<compile_context>
chip_gen: v7x
topology: tpu7x:2x2x1
jax: 0.10.0
libtpu: 0.0.40
codegen_flags: <defaults>
</compile_context>

<pallas_src>
import math
from functools import partial

import jax
import jax.numpy as jnp
from jax.experimental import pallas as pl
from jax.experimental.pallas import tpu as pltpu

LN_EPS = 1e-5  # nn.LayerNorm default


# ---------------------------------------------------------------------------
# RoPE tables: interleaved cos / signed-sin expanded to full model width, with
# the embedding scale folded in (the pair-swap itself is done in-kernel).
# ---------------------------------------------------------------------------
def rope_tables(seq_len, num_heads, head_dim, emb_scale):
    half = head_dim // 2
    theta = 1.0 / (10000.0 ** (jnp.arange(half, dtype=jnp.float32) * 2.0 / head_dim))
    ang = jnp.arange(seq_len, dtype=jnp.float32)[:, None] * theta[None, :]      # (S, half)
    cos_h = jnp.repeat(jnp.cos(ang), 2, axis=-1)                                 # (S, Dh)
    sin_h = jnp.repeat(jnp.sin(ang), 2, axis=-1)
    sign = jnp.tile(jnp.array([-1.0, 1.0], jnp.float32), (half,))                # -sin even, +sin odd
    sin_h = sin_h * sign[None, :]
    cos_f = jnp.tile(cos_h, (1, num_heads)) * emb_scale                          # (S, E)
    sin_s = jnp.tile(sin_h, (1, num_heads)) * emb_scale
    return cos_f, sin_s


# ---------------------------------------------------------------------------
# Fused kernel: one (batch, q-tile) grid point per step.
#   x <- RoPE(q) * emb_scale
#   repeat num_layers: pre-LN MHA (residual from normalized query) + pre-LN FFN
#   (residual from normalized input), identical shared weights.
# ---------------------------------------------------------------------------
def fused_kernel(q_ref, k_ref, kpm_ref, cos_q_ref, sin_q_ref, cos_k_ref, sin_k_ref,
                 ln1g_ref, ln1b_ref, wqp_ref, bqp_ref, wkv_ref, bkv_ref,
                 wo_ref, bo_ref, ln2g_ref, ln2b_ref, w1_ref, b1_ref, w2_ref, b2_ref,
                 o_ref, *, num_heads, head_dim, num_layers, attn_mask, kv_from_input):
    f32 = jnp.float32
    TQ, E = q_ref.shape
    Sk = kpm_ref.shape[1]
    H, Dh = num_heads, head_dim

    ln1g = ln1g_ref[...]; ln1b = ln1b_ref[...]
    ln2g = ln2g_ref[...]; ln2b = ln2b_ref[...]
    wqp = wqp_ref[...]; bqp = bqp_ref[...]        # (E, E) or (E, 3E) bf16 ; 1/sqrt(Dh) folded in Q part
    wo = wo_ref[...]; bo = bo_ref[...]            # (E, E) bf16 / (1, E) f32
    w1 = w1_ref[...]; b1 = b1_ref[...]
    w2 = w2_ref[...]; b2 = b2_ref[...]
    cdt = wqp.dtype                               # MXU operand dtype (bfloat16)

    def layernorm(x, g, b):
        mu = jnp.mean(x, axis=-1, keepdims=True)
        var = jnp.mean(jnp.square(x - mu), axis=-1, keepdims=True)
        return (x - mu) * jax.lax.rsqrt(var + LN_EPS) * g + b

    def rope(x, cos_t, sin_t):
        # swap adjacent (even, odd) lanes: two cyclic XLU rolls + a lane-parity select.
        lane = jax.lax.broadcasted_iota(jnp.int32, x.shape, 1)
        nxt = pltpu.roll(x, shift=x.shape[1] - 1, axis=1)   # out[:, i] = x[:, i + 1]
        prv = pltpu.roll(x, shift=1, axis=1)                # out[:, i] = x[:, i - 1]
        swapped = jnp.where(lane % 2 == 0, nxt, prv)
        return x * cos_t + swapped * sin_t                  # emb_scale already folded into the tables

    def split_heads(x2d):   # (S, E) -> (H, S, Dh): static lane slices, no matmul work
        return jnp.stack([x2d[:, h * Dh:(h + 1) * Dh] for h in range(H)], axis=0)

    def merge_heads(x3d):   # (H, S, Dh) -> (S, E): lane concatenation
        return jnp.concatenate([x3d[h] for h in range(H)], axis=-1)

    # --- RoPE + embedding scale on the query-stream tile --------------------------------
    x = rope(q_ref[...].astype(f32), cos_q_ref[...], sin_q_ref[...])             # (TQ, E) f32

    # --- additive attention mask (causal + key padding), shared by all heads/layers -----
    mask = kpm_ref[...].astype(f32)                                              # (1, Sk)
    if attn_mask:
        q0 = pl.program_id(1) * TQ                                               # global row offset
        row = q0 + jax.lax.broadcasted_iota(jnp.int32, (TQ, Sk), 0)
        col = jax.lax.broadcasted_iota(jnp.int32, (TQ, Sk), 1)
        mask = mask + jnp.where(col > row, jnp.float32(-1e30), jnp.float32(0.0)) # (TQ, Sk)
    mask = mask[None]                                                            # broadcast over H

    # --- K/V from the (layer-invariant) input key stream: computed once, kept resident --
    if kv_from_input:
        wkv = wkv_ref[...]; bkv = bkv_ref[...]                                   # (E, 2E) bf16
        k0 = rope(k_ref[...].astype(f32), cos_k_ref[...], sin_k_ref[...])
        kn = layernorm(k0, ln1g, ln1b).astype(cdt)                               # (Sk, E) bf16
        kv = jnp.dot(kn, wkv, preferred_element_type=f32) + bkv                  # (Sk, 2E) f32
        kh_c = split_heads(kv[:, :E].astype(cdt))                                # (H, Sk, Dh) bf16
        vh_c = split_heads(kv[:, E:].astype(cdt))

    def layer_body(xc):
        qn = layernorm(xc, ln1g, ln1b)                                           # (TQ, E) f32
        qn_c = qn.astype(cdt)                                                    # single bf16 cast / layer
        if kv_from_input:
            qp = jnp.dot(qn_c, wqp, preferred_element_type=f32) + bqp            # (TQ, E)
            kh, vh = kh_c, vh_c
        else:
            # fused QKV: one E-wide MXU matmul, keys/values = the evolving sequence itself
            qkv = jnp.dot(qn_c, wqp, preferred_element_type=f32) + bqp           # (TQ, 3E)
            qp = qkv[:, :E]
            kh = split_heads(qkv[:, E:2 * E].astype(cdt))
            vh = split_heads(qkv[:, 2 * E:].astype(cdt))
        qh = split_heads(qp.astype(cdt))                                         # (H, TQ, Dh)

        scores = jnp.einsum("hqd,hkd->hqk", qh, kh,
                            preferred_element_type=f32) + mask                   # (H, TQ, Sk) f32
        scores = scores - jnp.max(scores, axis=-1, keepdims=True)
        p = jnp.exp(scores)
        p = p * pl.reciprocal(jnp.sum(p, axis=-1, keepdims=True), approx=True)
        ctx = jnp.einsum("hqk,hkd->hqd", p.astype(cdt), vh,
                         preferred_element_type=f32)                             # (H, TQ, Dh)

        # head merge (lane concat) + one dense (E,E) matmul: head-sum happens inside the MXU
        attn_out = jnp.dot(merge_heads(ctx).astype(cdt), wo,
                           preferred_element_type=f32) + bo                      # (TQ, E)
        x1 = qn + attn_out                                                       # residual: normalized query

        x2n = layernorm(x1, ln2g, ln2b)
        h1 = jnp.maximum(
            jnp.dot(x2n.astype(cdt), w1, preferred_element_type=f32) + b1, 0.0)
        ff = jnp.dot(h1.astype(cdt), w2, preferred_element_type=f32) + b2
        return x2n + ff                                                          # residual: normalized input

    if num_layers <= 2:
        for _ in range(num_layers):
            x = layer_body(x)
    else:
        # shared weights -> loop-invariant body; fori_loop bounds live ranges / code size
        x = jax.lax.fori_loop(0, num_layers, lambda _, c: layer_body(c), x)

    o_ref[...] = x.astype(o_ref.dtype)


def _vmem_limit_bytes(tq, sk, e, f, h, const_arrays):
    w_bytes = sum(int(a.size) * a.dtype.itemsize for a in const_arrays)
    act_bytes = 4 * (2 * h * tq * sk            # f32 scores + probs
                     + tq * max(f, 3 * e)       # FFN hidden / fused QKV
                     + 4 * sk * e               # key-stream activations + K/V heads
                     + 8 * tq * e)              # residuals / LN / ctx
    est = 2 * w_bytes + 2 * act_bytes
    # clamp so the request stays legal on 64 MiB-VMEM v7x; raise per-generation for production.
    return int(min(56 * 2 ** 20, max(32 * 2 ** 20, est)))


# ---------------------------------------------------------------------------
# Full CrossModalTransformer forward (one fused pallas_call).
# ---------------------------------------------------------------------------
def crossmodal_forward(q_in, k_in, key_padding_mask, params, *,
                       num_heads, attn_mask, emb_scale, num_layers,
                       single_buffer_weights=True):
    B, Sq, E = q_in.shape
    H = num_heads
    Dh = E // H
    assert E % H == 0 and Dh % 2 == 0
    self_attn = k_in is None
    k_arr = q_in if self_attn else k_in
    Sk = k_arr.shape[1]
    # K/V are layer-invariant (computable once from the input key stream) iff cross-attention
    # or a single self-attention layer; only then is query tiling across the grid valid.
    kv_from_input = (not self_attn) or (num_layers == 1)

    cos_q, sin_q = rope_tables(Sq, H, Dh, emb_scale)
    if self_attn:
        cos_k, sin_k = cos_q, sin_q
    else:
        cos_k, sin_k = rope_tables(Sk, H, Dh, emb_scale)

    if key_padding_mask is None:
        kpm_add = jnp.zeros((B, 1, Sk), jnp.float32)
    else:
        kpm_add = jnp.where(key_padding_mask, jnp.float32(-1e30),
                            jnp.float32(0.0)).reshape(B, 1, Sk)

    # ---- wrapper-side weight prep (free): fused projections, bf16 cast, scale folding ----
    scale = 1.0 / math.sqrt(Dh)
    bf16 = jnp.bfloat16
    wq, bq = params["wq"], params["bq"]
    wk, bk = params["wk"], params["bk"]
    wv, bv = params["wv"], params["bv"]
    if kv_from_input:
        w_qp = (wq * scale).astype(bf16)                                          # (E, E)
        b_qp = (bq * scale).astype(jnp.float32)
    else:
        w_qp = jnp.concatenate([wq * scale, wk, wv], axis=1).astype(bf16)         # (E, 3E) fused QKV
        b_qp = jnp.concatenate([bq * scale, bk, bv], axis=1).astype(jnp.float32)
    w_kv = jnp.concatenate([wk, wv], axis=1).astype(bf16)                         # (E, 2E) fused KV
    b_kv = jnp.concatenate([bk, bv], axis=1).astype(jnp.float32)

    wo = params["wo"].astype(bf16); bo = params["bo"].astype(jnp.float32)
    w1 = params["w1"].astype(bf16); b1 = params["b1"].astype(jnp.float32)
    w2 = params["w2"].astype(bf16); b2 = params["b2"].astype(jnp.float32)
    ln1g = params["ln1_g"].astype(jnp.float32); ln1b = params["ln1_b"].astype(jnp.float32)
    ln2g = params["ln2_g"].astype(jnp.float32); ln2b = params["ln2_b"].astype(jnp.float32)

    weights = [ln1g, ln1b, w_qp, b_qp, w_kv, b_kv, wo, bo, ln2g, ln2b, w1, b1, w2, b2]

    # ---- query tiling (only when K/V come from the layer-invariant input key stream) ----
    TQ = Sq
    if kv_from_input:
        for cand in (512, 256, 128):
            if Sq > cand and Sq % cand == 0:
                TQ = cand
                break
    grid = (B, Sq // TQ)

    def const_spec(a):
        z = (0,) * a.ndim
        im = lambda b, t, _z=z: _z
        if single_buffer_weights:
            # constant-index operands: single-buffer to halve their VMEM footprint
            return pl.BlockSpec(a.shape, im, pipeline_mode=pl.Buffered(1))
        return pl.BlockSpec(a.shape, im)

    in_specs = ([pl.BlockSpec((None, TQ, E), lambda b, t: (b, t, 0)),   # q tile
                 pl.BlockSpec((None, Sk, E), lambda b, t: (b, 0, 0)),   # key stream (full)
                 pl.BlockSpec((None, 1, Sk), lambda b, t: (b, 0, 0)),   # key-padding mask (additive)
                 pl.BlockSpec((TQ, E), lambda b, t: (t, 0)),            # cos_q tile
                 pl.BlockSpec((TQ, E), lambda b, t: (t, 0))]            # sin_q tile
                + [const_spec(t) for t in (cos_k, sin_k)]
                + [const_spec(w) for w in weights])

    kernel = partial(fused_kernel, num_heads=H, head_dim=Dh, num_layers=num_layers,
                     attn_mask=attn_mask, kv_from_input=kv_from_input)

    ffn_dims = w1.shape[1]
    vmem_limit = _vmem_limit_bytes(TQ, Sk, E, ffn_dims, H,
                                   weights + [cos_q, sin_q, cos_k, sin_k])

    return pl.pallas_call(
        kernel,
        out_shape=jax.ShapeDtypeStruct((B, Sq, E), q_in.dtype),
        grid=grid,
        in_specs=in_specs,
        out_specs=pl.BlockSpec((None, TQ, E), lambda b, t: (b, t, 0)),
        compiler_params=pltpu.CompilerParams(
            dimension_semantics=("parallel", "parallel"),
            vmem_limit_bytes=vmem_limit),
    )(q_in, k_arr, kpm_add, cos_q, sin_q, cos_k, sin_k, *weights)


# ---------------------------------------------------------------------------
# Deterministic parameter init (shapes implied by the PyTorch __init__).
# Linear weights stored pre-transposed: y = x @ W + b.
# ---------------------------------------------------------------------------
def init_params(key, model_dims, ffn_dims):
    ks = jax.random.split(key, 6)

    def lin(k, fan_in, fan_out):
        bound = 1.0 / math.sqrt(fan_in)
        kw, kb = jax.random.split(k)
        w = jax.random.uniform(kw, (fan_in, fan_out), jnp.float32, -bound, bound)
        b = jax.random.uniform(kb, (1, fan_out), jnp.float32, -bound, bound)
        return w, b

    wq, bq = lin(ks[0], model_dims, model_dims)
    wk, bk = lin(ks[1], model_dims, model_dims)
    wv, bv = lin(ks[2], model_dims, model_dims)
    wo, bo = lin(ks[3], model_dims, model_dims)
    w1, b1 = lin(ks[4], model_dims, ffn_dims)
    w2, b2 = lin(ks[5], ffn_dims, model_dims)
    ones = jnp.ones((1, model_dims), jnp.float32)
    zeros = jnp.zeros((1, model_dims), jnp.float32)
    return dict(ln1_g=ones, ln1_b=zeros, wq=wq, bq=bq, wk=wk, bk=bk, wv=wv, bv=bv,
                wo=wo, bo=bo, ln2_g=ones, ln2_b=zeros, w1=w1, b1=b1, w2=w2, b2=b2)


# ---------------------------------------------------------------------------
# Pure-JAX f32 reference (mirrors the PyTorch forward) for correctness checking.
# ---------------------------------------------------------------------------
def reference_forward(q_in, k_in, key_padding_mask, p, *,
                      num_heads, attn_mask, emb_scale, num_layers):
    def rope(x):
        B, S, E = x.shape
        Dh = E // num_heads
        half = Dh // 2
        theta = 1.0 / (10000.0 ** (jnp.arange(half, dtype=jnp.float32) * 2.0 / Dh))
        ang = jnp.arange(S, dtype=jnp.float32)[:, None] * theta[None, :]
        cos = jnp.cos(ang)[None, :, None, :]
        sin = jnp.sin(ang)[None, :, None, :]
        xr = x.reshape(B, S, num_heads, half, 2)
        o0 = xr[..., 0] * cos - xr[..., 1] * sin
        o1 = xr[..., 1] * cos + xr[..., 0] * sin
        return jnp.stack([o0, o1], axis=-1).reshape(B, S, E)

    def ln(x, g, b):
        mu = x.mean(-1, keepdims=True)
        var = ((x - mu) ** 2).mean(-1, keepdims=True)
        return (x - mu) / jnp.sqrt(var + LN_EPS) * g + b

    q = rope(q_in) * emb_scale
    self_attn = k_in is None
    k = None if self_attn else rope(k_in) * emb_scale

    B, Sq, E = q.shape
    Dh = E // num_heads
    for _ in range(num_layers):
        key_seq = q if self_attn else k
        Sk = key_seq.shape[1]
        qn = ln(q, p["ln1_g"], p["ln1_b"])
        kn = ln(key_seq, p["ln1_g"], p["ln1_b"])
        qh = (qn @ p["wq"] + p["bq"]).reshape(B, Sq, num_heads, Dh)
        kh = (kn @ p["wk"] + p["bk"]).reshape(B, Sk, num_heads, Dh)
        vh = (kn @ p["wv"] + p["bv"]).reshape(B, Sk, num_heads, Dh)
        scores = jnp.einsum("bqhd,bkhd->bhqk", qh, kh) / math.sqrt(Dh)
        if attn_mask:
            row = jnp.arange(Sq)[:, None]
            col = jnp.arange(Sk)[None, :]
            scores = scores + jnp.where(col > row, -1e30, 0.0)
        if key_padding_mask is not None:
            scores = scores + jnp.where(key_padding_mask, -1e30, 0.0)[:, None, None, :]
        probs = jax.nn.softmax(scores, axis=-1)
        ctx = jnp.einsum("bhqk,bkhd->bqhd", probs, vh).reshape(B, Sq, E)
        attn_out = ctx @ p["wo"] + p["bo"]
        x1 = qn + attn_out
        x2n = ln(x1, p["ln2_g"], p["ln2_b"])
        ff = jax.nn.relu(x2n @ p["w1"] + p["b1"]) @ p["w2"] + p["b2"]
        q = x2n + ff
    return q


if __name__ == "__main__":
    # Small config consistent with the module: model_dims=32, num_heads=4, num_layers=2
    B, Sq, Sk = 2, 8, 8
    model_dims, num_heads, num_layers = 32, 4, 2
    attn_mask = True
    emb_scale = math.sqrt(model_dims)   # scale_embedding=True

    root = jax.random.PRNGKey(0)
    kq, kk, kp = jax.random.split(root, 3)
    q_in = jax.random.normal(kq, (B, Sq, model_dims), jnp.float32)
    k_in = jax.random.normal(kk, (B, Sk, model_dims), jnp.float32)
    params = init_params(kp, model_dims, model_dims * 4)

    cfg = dict(num_heads=num_heads, attn_mask=attn_mask,
               emb_scale=emb_scale, num_layers=num_layers)

    def run(q, k):
        try:
            fwd = jax.jit(partial(crossmodal_forward, single_buffer_weights=True, **cfg))
            return jax.block_until_ready(fwd(q, k, None, params))
        except Exception:
            # fallback: this JAX build rejects pl.Buffered(1) single-buffering
            fwd = jax.jit(partial(crossmodal_forward, single_buffer_weights=False, **cfg))
            return jax.block_until_ready(fwd(q, k, None, params))

    # cross-modal attention (key stream provided) -> layer-invariant K/V path
    out_cross = run(q_in, k_in)
    ref_cross = reference_forward(q_in, k_in, None, params, **cfg)
    # self-attention (key=None) -> fused-QKV path
    out_self = run(q_in, None)
    ref_self = reference_forward(q_in, None, None, params, **cfg)

    assert out_cross.shape == (B, Sq, model_dims)
    assert out_self.shape == (B, Sq, model_dims)
    # Tolerance sized for bf16 MXU operands (f32 accumulation) vs. the pure-f32 reference.
    ok = (jnp.allclose(out_cross, ref_cross, atol=5e-2, rtol=5e-2)
          and jnp.allclose(out_self, ref_self, atol=5e-2, rtol=5e-2))
    if not ok:
        raise AssertionError("Pallas output does not match JAX reference")
    print("KERNEL_OK")
</pallas_src>

<mosaic_0001>
module attributes {stable_mosaic.version = 11 : i64} {
  func.func @fused_kernel(%arg0: i32, %arg1: i32, %arg2: memref<1x8x32xf32, #tpu.memory_space<vmem>>, %arg3: memref<1x8x32xf32, #tpu.memory_space<vmem>>, %arg4: memref<1x1x8xf32, #tpu.memory_space<vmem>>, %arg5: memref<8x32xf32, #tpu.memory_space<vmem>>, %arg6: memref<8x32xf32, #tpu.memory_space<vmem>>, %arg7: memref<8x32xf32, #tpu.memory_space<vmem>>, %arg8: memref<8x32xf32, #tpu.memory_space<vmem>>, %arg9: memref<1x32xf32, #tpu.memory_space<vmem>>, %arg10: memref<1x32xf32, #tpu.memory_space<vmem>>, %arg11: memref<32x32xbf16, #tpu.memory_space<vmem>>, %arg12: memref<1x32xf32, #tpu.memory_space<vmem>>, %arg13: memref<32x64xbf16, #tpu.memory_space<vmem>>, %arg14: memref<1x64xf32, #tpu.memory_space<vmem>>, %arg15: memref<32x32xbf16, #tpu.memory_space<vmem>>, %arg16: memref<1x32xf32, #tpu.memory_space<vmem>>, %arg17: memref<1x32xf32, #tpu.memory_space<vmem>>, %arg18: memref<1x32xf32, #tpu.memory_space<vmem>>, %arg19: memref<32x128xbf16, #tpu.memory_space<vmem>>, %arg20: memref<1x128xf32, #tpu.memory_space<vmem>>, %arg21: memref<128x32xbf16, #tpu.memory_space<vmem>>, %arg22: memref<1x32xf32, #tpu.memory_space<vmem>>, %arg23: memref<1x8x32xf32, #tpu.memory_space<vmem>>) attributes {dimension_semantics = [#tpu.dimension_semantics<parallel>, #tpu.dimension_semantics<parallel>], iteration_bounds = array<i64: 2, 1>, scalar_prefetch = 0 : i64, scratch_operands = 0 : i64, tpu.core_type = #tpu.core_type<tc>, window_params = [{transform_indices = @transform_0, window_bounds = array<i64: 1, 8, 32>}, {transform_indices = @transform_1, window_bounds = array<i64: 1, 8, 32>}, {transform_indices = @transform_2, window_bounds = array<i64: 1, 1, 8>}, {transform_indices = @transform_3, window_bounds = array<i64: 8, 32>}, {transform_indices = @transform_4, window_bounds = array<i64: 8, 32>}, {pipeline_mode = #tpu.pipeline_mode<synchronous>, transform_indices = @transform_5, window_bounds = array<i64: 8, 32>}, {pipeline_mode = #tpu.pipeline_mode<synchronous>, transform_indices = @transform_6, window_bounds = array<i64: 8, 32>}, {pipeline_mode = #tpu.pipeline_mode<synchronous>, transform_indices = @transform_7, window_bounds = array<i64: 1, 32>}, {pipeline_mode = #tpu.pipeline_mode<synchronous>, transform_indices = @transform_8, window_bounds = array<i64: 1, 32>}, {pipeline_mode = #tpu.pipeline_mode<synchronous>, transform_indices = @transform_9, window_bounds = array<i64: 32, 32>}, {pipeline_mode = #tpu.pipeline_mode<synchronous>, transform_indices = @transform_10, window_bounds = array<i64: 1, 32>}, {pipeline_mode = #tpu.pipeline_mode<synchronous>, transform_indices = @transform_11, window_bounds = array<i64: 32, 64>}, {pipeline_mode = #tpu.pipeline_mode<synchronous>, transform_indices = @transform_12, window_bounds = array<i64: 1, 64>}, {pipeline_mode = #tpu.pipeline_mode<synchronous>, transform_indices = @transform_13, window_bounds = array<i64: 32, 32>}, {pipeline_mode = #tpu.pipeline_mode<synchronous>, transform_indices = @transform_14, window_bounds = array<i64: 1, 32>}, {pipeline_mode = #tpu.pipeline_mode<synchronous>, transform_indices = @transform_15, window_bounds = array<i64: 1, 32>}, {pipeline_mode = #tpu.pipeline_mode<synchronous>, transform_indices = @transform_16, window_bounds = array<i64: 1, 32>}, {pipeline_mode = #tpu.pipeline_mode<synchronous>, transform_indices = @transform_17, window_bounds = array<i64: 32, 128>}, {pipeline_mode = #tpu.pipeline_mode<synchronous>, transform_indices = @transform_18, window_bounds = array<i64: 1, 128>}, {pipeline_mode = #tpu.pipeline_mode<synchronous>, transform_indices = @transform_19, window_bounds = array<i64: 128, 32>}, {pipeline_mode = #tpu.pipeline_mode<synchronous>, transform_indices = @transform_20, window_bounds = array<i64: 1, 32>}, {transform_indices = @transform_21, window_bounds = array<i64: 1, 8, 32>}]} {
    %c0 = arith.constant 0 : index
    %c0_0 = arith.constant 0 : index
    %0 = vector.load %arg9[%c0, %c0_0] : memref<1x32xf32, #tpu.memory_space<vmem>>, vector<1x32xf32>
    %c0_1 = arith.constant 0 : index
    %c0_2 = arith.constant 0 : index
    %1 = vector.load %arg10[%c0_1, %c0_2] : memref<1x32xf32, #tpu.memory_space<vmem>>, vector<1x32xf32>
    %c0_3 = arith.constant 0 : index
    %c0_4 = arith.constant 0 : index
    %2 = vector.load %arg17[%c0_3, %c0_4] : memref<1x32xf32, #tpu.memory_space<vmem>>, vector<1x32xf32>
    %c0_5 = arith.constant 0 : index
    %c0_6 = arith.constant 0 : index
    %3 = vector.load %arg18[%c0_5, %c0_6] : memref<1x32xf32, #tpu.memory_space<vmem>>, vector<1x32xf32>
    %c0_7 = arith.constant 0 : index
    %c0_8 = arith.constant 0 : index
    %4 = vector.load %arg11[%c0_7, %c0_8] : memref<32x32xbf16, #tpu.memory_space<vmem>>, vector<32x32xbf16>
    %c0_9 = arith.constant 0 : index
    %c0_10 = arith.constant 0 : index
    %5 = vector.load %arg12[%c0_9, %c0_10] : memref<1x32xf32, #tpu.memory_space<vmem>>, vector<1x32xf32>
    %c0_11 = arith.constant 0 : index
    %c0_12 = arith.constant 0 : index
    %6 = vector.load %arg15[%c0_11, %c0_12] : memref<32x32xbf16, #tpu.memory_space<vmem>>, vector<32x32xbf16>
    %c0_13 = arith.constant 0 : index
    %c0_14 = arith.constant 0 : index
    %7 = vector.load %arg16[%c0_13, %c0_14] : memref<1x32xf32, #tpu.memory_space<vmem>>, vector<1x32xf32>
    %c0_15 = arith.constant 0 : index
    %c0_16 = arith.constant 0 : index
    %8 = vector.load %arg19[%c0_15, %c0_16] : memref<32x128xbf16, #tpu.memory_space<vmem>>, vector<32x128xbf16>
    %c0_17 = arith.constant 0 : index
    %c0_18 = arith.constant 0 : index
    %9 = vector.load %arg20[%c0_17, %c0_18] : memref<1x128xf32, #tpu.memory_space<vmem>>, vector<1x128xf32>
    %c0_19 = arith.constant 0 : index
    %c0_20 = arith.constant 0 : index
    %10 = vector.load %arg21[%c0_19, %c0_20] : memref<128x32xbf16, #tpu.memory_space<vmem>>, vector<128x32xbf16>
    %c0_21 = arith.constant 0 : index
    %c0_22 = arith.constant 0 : index
    %11 = vector.load %arg22[%c0_21, %c0_22] : memref<1x32xf32, #tpu.memory_space<vmem>>, vector<1x32xf32>
    %c0_23 = arith.constant 0 : index
    %c0_24 = arith.constant 0 : index
    %c0_25 = arith.constant 0 : index
    %12 = vector.load %arg2[%c0_23, %c0_24, %c0_25] : memref<1x8x32xf32, #tpu.memory_space<vmem>>, vector<1x8x32xf32>
    %13 = vector.shape_cast %12 : vector<1x8x32xf32> to vector<8x32xf32>
    %c0_26 = arith.constant 0 : index
    %c0_27 = arith.constant 0 : index
    %14 = vector.load %arg5[%c0_26, %c0_27] : memref<8x32xf32, #tpu.memory_space<vmem>>, vector<8x32xf32>
    %c0_28 = arith.constant 0 : index
    %c0_29 = arith.constant 0 : index
    %15 = vector.load %arg6[%c0_28, %c0_29] : memref<8x32xf32, #tpu.memory_space<vmem>>, vector<8x32xf32>
    %16 = tpu.iota {dimensions = array<i32: 1>} : vector<8x32xi32>
    %c31_i32 = arith.constant 31 : i32
    %17 = tpu.dynamic_rotate %13 by %c31_i32 dim 1 : vector<8x32xf32>, i32 -> vector<8x32xf32>
    %c1_i32 = arith.constant 1 : i32
    %18 = tpu.dynamic_rotate %13 by %c1_i32 dim 1 : vector<8x32xf32>, i32 -> vector<8x32xf32>
    %c2_i32 = arith.constant 2 : i32
    %c0_i32 = arith.constant 0 : i32
    %19 = arith.cmpi eq, %c2_i32, %c0_i32 : i32
    %c1_i32_30 = arith.constant 1 : i32
    %20 = arith.select %19, %c1_i32_30, %c2_i32 : i32
    %21 = vector.broadcast %20 : i32 to vector<8x32xi32>
    %22 = arith.remsi %16, %21 : vector<8x32xi32>
    %c0_i32_31 = arith.constant 0 : i32
    %23 = vector.broadcast %c0_i32_31 : i32 to vector<8x32xi32>
    %24 = arith.cmpi ne, %22, %23 : vector<8x32xi32>
    %c0_i32_32 = arith.constant 0 : i32
    %25 = vector.broadcast %c0_i32_32 : i32 to vector<8x32xi32>
    %26 = arith.cmpi slt, %22, %25 : vector<8x32xi32>
    %c0_i32_33 = arith.constant 0 : i32
    %27 = arith.cmpi slt, %20, %c0_i32_33 : i32
    %28 = vector.broadcast %27 : i1 to vector<8x32xi1>
    %29 = vector.broadcast %28 : vector<8x32xi1> to vector<8x32xi1>
    %30 = arith.xori %26, %29 : vector<8x32xi1>
    %31 = arith.andi %30, %24 : vector<8x32xi1>
    %32 = vector.broadcast %20 : i32 to vector<8x32xi32>
    %33 = arith.addi %22, %32 : vector<8x32xi32>
    %34 = arith.select %31, %33, %22 : vector<8x32xi1>, vector<8x32xi32>
    %c0_i32_34 = arith.constant 0 : i32
    %35 = vector.broadcast %c0_i32_34 : i32 to vector<8x32xi32>
    %36 = arith.cmpi eq, %34, %35 : vector<8x32xi32>
    %37 = arith.select %36, %17, %18 : vector<8x32xi1>, vector<8x32xf32>
    %38 = arith.mulf %13, %14 : vector<8x32xf32>
    %39 = arith.mulf %37, %15 : vector<8x32xf32>
    %40 = arith.addf %38, %39 : vector<8x32xf32>
    %c0_35 = arith.constant 0 : index
    %c0_36 = arith.constant 0 : index
    %c0_37 = arith.constant 0 : index
    %41 = vector.load %arg4[%c0_35, %c0_36, %c0_37] : memref<1x1x8xf32, #tpu.memory_space<vmem>>, vector<1x1x8xf32>
    %42 = vector.shape_cast %41 : vector<1x1x8xf32> to vector<1x8xf32>
    %c8_i32 = arith.constant 8 : i32
    %43 = arith.muli %arg1, %c8_i32 : i32
    %44 = tpu.iota {dimensions = array<i32: 0>} : vector<8x8xi32>
    %45 = vector.broadcast %43 : i32 to vector<8x8xi32>
    %46 = arith.addi %45, %44 : vector<8x8xi32>
    %47 = tpu.iota {dimensions = array<i32: 1>} : vector<8x8xi32>
    %48 = arith.cmpi sgt, %47, %46 : vector<8x8xi32>
    %cst = arith.constant -1.000000e+30 : f32
    %cst_38 = arith.constant 0.000000e+00 : f32
    %49 = vector.broadcast %cst : f32 to vector<8x8xf32>
    %50 = vector.broadcast %cst_38 : f32 to vector<8x8xf32>
    %51 = arith.select %48, %49, %50 : vector<8x8xi1>, vector<8x8xf32>
    %52 = vector.broadcast %42 : vector<1x8xf32> to vector<8x8xf32>
    %53 = arith.addf %52, %51 : vector<8x8xf32>
    %54 = vector.shape_cast %53 : vector<8x8xf32> to vector<1x8x8xf32>
    %c0_39 = arith.constant 0 : index
    %c0_40 = arith.constant 0 : index
    %55 = vector.load %arg13[%c0_39, %c0_40] : memref<32x64xbf16, #tpu.memory_space<vmem>>, vector<32x64xbf16>
    %c0_41 = arith.constant 0 : index
    %c0_42 = arith.constant 0 : index
    %56 = vector.load %arg14[%c0_41, %c0_42] : memref<1x64xf32, #tpu.memory_space<vmem>>, vector<1x64xf32>
    %c0_43 = arith.constant 0 : index
    %c0_44 = arith.constant 0 : index
    %c0_45 = arith.constant 0 : index
    %57 = vector.load %arg3[%c0_43, %c0_44, %c0_45] : memref<1x8x32xf32, #tpu.memory_space<vmem>>, vector<1x8x32xf32>
    %58 = vector.shape_cast %57 : vector<1x8x32xf32> to vector<8x32xf32>
    %c0_46 = arith.constant 0 : index
    %c0_47 = arith.constant 0 : index
    %59 = vector.load %arg7[%c0_46, %c0_47] : memref<8x32xf32, #tpu.memory_space<vmem>>, vector<8x32xf32>
    %c0_48 = arith.constant 0 : index
    %c0_49 = arith.constant 0 : index
    %60 = vector.load %arg8[%c0_48, %c0_49] : memref<8x32xf32, #tpu.memory_space<vmem>>, vector<8x32xf32>
    %61 = tpu.iota {dimensions = array<i32: 1>} : vector<8x32xi32>
    %c31_i32_50 = arith.constant 31 : i32
    %62 = tpu.dynamic_rotate %58 by %c31_i32_50 dim 1 : vector<8x32xf32>, i32 -> vector<8x32xf32>
    %c1_i32_51 = arith.constant 1 : i32
    %63 = tpu.dynamic_rotate %58 by %c1_i32_51 dim 1 : vector<8x32xf32>, i32 -> vector<8x32xf32>
    %c2_i32_52 = arith.constant 2 : i32
    %c0_i32_53 = arith.constant 0 : i32
    %64 = arith.cmpi eq, %c2_i32_52, %c0_i32_53 : i32
    %c1_i32_54 = arith.constant 1 : i32
    %65 = arith.select %64, %c1_i32_54, %c2_i32_52 : i32
    %66 = vector.broadcast %65 : i32 to vector<8x32xi32>
    %67 = arith.remsi %61, %66 : vector<8x32xi32>
    %c0_i32_55 = arith.constant 0 : i32
    %68 = vector.broadcast %c0_i32_55 : i32 to vector<8x32xi32>
    %69 = arith.cmpi ne, %67, %68 : vector<8x32xi32>
    %c0_i32_56 = arith.constant 0 : i32
    %70 = vector.broadcast %c0_i32_56 : i32 to vector<8x32xi32>
    %71 = arith.cmpi slt, %67, %70 : vector<8x32xi32>
    %c0_i32_57 = arith.constant 0 : i32
    %72 = arith.cmpi slt, %65, %c0_i32_57 : i32
    %73 = vector.broadcast %72 : i1 to vector<8x32xi1>
    %74 = vector.broadcast %73 : vector<8x32xi1> to vector<8x32xi1>
    %75 = arith.xori %71, %74 : vector<8x32xi1>
    %76 = arith.andi %75, %69 : vector<8x32xi1>
    %77 = vector.broadcast %65 : i32 to vector<8x32xi32>
    %78 = arith.addi %67, %77 : vector<8x32xi32>
    %79 = arith.select %76, %78, %67 : vector<8x32xi1>, vector<8x32xi32>
    %c0_i32_58 = arith.constant 0 : i32
    %80 = vector.broadcast %c0_i32_58 : i32 to vector<8x32xi32>
    %81 = arith.cmpi eq, %79, %80 : vector<8x32xi32>
    %82 = arith.select %81, %62, %63 : vector<8x32xi1>, vector<8x32xf32>
    %83 = arith.mulf %58, %59 : vector<8x32xf32>
    %84 = arith.mulf %82, %60 : vector<8x32xf32>
    %85 = arith.addf %83, %84 : vector<8x32xf32>
    %cst_59 = arith.constant dense<0.000000e+00> : vector<8xf32>
    %86 = vector.multi_reduction <add>, %85, %cst_59 [1] : vector<8x32xf32> to vector<8xf32>
    %87 = vector.shape_cast %86 : vector<8xf32> to vector<8x1xf32>
    %cst_60 = arith.constant 3.200000e+01 : f32
    %88 = vector.broadcast %cst_60 : f32 to vector<8x1xf32>
    %89 = arith.divf %87, %88 : vector<8x1xf32>
    %90 = vector.broadcast %89 : vector<8x1xf32> to vector<8x32xf32>
    %91 = arith.subf %85, %90 : vector<8x32xf32>
    %92 = arith.mulf %91, %91 : vector<8x32xf32>
    %cst_61 = arith.constant dense<0.000000e+00> : vector<8xf32>
    %93 = vector.multi_reduction <add>, %92, %cst_61 [1] : vector<8x32xf32> to vector<8xf32>
    %94 = vector.shape_cast %93 : vector<8xf32> to vector<8x1xf32>
    %cst_62 = arith.constant 3.200000e+01 : f32
    %95 = vector.broadcast %cst_62 : f32 to vector<8x1xf32>
    %96 = arith.divf %94, %95 : vector<8x1xf32>
    %97 = vector.broadcast %89 : vector<8x1xf32> to vector<8x32xf32>
    %98 = arith.subf %85, %97 : vector<8x32xf32>
    %cst_63 = arith.constant 9.99999974E-6 : f32
    %99 = vector.broadcast %cst_63 : f32 to vector<8x1xf32>
    %100 = arith.addf %96, %99 : vector<8x1xf32>
    %101 = math.rsqrt %100 : vector<8x1xf32>
    %102 = vector.broadcast %101 : vector<8x1xf32> to vector<8x32xf32>
    %103 = arith.mulf %98, %102 : vector<8x32xf32>
    %104 = vector.broadcast %0 : vector<1x32xf32> to vector<8x32xf32>
    %105 = arith.mulf %103, %104 : vector<8x32xf32>
    %106 = vector.broadcast %1 : vector<1x32xf32> to vector<8x32xf32>
    %107 = arith.addf %105, %106 : vector<8x32xf32>
    %108 = arith.truncf %107 : vector<8x32xf32> to vector<8x32xbf16>
    %cst_64 = arith.constant dense<0.000000e+00> : vector<8x64xf32>
    %109 = tpu.matmul %108, %55, %cst_64 {dimension_numbers = #tpu.dot_dimension_numbers<[1], [0], [0], [1], [0, 0, 1, 1], [], []>} : vector<8x32xbf16>, vector<32x64xbf16>, vector<8x64xf32> -> vector<8x64xf32>
    %110 = vector.broadcast %56 : vector<1x64xf32> to vector<8x64xf32>
    %111 = arith.addf %109, %110 : vector<8x64xf32>
    %112 = vector.extract_strided_slice %111 {offsets = [0, 0], sizes = [8, 32], strides = [1, 1]} : vector<8x64xf32> to vector<8x32xf32>
    %113 = arith.truncf %112 : vector<8x32xf32> to vector<8x32xbf16>
    %114 = vector.extract_strided_slice %113 {offsets = [0, 0], sizes = [8, 8], strides = [1, 1]} : vector<8x32xbf16> to vector<8x8xbf16>
    %115 = vector.extract_strided_slice %113 {offsets = [0, 8], sizes = [8, 8], strides = [1, 1]} : vector<8x32xbf16> to vector<8x8xbf16>
    %116 = vector.extract_strided_slice %113 {offsets = [0, 16], sizes = [8, 8], strides = [1, 1]} : vector<8x32xbf16> to vector<8x8xbf16>
    %117 = vector.extract_strided_slice %113 {offsets = [0, 24], sizes = [8, 8], strides = [1, 1]} : vector<8x32xbf16> to vector<8x8xbf16>
    %118 = vector.shape_cast %114 : vector<8x8xbf16> to vector<1x8x8xbf16>
    %119 = vector.shape_cast %115 : vector<8x8xbf16> to vector<1x8x8xbf16>
    %120 = vector.shape_cast %116 : vector<8x8xbf16> to vector<1x8x8xbf16>
    %121 = vector.shape_cast %117 : vector<8x8xbf16> to vector<1x8x8xbf16>
    %122 = tpu.concatenate %118, %119, %120, %121 in 0 : vector<1x8x8xbf16>, vector<1x8x8xbf16>, vector<1x8x8xbf16>, vector<1x8x8xbf16> -> vector<4x8x8xbf16>
    %123 = vector.extract_strided_slice %111 {offsets = [0, 32], sizes = [8, 32], strides = [1, 1]} : vector<8x64xf32> to vector<8x32xf32>
    %124 = arith.truncf %123 : vector<8x32xf32> to vector<8x32xbf16>
    %125 = vector.extract_strided_slice %124 {offsets = [0, 0], sizes = [8, 8], strides = [1, 1]} : vector<8x32xbf16> to vector<8x8xbf16>
    %126 = vector.extract_strided_slice %124 {offsets = [0, 8], sizes = [8, 8], strides = [1, 1]} : vector<8x32xbf16> to vector<8x8xbf16>
    %127 = vector.extract_strided_slice %124 {offsets = [0, 16], sizes = [8, 8], strides = [1, 1]} : vector<8x32xbf16> to vector<8x8xbf16>
    %128 = vector.extract_strided_slice %124 {offsets = [0, 24], sizes = [8, 8], strides = [1, 1]} : vector<8x32xbf16> to vector<8x8xbf16>
    %129 = vector.shape_cast %125 : vector<8x8xbf16> to vector<1x8x8xbf16>
    %130 = vector.shape_cast %126 : vector<8x8xbf16> to vector<1x8x8xbf16>
    %131 = vector.shape_cast %127 : vector<8x8xbf16> to vector<1x8x8xbf16>
    %132 = vector.shape_cast %128 : vector<8x8xbf16> to vector<1x8x8xbf16>
    %133 = tpu.concatenate %129, %130, %131, %132 in 0 : vector<1x8x8xbf16>, vector<1x8x8xbf16>, vector<1x8x8xbf16>, vector<1x8x8xbf16> -> vector<4x8x8xbf16>
    %cst_65 = arith.constant dense<0.000000e+00> : vector<8xf32>
    %134 = vector.multi_reduction <add>, %40, %cst_65 [1] : vector<8x32xf32> to vector<8xf32>
    %135 = vector.shape_cast %134 : vector<8xf32> to vector<8x1xf32>
    %cst_66 = arith.constant 3.200000e+01 : f32
    %136 = vector.broadcast %cst_66 : f32 to vector<8x1xf32>
    %137 = arith.divf %135, %136 : vector<8x1xf32>
    %138 = vector.broadcast %137 : vector<8x1xf32> to vector<8x32xf32>
    %139 = arith.subf %40, %138 : vector<8x32xf32>
    %140 = arith.mulf %139, %139 : vector<8x32xf32>
    %cst_67 = arith.constant dense<0.000000e+00> : vector<8xf32>
    %141 = vector.multi_reduction <add>, %140, %cst_67 [1] : vector<8x32xf32> to vector<8xf32>
    %142 = vector.shape_cast %141 : vector<8xf32> to vector<8x1xf32>
    %cst_68 = arith.constant 3.200000e+01 : f32
    %143 = vector.broadcast %cst_68 : f32 to vector<8x1xf32>
    %144 = arith.divf %142, %143 : vector<8x1xf32>
    %145 = vector.broadcast %137 : vector<8x1xf32> to vector<8x32xf32>
    %146 = arith.subf %40, %145 : vector<8x32xf32>
    %cst_69 = arith.constant 9.99999974E-6 : f32
    %147 = vector.broadcast %cst_69 : f32 to vector<8x1xf32>
    %148 = arith.addf %144, %147 : vector<8x1xf32>
    %149 = math.rsqrt %148 : vector<8x1xf32>
    %150 = vector.broadcast %149 : vector<8x1xf32> to vector<8x32xf32>
    %151 = arith.mulf %146, %150 : vector<8x32xf32>
    %152 = vector.broadcast %0 : vector<1x32xf32> to vector<8x32xf32>
    %153 = arith.mulf %151, %152 : vector<8x32xf32>
    %154 = vector.broadcast %1 : vector<1x32xf32> to vector<8x32xf32>
    %155 = arith.addf %153, %154 : vector<8x32xf32>
    %156 = arith.truncf %155 : vector<8x32xf32> to vector<8x32xbf16>
    %cst_70 = arith.constant dense<0.000000e+00> : vector<8x32xf32>
    %157 = tpu.matmul %156, %4, %cst_70 {dimension_numbers = #tpu.dot_dimension_numbers<[1], [0], [0], [1], [0, 0, 1, 1], [], []>} : vector<8x32xbf16>, vector<32x32xbf16>, vector<8x32xf32> -> vector<8x32xf32>
    %158 = vector.broadcast %5 : vector<1x32xf32> to vector<8x32xf32>
    %159 = arith.addf %157, %158 : vector<8x32xf32>
    %160 = arith.truncf %159 : vector<8x32xf32> to vector<8x32xbf16>
    %161 = vector.extract_strided_slice %160 {offsets = [0, 0], sizes = [8, 8], strides = [1, 1]} : vector<8x32xbf16> to vector<8x8xbf16>
    %162 = vector.extract_strided_slice %160 {offsets = [0, 8], sizes = [8, 8], strides = [1, 1]} : vector<8x32xbf16> to vector<8x8xbf16>
    %163 = vector.extract_strided_slice %160 {offsets = [0, 16], sizes = [8, 8], strides = [1, 1]} : vector<8x32xbf16> to vector<8x8xbf16>
    %164 = vector.extract_strided_slice %160 {offsets = [0, 24], sizes = [8, 8], strides = [1, 1]} : vector<8x32xbf16> to vector<8x8xbf16>
    %165 = vector.shape_cast %161 : vector<8x8xbf16> to vector<1x8x8xbf16>
    %166 = vector.shape_cast %162 : vector<8x8xbf16> to vector<1x8x8xbf16>
    %167 = vector.shape_cast %163 : vector<8x8xbf16> to vector<1x8x8xbf16>
    %168 = vector.shape_cast %164 : vector<8x8xbf16> to vector<1x8x8xbf16>
    %169 = tpu.concatenate %165, %166, %167, %168 in 0 : vector<1x8x8xbf16>, vector<1x8x8xbf16>, vector<1x8x8xbf16>, vector<1x8x8xbf16> -> vector<4x8x8xbf16>
    "tpu.trace_start"() <{level = 10 : i32, message = "hqd,hkd->hqk"}> : () -> ()
    %cst_71 = arith.constant dense<0.000000e+00> : vector<4x8x8xf32>
    %170 = tpu.matmul %169, %122, %cst_71 {dimension_numbers = #tpu.dot_dimension_numbers<[2], [2], [1], [1], [0, 0, 0, 1, 1, 1], [0], [0]>} : vector<4x8x8xbf16>, vector<4x8x8xbf16>, vector<4x8x8xf32> -> vector<4x8x8xf32>
    "tpu.trace_stop"() : () -> ()
    %171 = vector.broadcast %54 : vector<1x8x8xf32> to vector<4x8x8xf32>
    %172 = arith.addf %170, %171 : vector<4x8x8xf32>
    %cst_72 = arith.constant dense<0xFF800000> : vector<4x8xf32>
    %173 = vector.multi_reduction <maximumf>, %172, %cst_72 [2] : vector<4x8x8xf32> to vector<4x8xf32>
    %174 = vector.shape_cast %173 : vector<4x8xf32> to vector<4x8x1xf32>
    %175 = vector.broadcast %174 : vector<4x8x1xf32> to vector<4x8x8xf32>
    %176 = arith.subf %172, %175 : vector<4x8x8xf32>
    %177 = math.exp %176 : vector<4x8x8xf32>
    %cst_73 = arith.constant dense<0.000000e+00> : vector<4x8xf32>
    %178 = vector.multi_reduction <add>, %177, %cst_73 [2] : vector<4x8x8xf32> to vector<4x8xf32>
    %179 = vector.shape_cast %178 : vector<4x8xf32> to vector<4x8x1xf32>
    %180 = tpu.reciprocal %179 {approx = true} : vector<4x8x1xf32> -> vector<4x8x1xf32>
    %181 = vector.broadcast %180 : vector<4x8x1xf32> to vector<4x8x8xf32>
    %182 = arith.mulf %177, %181 : vector<4x8x8xf32>
    %183 = arith.truncf %182 : vector<4x8x8xf32> to vector<4x8x8xbf16>
    "tpu.trace_start"() <{level = 10 : i32, message = "hqk,hkd->hqd"}> : () -> ()
    %cst_74 = arith.constant dense<0.000000e+00> : vector<4x8x8xf32>
    %184 = tpu.matmul %183, %133, %cst_74 {dimension_numbers = #tpu.dot_dimension_numbers<[2], [1], [1], [2], [0, 0, 0, 1, 1, 2], [0], [0]>} : vector<4x8x8xbf16>, vector<4x8x8xbf16>, vector<4x8x8xf32> -> vector<4x8x8xf32>
    "tpu.trace_stop"() : () -> ()
    %185 = vector.extract_strided_slice %184 {offsets = [0, 0, 0], sizes = [1, 8, 8], strides = [1, 1, 1]} : vector<4x8x8xf32> to vector<1x8x8xf32>
    %186 = vector.shape_cast %185 : vector<1x8x8xf32> to vector<8x8xf32>
    %187 = vector.extract_strided_slice %184 {offsets = [1, 0, 0], sizes = [1, 8, 8], strides = [1, 1, 1]} : vector<4x8x8xf32> to vector<1x8x8xf32>
    %188 = vector.shape_cast %187 : vector<1x8x8xf32> to vector<8x8xf32>
    %189 = vector.extract_strided_slice %184 {offsets = [2, 0, 0], sizes = [1, 8, 8], strides = [1, 1, 1]} : vector<4x8x8xf32> to vector<1x8x8xf32>
    %190 = vector.shape_cast %189 : vector<1x8x8xf32> to vector<8x8xf32>
    %191 = vector.extract_strided_slice %184 {offsets = [3, 0, 0], sizes = [1, 8, 8], strides = [1, 1, 1]} : vector<4x8x8xf32> to vector<1x8x8xf32>
    %192 = vector.shape_cast %191 : vector<1x8x8xf32> to vector<8x8xf32>
    %193 = tpu.concatenate %186, %188, %190, %192 in 1 : vector<8x8xf32>, vector<8x8xf32>, vector<8x8xf32>, vector<8x8xf32> -> vector<8x32xf32>
    %194 = arith.truncf %193 : vector<8x32xf32> to vector<8x32xbf16>
    %cst_75 = arith.constant dense<0.000000e+00> : vector<8x32xf32>
    %195 = tpu.matmul %194, %6, %cst_75 {dimension_numbers = #tpu.dot_dimension_numbers<[1], [0], [0], [1], [0, 0, 1, 1], [], []>} : vector<8x32xbf16>, vector<32x32xbf16>, vector<8x32xf32> -> vector<8x32xf32>
    %196 = vector.broadcast %7 : vector<1x32xf32> to vector<8x32xf32>
    %197 = arith.addf %195, %196 : vector<8x32xf32>
    %198 = arith.addf %155, %197 : vector<8x32xf32>
    %cst_76 = arith.constant dense<0.000000e+00> : vector<8xf32>
    %199 = vector.multi_reduction <add>, %198, %cst_76 [1] : vector<8x32xf32> to vector<8xf32>
    %200 = vector.shape_cast %199 : vector<8xf32> to vector<8x1xf32>
    %cst_77 = arith.constant 3.200000e+01 : f32
    %201 = vector.broadcast %cst_77 : f32 to vector<8x1xf32>
    %202 = arith.divf %200, %201 : vector<8x1xf32>
    %203 = vector.broadcast %202 : vector<8x1xf32> to vector<8x32xf32>
    %204 = arith.subf %198, %203 : vector<8x32xf32>
    %205 = arith.mulf %204, %204 : vector<8x32xf32>
    %cst_78 = arith.constant dense<0.000000e+00> : vector<8xf32>
    %206 = vector.multi_reduction <add>, %205, %cst_78 [1] : vector<8x32xf32> to vector<8xf32>
    %207 = vector.shape_cast %206 : vector<8xf32> to vector<8x1xf32>
    %cst_79 = arith.constant 3.200000e+01 : f32
    %208 = vector.broadcast %cst_79 : f32 to vector<8x1xf32>
    %209 = arith.divf %207, %208 : vector<8x1xf32>
    %210 = vector.broadcast %202 : vector<8x1xf32> to vector<8x32xf32>
    %211 = arith.subf %198, %210 : vector<8x32xf32>
    %cst_80 = arith.constant 9.99999974E-6 : f32
    %212 = vector.broadcast %cst_80 : f32 to vector<8x1xf32>
    %213 = arith.addf %209, %212 : vector<8x1xf32>
    %214 = math.rsqrt %213 : vector<8x1xf32>
    %215 = vector.broadcast %214 : vector<8x1xf32> to vector<8x32xf32>
    %216 = arith.mulf %211, %215 : vector<8x32xf32>
    %217 = vector.broadcast %2 : vector<1x32xf32> to vector<8x32xf32>
    %218 = arith.mulf %216, %217 : vector<8x32xf32>
    %219 = vector.broadcast %3 : vector<1x32xf32> to vector<8x32xf32>
    %220 = arith.addf %218, %219 : vector<8x32xf32>
    %221 = arith.truncf %220 : vector<8x32xf32> to vector<8x32xbf16>
    %cst_81 = arith.constant dense<0.000000e+00> : vector<8x128xf32>
    %222 = tpu.matmul %221, %8, %cst_81 {dimension_numbers = #tpu.dot_dimension_numbers<[1], [0], [0], [1], [0, 0, 1, 1], [], []>} : vector<8x32xbf16>, vector<32x128xbf16>, vector<8x128xf32> -> vector<8x128xf32>
    %223 = vector.broadcast %9 : vector<1x128xf32> to vector<8x128xf32>
    %224 = arith.addf %222, %223 : vector<8x128xf32>
    %cst_82 = arith.constant 0.000000e+00 : f32
    %225 = vector.broadcast %cst_82 : f32 to vector<8x128xf32>
    %226 = arith.maximumf %224, %225 : vector<8x128xf32>
    %227 = arith.truncf %226 : vector<8x128xf32> to vector<8x128xbf16>
    %cst_83 = arith.constant dense<0.000000e+00> : vector<8x32xf32>
    %228 = tpu.matmul %227, %10, %cst_83 {dimension_numbers = #tpu.dot_dimension_numbers<[1], [0], [0], [1], [0, 0, 1, 1], [], []>} : vector<8x128xbf16>, vector<128x32xbf16>, vector<8x32xf32> -> vector<8x32xf32>
    %229 = vector.broadcast %11 : vector<1x32xf32> to vector<8x32xf32>
    %230 = arith.addf %228, %229 : vector<8x32xf32>
    %231 = arith.addf %220, %230 : vector<8x32xf32>
    %cst_84 = arith.constant dense<0.000000e+00> : vector<8xf32>
    %232 = vector.multi_reduction <add>, %231, %cst_84 [1] : vector<8x32xf32> to vector<8xf32>
    %233 = vector.shape_cast %232 : vector<8xf32> to vector<8x1xf32>
    %cst_85 = arith.constant 3.200000e+01 : f32
    %234 = vector.broadcast %cst_85 : f32 to vector<8x1xf32>
    %235 = arith.divf %233, %234 : vector<8x1xf32>
    %236 = vector.broadcast %235 : vector<8x1xf32> to vector<8x32xf32>
    %237 = arith.subf %231, %236 : vector<8x32xf32>
    %238 = arith.mulf %237, %237 : vector<8x32xf32>
    %cst_86 = arith.constant dense<0.000000e+00> : vector<8xf32>
    %239 = vector.multi_reduction <add>, %238, %cst_86 [1] : vector<8x32xf32> to vector<8xf32>
    %240 = vector.shape_cast %239 : vector<8xf32> to vector<8x1xf32>
    %cst_87 = arith.constant 3.200000e+01 : f32
    %241 = vector.broadcast %cst_87 : f32 to vector<8x1xf32>
    %242 = arith.divf %240, %241 : vector<8x1xf32>
    %243 = vector.broadcast %235 : vector<8x1xf32> to vector<8x32xf32>
    %244 = arith.subf %231, %243 : vector<8x32xf32>
    %cst_88 = arith.constant 9.99999974E-6 : f32
    %245 = vector.broadcast %cst_88 : f32 to vector<8x1xf32>
    %246 = arith.addf %242, %245 : vector<8x1xf32>
    %247 = math.rsqrt %246 : vector<8x1xf32>
    %248 = vector.broadcast %247 : vector<8x1xf32> to vector<8x32xf32>
    %249 = arith.mulf %244, %248 : vector<8x32xf32>
    %250 = vector.broadcast %0 : vector<1x32xf32> to vector<8x32xf32>
    %251 = arith.mulf %249, %250 : vector<8x32xf32>
    %252 = vector.broadcast %1 : vector<1x32xf32> to vector<8x32xf32>
    %253 = arith.addf %251, %252 : vector<8x32xf32>
    %254 = arith.truncf %253 : vector<8x32xf32> to vector<8x32xbf16>
    %cst_89 = arith.constant dense<0.000000e+00> : vector<8x32xf32>
    %255 = tpu.matmul %254, %4, %cst_89 {dimension_numbers = #tpu.dot_dimension_numbers<[1], [0], [0], [1], [0, 0, 1, 1], [], []>} : vector<8x32xbf16>, vector<32x32xbf16>, vector<8x32xf32> -> vector<8x32xf32>
    %256 = vector.broadcast %5 : vector<1x32xf32> to vector<8x32xf32>
    %257 = arith.addf %255, %256 : vector<8x32xf32>
    %258 = arith.truncf %257 : vector<8x32xf32> to vector<8x32xbf16>
    %259 = vector.extract_strided_slice %258 {offsets = [0, 0], sizes = [8, 8], strides = [1, 1]} : vector<8x32xbf16> to vector<8x8xbf16>
    %260 = vector.extract_strided_slice %258 {offsets = [0, 8], sizes = [8, 8], strides = [1, 1]} : vector<8x32xbf16> to vector<8x8xbf16>
    %261 = vector.extract_strided_slice %258 {offsets = [0, 16], sizes = [8, 8], strides = [1, 1]} : vector<8x32xbf16> to vector<8x8xbf16>
    %262 = vector.extract_strided_slice %258 {offsets = [0, 24], sizes = [8, 8], strides = [1, 1]} : vector<8x32xbf16> to vector<8x8xbf16>
    %263 = vector.shape_cast %259 : vector<8x8xbf16> to vector<1x8x8xbf16>
    %264 = vector.shape_cast %260 : vector<8x8xbf16> to vector<1x8x8xbf16>
    %265 = vector.shape_cast %261 : vector<8x8xbf16> to vector<1x8x8xbf16>
    %266 = vector.shape_cast %262 : vector<8x8xbf16> to vector<1x8x8xbf16>
    %267 = tpu.concatenate %263, %264, %265, %266 in 0 : vector<1x8x8xbf16>, vector<1x8x8xbf16>, vector<1x8x8xbf16>, vector<1x8x8xbf16> -> vector<4x8x8xbf16>
    "tpu.trace_start"() <{level = 10 : i32, message = "hqd,hkd->hqk"}> : () -> ()
    %cst_90 = arith.constant dense<0.000000e+00> : vector<4x8x8xf32>
    %268 = tpu.matmul %267, %122, %cst_90 {dimension_numbers = #tpu.dot_dimension_numbers<[2], [2], [1], [1], [0, 0, 0, 1, 1, 1], [0], [0]>} : vector<4x8x8xbf16>, vector<4x8x8xbf16>, vector<4x8x8xf32> -> vector<4x8x8xf32>
    "tpu.trace_stop"() : () -> ()
    %269 = vector.broadcast %54 : vector<1x8x8xf32> to vector<4x8x8xf32>
    %270 = arith.addf %268, %269 : vector<4x8x8xf32>
    %cst_91 = arith.constant dense<0xFF800000> : vector<4x8xf32>
    %271 = vector.multi_reduction <maximumf>, %270, %cst_91 [2] : vector<4x8x8xf32> to vector<4x8xf32>
    %272 = vector.shape_cast %271 : vector<4x8xf32> to vector<4x8x1xf32>
    %273 = vector.broadcast %272 : vector<4x8x1xf32> to vector<4x8x8xf32>
    %274 = arith.subf %270, %273 : vector<4x8x8xf32>
    %275 = math.exp %274 : vector<4x8x8xf32>
    %cst_92 = arith.constant dense<0.000000e+00> : vector<4x8xf32>
    %276 = vector.multi_reduction <add>, %275, %cst_92 [2] : vector<4x8x8xf32> to vector<4x8xf32>
    %277 = vector.shape_cast %276 : vector<4x8xf32> to vector<4x8x1xf32>
    %278 = tpu.reciprocal %277 {approx = true} : vector<4x8x1xf32> -> vector<4x8x1xf32>
    %279 = vector.broadcast %278 : vector<4x8x1xf32> to vector<4x8x8xf32>
    %280 = arith.mulf %275, %279 : vector<4x8x8xf32>
    %281 = arith.truncf %280 : vector<4x8x8xf32> to vector<4x8x8xbf16>
    "tpu.trace_start"() <{level = 10 : i32, message = "hqk,hkd->hqd"}> : () -> ()
    %cst_93 = arith.constant dense<0.000000e+00> : vector<4x8x8xf32>
    %282 = tpu.matmul %281, %133, %cst_93 {dimension_numbers = #tpu.dot_dimension_numbers<[2], [1], [1], [2], [0, 0, 0, 1, 1, 2], [0], [0]>} : vector<4x8x8xbf16>, vector<4x8x8xbf16>, vector<4x8x8xf32> -> vector<4x8x8xf32>
    "tpu.trace_stop"() : () -> ()
    %283 = vector.extract_strided_slice %282 {offsets = [0, 0, 0], sizes = [1, 8, 8], strides = [1, 1, 1]} : vector<4x8x8xf32> to vector<1x8x8xf32>
    %284 = vector.shape_cast %283 : vector<1x8x8xf32> to vector<8x8xf32>
    %285 = vector.extract_strided_slice %282 {offsets = [1, 0, 0], sizes = [1, 8, 8], strides = [1, 1, 1]} : vector<4x8x8xf32> to vector<1x8x8xf32>
    %286 = vector.shape_cast %285 : vector<1x8x8xf32> to vector<8x8xf32>
    %287 = vector.extract_strided_slice %282 {offsets = [2, 0, 0], sizes = [1, 8, 8], strides = [1, 1, 1]} : vector<4x8x8xf32> to vector<1x8x8xf32>
    %288 = vector.shape_cast %287 : vector<1x8x8xf32> to vector<8x8xf32>
    %289 = vector.extract_strided_slice %282 {offsets = [3, 0, 0], sizes = [1, 8, 8], strides = [1, 1, 1]} : vector<4x8x8xf32> to vector<1x8x8xf32>
    %290 = vector.shape_cast %289 : vector<1x8x8xf32> to vector<8x8xf32>
    %291 = tpu.concatenate %284, %286, %288, %290 in 1 : vector<8x8xf32>, vector<8x8xf32>, vector<8x8xf32>, vector<8x8xf32> -> vector<8x32xf32>
    %292 = arith.truncf %291 : vector<8x32xf32> to vector<8x32xbf16>
    %cst_94 = arith.constant dense<0.000000e+00> : vector<8x32xf32>
    %293 = tpu.matmul %292, %6, %cst_94 {dimension_numbers = #tpu.dot_dimension_numbers<[1], [0], [0], [1], [0, 0, 1, 1], [], []>} : vector<8x32xbf16>, vector<32x32xbf16>, vector<8x32xf32> -> vector<8x32xf32>
    %294 = vector.broadcast %7 : vector<1x32xf32> to vector<8x32xf32>
    %295 = arith.addf %293, %294 : vector<8x32xf32>
    %296 = arith.addf %253, %295 : vector<8x32xf32>
    %cst_95 = arith.constant dense<0.000000e+00> : vector<8xf32>
    %297 = vector.multi_reduction <add>, %296, %cst_95 [1] : vector<8x32xf32> to vector<8xf32>
    %298 = vector.shape_cast %297 : vector<8xf32> to vector<8x1xf32>
    %cst_96 = arith.constant 3.200000e+01 : f32
    %299 = vector.broadcast %cst_96 : f32 to vector<8x1xf32>
    %300 = arith.divf %298, %299 : vector<8x1xf32>
    %301 = vector.broadcast %300 : vector<8x1xf32> to vector<8x32xf32>
    %302 = arith.subf %296, %301 : vector<8x32xf32>
    %303 = arith.mulf %302, %302 : vector<8x32xf32>
    %cst_97 = arith.constant dense<0.000000e+00> : vector<8xf32>
    %304 = vector.multi_reduction <add>, %303, %cst_97 [1] : vector<8x32xf32> to vector<8xf32>
    %305 = vector.shape_cast %304 : vector<8xf32> to vector<8x1xf32>
    %cst_98 = arith.constant 3.200000e+01 : f32
    %306 = vector.broadcast %cst_98 : f32 to vector<8x1xf32>
    %307 = arith.divf %305, %306 : vector<8x1xf32>
    %308 = vector.broadcast %300 : vector<8x1xf32> to vector<8x32xf32>
    %309 = arith.subf %296, %308 : vector<8x32xf32>
    %cst_99 = arith.constant 9.99999974E-6 : f32
    %310 = vector.broadcast %cst_99 : f32 to vector<8x1xf32>
    %311 = arith.addf %307, %310 : vector<8x1xf32>
    %312 = math.rsqrt %311 : vector<8x1xf32>
    %313 = vector.broadcast %312 : vector<8x1xf32> to vector<8x32xf32>
    %314 = arith.mulf %309, %313 : vector<8x32xf32>
    %315 = vector.broadcast %2 : vector<1x32xf32> to vector<8x32xf32>
    %316 = arith.mulf %314, %315 : vector<8x32xf32>
    %317 = vector.broadcast %3 : vector<1x32xf32> to vector<8x32xf32>
    %318 = arith.addf %316, %317 : vector<8x32xf32>
    %319 = arith.truncf %318 : vector<8x32xf32> to vector<8x32xbf16>
    %cst_100 = arith.constant dense<0.000000e+00> : vector<8x128xf32>
    %320 = tpu.matmul %319, %8, %cst_100 {dimension_numbers = #tpu.dot_dimension_numbers<[1], [0], [0], [1], [0, 0, 1, 1], [], []>} : vector<8x32xbf16>, vector<32x128xbf16>, vector<8x128xf32> -> vector<8x128xf32>
    %321 = vector.broadcast %9 : vector<1x128xf32> to vector<8x128xf32>
    %322 = arith.addf %320, %321 : vector<8x128xf32>
    %cst_101 = arith.constant 0.000000e+00 : f32
    %323 = vector.broadcast %cst_101 : f32 to vector<8x128xf32>
    %324 = arith.maximumf %322, %323 : vector<8x128xf32>
    %325 = arith.truncf %324 : vector<8x128xf32> to vector<8x128xbf16>
    %cst_102 = arith.constant dense<0.000000e+00> : vector<8x32xf32>
    %326 = tpu.matmul %325, %10, %cst_102 {dimension_numbers = #tpu.dot_dimension_numbers<[1], [0], [0], [1], [0, 0, 1, 1], [], []>} : vector<8x128xbf16>, vector<128x32xbf16>, vector<8x32xf32> -> vector<8x32xf32>
    %327 = vector.broadcast %11 : vector<1x32xf32> to vector<8x32xf32>
    %328 = arith.addf %326, %327 : vector<8x32xf32>
    %329 = arith.addf %318, %328 : vector<8x32xf32>
    %c0_103 = arith.constant 0 : index
    %c0_104 = arith.constant 0 : index
    %c0_105 = arith.constant 0 : index
    %330 = vector.load %arg23[%c0_103, %c0_104, %c0_105] : memref<1x8x32xf32, #tpu.memory_space<vmem>>, vector<1x8x32xf32>
    %331 = vector.shape_cast %330 : vector<1x8x32xf32> to vector<8x32xf32>
    %332 = vector.shape_cast %329 : vector<8x32xf32> to vector<1x8x32xf32>
    tpu.vector_store %arg23[%c0_103, %c0_104, %c0_105], %332 {strides = array<i32>} : memref<1x8x32xf32, #tpu.memory_space<vmem>>, vector<1x8x32xf32>,
    return
  }
  func.func @transform_0(%arg0: i32, %arg1: i32) -> (i32, i32, i32) {
    %c0_i32 = arith.constant 0 : i32
    %c0_i32_0 = arith.constant 0 : i32
    return %arg0, %arg1, %c0_i32 : i32, i32, i32
  }
  func.func @transform_1(%arg0: i32, %arg1: i32) -> (i32, i32, i32) {
    %c0_i32 = arith.constant 0 : i32
    %c0_i32_0 = arith.constant 0 : i32
    %c0_i32_1 = arith.constant 0 : i32
    return %arg0, %c0_i32, %c0_i32_0 : i32, i32, i32
  }
  func.func @transform_2(%arg0: i32, %arg1: i32) -> (i32, i32, i32) {
    %c0_i32 = arith.constant 0 : i32
    %c0_i32_0 = arith.constant 0 : i32
    %c0_i32_1 = arith.constant 0 : i32
    return %arg0, %c0_i32, %c0_i32_0 : i32, i32, i32
  }
  func.func @transform_3(%arg0: i32, %arg1: i32) -> (i32, i32) {
    %c0_i32 = arith.constant 0 : i32
    %c0_i32_0 = arith.constant 0 : i32
    return %arg1, %c0_i32 : i32, i32
  }
  func.func @transform_4(%arg0: i32, %arg1: i32) -> (i32, i32) {
    %c0_i32 = arith.constant 0 : i32
    %c0_i32_0 = arith.constant 0 : i32
    return %arg1, %c0_i32 : i32, i32
  }
  func.func @transform_5(%arg0: i32, %arg1: i32) -> (i32, i32) {
    %c0_i32 = arith.constant 0 : i32
    %c0_i32_0 = arith.constant 0 : i32
    %c0_i32_1 = arith.constant 0 : i32
    return %c0_i32, %c0_i32_0 : i32, i32
  }
  func.func @transform_6(%arg0: i32, %arg1: i32) -> (i32, i32) {
    %c0_i32 = arith.constant 0 : i32
    %c0_i32_0 = arith.constant 0 : i32
    %c0_i32_1 = arith.constant 0 : i32
    return %c0_i32, %c0_i32_0 : i32, i32
  }
  func.func @transform_7(%arg0: i32, %arg1: i32) -> (i32, i32) {
    %c0_i32 = arith.constant 0 : i32
    %c0_i32_0 = arith.constant 0 : i32
    %c0_i32_1 = arith.constant 0 : i32
    return %c0_i32, %c0_i32_0 : i32, i32
  }
  func.func @transform_8(%arg0: i32, %arg1: i32) -> (i32, i32) {
    %c0_i32 = arith.constant 0 : i32
    %c0_i32_0 = arith.constant 0 : i32
    %c0_i32_1 = arith.constant 0 : i32
    return %c0_i32, %c0_i32_0 : i32, i32
  }
  func.func @transform_9(%arg0: i32, %arg1: i32) -> (i32, i32) {
    %c0_i32 = arith.constant 0 : i32
    %c0_i32_0 = arith.constant 0 : i32
    %c0_i32_1 = arith.constant 0 : i32
    return %c0_i32, %c0_i32_0 : i32, i32
  }
  func.func @transform_10(%arg0: i32, %arg1: i32) -> (i32, i32) {
    %c0_i32 = arith.constant 0 : i32
    %c0_i32_0 = arith.constant 0 : i32
    %c0_i32_1 = arith.constant 0 : i32
    return %c0_i32, %c0_i32_0 : i32, i32
  }
  func.func @transform_11(%arg0: i32, %arg1: i32) -> (i32, i32) {
    %c0_i32 = arith.constant 0 : i32
    %c0_i32_0 = arith.constant 0 : i32
    %c0_i32_1 = arith.constant 0 : i32
    return %c0_i32, %c0_i32_0 : i32, i32
  }
  func.func @transform_12(%arg0: i32, %arg1: i32) -> (i32, i32) {
    %c0_i32 = arith.constant 0 : i32
    %c0_i32_0 = arith.constant 0 : i32
    %c0_i32_1 = arith.constant 0 : i32
    return %c0_i32, %c0_i32_0 : i32, i32
  }
  func.func @transform_13(%arg0: i32, %arg1: i32) -> (i32, i32) {
    %c0_i32 = arith.constant 0 : i32
    %c0_i32_0 = arith.constant 0 : i32
    %c0_i32_1 = arith.constant 0 : i32
    return %c0_i32, %c0_i32_0 : i32, i32
  }
  func.func @transform_14(%arg0: i32, %arg1: i32) -> (i32, i32) {
    %c0_i32 = arith.constant 0 : i32
    %c0_i32_0 = arith.constant 0 : i32
    %c0_i32_1 = arith.constant 0 : i32
    return %c0_i32, %c0_i32_0 : i32, i32
  }
  func.func @transform_15(%arg0: i32, %arg1: i32) -> (i32, i32) {
    %c0_i32 = arith.constant 0 : i32
    %c0_i32_0 = arith.constant 0 : i32
    %c0_i32_1 = arith.constant 0 : i32
    return %c0_i32, %c0_i32_0 : i32, i32
  }
  func.func @transform_16(%arg0: i32, %arg1: i32) -> (i32, i32) {
    %c0_i32 = arith.constant 0 : i32
    %c0_i32_0 = arith.constant 0 : i32
    %c0_i32_1 = arith.constant 0 : i32
    return %c0_i32, %c0_i32_0 : i32, i32
  }
  func.func @transform_17(%arg0: i32, %arg1: i32) -> (i32, i32) {
    %c0_i32 = arith.constant 0 : i32
    %c0_i32_0 = arith.constant 0 : i32
    %c0_i32_1 = arith.constant 0 : i32
    return %c0_i32, %c0_i32_0 : i32, i32
  }
  func.func @transform_18(%arg0: i32, %arg1: i32) -> (i32, i32) {
    %c0_i32 = arith.constant 0 : i32
    %c0_i32_0 = arith.constant 0 : i32
    %c0_i32_1 = arith.constant 0 : i32
    return %c0_i32, %c0_i32_0 : i32, i32
  }
  func.func @transform_19(%arg0: i32, %arg1: i32) -> (i32, i32) {
    %c0_i32 = arith.constant 0 : i32
    %c0_i32_0 = arith.constant 0 : i32
    %c0_i32_1 = arith.constant 0 : i32
    return %c0_i32, %c0_i32_0 : i32, i32
  }
  func.func @transform_20(%arg0: i32, %arg1: i32) -> (i32, i32) {
    %c0_i32 = arith.constant 0 : i32
    %c0_i32_0 = arith.constant 0 : i32
    %c0_i32_1 = arith.constant 0 : i32
    return %c0_i32, %c0_i32_0 : i32, i32
  }
  func.func @transform_21(%arg0: i32, %arg1: i32) -> (i32, i32, i32) {
    %c0_i32 = arith.constant 0 : i32
    %c0_i32_0 = arith.constant 0 : i32
    return %arg0, %arg1, %c0_i32 : i32, i32, i32
  }
}

module attributes {stable_mosaic.version = 11 : i64} {
  func.func @fused_kernel(%arg0: i32, %arg1: i32, %arg2: memref<1x8x32xf32, #tpu.memory_space<vmem>>, %arg3: memref<1x8x32xf32, #tpu.memory_space<vmem>>, %arg4: memref<1x1x8xf32, #tpu.memory_space<vmem>>, %arg5: memref<8x32xf32, #tpu.memory_space<vmem>>, %arg6: memref<8x32xf32, #tpu.memory_space<vmem>>, %arg7: memref<8x32xf32, #tpu.memory_space<vmem>>, %arg8: memref<8x32xf32, #tpu.memory_space<vmem>>, %arg9: memref<1x32xf32, #tpu.memory_space<vmem>>, %arg10: memref<1x32xf32, #tpu.memory_space<vmem>>, %arg11: memref<32x32xbf16, #tpu.memory_space<vmem>>, %arg12: memref<1x32xf32, #tpu.memory_space<vmem>>, %arg13: memref<32x64xbf16, #tpu.memory_space<vmem>>, %arg14: memref<1x64xf32, #tpu.memory_space<vmem>>, %arg15: memref<32x32xbf16, #tpu.memory_space<vmem>>, %arg16: memref<1x32xf32, #tpu.memory_space<vmem>>, %arg17: memref<1x32xf32, #tpu.memory_space<vmem>>, %arg18: memref<1x32xf32, #tpu.memory_space<vmem>>, %arg19: memref<32x128xbf16, #tpu.memory_space<vmem>>, %arg20: memref<1x128xf32, #tpu.memory_space<vmem>>, %arg21: memref<128x32xbf16, #tpu.memory_space<vmem>>, %arg22: memref<1x32xf32, #tpu.memory_space<vmem>>, %arg23: memref<1x8x32xf32, #tpu.memory_space<vmem>>) attributes {dimension_semantics = [#tpu.dimension_semantics<parallel>, #tpu.dimension_semantics<parallel>], iteration_bounds = array<i64: 2, 1>, scalar_prefetch = 0 : i64, scratch_operands = 0 : i64, tpu.core_type = #tpu.core_type<tc>, window_params = [{transform_indices = @transform_0, window_bounds = array<i64: 1, 8, 32>}, {transform_indices = @transform_1, window_bounds = array<i64: 1, 8, 32>}, {transform_indices = @transform_2, window_bounds = array<i64: 1, 1, 8>}, {transform_indices = @transform_3, window_bounds = array<i64: 8, 32>}, {transform_indices = @transform_4, window_bounds = array<i64: 8, 32>}, {pipeline_mode = #tpu.pipeline_mode<synchronous>, transform_indices = @transform_5, window_bounds = array<i64: 8, 32>}, {pipeline_mode = #tpu.pipeline_mode<synchronous>, transform_indices = @transform_6, window_bounds = array<i64: 8, 32>}, {pipeline_mode = #tpu.pipeline_mode<synchronous>, transform_indices = @transform_7, window_bounds = array<i64: 1, 32>}, {pipeline_mode = #tpu.pipeline_mode<synchronous>, transform_indices = @transform_8, window_bounds = array<i64: 1, 32>}, {pipeline_mode = #tpu.pipeline_mode<synchronous>, transform_indices = @transform_9, window_bounds = array<i64: 32, 32>}, {pipeline_mode = #tpu.pipeline_mode<synchronous>, transform_indices = @transform_10, window_bounds = array<i64: 1, 32>}, {pipeline_mode = #tpu.pipeline_mode<synchronous>, transform_indices = @transform_11, window_bounds = array<i64: 32, 64>}, {pipeline_mode = #tpu.pipeline_mode<synchronous>, transform_indices = @transform_12, window_bounds = array<i64: 1, 64>}, {pipeline_mode = #tpu.pipeline_mode<synchronous>, transform_indices = @transform_13, window_bounds = array<i64: 32, 32>}, {pipeline_mode = #tpu.pipeline_mode<synchronous>, transform_indices = @transform_14, window_bounds = array<i64: 1, 32>}, {pipeline_mode = #tpu.pipeline_mode<synchronous>, transform_indices = @transform_15, window_bounds = array<i64: 1, 32>}, {pipeline_mode = #tpu.pipeline_mode<synchronous>, transform_indices = @transform_16, window_bounds = array<i64: 1, 32>}, {pipeline_mode = #tpu.pipeline_mode<synchronous>, transform_indices = @transform_17, window_bounds = array<i64: 32, 128>}, {pipeline_mode = #tpu.pipeline_mode<synchronous>, transform_indices = @transform_18, window_bounds = array<i64: 1, 128>}, {pipeline_mode = #tpu.pipeline_mode<synchronous>, transform_indices = @transform_19, window_bounds = array<i64: 128, 32>}, {pipeline_mode = #tpu.pipeline_mode<synchronous>, transform_indices = @transform_20, window_bounds = array<i64: 1, 32>}, {transform_indices = @transform_21, window_bounds = array<i64: 1, 8, 32>}]} {
    %c0 = arith.constant 0 : index
    %c0_0 = arith.constant 0 : index
    %0 = vector.load %arg9[%c0, %c0_0] : memref<1x32xf32, #tpu.memory_space<vmem>>, vector<1x32xf32>
    %c0_1 = arith.constant 0 : index
    %c0_2 = arith.constant 0 : index
    %1 = vector.load %arg10[%c0_1, %c0_2] : memref<1x32xf32, #tpu.memory_space<vmem>>, vector<1x32xf32>
    %c0_3 = arith.constant 0 : index
    %c0_4 = arith.constant 0 : index
    %2 = vector.load %arg17[%c0_3, %c0_4] : memref<1x32xf32, #tpu.memory_space<vmem>>, vector<1x32xf32>
    %c0_5 = arith.constant 0 : index
    %c0_6 = arith.constant 0 : index
    %3 = vector.load %arg18[%c0_5, %c0_6] : memref<1x32xf32, #tpu.memory_space<vmem>>, vector<1x32xf32>
    %c0_7 = arith.constant 0 : index
    %c0_8 = arith.constant 0 : index
    %4 = vector.load %arg11[%c0_7, %c0_8] : memref<32x32xbf16, #tpu.memory_space<vmem>>, vector<32x32xbf16>
    %c0_9 = arith.constant 0 : index
    %c0_10 = arith.constant 0 : index
    %5 = vector.load %arg12[%c0_9, %c0_10] : memref<1x32xf32, #tpu.memory_space<vmem>>, vector<1x32xf32>
    %c0_11 = arith.constant 0 : index
    %c0_12 = arith.constant 0 : index
    %6 = vector.load %arg15[%c0_11, %c0_12] : memref<32x32xbf16, #tpu.memory_space<vmem>>, vector<32x32xbf16>
    %c0_13 = arith.constant 0 : index
    %c0_14 = arith.constant 0 : index
    %7 = vector.load %arg16[%c0_13, %c0_14] : memref<1x32xf32, #tpu.memory_space<vmem>>, vector<1x32xf32>
    %c0_15 = arith.constant 0 : index
    %c0_16 = arith.constant 0 : index
    %8 = vector.load %arg19[%c0_15, %c0_16] : memref<32x128xbf16, #tpu.memory_space<vmem>>, vector<32x128xbf16>
    %c0_17 = arith.constant 0 : index
    %c0_18 = arith.constant 0 : index
    %9 = vector.load %arg20[%c0_17, %c0_18] : memref<1x128xf32, #tpu.memory_space<vmem>>, vector<1x128xf32>
    %c0_19 = arith.constant 0 : index
    %c0_20 = arith.constant 0 : index
    %10 = vector.load %arg21[%c0_19, %c0_20] : memref<128x32xbf16, #tpu.memory_space<vmem>>, vector<128x32xbf16>
    %c0_21 = arith.constant 0 : index
    %c0_22 = arith.constant 0 : index
    %11 = vector.load %arg22[%c0_21, %c0_22] : memref<1x32xf32, #tpu.memory_space<vmem>>, vector<1x32xf32>
    %c0_23 = arith.constant 0 : index
    %c0_24 = arith.constant 0 : index
    %c0_25 = arith.constant 0 : index
    %12 = vector.load %arg2[%c0_23, %c0_24, %c0_25] : memref<1x8x32xf32, #tpu.memory_space<vmem>>, vector<1x8x32xf32>
    %13 = vector.shape_cast %12 : vector<1x8x32xf32> to vector<8x32xf32>
    %c0_26 = arith.constant 0 : index
    %c0_27 = arith.constant 0 : index
    %14 = vector.load %arg5[%c0_26, %c0_27] : memref<8x32xf32, #tpu.memory_space<vmem>>, vector<8x32xf32>
    %c0_28 = arith.constant 0 : index
    %c0_29 = arith.constant 0 : index
    %15 = vector.load %arg6[%c0_28, %c0_29] : memref<8x32xf32, #tpu.memory_space<vmem>>, vector<8x32xf32>
    %16 = tpu.iota {dimensions = array<i32: 1>} : vector<8x32xi32>
    %c31_i32 = arith.constant 31 : i32
    %17 = tpu.dynamic_rotate %13 by %c31_i32 dim 1 : vector<8x32xf32>, i32 -> vector<8x32xf32>
    %c1_i32 = arith.constant 1 : i32
    %18 = tpu.dynamic_rotate %13 by %c1_i32 dim 1 : vector<8x32xf32>, i32 -> vector<8x32xf32>
    %c2_i32 = arith.constant 2 : i32
    %c0_i32 = arith.constant 0 : i32
    %19 = arith.cmpi eq, %c2_i32, %c0_i32 : i32
    %c1_i32_30 = arith.constant 1 : i32
    %20 = arith.select %19, %c1_i32_30, %c2_i32 : i32
    %21 = vector.broadcast %20 : i32 to vector<8x32xi32>
    %22 = arith.remsi %16, %21 : vector<8x32xi32>
    %c0_i32_31 = arith.constant 0 : i32
    %23 = vector.broadcast %c0_i32_31 : i32 to vector<8x32xi32>
    %24 = arith.cmpi ne, %22, %23 : vector<8x32xi32>
    %c0_i32_32 = arith.constant 0 : i32
    %25 = vector.broadcast %c0_i32_32 : i32 to vector<8x32xi32>
    %26 = arith.cmpi slt, %22, %25 : vector<8x32xi32>
    %c0_i32_33 = arith.constant 0 : i32
    %27 = arith.cmpi slt, %20, %c0_i32_33 : i32
    %28 = vector.broadcast %27 : i1 to vector<8x32xi1>
    %29 = vector.broadcast %28 : vector<8x32xi1> to vector<8x32xi1>
    %30 = arith.xori %26, %29 : vector<8x32xi1>
    %31 = arith.andi %30, %24 : vector<8x32xi1>
    %32 = vector.broadcast %20 : i32 to vector<8x32xi32>
    %33 = arith.addi %22, %32 : vector<8x32xi32>
    %34 = arith.select %31, %33, %22 : vector<8x32xi1>, vector<8x32xi32>
    %c0_i32_34 = arith.constant 0 : i32
    %35 = vector.broadcast %c0_i32_34 : i32 to vector<8x32xi32>
    %36 = arith.cmpi eq, %34, %35 : vector<8x32xi32>
    %37 = arith.select %36, %17, %18 : vector<8x32xi1>, vector<8x32xf32>
    %38 = arith.mulf %13, %14 : vector<8x32xf32>
    %39 = arith.mulf %37, %15 : vector<8x32xf32>
    %40 = arith.addf %38, %39 : vector<8x32xf32>
    %c0_35 = arith.constant 0 : index
    %c0_36 = arith.constant 0 : index
    %c0_37 = arith.constant 0 : index
    %41 = vector.load %arg4[%c0_35, %c0_36, %c0_37] : memref<1x1x8xf32, #tpu.memory_space<vmem>>, vector<1x1x8xf32>
    %42 = vector.shape_cast %41 : vector<1x1x8xf32> to vector<1x8xf32>
    %c8_i32 = arith.constant 8 : i32
    %43 = arith.muli %arg1, %c8_i32 : i32
    %44 = tpu.iota {dimensions = array<i32: 0>} : vector<8x8xi32>
    %45 = vector.broadcast %43 : i32 to vector<8x8xi32>
    %46 = arith.addi %45, %44 : vector<8x8xi32>
    %47 = tpu.iota {dimensions = array<i32: 1>} : vector<8x8xi32>
    %48 = arith.cmpi sgt, %47, %46 : vector<8x8xi32>
    %cst = arith.constant -1.000000e+30 : f32
    %cst_38 = arith.constant 0.000000e+00 : f32
    %49 = vector.broadcast %cst : f32 to vector<8x8xf32>
    %50 = vector.broadcast %cst_38 : f32 to vector<8x8xf32>
    %51 = arith.select %48, %49, %50 : vector<8x8xi1>, vector<8x8xf32>
    %52 = vector.broadcast %42 : vector<1x8xf32> to vector<8x8xf32>
    %53 = arith.addf %52, %51 : vector<8x8xf32>
    %54 = vector.shape_cast %53 : vector<8x8xf32> to vector<1x8x8xf32>
    %c0_39 = arith.constant 0 : index
    %c0_40 = arith.constant 0 : index
    %55 = vector.load %arg13[%c0_39, %c0_40] : memref<32x64xbf16, #tpu.memory_space<vmem>>, vector<32x64xbf16>
    %c0_41 = arith.constant 0 : index
    %c0_42 = arith.constant 0 : index
    %56 = vector.load %arg14[%c0_41, %c0_42] : memref<1x64xf32, #tpu.memory_space<vmem>>, vector<1x64xf32>
    %c0_43 = arith.constant 0 : index
    %c0_44 = arith.constant 0 : index
    %c0_45 = arith.constant 0 : index
    %57 = vector.load %arg3[%c0_43, %c0_44, %c0_45] : memref<1x8x32xf32, #tpu.memory_space<vmem>>, vector<1x8x32xf32>
    %58 = vector.shape_cast %57 : vector<1x8x32xf32> to vector<8x32xf32>
    %c0_46 = arith.constant 0 : index
    %c0_47 = arith.constant 0 : index
    %59 = vector.load %arg7[%c0_46, %c0_47] : memref<8x32xf32, #tpu.memory_space<vmem>>, vector<8x32xf32>
    %c0_48 = arith.constant 0 : index
    %c0_49 = arith.constant 0 : index
    %60 = vector.load %arg8[%c0_48, %c0_49] : memref<8x32xf32, #tpu.memory_space<vmem>>, vector<8x32xf32>
    %61 = tpu.iota {dimensions = array<i32: 1>} : vector<8x32xi32>
    %c31_i32_50 = arith.constant 31 : i32
    %62 = tpu.dynamic_rotate %58 by %c31_i32_50 dim 1 : vector<8x32xf32>, i32 -> vector<8x32xf32>
    %c1_i32_51 = arith.constant 1 : i32
    %63 = tpu.dynamic_rotate %58 by %c1_i32_51 dim 1 : vector<8x32xf32>, i32 -> vector<8x32xf32>
    %c2_i32_52 = arith.constant 2 : i32
    %c0_i32_53 = arith.constant 0 : i32
    %64 = arith.cmpi eq, %c2_i32_52, %c0_i32_53 : i32
    %c1_i32_54 = arith.constant 1 : i32
    %65 = arith.select %64, %c1_i32_54, %c2_i32_52 : i32
    %66 = vector.broadcast %65 : i32 to vector<8x32xi32>
    %67 = arith.remsi %61, %66 : vector<8x32xi32>
    %c0_i32_55 = arith.constant 0 : i32
    %68 = vector.broadcast %c0_i32_55 : i32 to vector<8x32xi32>
    %69 = arith.cmpi ne, %67, %68 : vector<8x32xi32>
    %c0_i32_56 = arith.constant 0 : i32
    %70 = vector.broadcast %c0_i32_56 : i32 to vector<8x32xi32>
    %71 = arith.cmpi slt, %67, %70 : vector<8x32xi32>
    %c0_i32_57 = arith.constant 0 : i32
    %72 = arith.cmpi slt, %65, %c0_i32_57 : i32
    %73 = vector.broadcast %72 : i1 to vector<8x32xi1>
    %74 = vector.broadcast %73 : vector<8x32xi1> to vector<8x32xi1>
    %75 = arith.xori %71, %74 : vector<8x32xi1>
    %76 = arith.andi %75, %69 : vector<8x32xi1>
    %77 = vector.broadcast %65 : i32 to vector<8x32xi32>
    %78 = arith.addi %67, %77 : vector<8x32xi32>
    %79 = arith.select %76, %78, %67 : vector<8x32xi1>, vector<8x32xi32>
    %c0_i32_58 = arith.constant 0 : i32
    %80 = vector.broadcast %c0_i32_58 : i32 to vector<8x32xi32>
    %81 = arith.cmpi eq, %79, %80 : vector<8x32xi32>
    %82 = arith.select %81, %62, %63 : vector<8x32xi1>, vector<8x32xf32>
    %83 = arith.mulf %58, %59 : vector<8x32xf32>
    %84 = arith.mulf %82, %60 : vector<8x32xf32>
    %85 = arith.addf %83, %84 : vector<8x32xf32>
    %cst_59 = arith.constant dense<0.000000e+00> : vector<8xf32>
    %86 = vector.multi_reduction <add>, %85, %cst_59 [1] : vector<8x32xf32> to vector<8xf32>
    %87 = vector.shape_cast %86 : vector<8xf32> to vector<8x1xf32>
    %cst_60 = arith.constant 3.200000e+01 : f32
    %88 = vector.broadcast %cst_60 : f32 to vector<8x1xf32>
    %89 = arith.divf %87, %88 : vector<8x1xf32>
    %90 = vector.broadcast %89 : vector<8x1xf32> to vector<8x32xf32>
    %91 = arith.subf %85, %90 : vector<8x32xf32>
    %92 = arith.mulf %91, %91 : vector<8x32xf32>
    %cst_61 = arith.constant dense<0.000000e+00> : vector<8xf32>
    %93 = vector.multi_reduction <add>, %92, %cst_61 [1] : vector<8x32xf32> to vector<8xf32>
    %94 = vector.shape_cast %93 : vector<8xf32> to vector<8x1xf32>
    %cst_62 = arith.constant 3.200000e+01 : f32
    %95 = vector.broadcast %cst_62 : f32 to vector<8x1xf32>
    %96 = arith.divf %94, %95 : vector<8x1xf32>
    %97 = vector.broadcast %89 : vector<8x1xf32> to vector<8x32xf32>
    %98 = arith.subf %85, %97 : vector<8x32xf32>
    %cst_63 = arith.constant 9.99999974E-6 : f32
    %99 = vector.broadcast %cst_63 : f32 to vector<8x1xf32>
    %100 = arith.addf %96, %99 : vector<8x1xf32>
    %101 = math.rsqrt %100 : vector<8x1xf32>
    %102 = vector.broadcast %101 : vector<8x1xf32> to vector<8x32xf32>
    %103 = arith.mulf %98, %102 : vector<8x32xf32>
    %104 = vector.broadcast %0 : vector<1x32xf32> to vector<8x32xf32>
    %105 = arith.mulf %103, %104 : vector<8x32xf32>
    %106 = vector.broadcast %1 : vector<1x32xf32> to vector<8x32xf32>
    %107 = arith.addf %105, %106 : vector<8x32xf32>
    %108 = arith.truncf %107 : vector<8x32xf32> to vector<8x32xbf16>
    %cst_64 = arith.constant dense<0.000000e+00> : vector<8x64xf32>
    %109 = tpu.matmul %108, %55, %cst_64 {dimension_numbers = #tpu.dot_dimension_numbers<[1], [0], [0], [1], [0, 0, 1, 1], [], []>} : vector<8x32xbf16>, vector<32x64xbf16>, vector<8x64xf32> -> vector<8x64xf32>
    %110 = vector.broadcast %56 : vector<1x64xf32> to vector<8x64xf32>
    %111 = arith.addf %109, %110 : vector<8x64xf32>
    %112 = vector.extract_strided_slice %111 {offsets = [0, 0], sizes = [8, 32], strides = [1, 1]} : vector<8x64xf32> to vector<8x32xf32>
    %113 = arith.truncf %112 : vector<8x32xf32> to vector<8x32xbf16>
    %114 = vector.extract_strided_slice %113 {offsets = [0, 0], sizes = [8, 8], strides = [1, 1]} : vector<8x32xbf16> to vector<8x8xbf16>
    %115 = vector.extract_strided_slice %113 {offsets = [0, 8], sizes = [8, 8], strides = [1, 1]} : vector<8x32xbf16> to vector<8x8xbf16>
    %116 = vector.extract_strided_slice %113 {offsets = [0, 16], sizes = [8, 8], strides = [1, 1]} : vector<8x32xbf16> to vector<8x8xbf16>
    %117 = vector.extract_strided_slice %113 {offsets = [0, 24], sizes = [8, 8], strides = [1, 1]} : vector<8x32xbf16> to vector<8x8xbf16>
    %118 = vector.shape_cast %114 : vector<8x8xbf16> to vector<1x8x8xbf16>
    %119 = vector.shape_cast %115 : vector<8x8xbf16> to vector<1x8x8xbf16>
    %120 = vector.shape_cast %116 : vector<8x8xbf16> to vector<1x8x8xbf16>
    %121 = vector.shape_cast %117 : vector<8x8xbf16> to vector<1x8x8xbf16>
    %122 = tpu.concatenate %118, %119, %120, %121 in 0 : vector<1x8x8xbf16>, vector<1x8x8xbf16>, vector<1x8x8xbf16>, vector<1x8x8xbf16> -> vector<4x8x8xbf16>
    %123 = vector.extract_strided_slice %111 {offsets = [0, 32], sizes = [8, 32], strides = [1, 1]} : vector<8x64xf32> to vector<8x32xf32>
    %124 = arith.truncf %123 : vector<8x32xf32> to vector<8x32xbf16>
    %125 = vector.extract_strided_slice %124 {offsets = [0, 0], sizes = [8, 8], strides = [1, 1]} : vector<8x32xbf16> to vector<8x8xbf16>
    %126 = vector.extract_strided_slice %124 {offsets = [0, 8], sizes = [8, 8], strides = [1, 1]} : vector<8x32xbf16> to vector<8x8xbf16>
    %127 = vector.extract_strided_slice %124 {offsets = [0, 16], sizes = [8, 8], strides = [1, 1]} : vector<8x32xbf16> to vector<8x8xbf16>
    %128 = vector.extract_strided_slice %124 {offsets = [0, 24], sizes = [8, 8], strides = [1, 1]} : vector<8x32xbf16> to vector<8x8xbf16>
    %129 = vector.shape_cast %125 : vector<8x8xbf16> to vector<1x8x8xbf16>
    %130 = vector.shape_cast %126 : vector<8x8xbf16> to vector<1x8x8xbf16>
    %131 = vector.shape_cast %127 : vector<8x8xbf16> to vector<1x8x8xbf16>
    %132 = vector.shape_cast %128 : vector<8x8xbf16> to vector<1x8x8xbf16>
    %133 = tpu.concatenate %129, %130, %131, %132 in 0 : vector<1x8x8xbf16>, vector<1x8x8xbf16>, vector<1x8x8xbf16>, vector<1x8x8xbf16> -> vector<4x8x8xbf16>
    %cst_65 = arith.constant dense<0.000000e+00> : vector<8xf32>
    %134 = vector.multi_reduction <add>, %40, %cst_65 [1] : vector<8x32xf32> to vector<8xf32>
    %135 = vector.shape_cast %134 : vector<8xf32> to vector<8x1xf32>
    %cst_66 = arith.constant 3.200000e+01 : f32
    %136 = vector.broadcast %cst_66 : f32 to vector<8x1xf32>
    %137 = arith.divf %135, %136 : vector<8x1xf32>
    %138 = vector.broadcast %137 : vector<8x1xf32> to vector<8x32xf32>
    %139 = arith.subf %40, %138 : vector<8x32xf32>
    %140 = arith.mulf %139, %139 : vector<8x32xf32>
    %cst_67 = arith.constant dense<0.000000e+00> : vector<8xf32>
    %141 = vector.multi_reduction <add>, %140, %cst_67 [1] : vector<8x32xf32> to vector<8xf32>
    %142 = vector.shape_cast %141 : vector<8xf32> to vector<8x1xf32>
    %cst_68 = arith.constant 3.200000e+01 : f32
    %143 = vector.broadcast %cst_68 : f32 to vector<8x1xf32>
    %144 = arith.divf %142, %143 : vector<8x1xf32>
    %145 = vector.broadcast %137 : vector<8x1xf32> to vector<8x32xf32>
    %146 = arith.subf %40, %145 : vector<8x32xf32>
    %cst_69 = arith.constant 9.99999974E-6 : f32
    %147 = vector.broadcast %cst_69 : f32 to vector<8x1xf32>
    %148 = arith.addf %144, %147 : vector<8x1xf32>
    %149 = math.rsqrt %148 : vector<8x1xf32>
    %150 = vector.broadcast %149 : vector<8x1xf32> to vector<8x32xf32>
    %151 = arith.mulf %146, %150 : vector<8x32xf32>
    %152 = vector.broadcast %0 : vector<1x32xf32> to vector<8x32xf32>
    %153 = arith.mulf %151, %152 : vector<8x32xf32>
    %154 = vector.broadcast %1 : vector<1x32xf32> to vector<8x32xf32>
    %155 = arith.addf %153, %154 : vector<8x32xf32>
    %156 = arith.truncf %155 : vector<8x32xf32> to vector<8x32xbf16>
    %cst_70 = arith.constant dense<0.000000e+00> : vector<8x32xf32>
    %157 = tpu.matmul %156, %4, %cst_70 {dimension_numbers = #tpu.dot_dimension_numbers<[1], [0], [0], [1], [0, 0, 1, 1], [], []>} : vector<8x32xbf16>, vector<32x32xbf16>, vector<8x32xf32> -> vector<8x32xf32>
    %158 = vector.broadcast %5 : vector<1x32xf32> to vector<8x32xf32>
    %159 = arith.addf %157, %158 : vector<8x32xf32>
    %160 = arith.truncf %159 : vector<8x32xf32> to vector<8x32xbf16>
    %161 = vector.extract_strided_slice %160 {offsets = [0, 0], sizes = [8, 8], strides = [1, 1]} : vector<8x32xbf16> to vector<8x8xbf16>
    %162 = vector.extract_strided_slice %160 {offsets = [0, 8], sizes = [8, 8], strides = [1, 1]} : vector<8x32xbf16> to vector<8x8xbf16>
    %163 = vector.extract_strided_slice %160 {offsets = [0, 16], sizes = [8, 8], strides = [1, 1]} : vector<8x32xbf16> to vector<8x8xbf16>
    %164 = vector.extract_strided_slice %160 {offsets = [0, 24], sizes = [8, 8], strides = [1, 1]} : vector<8x32xbf16> to vector<8x8xbf16>
    %165 = vector.shape_cast %161 : vector<8x8xbf16> to vector<1x8x8xbf16>
    %166 = vector.shape_cast %162 : vector<8x8xbf16> to vector<1x8x8xbf16>
    %167 = vector.shape_cast %163 : vector<8x8xbf16> to vector<1x8x8xbf16>
    %168 = vector.shape_cast %164 : vector<8x8xbf16> to vector<1x8x8xbf16>
    %169 = tpu.concatenate %165, %166, %167, %168 in 0 : vector<1x8x8xbf16>, vector<1x8x8xbf16>, vector<1x8x8xbf16>, vector<1x8x8xbf16> -> vector<4x8x8xbf16>
    "tpu.trace_start"() <{level = 10 : i32, message = "hqd,hkd->hqk"}> : () -> ()
    %cst_71 = arith.constant dense<0.000000e+00> : vector<4x8x8xf32>
    %170 = tpu.matmul %169, %122, %cst_71 {dimension_numbers = #tpu.dot_dimension_numbers<[2], [2], [1], [1], [0, 0, 0, 1, 1, 1], [0], [0]>} : vector<4x8x8xbf16>, vector<4x8x8xbf16>, vector<4x8x8xf32> -> vector<4x8x8xf32>
    "tpu.trace_stop"() : () -> ()
    %171 = vector.broadcast %54 : vector<1x8x8xf32> to vector<4x8x8xf32>
    %172 = arith.addf %170, %171 : vector<4x8x8xf32>
    %cst_72 = arith.constant dense<0xFF800000> : vector<4x8xf32>
    %173 = vector.multi_reduction <maximumf>, %172, %cst_72 [2] : vector<4x8x8xf32> to vector<4x8xf32>
    %174 = vector.shape_cast %173 : vector<4x8xf32> to vector<4x8x1xf32>
    %175 = vector.broadcast %174 : vector<4x8x1xf32> to vector<4x8x8xf32>
    %176 = arith.subf %172, %175 : vector<4x8x8xf32>
    %177 = math.exp %176 : vector<4x8x8xf32>
    %cst_73 = arith.constant dense<0.000000e+00> : vector<4x8xf32>
    %178 = vector.multi_reduction <add>, %177, %cst_73 [2] : vector<4x8x8xf32> to vector<4x8xf32>
    %179 = vector.shape_cast %178 : vector<4x8xf32> to vector<4x8x1xf32>
    %180 = tpu.reciprocal %179 {approx = true} : vector<4x8x1xf32> -> vector<4x8x1xf32>
    %181 = vector.broadcast %180 : vector<4x8x1xf32> to vector<4x8x8xf32>
    %182 = arith.mulf %177, %181 : vector<4x8x8xf32>
    %183 = arith.truncf %182 : vector<4x8x8xf32> to vector<4x8x8xbf16>
    "tpu.trace_start"() <{level = 10 : i32, message = "hqk,hkd->hqd"}> : () -> ()
    %cst_74 = arith.constant dense<0.000000e+00> : vector<4x8x8xf32>
    %184 = tpu.matmul %183, %133, %cst_74 {dimension_numbers = #tpu.dot_dimension_numbers<[2], [1], [1], [2], [0, 0, 0, 1, 1, 2], [0], [0]>} : vector<4x8x8xbf16>, vector<4x8x8xbf16>, vector<4x8x8xf32> -> vector<4x8x8xf32>
    "tpu.trace_stop"() : () -> ()
    %185 = vector.extract_strided_slice %184 {offsets = [0, 0, 0], sizes = [1, 8, 8], strides = [1, 1, 1]} : vector<4x8x8xf32> to vector<1x8x8xf32>
    %186 = vector.shape_cast %185 : vector<1x8x8xf32> to vector<8x8xf32>
    %187 = vector.extract_strided_slice %184 {offsets = [1, 0, 0], sizes = [1, 8, 8], strides = [1, 1, 1]} : vector<4x8x8xf32> to vector<1x8x8xf32>
    %188 = vector.shape_cast %187 : vector<1x8x8xf32> to vector<8x8xf32>
    %189 = vector.extract_strided_slice %184 {offsets = [2, 0, 0], sizes = [1, 8, 8], strides = [1, 1, 1]} : vector<4x8x8xf32> to vector<1x8x8xf32>
    %190 = vector.shape_cast %189 : vector<1x8x8xf32> to vector<8x8xf32>
    %191 = vector.extract_strided_slice %184 {offsets = [3, 0, 0], sizes = [1, 8, 8], strides = [1, 1, 1]} : vector<4x8x8xf32> to vector<1x8x8xf32>
    %192 = vector.shape_cast %191 : vector<1x8x8xf32> to vector<8x8xf32>
    %193 = tpu.concatenate %186, %188, %190, %192 in 1 : vector<8x8xf32>, vector<8x8xf32>, vector<8x8xf32>, vector<8x8xf32> -> vector<8x32xf32>
    %194 = arith.truncf %193 : vector<8x32xf32> to vector<8x32xbf16>
    %cst_75 = arith.constant dense<0.000000e+00> : vector<8x32xf32>
    %195 = tpu.matmul %194, %6, %cst_75 {dimension_numbers = #tpu.dot_dimension_numbers<[1], [0], [0], [1], [0, 0, 1, 1], [], []>} : vector<8x32xbf16>, vector<32x32xbf16>, vector<8x32xf32> -> vector<8x32xf32>
    %196 = vector.broadcast %7 : vector<1x32xf32> to vector<8x32xf32>
    %197 = arith.addf %195, %196 : vector<8x32xf32>
    %198 = arith.addf %155, %197 : vector<8x32xf32>
    %cst_76 = arith.constant dense<0.000000e+00> : vector<8xf32>
    %199 = vector.multi_reduction <add>, %198, %cst_76 [1] : vector<8x32xf32> to vector<8xf32>
    %200 = vector.shape_cast %199 : vector<8xf32> to vector<8x1xf32>
    %cst_77 = arith.constant 3.200000e+01 : f32
    %201 = vector.broadcast %cst_77 : f32 to vector<8x1xf32>
    %202 = arith.divf %200, %201 : vector<8x1xf32>
    %203 = vector.broadcast %202 : vector<8x1xf32> to vector<8x32xf32>
    %204 = arith.subf %198, %203 : vector<8x32xf32>
    %205 = arith.mulf %204, %204 : vector<8x32xf32>
    %cst_78 = arith.constant dense<0.000000e+00> : vector<8xf32>
    %206 = vector.multi_reduction <add>, %205, %cst_78 [1] : vector<8x32xf32> to vector<8xf32>
    %207 = vector.shape_cast %206 : vector<8xf32> to vector<8x1xf32>
    %cst_79 = arith.constant 3.200000e+01 : f32
    %208 = vector.broadcast %cst_79 : f32 to vector<8x1xf32>
    %209 = arith.divf %207, %208 : vector<8x1xf32>
    %210 = vector.broadcast %202 : vector<8x1xf32> to vector<8x32xf32>
    %211 = arith.subf %198, %210 : vector<8x32xf32>
    %cst_80 = arith.constant 9.99999974E-6 : f32
    %212 = vector.broadcast %cst_80 : f32 to vector<8x1xf32>
    %213 = arith.addf %209, %212 : vector<8x1xf32>
    %214 = math.rsqrt %213 : vector<8x1xf32>
    %215 = vector.broadcast %214 : vector<8x1xf32> to vector<8x32xf32>
    %216 = arith.mulf %211, %215 : vector<8x32xf32>
    %217 = vector.broadcast %2 : vector<1x32xf32> to vector<8x32xf32>
    %218 = arith.mulf %216, %217 : vector<8x32xf32>
    %219 = vector.broadcast %3 : vector<1x32xf32> to vector<8x32xf32>
    %220 = arith.addf %218, %219 : vector<8x32xf32>
    %221 = arith.truncf %220 : vector<8x32xf32> to vector<8x32xbf16>
    %cst_81 = arith.constant dense<0.000000e+00> : vector<8x128xf32>
    %222 = tpu.matmul %221, %8, %cst_81 {dimension_numbers = #tpu.dot_dimension_numbers<[1], [0], [0], [1], [0, 0, 1, 1], [], []>} : vector<8x32xbf16>, vector<32x128xbf16>, vector<8x128xf32> -> vector<8x128xf32>
    %223 = vector.broadcast %9 : vector<1x128xf32> to vector<8x128xf32>
    %224 = arith.addf %222, %223 : vector<8x128xf32>
    %cst_82 = arith.constant 0.000000e+00 : f32
    %225 = vector.broadcast %cst_82 : f32 to vector<8x128xf32>
    %226 = arith.maximumf %224, %225 : vector<8x128xf32>
    %227 = arith.truncf %226 : vector<8x128xf32> to vector<8x128xbf16>
    %cst_83 = arith.constant dense<0.000000e+00> : vector<8x32xf32>
    %228 = tpu.matmul %227, %10, %cst_83 {dimension_numbers = #tpu.dot_dimension_numbers<[1], [0], [0], [1], [0, 0, 1, 1], [], []>} : vector<8x128xbf16>, vector<128x32xbf16>, vector<8x32xf32> -> vector<8x32xf32>
    %229 = vector.broadcast %11 : vector<1x32xf32> to vector<8x32xf32>
    %230 = arith.addf %228, %229 : vector<8x32xf32>
    %231 = arith.addf %220, %230 : vector<8x32xf32>
    %cst_84 = arith.constant dense<0.000000e+00> : vector<8xf32>
    %232 = vector.multi_reduction <add>, %231, %cst_84 [1] : vector<8x32xf32> to vector<8xf32>
    %233 = vector.shape_cast %232 : vector<8xf32> to vector<8x1xf32>
    %cst_85 = arith.constant 3.200000e+01 : f32
    %234 = vector.broadcast %cst_85 : f32 to vector<8x1xf32>
    %235 = arith.divf %233, %234 : vector<8x1xf32>
    %236 = vector.broadcast %235 : vector<8x1xf32> to vector<8x32xf32>
    %237 = arith.subf %231, %236 : vector<8x32xf32>
    %238 = arith.mulf %237, %237 : vector<8x32xf32>
    %cst_86 = arith.constant dense<0.000000e+00> : vector<8xf32>
    %239 = vector.multi_reduction <add>, %238, %cst_86 [1] : vector<8x32xf32> to vector<8xf32>
    %240 = vector.shape_cast %239 : vector<8xf32> to vector<8x1xf32>
    %cst_87 = arith.constant 3.200000e+01 : f32
    %241 = vector.broadcast %cst_87 : f32 to vector<8x1xf32>
    %242 = arith.divf %240, %241 : vector<8x1xf32>
    %243 = vector.broadcast %235 : vector<8x1xf32> to vector<8x32xf32>
    %244 = arith.subf %231, %243 : vector<8x32xf32>
    %cst_88 = arith.constant 9.99999974E-6 : f32
    %245 = vector.broadcast %cst_88 : f32 to vector<8x1xf32>
    %246 = arith.addf %242, %245 : vector<8x1xf32>
    %247 = math.rsqrt %246 : vector<8x1xf32>
    %248 = vector.broadcast %247 : vector<8x1xf32> to vector<8x32xf32>
    %249 = arith.mulf %244, %248 : vector<8x32xf32>
    %250 = vector.broadcast %0 : vector<1x32xf32> to vector<8x32xf32>
    %251 = arith.mulf %249, %250 : vector<8x32xf32>
    %252 = vector.broadcast %1 : vector<1x32xf32> to vector<8x32xf32>
    %253 = arith.addf %251, %252 : vector<8x32xf32>
    %254 = arith.truncf %253 : vector<8x32xf32> to vector<8x32xbf16>
    %cst_89 = arith.constant dense<0.000000e+00> : vector<8x32xf32>
    %255 = tpu.matmul %254, %4, %cst_89 {dimension_numbers = #tpu.dot_dimension_numbers<[1], [0], [0], [1], [0, 0, 1, 1], [], []>} : vector<8x32xbf16>, vector<32x32xbf16>, vector<8x32xf32> -> vector<8x32xf32>
    %256 = vector.broadcast %5 : vector<1x32xf32> to vector<8x32xf32>
    %257 = arith.addf %255, %256 : vector<8x32xf32>
    %258 = arith.truncf %257 : vector<8x32xf32> to vector<8x32xbf16>
    %259 = vector.extract_strided_slice %258 {offsets = [0, 0], sizes = [8, 8], strides = [1, 1]} : vector<8x32xbf16> to vector<8x8xbf16>
    %260 = vector.extract_strided_slice %258 {offsets = [0, 8], sizes = [8, 8], strides = [1, 1]} : vector<8x32xbf16> to vector<8x8xbf16>
    %261 = vector.extract_strided_slice %258 {offsets = [0, 16], sizes = [8, 8], strides = [1, 1]} : vector<8x32xbf16> to vector<8x8xbf16>
    %262 = vector.extract_strided_slice %258 {offsets = [0, 24], sizes = [8, 8], strides = [1, 1]} : vector<8x32xbf16> to vector<8x8xbf16>
    %263 = vector.shape_cast %259 : vector<8x8xbf16> to vector<1x8x8xbf16>
    %264 = vector.shape_cast %260 : vector<8x8xbf16> to vector<1x8x8xbf16>
    %265 = vector.shape_cast %261 : vector<8x8xbf16> to vector<1x8x8xbf16>
    %266 = vector.shape_cast %262 : vector<8x8xbf16> to vector<1x8x8xbf16>
    %267 = tpu.concatenate %263, %264, %265, %266 in 0 : vector<1x8x8xbf16>, vector<1x8x8xbf16>, vector<1x8x8xbf16>, vector<1x8x8xbf16> -> vector<4x8x8xbf16>
    "tpu.trace_start"() <{level = 10 : i32, message = "hqd,hkd->hqk"}> : () -> ()
    %cst_90 = arith.constant dense<0.000000e+00> : vector<4x8x8xf32>
    %268 = tpu.matmul %267, %122, %cst_90 {dimension_numbers = #tpu.dot_dimension_numbers<[2], [2], [1], [1], [0, 0, 0, 1, 1, 1], [0], [0]>} : vector<4x8x8xbf16>, vector<4x8x8xbf16>, vector<4x8x8xf32> -> vector<4x8x8xf32>
    "tpu.trace_stop"() : () -> ()
    %269 = vector.broadcast %54 : vector<1x8x8xf32> to vector<4x8x8xf32>
    %270 = arith.addf %268, %269 : vector<4x8x8xf32>
    %cst_91 = arith.constant dense<0xFF800000> : vector<4x8xf32>
    %271 = vector.multi_reduction <maximumf>, %270, %cst_91 [2] : vector<4x8x8xf32> to vector<4x8xf32>
    %272 = vector.shape_cast %271 : vector<4x8xf32> to vector<4x8x1xf32>
    %273 = vector.broadcast %272 : vector<4x8x1xf32> to vector<4x8x8xf32>
    %274 = arith.subf %270, %273 : vector<4x8x8xf32>
    %275 = math.exp %274 : vector<4x8x8xf32>
    %cst_92 = arith.constant dense<0.000000e+00> : vector<4x8xf32>
    %276 = vector.multi_reduction <add>, %275, %cst_92 [2] : vector<4x8x8xf32> to vector<4x8xf32>
    %277 = vector.shape_cast %276 : vector<4x8xf32> to vector<4x8x1xf32>
    %278 = tpu.reciprocal %277 {approx = true} : vector<4x8x1xf32> -> vector<4x8x1xf32>
    %279 = vector.broadcast %278 : vector<4x8x1xf32> to vector<4x8x8xf32>
    %280 = arith.mulf %275, %279 : vector<4x8x8xf32>
    %281 = arith.truncf %280 : vector<4x8x8xf32> to vector<4x8x8xbf16>
    "tpu.trace_start"() <{level = 10 : i32, message = "hqk,hkd->hqd"}> : () -> ()
    %cst_93 = arith.constant dense<0.000000e+00> : vector<4x8x8xf32>
    %282 = tpu.matmul %281, %133, %cst_93 {dimension_numbers = #tpu.dot_dimension_numbers<[2], [1], [1], [2], [0, 0, 0, 1, 1, 2], [0], [0]>} : vector<4x8x8xbf16>, vector<4x8x8xbf16>, vector<4x8x8xf32> -> vector<4x8x8xf32>
    "tpu.trace_stop"() : () -> ()
    %283 = vector.extract_strided_slice %282 {offsets = [0, 0, 0], sizes = [1, 8, 8], strides = [1, 1, 1]} : vector<4x8x8xf32> to vector<1x8x8xf32>
    %284 = vector.shape_cast %283 : vector<1x8x8xf32> to vector<8x8xf32>
    %285 = vector.extract_strided_slice %282 {offsets = [1, 0, 0], sizes = [1, 8, 8], strides = [1, 1, 1]} : vector<4x8x8xf32> to vector<1x8x8xf32>
    %286 = vector.shape_cast %285 : vector<1x8x8xf32> to vector<8x8xf32>
    %287 = vector.extract_strided_slice %282 {offsets = [2, 0, 0], sizes = [1, 8, 8], strides = [1, 1, 1]} : vector<4x8x8xf32> to vector<1x8x8xf32>
    %288 = vector.shape_cast %287 : vector<1x8x8xf32> to vector<8x8xf32>
    %289 = vector.extract_strided_slice %282 {offsets = [3, 0, 0], sizes = [1, 8, 8], strides = [1, 1, 1]} : vector<4x8x8xf32> to vector<1x8x8xf32>
    %290 = vector.shape_cast %289 : vector<1x8x8xf32> to vector<8x8xf32>
    %291 = tpu.concatenate %284, %286, %288, %290 in 1 : vector<8x8xf32>, vector<8x8xf32>, vector<8x8xf32>, vector<8x8xf32> -> vector<8x32xf32>
    %292 = arith.truncf %291 : vector<8x32xf32> to vector<8x32xbf16>
    %cst_94 = arith.constant dense<0.000000e+00> : vector<8x32xf32>
    %293 = tpu.matmul %292, %6, %cst_94 {dimension_numbers = #tpu.dot_dimension_numbers<[1], [0], [0], [1], [0, 0, 1, 1], [], []>} : vector<8x32xbf16>, vector<32x32xbf16>, vector<8x32xf32> -> vector<8x32xf32>
    %294 = vector.broadcast %7 : vector<1x32xf32> to vector<8x32xf32>
    %295 = arith.addf %293, %294 : vector<8x32xf32>
    %296 = arith.addf %253, %295 : vector<8x32xf32>
    %cst_95 = arith.constant dense<0.000000e+00> : vector<8xf32>
    %297 = vector.multi_reduction <add>, %296, %cst_95 [1] : vector<8x32xf32> to vector<8xf32>
    %298 = vector.shape_cast %297 : vector<8xf32> to vector<8x1xf32>
    %cst_96 = arith.constant 3.200000e+01 : f32
    %299 = vector.broadcast %cst_96 : f32 to vector<8x1xf32>
    %300 = arith.divf %298, %299 : vector<8x1xf32>
    %301 = vector.broadcast %300 : vector<8x1xf32> to vector<8x32xf32>
    %302 = arith.subf %296, %301 : vector<8x32xf32>
    %303 = arith.mulf %302, %302 : vector<8x32xf32>
    %cst_97 = arith.constant dense<0.000000e+00> : vector<8xf32>
    %304 = vector.multi_reduction <add>, %303, %cst_97 [1] : vector<8x32xf32> to vector<8xf32>
    %305 = vector.shape_cast %304 : vector<8xf32> to vector<8x1xf32>
    %cst_98 = arith.constant 3.200000e+01 : f32
    %306 = vector.broadcast %cst_98 : f32 to vector<8x1xf32>
    %307 = arith.divf %305, %306 : vector<8x1xf32>
    %308 = vector.broadcast %300 : vector<8x1xf32> to vector<8x32xf32>
    %309 = arith.subf %296, %308 : vector<8x32xf32>
    %cst_99 = arith.constant 9.99999974E-6 : f32
    %310 = vector.broadcast %cst_99 : f32 to vector<8x1xf32>
    %311 = arith.addf %307, %310 : vector<8x1xf32>
    %312 = math.rsqrt %311 : vector<8x1xf32>
    %313 = vector.broadcast %312 : vector<8x1xf32> to vector<8x32xf32>
    %314 = arith.mulf %309, %313 : vector<8x32xf32>
    %315 = vector.broadcast %2 : vector<1x32xf32> to vector<8x32xf32>
    %316 = arith.mulf %314, %315 : vector<8x32xf32>
    %317 = vector.broadcast %3 : vector<1x32xf32> to vector<8x32xf32>
    %318 = arith.addf %316, %317 : vector<8x32xf32>
    %319 = arith.truncf %318 : vector<8x32xf32> to vector<8x32xbf16>
    %cst_100 = arith.constant dense<0.000000e+00> : vector<8x128xf32>
    %320 = tpu.matmul %319, %8, %cst_100 {dimension_numbers = #tpu.dot_dimension_numbers<[1], [0], [0], [1], [0, 0, 1, 1], [], []>} : vector<8x32xbf16>, vector<32x128xbf16>, vector<8x128xf32> -> vector<8x128xf32>
    %321 = vector.broadcast %9 : vector<1x128xf32> to vector<8x128xf32>
    %322 = arith.addf %320, %321 : vector<8x128xf32>
    %cst_101 = arith.constant 0.000000e+00 : f32
    %323 = vector.broadcast %cst_101 : f32 to vector<8x128xf32>
    %324 = arith.maximumf %322, %323 : vector<8x128xf32>
    %325 = arith.truncf %324 : vector<8x128xf32> to vector<8x128xbf16>
    %cst_102 = arith.constant dense<0.000000e+00> : vector<8x32xf32>
    %326 = tpu.matmul %325, %10, %cst_102 {dimension_numbers = #tpu.dot_dimension_numbers<[1], [0], [0], [1], [0, 0, 1, 1], [], []>} : vector<8x128xbf16>, vector<128x32xbf16>, vector<8x32xf32> -> vector<8x32xf32>
    %327 = vector.broadcast %11 : vector<1x32xf32> to vector<8x32xf32>
    %328 = arith.addf %326, %327 : vector<8x32xf32>
    %329 = arith.addf %318, %328 : vector<8x32xf32>
    %c0_103 = arith.constant 0 : index
    %c0_104 = arith.constant 0 : index
    %c0_105 = arith.constant 0 : index
    %330 = vector.load %arg23[%c0_103, %c0_104, %c0_105] : memref<1x8x32xf32, #tpu.memory_space<vmem>>, vector<1x8x32xf32>
    %331 = vector.shape_cast %330 : vector<1x8x32xf32> to vector<8x32xf32>
    %332 = vector.shape_cast %329 : vector<8x32xf32> to vector<1x8x32xf32>
    tpu.vector_store %arg23[%c0_103, %c0_104, %c0_105], %332 {strides = array<i32>} : memref<1x8x32xf32, #tpu.memory_space<vmem>>, vector<1x8x32xf32>,
    return
  }
  func.func @transform_0(%arg0: i32, %arg1: i32) -> (i32, i32, i32) {
    %c0_i32 = arith.constant 0 : i32
    %c0_i32_0 = arith.constant 0 : i32
    return %arg0, %arg1, %c0_i32 : i32, i32, i32
  }
  func.func @transform_1(%arg0: i32, %arg1: i32) -> (i32, i32, i32) {
    %c0_i32 = arith.constant 0 : i32
    %c0_i32_0 = arith.constant 0 : i32
    %c0_i32_1 = arith.constant 0 : i32
    return %arg0, %c0_i32, %c0_i32_0 : i32, i32, i32
  }
  func.func @transform_2(%arg0: i32, %arg1: i32) -> (i32, i32, i32) {
    %c0_i32 = arith.constant 0 : i32
    %c0_i32_0 = arith.constant 0 : i32
    %c0_i32_1 = arith.constant 0 : i32
    return %arg0, %c0_i32, %c0_i32_0 : i32, i32, i32
  }
  func.func @transform_3(%arg0: i32, %arg1: i32) -> (i32, i32) {
    %c0_i32 = arith.constant 0 : i32
    %c0_i32_0 = arith.constant 0 : i32
    return %arg1, %c0_i32 : i32, i32
  }
  func.func @transform_4(%arg0: i32, %arg1: i32) -> (i32, i32) {
    %c0_i32 = arith.constant 0 : i32
    %c0_i32_0 = arith.constant 0 : i32
    return %arg1, %c0_i32 : i32, i32
  }
  func.func @transform_5(%arg0: i32, %arg1: i32) -> (i32, i32) {
    %c0_i32 = arith.constant 0 : i32
    %c0_i32_0 = arith.constant 0 : i32
    %c0_i32_1 = arith.constant 0 : i32
    return %c0_i32, %c0_i32_0 : i32, i32
  }
  func.func @transform_6(%arg0: i32, %arg1: i32) -> (i32, i32) {
    %c0_i32 = arith.constant 0 : i32
    %c0_i32_0 = arith.constant 0 : i32
    %c0_i32_1 = arith.constant 0 : i32
    return %c0_i32, %c0_i32_0 : i32, i32
  }
  func.func @transform_7(%arg0: i32, %arg1: i32) -> (i32, i32) {
    %c0_i32 = arith.constant 0 : i32
    %c0_i32_0 = arith.constant 0 : i32
    %c0_i32_1 = arith.constant 0 : i32
    return %c0_i32, %c0_i32_0 : i32, i32
  }
  func.func @transform_8(%arg0: i32, %arg1: i32) -> (i32, i32) {
    %c0_i32 = arith.constant 0 : i32
    %c0_i32_0 = arith.constant 0 : i32
    %c0_i32_1 = arith.constant 0 : i32
    return %c0_i32, %c0_i32_0 : i32, i32
  }
  func.func @transform_9(%arg0: i32, %arg1: i32) -> (i32, i32) {
    %c0_i32 = arith.constant 0 : i32
    %c0_i32_0 = arith.constant 0 : i32
    %c0_i32_1 = arith.constant 0 : i32
    return %c0_i32, %c0_i32_0 : i32, i32
  }
  func.func @transform_10(%arg0: i32, %arg1: i32) -> (i32, i32) {
    %c0_i32 = arith.constant 0 : i32
    %c0_i32_0 = arith.constant 0 : i32
    %c0_i32_1 = arith.constant 0 : i32
    return %c0_i32, %c0_i32_0 : i32, i32
  }
  func.func @transform_11(%arg0: i32, %arg1: i32) -> (i32, i32) {
    %c0_i32 = arith.constant 0 : i32
    %c0_i32_0 = arith.constant 0 : i32
    %c0_i32_1 = arith.constant 0 : i32
    return %c0_i32, %c0_i32_0 : i32, i32
  }
  func.func @transform_12(%arg0: i32, %arg1: i32) -> (i32, i32) {
    %c0_i32 = arith.constant 0 : i32
    %c0_i32_0 = arith.constant 0 : i32
    %c0_i32_1 = arith.constant 0 : i32
    return %c0_i32, %c0_i32_0 : i32, i32
  }
  func.func @transform_13(%arg0: i32, %arg1: i32) -> (i32, i32) {
    %c0_i32 = arith.constant 0 : i32
    %c0_i32_0 = arith.constant 0 : i32
    %c0_i32_1 = arith.constant 0 : i32
    return %c0_i32, %c0_i32_0 : i32, i32
  }
  func.func @transform_14(%arg0: i32, %arg1: i32) -> (i32, i32) {
    %c0_i32 = arith.constant 0 : i32
    %c0_i32_0 = arith.constant 0 : i32
    %c0_i32_1 = arith.constant 0 : i32
    return %c0_i32, %c0_i32_0 : i32, i32
  }
  func.func @transform_15(%arg0: i32, %arg1: i32) -> (i32, i32) {
    %c0_i32 = arith.constant 0 : i32
    %c0_i32_0 = arith.constant 0 : i32
    %c0_i32_1 = arith.constant 0 : i32
    return %c0_i32, %c0_i32_0 : i32, i32
  }
  func.func @transform_16(%arg0: i32, %arg1: i32) -> (i32, i32) {
    %c0_i32 = arith.constant 0 : i32
    %c0_i32_0 = arith.constant 0 : i32
    %c0_i32_1 = arith.constant 0 : i32
    return %c0_i32, %c0_i32_0 : i32, i32
  }
  func.func @transform_17(%arg0: i32, %arg1: i32) -> (i32, i32) {
    %c0_i32 = arith.constant 0 : i32
    %c0_i32_0 = arith.constant 0 : i32
    %c0_i32_1 = arith.constant 0 : i32
    return %c0_i32, %c0_i32_0 : i32, i32
  }
  func.func @transform_18(%arg0: i32, %arg1: i32) -> (i32, i32) {
    %c0_i32 = arith.constant 0 : i32
    %c0_i32_0 = arith.constant 0 : i32
    %c0_i32_1 = arith.constant 0 : i32
    return %c0_i32, %c0_i32_0 : i32, i32
  }
  func.func @transform_19(%arg0: i32, %arg1: i32) -> (i32, i32) {
    %c0_i32 = arith.constant 0 : i32
    %c0_i32_0 = arith.constant 0 : i32
    %c0_i32_1 = arith.constant 0 : i32
    return %c0_i32, %c0_i32_0 : i32, i32
  }
  func.func @transform_20(%arg0: i32, %arg1: i32) -> (i32, i32) {
    %c0_i32 = arith.constant 0 : i32
    %c0_i32_0 = arith.constant 0 : i32
    %c0_i32_1 = arith.constant 0 : i32
    return %c0_i32, %c0_i32_0 : i32, i32
  }
  func.func @transform_21(%arg0: i32, %arg1: i32) -> (i32, i32, i32) {
    %c0_i32 = arith.constant 0 : i32
    %c0_i32_0 = arith.constant 0 : i32
    return %arg0, %arg1, %c0_i32 : i32, i32, i32
  }
}

</mosaic_0001>

<llo_original>
// kernel: tile.28
$region0: #{tile.28}
  #allocation0 [shape = 's32[1]{0}', space=sflag, size = 0x4, scoped, tag = 'scoped memory for tile.28']
  %s0 = inlined_call_operand.vmem [shape: f32[2], index: 0, kind: input, shape index: {}]
  %s1 = inlined_call_operand.vmem [shape: f32[4,2], index: 1, kind: output, shape index: {}]
  // Predicated region
  $region2: #{tile.28} parent=0 // pred_check
    _
  $region3: #{tile.28} parent=0 // pred_check_branch
    %3 = sbr.rel (0) target = $region5
  $region4: #{tile.28} parent=0 // pred_region
    _
  $region5: #{tile.28} parent=0 // pred_fallthru
    _
  %v4 = vld [vmem:[%s0] ss:$0 sm:$0xff]
  %5 = vst [vmem:[%s1] sm:$0xf] %v4

// kernel: crossmodal_forward.1
$region0: #{crossmodal_forward.1}
  #allocation0 [shape = 'u32[]', space=smem, size = 0x4, offset = 0x4, fixed_abs, tag = 'smem constant byte address 0x4 - core index']
  #allocation1 [shape = 'u32[144,128]{1,0:T(1,128)}', space=vmem, size = 0x12000, scoped, tag = 'internal scratch']
  %s0 = inlined_call_operand.vmem [shape: f32[2,8,32], index: 0, kind: input, shape index: {}]
  %s1 = inlined_call_operand.vmem [shape: f32[2,8,32], index: 1, kind: input, shape index: {}]
  %s2 = inlined_call_operand.vmem [shape: f32[2,1,8], index: 2, kind: input, shape index: {}]
  %s3 = inlined_call_operand.vmem [shape: f32[8,32], index: 3, kind: input, shape index: {}, may-alias: {3,5}]
  %s4 = inlined_call_operand.vmem [shape: f32[8,32], index: 4, kind: input, shape index: {}, may-alias: {4,6}]
  %s5 = inlined_call_operand.vmem [shape: f32[8,32], index: 5, kind: input, shape index: {}, may-alias: {3,5}]
  %s6 = inlined_call_operand.vmem [shape: f32[8,32], index: 6, kind: input, shape index: {}, may-alias: {4,6}]
  %s7 = inlined_call_operand.vmem [shape: f32[1,32], index: 7, kind: input, shape index: {}]
  %s8 = inlined_call_operand.vmem [shape: f32[1,32], index: 8, kind: input, shape index: {}]
  %s9 = inlined_call_operand.vmem [shape: bf16[32,32], index: 9, kind: input, shape index: {}]
  %s10 = inlined_call_operand.vmem [shape: f32[1,32], index: 10, kind: input, shape index: {}]
  %s11 = inlined_call_operand.vmem [shape: bf16[32,64], index: 11, kind: input, shape index: {}]
  %s12 = inlined_call_operand.vmem [shape: f32[1,64], index: 12, kind: input, shape index: {}]
  %s13 = inlined_call_operand.vmem [shape: bf16[32,32], index: 13, kind: input, shape index: {}]
  %s14 = inlined_call_operand.vmem [shape: f32[1,32], index: 14, kind: input, shape index: {}]
  %s15 = inlined_call_operand.vmem [shape: f32[1,32], index: 15, kind: input, shape index: {}]
  %s16 = inlined_call_operand.vmem [shape: f32[1,32], index: 16, kind: input, shape index: {}]
  %s17 = inlined_call_operand.vmem [shape: bf16[32,128], index: 17, kind: input, shape index: {}]
  %s18 = inlined_call_operand.vmem [shape: f32[1,128], index: 18, kind: input, shape index: {}]
  %s19 = inlined_call_operand.vmem [shape: bf16[128,32], index: 19, kind: input, shape index: {}]
  %s20 = inlined_call_operand.vmem [shape: f32[1,32], index: 20, kind: input, shape index: {}]
  %s21 = inlined_call_operand.hbm [shape: f32[2,8,32], index: 21, kind: output, shape index: {}]
  %s22 = sld [smem:[#allocation0]]
  $region117: #{crossmodal_forward.1} parent=0
    _
  %s24 = ssub.s32 1, %s22
  %s25 = scalar_select 0, %s24, %s22
  $region1: #{crossmodal_forward.1} parent=0
    #allocation2 [shape = 'u8[8192]{0}', space=vmem, size = 0x2000, scoped, tag = 'output window, operand 0']
    #allocation3 [shape = 's32[2]{0}', space=sflag, size = 0x8, scoped, tag = 'scoped memory for crossmodal_forward.1']
    %26 = vsyncpa [#allocation3], 0
    %s27 = scalar_lea.sflag [#allocation3], 1
    %28 = vsyncpa %s27, 0
    loop: start=0, step=1, limit=4
    $region2: #{crossmodal_forward.1} parent=1 // loop_pre_header
      _
    $region3: #{crossmodal_forward.1} parent=1 // loop_header
      %s30 = sphi 0, %s34
      %p31 = scmp.ge.s32.totalorder %s30, 4
      %s37 = sphi 0, %s49
      %s38 = sphi 0, %s45
      %s39 = sphi 0, %s37
      %s40 = sphi 0, %s38
      %s41 = sphi 0, %s39
      %s42 = sphi 0, %s40
      %s54 = sphi 0, %s56
      %s57 = sphi 0, %s54
      %s58 = sphi 0, %s57
      %s74 = sphi 0, %s58
      %s80 = sphi 0, %s82
      %s83 = sphi 0, %s80
      %s84 = sphi 0, %s83
      %s100 = sphi 0, %s84
      %s106 = sphi 0, %s108
      %s109 = sphi 0, %s106
      %s110 = sphi 0, %s109
      %s126 = sphi 0, %s110
      %s132 = sphi 0, %s134
      %s135 = sphi 0, %s132
      %s136 = sphi 0, %s135
      %s152 = sphi 0, %s136
      %s158 = sphi 0, %s160
      %s161 = sphi 0, %s158
      %s162 = sphi 0, %s161
      %s178 = sphi 0, %s162
      %s182 = sphi 0, %s182
      %s184 = sphi 0, %s182
      %s185 = sphi 0, %s184
      %s199 = sphi 0, %s185
      %s203 = sphi 0, %s203
      %s205 = sphi 0, %s203
      %s206 = sphi 0, %s205
      %s220 = sphi 0, %s206
      %s224 = sphi 0, %s224
      %s226 = sphi 0, %s224
      %s227 = sphi 0, %s226
      %s241 = sphi 0, %s227
      %s245 = sphi 0, %s245
      %s247 = sphi 0, %s245
      %s248 = sphi 0, %s247
      %s262 = sphi 0, %s248
      %s266 = sphi 0, %s266
      %s268 = sphi 0, %s266
      %s269 = sphi 0, %s268
      %s283 = sphi 0, %s269
      %s287 = sphi 0, %s287
      %s289 = sphi 0, %s287
      %s290 = sphi 0, %s289
      %s304 = sphi 0, %s290
      %s308 = sphi 0, %s308
      %s310 = sphi 0, %s308
      %s311 = sphi 0, %s310
      %s325 = sphi 0, %s311
      %s329 = sphi 0, %s329
      %s331 = sphi 0, %s329
      %s332 = sphi 0, %s331
      %s346 = sphi 0, %s332
      %s350 = sphi 0, %s350
      %s352 = sphi 0, %s350
      %s353 = sphi 0, %s352
      %s367 = sphi 0, %s353
      %s371 = sphi 0, %s371
      %s373 = sphi 0, %s371
      %s374 = sphi 0, %s373
      %s388 = sphi 0, %s374
      %s392 = sphi 0, %s392
      %s394 = sphi 0, %s392
      %s395 = sphi 0, %s394
      %s409 = sphi 0, %s395
      %s413 = sphi 0, %s413
      %s415 = sphi 0, %s413
      %s416 = sphi 0, %s415
      %s430 = sphi 0, %s416
      %s434 = sphi 0, %s434
      %s436 = sphi 0, %s434
      %s437 = sphi 0, %s436
      %s451 = sphi 0, %s437
      %s455 = sphi 0, %s455
      %s457 = sphi 0, %s455
      %s458 = sphi 0, %s457
      %s472 = sphi 0, %s458
      %s476 = sphi 0, %s476
      %s478 = sphi 0, %s476
      %s479 = sphi 0, %s478
      %s493 = sphi 0, %s479
      %s497 = sphi 0, %s497
      %s499 = sphi 0, %s497
      %s500 = sphi 0, %s499
      %s514 = sphi 0, %s500
      %s522 = sphi 0, %s524
      %s525 = sphi 0, %s522
      %s526 = sphi 0, %s525
      %s542 = sphi 0, %s526
    $region4: #{crossmodal_forward.1} parent=1 // loop_header_branch
      %33 = sbr.rel (%p31) target = $region8
    $region5: #{crossmodal_forward.1} parent=1 // loop_body
      %s35 = ssub.s32 %s30, 1
      %s36 = ssub.s32 %s30, 2
      %s43 = sadd.s32 1, %s38
      %p44 = scmp.ge.s32.totalorder %s43, 1
      %s45 = scalar_select %p44, 0, %s43
      %s46 = sadd.s32 1, %s37
      %s47 = scalar_select %p44, %s46, %s37
      %p48 = scmp.ge.s32.totalorder %s47, 2
      %s49 = scalar_select %p48, 0, %s47
      %s50 = ssub.s32 %s37, %s49
      %s51 = ssub.s32 %s38, %s45
      %s52 = sor.u32 %s50, %s51
      %p53 = scmp.eq.s32.totalorder %s52, 0
      %s55 = sadd.s32 %s54, 1
      %s56 = scalar_select %p53, %s54, %s55
      %p59 = pneg %p53
      %p60 = scmp.eq.s32.totalorder %s30, 1
      %p61 = por %p59, %p60
      %p62 = scmp.ne.s32.totalorder %s54, %s57
      %p63 = scmp.eq.s32.totalorder %s30, 0
      %p64 = por %p62, %p63
      %p65 = scmp.ne.s32.totalorder %s54, %s57
      %p66 = scmp.eq.s32.totalorder %s35, 1
      %p67 = por %p65, %p66
      %p68 = scmp.ne.s32.totalorder %s57, %s58
      %p69 = scmp.eq.s32.totalorder %s35, 0
      %p70 = por %p68, %p69
      %p71 = scmp.ne.s32.totalorder %s57, %s58
      %p72 = scmp.eq.s32.totalorder %s36, 1
      %p73 = por %p71, %p72
      %p75 = scmp.ne.s32.totalorder %s58, %s74
      %p76 = scmp.eq.s32.totalorder %s36, 0
      %p77 = por %p75, %p76
      %s78 = ssub.s32 %s37, %s49
      %p79 = scmp.eq.s32.totalorder %s78, 0
      %s81 = sadd.s32 %s80, 1
      %s82 = scalar_select %p79, %s80, %s81
      %p85 = pneg %p79
      %p86 = scmp.eq.s32.totalorder %s30, 1
      %p87 = por %p85, %p86
      %p88 = scmp.ne.s32.totalorder %s80, %s83
      %p89 = scmp.eq.s32.totalorder %s30, 0
      %p90 = por %p88, %p89
      %p91 = scmp.ne.s32.totalorder %s80, %s83
      %p92 = scmp.eq.s32.totalorder %s35, 1
      %p93 = por %p91, %p92
      %p94 = scmp.ne.s32.totalorder %s83, %s84
      %p95 = scmp.eq.s32.totalorder %s35, 0
      %p96 = por %p94, %p95
      %p97 = scmp.ne.s32.totalorder %s83, %s84
      %p98 = scmp.eq.s32.totalorder %s36, 1
      %p99 = por %p97, %p98
      %p101 = scmp.ne.s32.totalorder %s84, %s100
      %p102 = scmp.eq.s32.totalorder %s36, 0
      %p103 = por %p101, %p102
      %s104 = ssub.s32 %s37, %s49
      %p105 = scmp.eq.s32.totalorder %s104, 0
      %s107 = sadd.s32 %s106, 1
      %s108 = scalar_select %p105, %s106, %s107
      %p111 = pneg %p105
      %p112 = scmp.eq.s32.totalorder %s30, 1
      %p113 = por %p111, %p112
      %p114 = scmp.ne.s32.totalorder %s106, %s109
      %p115 = scmp.eq.s32.totalorder %s30, 0
      %p116 = por %p114, %p115
      %p117 = scmp.ne.s32.totalorder %s106, %s109
      %p118 = scmp.eq.s32.totalorder %s35, 1
      %p119 = por %p117, %p118
      %p120 = scmp.ne.s32.totalorder %s109, %s110
      %p121 = scmp.eq.s32.totalorder %s35, 0
      %p122 = por %p120, %p121
      %p123 = scmp.ne.s32.totalorder %s109, %s110
      %p124 = scmp.eq.s32.totalorder %s36, 1
      %p125 = por %p123, %p124
      %p127 = scmp.ne.s32.totalorder %s110, %s126
      %p128 = scmp.eq.s32.totalorder %s36, 0
      %p129 = por %p127, %p128
      %s130 = ssub.s32 %s38, %s45
      %p131 = scmp.eq.s32.totalorder %s130, 0
      %s133 = sadd.s32 %s132, 1
      %s134 = scalar_select %p131, %s132, %s133
      %p137 = pneg %p131
      %p138 = scmp.eq.s32.totalorder %s30, 1
      %p139 = por %p137, %p138
      %p140 = scmp.ne.s32.totalorder %s132, %s135
      %p141 = scmp.eq.s32.totalorder %s30, 0
      %p142 = por %p140, %p141
      %p143 = scmp.ne.s32.totalorder %s132, %s135
      %p144 = scmp.eq.s32.totalorder %s35, 1
      %p145 = por %p143, %p144
      %p146 = scmp.ne.s32.totalorder %s135, %s136
      %p147 = scmp.eq.s32.totalorder %s35, 0
      %p148 = por %p146, %p147
      %p149 = scmp.ne.s32.totalorder %s135, %s136
      %p150 = scmp.eq.s32.totalorder %s36, 1
      %p151 = por %p149, %p150
      %p153 = scmp.ne.s32.totalorder %s136, %s152
      %p154 = scmp.eq.s32.totalorder %s36, 0
      %p155 = por %p153, %p154
      %s156 = ssub.s32 %s38, %s45
      %p157 = scmp.eq.s32.totalorder %s156, 0
      %s159 = sadd.s32 %s158, 1
      %s160 = scalar_select %p157, %s158, %s159
      %p163 = pneg %p157
      %p164 = scmp.eq.s32.totalorder %s30, 1
      %p165 = por %p163, %p164
      %p166 = scmp.ne.s32.totalorder %s158, %s161
      %p167 = scmp.eq.s32.totalorder %s30, 0
      %p168 = por %p166, %p167
      %p169 = scmp.ne.s32.totalorder %s158, %s161
      %p170 = scmp.eq.s32.totalorder %s35, 1
      %p171 = por %p169, %p170
      %p172 = scmp.ne.s32.totalorder %s161, %s162
      %p173 = scmp.eq.s32.totalorder %s35, 0
      %p174 = por %p172, %p173
      %p175 = scmp.ne.s32.totalorder %s161, %s162
      %p176 = scmp.eq.s32.totalorder %s36, 1
      %p177 = por %p175, %p176
      %p179 = scmp.ne.s32.totalorder %s162, %s178
      %p180 = scmp.eq.s32.totalorder %s36, 0
      %p181 = por %p179, %p180
      %s183 = sadd.s32 %s182, 1
      %p186 = scmp.eq.s32.totalorder %s30, 1
      %p187 = scmp.ne.s32.totalorder %s182, %s184
      %p188 = scmp.eq.s32.totalorder %s30, 0
      %p189 = por %p187, %p188
      %p190 = scmp.ne.s32.totalorder %s182, %s184
      %p191 = scmp.eq.s32.totalorder %s35, 1
      %p192 = por %p190, %p191
      %p193 = scmp.ne.s32.totalorder %s184, %s185
      %p194 = scmp.eq.s32.totalorder %s35, 0
      %p195 = por %p193, %p194
      %p196 = scmp.ne.s32.totalorder %s184, %s185
      %p197 = scmp.eq.s32.totalorder %s36, 1
      %p198 = por %p196, %p197
      %p200 = scmp.ne.s32.totalorder %s185, %s199
      %p201 = scmp.eq.s32.totalorder %s36, 0
      %p202 = por %p200, %p201
      %s204 = sadd.s32 %s203, 1
      %p207 = scmp.eq.s32.totalorder %s30, 1
      %p208 = scmp.ne.s32.totalorder %s203, %s205
      %p209 = scmp.eq.s32.totalorder %s30, 0
      %p210 = por %p208, %p209
      %p211 = scmp.ne.s32.totalorder %s203, %s205
      %p212 = scmp.eq.s32.totalorder %s35, 1
      %p213 = por %p211, %p212
      %p214 = scmp.ne.s32.totalorder %s205, %s206
      %p215 = scmp.eq.s32.totalorder %s35, 0
      %p216 = por %p214, %p215
      %p217 = scmp.ne.s32.totalorder %s205, %s206
      %p218 = scmp.eq.s32.totalorder %s36, 1
      %p219 = por %p217, %p218
      %p221 = scmp.ne.s32.totalorder %s206, %s220
      %p222 = scmp.eq.s32.totalorder %s36, 0
      %p223 = por %p221, %p222
      %s225 = sadd.s32 %s224, 1
      %p228 = scmp.eq.s32.totalorder %s30, 1
      %p229 = scmp.ne.s32.totalorder %s224, %s226
      %p230 = scmp.eq.s32.totalorder %s30, 0
      %p231 = por %p229, %p230
      %p232 = scmp.ne.s32.totalorder %s224, %s226
      %p233 = scmp.eq.s32.totalorder %s35, 1
      %p234 = por %p232, %p233
      %p235 = scmp.ne.s32.totalorder %s226, %s227
      %p236 = scmp.eq.s32.totalorder %s35, 0
      %p237 = por %p235, %p236
      %p238 = scmp.ne.s32.totalorder %s226, %s227
      %p239 = scmp.eq.s32.totalorder %s36, 1
      %p240 = por %p238, %p239
      %p242 = scmp.ne.s32.totalorder %s227, %s241
      %p243 = scmp.eq.s32.totalorder %s36, 0
      %p244 = por %p242, %p243
      %s246 = sadd.s32 %s245, 1
      %p249 = scmp.eq.s32.totalorder %s30, 1
      %p250 = scmp.ne.s32.totalorder %s245, %s247
      %p251 = scmp.eq.s32.totalorder %s30, 0
      %p252 = por %p250, %p251
      %p253 = scmp.ne.s32.totalorder %s245, %s247
      %p254 = scmp.eq.s32.totalorder %s35, 1
      %p255 = por %p253, %p254
      %p256 = scmp.ne.s32.totalorder %s247, %s248
      %p257 = scmp.eq.s32.totalorder %s35, 0
      %p258 = por %p256, %p257
      %p259 = scmp.ne.s32.totalorder %s247, %s248
      %p260 = scmp.eq.s32.totalorder %s36, 1
      %p261 = por %p259, %p260
      %p263 = scmp.ne.s32.totalorder %s248, %s262
      %p264 = scmp.eq.s32.totalorder %s36, 0
      %p265 = por %p263, %p264
      %s267 = sadd.s32 %s266, 1
      %p270 = scmp.eq.s32.totalorder %s30, 1
      %p271 = scmp.ne.s32.totalorder %s266, %s268
      %p272 = scmp.eq.s32.totalorder %s30, 0
      %p273 = por %p271, %p272
      %p274 = scmp.ne.s32.totalorder %s266, %s268
      %p275 = scmp.eq.s32.totalorder %s35, 1
      %p276 = por %p274, %p275
      %p277 = scmp.ne.s32.totalorder %s268, %s269
      %p278 = scmp.eq.s32.totalorder %s35, 0
      %p279 = por %p277, %p278
      %p280 = scmp.ne.s32.totalorder %s268, %s269
      %p281 = scmp.eq.s32.totalorder %s36, 1
      %p282 = por %p280, %p281
      %p284 = scmp.ne.s32.totalorder %s269, %s283
      %p285 = scmp.eq.s32.totalorder %s36, 0
      %p286 = por %p284, %p285
      %s288 = sadd.s32 %s287, 1
      %p291 = scmp.eq.s32.totalorder %s30, 1
      %p292 = scmp.ne.s32.totalorder %s287, %s289
      %p293 = scmp.eq.s32.totalorder %s30, 0
      %p294 = por %p292, %p293
      %p295 = scmp.ne.s32.totalorder %s287, %s289
      %p296 = scmp.eq.s32.totalorder %s35, 1
      %p297 = por %p295, %p296
      %p298 = scmp.ne.s32.totalorder %s289, %s290
      %p299 = scmp.eq.s32.totalorder %s35, 0
      %p300 = por %p298, %p299
      %p301 = scmp.ne.s32.totalorder %s289, %s290
      %p302 = scmp.eq.s32.totalorder %s36, 1
      %p303 = por %p301, %p302
      %p305 = scmp.ne.s32.totalorder %s290, %s304
      %p306 = scmp.eq.s32.totalorder %s36, 0
      %p307 = por %p305, %p306
      %s309 = sadd.s32 %s308, 1
      %p312 = scmp.eq.s32.totalorder %s30, 1
      %p313 = scmp.ne.s32.totalorder %s308, %s310
      %p314 = scmp.eq.s32.totalorder %s30, 0
      %p315 = por %p313, %p314
      %p316 = scmp.ne.s32.totalorder %s308, %s310
      %p317 = scmp.eq.s32.totalorder %s35, 1
      %p318 = por %p316, %p317
      %p319 = scmp.ne.s32.totalorder %s310, %s311
      %p320 = scmp.eq.s32.totalorder %s35, 0
      %p321 = por %p319, %p320
      %p322 = scmp.ne.s32.totalorder %s310, %s311
      %p323 = scmp.eq.s32.totalorder %s36, 1
      %p324 = por %p322, %p323
      %p326 = scmp.ne.s32.totalorder %s311, %s325
      %p327 = scmp.eq.s32.totalorder %s36, 0
      %p328 = por %p326, %p327
      %s330 = sadd.s32 %s329, 1
      %p333 = scmp.eq.s32.totalorder %s30, 1
      %p334 = scmp.ne.s32.totalorder %s329, %s331
      %p335 = scmp.eq.s32.totalorder %s30, 0
      %p336 = por %p334, %p335
      %p337 = scmp.ne.s32.totalorder %s329, %s331
      %p338 = scmp.eq.s32.totalorder %s35, 1
      %p339 = por %p337, %p338
      %p340 = scmp.ne.s32.totalorder %s331, %s332
      %p341 = scmp.eq.s32.totalorder %s35, 0
      %p342 = por %p340, %p341
      %p343 = scmp.ne.s32.totalorder %s331, %s332
      %p344 = scmp.eq.s32.totalorder %s36, 1
      %p345 = por %p343, %p344
      %p347 = scmp.ne.s32.totalorder %s332, %s346
      %p348 = scmp.eq.s32.totalorder %s36, 0
      %p349 = por %p347, %p348
      %s351 = sadd.s32 %s350, 1
      %p354 = scmp.eq.s32.totalorder %s30, 1
      %p355 = scmp.ne.s32.totalorder %s350, %s352
      %p356 = scmp.eq.s32.totalorder %s30, 0
      %p357 = por %p355, %p356
      %p358 = scmp.ne.s32.totalorder %s350, %s352
      %p359 = scmp.eq.s32.totalorder %s35, 1
      %p360 = por %p358, %p359
      %p361 = scmp.ne.s32.totalorder %s352, %s353
      %p362 = scmp.eq.s32.totalorder %s35, 0
      %p363 = por %p361, %p362
      %p364 = scmp.ne.s32.totalorder %s352, %s353
      %p365 = scmp.eq.s32.totalorder %s36, 1
      %p366 = por %p364, %p365
      %p368 = scmp.ne.s32.totalorder %s353, %s367
      %p369 = scmp.eq.s32.totalorder %s36, 0
      %p370 = por %p368, %p369
      %s372 = sadd.s32 %s371, 1
      %p375 = scmp.eq.s32.totalorder %s30, 1
      %p376 = scmp.ne.s32.totalorder %s371, %s373
      %p377 = scmp.eq.s32.totalorder %s30, 0
      %p378 = por %p376, %p377
      %p379 = scmp.ne.s32.totalorder %s371, %s373
      %p380 = scmp.eq.s32.totalorder %s35, 1
      %p381 = por %p379, %p380
      %p382 = scmp.ne.s32.totalorder %s373, %s374
      %p383 = scmp.eq.s32.totalorder %s35, 0
      %p384 = por %p382, %p383
      %p385 = scmp.ne.s32.totalorder %s373, %s374
      %p386 = scmp.eq.s32.totalorder %s36, 1
      %p387 = por %p385, %p386
      %p389 = scmp.ne.s32.totalorder %s374, %s388
      %p390 = scmp.eq.s32.totalorder %s36, 0
      %p391 = por %p389, %p390
      %s393 = sadd.s32 %s392, 1
      %p396 = scmp.eq.s32.totalorder %s30, 1
      %p397 = scmp.ne.s32.totalorder %s392, %s394
      %p398 = scmp.eq.s32.totalorder %s30, 0
      %p399 = por %p397, %p398
      %p400 = scmp.ne.s32.totalorder %s392, %s394
      %p401 = scmp.eq.s32.totalorder %s35, 1
      %p402 = por %p400, %p401
      %p403 = scmp.ne.s32.totalorder %s394, %s395
      %p404 = scmp.eq.s32.totalorder %s35, 0
      %p405 = por %p403, %p404
      %p406 = scmp.ne.s32.totalorder %s394, %s395
      %p407 = scmp.eq.s32.totalorder %s36, 1
      %p408 = por %p406, %p407
      %p410 = scmp.ne.s32.totalorder %s395, %s409
      %p411 = scmp.eq.s32.totalorder %s36, 0
      %p412 = por %p410, %p411
      %s414 = sadd.s32 %s413, 1
      %p417 = scmp.eq.s32.totalorder %s30, 1
      %p418 = scmp.ne.s32.totalorder %s413, %s415
      %p419 = scmp.eq.s32.totalorder %s30, 0
      %p420 = por %p418, %p419
      %p421 = scmp.ne.s32.totalorder %s413, %s415
      %p422 = scmp.eq.s32.totalorder %s35, 1
      %p423 = por %p421, %p422
      %p424 = scmp.ne.s32.totalorder %s415, %s416
      %p425 = scmp.eq.s32.totalorder %s35, 0
      %p426 = por %p424, %p425
      %p427 = scmp.ne.s32.totalorder %s415, %s416
      %p428 = scmp.eq.s32.totalorder %s36, 1
      %p429 = por %p427, %p428
      %p431 = scmp.ne.s32.totalorder %s416, %s430
      %p432 = scmp.eq.s32.totalorder %s36, 0
      %p433 = por %p431, %p432
      %s435 = sadd.s32 %s434, 1
      %p438 = scmp.eq.s32.totalorder %s30, 1
      %p439 = scmp.ne.s32.totalorder %s434, %s436
      %p440 = scmp.eq.s32.totalorder %s30, 0
      %p441 = por %p439, %p440
      %p442 = scmp.ne.s32.totalorder %s434, %s436
      %p443 = scmp.eq.s32.totalorder %s35, 1
      %p444 = por %p442, %p443
      %p445 = scmp.ne.s32.totalorder %s436, %s437
      %p446 = scmp.eq.s32.totalorder %s35, 0
      %p447 = por %p445, %p446
      %p448 = scmp.ne.s32.totalorder %s436, %s437
      %p449 = scmp.eq.s32.totalorder %s36, 1
      %p450 = por %p448, %p449
      %p452 = scmp.ne.s32.totalorder %s437, %s451
      %p453 = scmp.eq.s32.totalorder %s36, 0
      %p454 = por %p452, %p453
      %s456 = sadd.s32 %s455, 1
      %p459 = scmp.eq.s32.totalorder %s30, 1
      %p460 = scmp.ne.s32.totalorder %s455, %s457
      %p461 = scmp.eq.s32.totalorder %s30, 0
      %p462 = por %p460, %p461
      %p463 = scmp.ne.s32.totalorder %s455, %s457
      %p464 = scmp.eq.s32.totalorder %s35, 1
      %p465 = por %p463, %p464
      %p466 = scmp.ne.s32.totalorder %s457, %s458
      %p467 = scmp.eq.s32.totalorder %s35, 0
      %p468 = por %p466, %p467
      %p469 = scmp.ne.s32.totalorder %s457, %s458
      %p470 = scmp.eq.s32.totalorder %s36, 1
      %p471 = por %p469, %p470
      %p473 = scmp.ne.s32.totalorder %s458, %s472
      %p474 = scmp.eq.s32.totalorder %s36, 0
      %p475 = por %p473, %p474
      %s477 = sadd.s32 %s476, 1
      %p480 = scmp.eq.s32.totalorder %s30, 1
      %p481 = scmp.ne.s32.totalorder %s476, %s478
      %p482 = scmp.eq.s32.totalorder %s30, 0
      %p483 = por %p481, %p482
      %p484 = scmp.ne.s32.totalorder %s476, %s478
      %p485 = scmp.eq.s32.totalorder %s35, 1
      %p486 = por %p484, %p485
      %p487 = scmp.ne.s32.totalorder %s478, %s479
      %p488 = scmp.eq.s32.totalorder %s35, 0
      %p489 = por %p487, %p488
      %p490 = scmp.ne.s32.totalorder %s478, %s479
      %p491 = scmp.eq.s32.totalorder %s36, 1
      %p492 = por %p490, %p491
      %p494 = scmp.ne.s32.totalorder %s479, %s493
      %p495 = scmp.eq.s32.totalorder %s36, 0
      %p496 = por %p494, %p495
      %s498 = sadd.s32 %s497, 1
      %p501 = scmp.eq.s32.totalorder %s30, 1
      %p502 = scmp.ne.s32.totalorder %s497, %s499
      %p503 = scmp.eq.s32.totalorder %s30, 0
      %p504 = por %p502, %p503
      %p505 = scmp.ne.s32.totalorder %s497, %s499
      %p506 = scmp.eq.s32.totalorder %s35, 1
      %p507 = por %p505, %p506
      %p508 = scmp.ne.s32.totalorder %s499, %s500
      %p509 = scmp.eq.s32.totalorder %s35, 0
      %p510 = por %p508, %p509
      %p511 = scmp.ne.s32.totalorder %s499, %s500
      %p512 = scmp.eq.s32.totalorder %s36, 1
      %p513 = por %p511, %p512
      %p515 = scmp.ne.s32.totalorder %s500, %s514
      %p516 = scmp.eq.s32.totalorder %s36, 0
      %p517 = por %p515, %p516
      %s518 = ssub.s32 %s37, %s49
      %s519 = ssub.s32 %s38, %s45
      %s520 = sor.u32 %s518, %s519
      %p521 = scmp.eq.s32.totalorder %s520, 0
      %s523 = sadd.s32 %s522, 1
      %s524 = scalar_select %p521, %s522, %s523
      %p527 = pneg %p521
      %p528 = scmp.eq.s32.totalorder %s30, 1
      %p529 = por %p527, %p528
      %p530 = scmp.ne.s32.totalorder %s522, %s525
      %p531 = scmp.eq.s32.totalorder %s30, 0
      %p532 = por %p530, %p531
      %p533 = scmp.ne.s32.totalorder %s522, %s525
      %p534 = scmp.eq.s32.totalorder %s35, 1
      %p535 = por %p533, %p534
      %p536 = scmp.ne.s32.totalorder %s525, %s526
      %p537 = scmp.eq.s32.totalorder %s35, 0
      %p538 = por %p536, %p537
      %p539 = scmp.ne.s32.totalorder %s525, %s526
      %p540 = scmp.eq.s32.totalorder %s36, 1
      %p541 = por %p539, %p540
      %p543 = scmp.ne.s32.totalorder %s526, %s542
      %p544 = scmp.eq.s32.totalorder %s36, 0
      %p545 = por %p543, %p544
      %p546 = scmp.le.s32.totalorder 1, %s30
      %p547 = scmp.lt.s32.totalorder %s30, 3
      %p548 = pnand %p546, %p547
      %p549 = pneg %p548
      // Predicated region
      $region9: #{crossmodal_forward.1} parent=5 // pred_check
        _
      $region10: #{crossmodal_forward.1} parent=5 // pred_check_branch
        %551 = sbr.rel (%p548) target = $region12
      $region11: #{crossmodal_forward.1} parent=5 // pred_region
        %s552 = ssub.s32 %s30, 1
        // Predicated region
        $region13: #{crossmodal_forward.1} parent=11 // pred_check
          %p553 = pneg %p148
        $region14: #{crossmodal_forward.1} parent=11 // pred_check_branch
          %555 = sbr.rel (%p553) target = $region16
        $region15: #{crossmodal_forward.1} parent=11 // pred_region
          %p556 = scmp.lt.s32.totalorder %s40, 0
          %s557 = scalar_select %p556, %s40, 0
          %s558 = smul.addr %s557, 8
          %s559 = scalar_lea.vmem %s3, %s558
        $region16: #{crossmodal_forward.1} parent=11 // pred_fallthru
          _
        // Predicated region
        $region17: #{crossmodal_forward.1} parent=11 // pred_check
          %p560 = pneg %p174
        $region18: #{crossmodal_forward.1} parent=11 // pred_check_branch
          %562 = sbr.rel (%p560) target = $region20
        $region19: #{crossmodal_forward.1} parent=11 // pred_region
          %p563 = scmp.lt.s32.totalorder %s40, 0
          %s564 = scalar_select %p563, %s40, 0
          %s565 = smul.addr %s564, 8
          %s566 = scalar_lea.vmem %s4, %s565
        $region20: #{crossmodal_forward.1} parent=11 // pred_fallthru
          _
        // Predicated region
        $region21: #{crossmodal_forward.1} parent=11 // pred_check
          %p567 = pneg %p195
        $region22: #{crossmodal_forward.1} parent=11 // pred_check_branch
          %569 = sbr.rel (%p567) target = $region24
        $region23: #{crossmodal_forward.1} parent=11 // pred_region
          _
        $region24: #{crossmodal_forward.1} parent=11 // pred_fallthru
          _
        // Predicated region
        $region25: #{crossmodal_forward.1} parent=11 // pred_check
          %p570 = pneg %p216
        $region26: #{crossmodal_forward.1} parent=11 // pred_check_branch
          %572 = sbr.rel (%p570) target = $region28
        $region27: #{crossmodal_forward.1} parent=11 // pred_region
          _
        $region28: #{crossmodal_forward.1} parent=11 // pred_fallthru
          _
        // Predicated region
        $region29: #{crossmodal_forward.1} parent=11 // pred_check
          %p573 = pneg %p237
        $region30: #{crossmodal_forward.1} parent=11 // pred_check_branch
          %575 = sbr.rel (%p573) target = $region32
        $region31: #{crossmodal_forward.1} parent=11 // pred_region
          _
        $region32: #{crossmodal_forward.1} parent=11 // pred_fallthru
          _
        // Predicated region
        $region33: #{crossmodal_forward.1} parent=11 // pred_check
          %p576 = pneg %p258
        $region34: #{crossmodal_forward.1} parent=11 // pred_check_branch
          %578 = sbr.rel (%p576) target = $region36
        $region35: #{crossmodal_forward.1} parent=11 // pred_region
          _
        $region36: #{crossmodal_forward.1} parent=11 // pred_fallthru
          _
        // Predicated region
        $region37: #{crossmodal_forward.1} parent=11 // pred_check
          %p579 = pneg %p279
        $region38: #{crossmodal_forward.1} parent=11 // pred_check_branch
          %581 = sbr.rel (%p579) target = $region40
        $region39: #{crossmodal_forward.1} parent=11 // pred_region
          _
        $region40: #{crossmodal_forward.1} parent=11 // pred_fallthru
          _
        // Predicated region
        $region41: #{crossmodal_forward.1} parent=11 // pred_check
          %p582 = pneg %p300
        $region42: #{crossmodal_forward.1} parent=11 // pred_check_branch
          %584 = sbr.rel (%p582) target = $region44
        $region43: #{crossmodal_forward.1} parent=11 // pred_region
          _
        $region44: #{crossmodal_forward.1} parent=11 // pred_fallthru
          _
        // Predicated region
        $region45: #{crossmodal_forward.1} parent=11 // pred_check
          %p585 = pneg %p321
        $region46: #{crossmodal_forward.1} parent=11 // pred_check_branch
          %587 = sbr.rel (%p585) target = $region48
        $region47: #{crossmodal_forward.1} parent=11 // pred_region
          _
        $region48: #{crossmodal_forward.1} parent=11 // pred_fallthru
          _
        // Predicated region
        $region49: #{crossmodal_forward.1} parent=11 // pred_check
          %p588 = pneg %p342
        $region50: #{crossmodal_forward.1} parent=11 // pred_check_branch
          %590 = sbr.rel (%p588) target = $region52
        $region51: #{crossmodal_forward.1} parent=11 // pred_region
          _
        $region52: #{crossmodal_forward.1} parent=11 // pred_fallthru
          _
        // Predicated region
        $region53: #{crossmodal_forward.1} parent=11 // pred_check
          %p591 = pneg %p363
        $region54: #{crossmodal_forward.1} parent=11 // pred_check_branch
          %593 = sbr.rel (%p591) target = $region56
        $region55: #{crossmodal_forward.1} parent=11 // pred_region
          _
        $region56: #{crossmodal_forward.1} parent=11 // pred_fallthru
          _
        // Predicated region
        $region57: #{crossmodal_forward.1} parent=11 // pred_check
          %p594 = pneg %p384
        $region58: #{crossmodal_forward.1} parent=11 // pred_check_branch
          %596 = sbr.rel (%p594) target = $region60
        $region59: #{crossmodal_forward.1} parent=11 // pred_region
          _
        $region60: #{crossmodal_forward.1} parent=11 // pred_fallthru
          _
        // Predicated region
        $region61: #{crossmodal_forward.1} parent=11 // pred_check
          %p597 = pneg %p405
        $region62: #{crossmodal_forward.1} parent=11 // pred_check_branch
          %599 = sbr.rel (%p597) target = $region64
        $region63: #{crossmodal_forward.1} parent=11 // pred_region
          _
        $region64: #{crossmodal_forward.1} parent=11 // pred_fallthru
          _
        // Predicated region
        $region65: #{crossmodal_forward.1} parent=11 // pred_check
          %p600 = pneg %p426
        $region66: #{crossmodal_forward.1} parent=11 // pred_check_branch
          %602 = sbr.rel (%p600) target = $region68
        $region67: #{crossmodal_forward.1} parent=11 // pred_region
          _
        $region68: #{crossmodal_forward.1} parent=11 // pred_fallthru
          _
        // Predicated region
        $region69: #{crossmodal_forward.1} parent=11 // pred_check
          %p603 = pneg %p447
        $region70: #{crossmodal_forward.1} parent=11 // pred_check_branch
          %605 = sbr.rel (%p603) target = $region72
        $region71: #{crossmodal_forward.1} parent=11 // pred_region
          _
        $region72: #{crossmodal_forward.1} parent=11 // pred_fallthru
          _
        // Predicated region
        $region73: #{crossmodal_forward.1} parent=11 // pred_check
          %p606 = pneg %p468
        $region74: #{crossmodal_forward.1} parent=11 // pred_check_branch
          %608 = sbr.rel (%p606) target = $region76
        $region75: #{crossmodal_forward.1} parent=11 // pred_region
          _
        $region76: #{crossmodal_forward.1} parent=11 // pred_fallthru
          _
        // Predicated region
        $region77: #{crossmodal_forward.1} parent=11 // pred_check
          %p609 = pneg %p489
        $region78: #{crossmodal_forward.1} parent=11 // pred_check_branch
          %611 = sbr.rel (%p609) target = $region80
        $region79: #{crossmodal_forward.1} parent=11 // pred_region
          _
        $region80: #{crossmodal_forward.1} parent=11 // pred_fallthru
          _
        // Predicated region
        $region81: #{crossmodal_forward.1} parent=11 // pred_check
          %p612 = pneg %p510
        $region82: #{crossmodal_forward.1} parent=11 // pred_check_branch
          %614 = sbr.rel (%p612) target = $region84
        $region83: #{crossmodal_forward.1} parent=11 // pred_region
          _
        $region84: #{crossmodal_forward.1} parent=11 // pred_fallthru
          _
      $region12: #{crossmodal_forward.1} parent=5 // pred_fallthru
        _
      %p615 = scmp.lt.s32.totalorder %s30, 2
      // Predicated region
      $region85: #{crossmodal_forward.1} parent=5 // pred_check
        %p616 = pneg %p615
      $region86: #{crossmodal_forward.1} parent=5 // pred_check_branch
        %618 = sbr.rel (%p616) target = $region88
      $region87: #{crossmodal_forward.1} parent=5 // pred_region
        // Predicated region
        $region89: #{crossmodal_forward.1} parent=87 // pred_check
          %p619 = pneg %p64
        $region90: #{crossmodal_forward.1} parent=87 // pred_check_branch
          %621 = sbr.rel (%p619) target = $region92
        $region91: #{crossmodal_forward.1} parent=87 // pred_region
          %p622 = scmp.lt.s32.totalorder %s37, 1
          %s623 = scalar_select %p622, %s37, 1
          %p624 = scmp.lt.s32.totalorder %s38, 0
          %s625 = scalar_select %p624, %s38, 0
          %s626 = sadd.s32 %s625, %s623
          %s627 = smul.addr %s626, 8
          %s628 = scalar_lea.vmem %s0, %s627
        $region92: #{crossmodal_forward.1} parent=87 // pred_fallthru
          _
        // Predicated region
        $region93: #{crossmodal_forward.1} parent=87 // pred_check
          %p629 = pneg %p90
        $region94: #{crossmodal_forward.1} parent=87 // pred_check_branch
          %631 = sbr.rel (%p629) target = $region96
        $region95: #{crossmodal_forward.1} parent=87 // pred_region
          %p632 = scmp.lt.s32.totalorder %s37, 1
          %s633 = scalar_select %p632, %s37, 1
          %s634 = smul.addr %s633, 8
          %s635 = scalar_lea.vmem %s1, %s634
        $region96: #{crossmodal_forward.1} parent=87 // pred_fallthru
          _
        // Predicated region
        $region97: #{crossmodal_forward.1} parent=87 // pred_check
          %p636 = pneg %p116
        $region98: #{crossmodal_forward.1} parent=87 // pred_check_branch
          %638 = sbr.rel (%p636) target = $region100
        $region99: #{crossmodal_forward.1} parent=87 // pred_region
          %p639 = scmp.lt.s32.totalorder %s37, 1
          %s640 = scalar_select %p639, %s37, 1
          %s641 = scalar_lea.vmem %s2, %s640
        $region100: #{crossmodal_forward.1} parent=87 // pred_fallthru
          _
      $region88: #{crossmodal_forward.1} parent=5 // pred_fallthru
        _
      %p642 = scmp.le.s32.totalorder 1, %s30
      %p643 = scmp.lt.s32.totalorder %s30, 3
      %p644 = pnand %p642, %p643
      %p645 = pneg %p644
      // Predicated region
      $region101: #{crossmodal_forward.1} parent=5 // pred_check
        _
      $region102: #{crossmodal_forward.1} parent=5 // pred_check_branch
        %647 = sbr.rel (%p644) target = $region104
      $region103: #{crossmodal_forward.1} parent=5 // pred_region
        %s648 = ssub.s32 %s30, 1
        %p649 = scmp.lt.s32.totalorder %s39, 1
        %s650 = scalar_select %p649, %s39, 1
        %p651 = scmp.lt.s32.totalorder %s40, 0
        %s652 = scalar_select %p651, %s40, 0
        %s653 = sadd.s32 %s652, %s650
        %s654 = smul.addr %s653, 8
        %s655 = scalar_lea.vmem %s0, %s654
        %p656 = pneg %p70
        %p657 = pneg %p67
        %p658 = scmp.lt.s32.totalorder %s39, 1
        %s659 = scalar_select %p658, %s39, 1
        %s660 = smul.addr %s659, 8
        %s661 = scalar_lea.vmem %s1, %s660
        %p662 = pneg %p96
        %p663 = pneg %p93
        %p664 = scmp.lt.s32.totalorder %s39, 1
        %s665 = scalar_select %p664, %s39, 1
        %s666 = scalar_lea.vmem %s2, %s665
        %p667 = pneg %p122
        %p668 = pneg %p119
        %p669 = scmp.lt.s32.totalorder %s40, 0
        %s670 = scalar_select %p669, %s40, 0
        %s671 = smul.addr %s670, 8
        %s672 = scalar_lea.vmem %s3, %s671
        %p673 = pneg %p148
        %p674 = pneg %p145
        %p675 = scmp.lt.s32.totalorder %s40, 0
        %s676 = scalar_select %p675, %s40, 0
        %s677 = smul.addr %s676, 8
        %s678 = scalar_lea.vmem %s4, %s677
        %p679 = pneg %p174
        %p680 = pneg %p171
        %p681 = pneg %p195
        %p682 = pneg %p192
        %p683 = pneg %p216
        %p684 = pneg %p213
        %p685 = pneg %p237
        %p686 = pneg %p234
        %p687 = pneg %p258
        %p688 = pneg %p255
        %p689 = pneg %p279
        %p690 = pneg %p276
        %p691 = pneg %p300
        %p692 = pneg %p297
        %p693 = pneg %p321
        %p694 = pneg %p318
        %p695 = pneg %p342
        %p696 = pneg %p339
        %p697 = pneg %p363
        %p698 = pneg %p360
        %p699 = pneg %p384
        %p700 = pneg %p381
        %p701 = pneg %p405
        %p702 = pneg %p402
        %p703 = pneg %p426
        %p704 = pneg %p423
        %p705 = pneg %p447
        %p706 = pneg %p444
        %p707 = pneg %p468
        %p708 = pneg %p465
        %p709 = pneg %p489
        %p710 = pneg %p486
        %p711 = pneg %p510
        %p712 = pneg %p507
        %p713 = pneg %p538
        %p714 = pneg %p535
        %s715 = sand.u32 %s525, 1
        %s716 = scalar_lea.sflag [#allocation3], %s715
        %s717 = sand.u32 %s525, 1
        %s718 = smul.addr %s717, 8
        %s719 = scalar_lea.vmem [#allocation2], %s718
        %p720 = scmp.lt.s32.totalorder %s39, 1
        %s721 = scalar_select %p720, %s39, 1
        %p722 = scmp.lt.s32.totalorder %s40, 0
        %s723 = scalar_select %p722, %s40, 0
        %s724 = sadd.s32 %s723, %s721
        %s725 = smul.addr %s724, 8
        %s726 = scalar_lea.vmem %s0, %s725
        %p727 = scmp.lt.s32.totalorder %s39, 1
        %s728 = scalar_select %p727, %s39, 1
        %s729 = smul.addr %s728, 8
        %s730 = scalar_lea.vmem %s1, %s729
        %p731 = scmp.lt.s32.totalorder %s39, 1
        %s732 = scalar_select %p731, %s39, 1
        %s733 = scalar_lea.vmem %s2, %s732
        %p734 = scmp.lt.s32.totalorder %s40, 0
        %s735 = scalar_select %p734, %s40, 0
        %s736 = smul.addr %s735, 8
        %s737 = scalar_lea.vmem %s3, %s736
        %p738 = scmp.lt.s32.totalorder %s40, 0
        %s739 = scalar_select %p738, %s40, 0
        %s740 = smul.addr %s739, 8
        %s741 = scalar_lea.vmem %s4, %s740
        %v743 = vld [vmem:[%s7] sm:$0x1]
        %v744 = vld [vmem:[%s8] sm:$0x1]
        %v745 = vld [vmem:[%s15] sm:$0x1]
        %v746 = vld [vmem:[%s16] sm:$0x1]
        %v747 = vld [vmem:[%s9] sm:$0xf]
        %v748 = vld [vmem:[%s9 + $0x4] sm:$0xf]
        %v749 = vld [vmem:[%s9 + $0x8] sm:$0xf]
        %v750 = vld [vmem:[%s9 + $0xc] sm:$0xf]
        %v751 = vld [vmem:[%s10] sm:$0x1]
        %v752 = vld [vmem:[%s13] sm:$0xf]
        %v753 = vld [vmem:[%s13 + $0x4] sm:$0xf]
        %v754 = vld [vmem:[%s13 + $0x8] sm:$0xf]
        %v755 = vld [vmem:[%s13 + $0xc] sm:$0xf]
        %v756 = vld [vmem:[%s14] sm:$0x1]
        %v757 = vld [vmem:[%s17] sm:$0xf]
        %v758 = vld [vmem:[%s17 + $0x4] sm:$0xf]
        %v759 = vld [vmem:[%s17 + $0x8] sm:$0xf]
        %v760 = vld [vmem:[%s17 + $0xc] sm:$0xf]
        %v761 = vld [vmem:[%s18] sm:$0x1]
        %v762 = vld [vmem:[%s19] sm:$0xf]
        %v763 = vld [vmem:[%s19 + $0x4] sm:$0xf]
        %v764 = vld [vmem:[%s19 + $0x8] sm:$0xf]
        %v765 = vld [vmem:[%s19 + $0xc] sm:$0xf]
        %v766 = vld [vmem:[%s19 + $0x10] sm:$0xf]
        %v767 = vld [vmem:[%s19 + $0x14] sm:$0xf]
        %v768 = vld [vmem:[%s19 + $0x18] sm:$0xf]
        %v769 = vld [vmem:[%s19 + $0x1c] sm:$0xf]
        %v770 = vld [vmem:[%s19 + $0x20] sm:$0xf]
        %v771 = vld [vmem:[%s19 + $0x24] sm:$0xf]
        %v772 = vld [vmem:[%s19 + $0x28] sm:$0xf]
        %v773 = vld [vmem:[%s19 + $0x2c] sm:$0xf]
        %v774 = vld [vmem:[%s19 + $0x30] sm:$0xf]
        %v775 = vld [vmem:[%s19 + $0x34] sm:$0xf]
        %v776 = vld [vmem:[%s19 + $0x38] sm:$0xf]
        %v777 = vld [vmem:[%s19 + $0x3c] sm:$0xf]
        %v778 = vld [vmem:[%s20] sm:$0x1]
        %v779 = vld [vmem:[%s726] sm:$0xff]
        %v780 = vld [vmem:[%s737] sm:$0xff]
        %v781 = vld [vmem:[%s741] sm:$0xff]
        %v782 = vlaneseq
        %v783 = vand.u32 %v782, 127
        %vm784 = vcmask 1047808
        %785 = vrot.lane.b32.xlu0 %v779, 32
        %v786 = vpop.permute.xlu0 %785
        %v787 = vsel %vm784, %v786, %v779
        %788 = vrot.lane.b32.xlu0 %v787, 32
        %v789 = vpop.permute.xlu0 %788
        %v790 = vsel %vm784, %v789, %v779
        %vm791 = vcmp.lt.s32.totalorder %v783, 0
        %v792 = vsub.s32 0, %v783
        %v793 = vsel %vm791, %v792, %v783
        %v794 = vshrl.u32 %v793, 1
        %v795 = vand.u32 %v793, 1
        %v796 = vsub.s32 0, %v795
        %v797 = vsel %vm791, %v796, %v795
        %vm798 = vcmp.ne.s32.totalorder %v797, 0
        %vm799 = vcmp.lt.s32.totalorder %v797, 0
        %vm800 = vmand %vm799, %vm798
        %v801 = vadd.s32 %v797, 2
        %v802 = vsel %vm800, %v801, %v797
        %vm803 = vcmp.eq.s32.totalorder %v802, 0
        %805 = vrot.lane.b32.xlu0 %v790, 127
        %v806 = vpop.permute.xlu0 %805
        %808 = vrot.lane.b32.xlu0 %v790, 97
        %v809 = vpop.permute.xlu0 %808
        %v811 = vsel %vm803, %v806, %v809
        %v812 = vmul.f32 %v779, %v780
        %v813 = vmul.f32 %v811, %v781
        %v814 = vadd.f32 %v812, %v813
        %v815 = vld [vmem:[%s733] sm:$0x1]
        %s816 = smul.u32 %s40, 8
        %v817 = vlaneseq
        %v818 = vshrl.u32 %v817, 7
        %v819 = vstv %s816
        %v820 = vadd.s32 %v819, %v818
        %vm821 = vcmp.gt.s32.totalorder %v783, %v820
        %v822 = vsel %vm821, -1e+30, 0.0
        %v824 = vlaneseq
        %v825 = vshrl.u32 %v824, 7
        %v826 = vsub.s32 0, %v825
        %v827 = vrot.slane %v815, %v826
        %v829 = vadd.f32 %v827, %v822
        %v830 = vld [vmem:[%s11] sm:$0xf]
        %v831 = vld [vmem:[%s11 + $0x4] sm:$0xf]
        %v832 = vld [vmem:[%s11 + $0x8] sm:$0xf]
        %v833 = vld [vmem:[%s11 + $0xc] sm:$0xf]
        %v834 = vld [vmem:[%s12] sm:$0x1]
        %v835 = vld [vmem:[%s730] sm:$0xff]
        %v836 = vld [vmem:[%s5] sm:$0xff]
        %v837 = vld [vmem:[%s6] sm:$0xff]
        %838 = vrot.lane.b32.xlu0 %v835, 32
        %v839 = vpop.permute.xlu0 %838
        %v840 = vsel %vm784, %v839, %v835
        %841 = vrot.lane.b32.xlu0 %v840, 32
        %v842 = vpop.permute.xlu0 %841
        %v843 = vsel %vm784, %v842, %v835
        %845 = vrot.lane.b32.xlu0 %v843, 127
        %v846 = vpop.permute.xlu0 %845
        %848 = vrot.lane.b32.xlu0 %v843, 97
        %v849 = vpop.permute.xlu0 %848
        %v851 = vsel %vm803, %v846, %v849
        %v852 = vmul.f32 %v835, %v836
        %v853 = vmul.f32 %v851, %v837
        %v854 = vadd.f32 %v852, %v853
        %vm855 = vcmask 261120
        %v856 = vsel %vm855, %v854, 0.0
        %857 = vadd.xlane.f32.xlu0 %v856
        %v858 = vpop.xlane.xlu0 %857
        %v859 = vrcp.pop 32.0
        %v860 = vmul.f32 %v858, %v859
        %v861 = vsub.f32 %v854, %v860
        %v862 = vmul.f32 %v861, %v861
        %v863 = vsel %vm855, %v862, 0.0
        %864 = vadd.xlane.f32.xlu0 %v863
        %v865 = vpop.xlane.xlu0 %864
        %v866 = vmul.f32 %v865, %v859
        %v867 = vadd.f32 %v866, 1e-05
        %v868 = vrsqrt.pop %v867
        %v869 = vmul.f32 %v861, %v868
        %v871 = vlaneseq
        %v872 = vshrl.u32 %v871, 7
        %v873 = vsub.s32 0, %v872
        %v874 = vrot.slane %v743, %v873
        %v876 = vmul.f32 %v869, %v874
        %v878 = vlaneseq
        %v879 = vshrl.u32 %v878, 7
        %v880 = vsub.s32 0, %v879
        %v881 = vrot.slane %v744, %v880
        %v883 = vadd.f32 %v876, %v881
        %v884 = vpack.c.bf16 %v883, %v883
        %v886 = vlaneseq
        %v887 = vshrl.u32 %v886, 7
        %v888 = vsub.s32 0, %v887
        %v889 = vrot.slane %v834, %v888
        %v895 = vunpack.c.l.b16 %v830
        %v896 = vunpack.c.l.b16 %v831
        %v897 = vunpack.c.l.b16 %v832
        %v898 = vunpack.c.l.b16 %v833
        %v899 = vpack.c.b16 %v896, %v895
        %v900 = vpack.c.b16 %v898, %v897
        %v904 = vsel %vm855, %v884, 0
        %906 = vmatprep.subr.bf16.mxu0 0
        %907 = vmatpush1.bf16.msra.mxu0 %v899
        %908 = vmatprep.subr.bf16.mxu0 0
        %909 = vmatpush1.bf16.msra.mxu0 %v900
        %910 = vmatprep.subr.bf16.mxu0 0
        %911 = vmatpush1.bf16.msra.mxu0 0
        %912 = vmatprep.subr.bf16.mxu0 0
        %913 = vmatpush1.bf16.msra.mxu0 0
        %914 = vmatprep.subr.bf16.mxu0 0
        %915 = vmatpush1.bf16.msra.mxu0 0
        %916 = vmatprep.subr.bf16.mxu0 0
        %917 = vmatpush1.bf16.msra.mxu0 0
        %918 = vmatprep.subr.bf16.mxu0 0
        %919 = vmatpush1.bf16.msra.mxu0 0
        %920 = vmatprep.subr.bf16.mxu0 0
        %921 = vmatpush1.bf16.msra.mxu0 0
        %922 = vmatprep.subr.bf16.mxu0 0
        %923 = vmatpush1.bf16.msra.mxu0 0
        %924 = vmatprep.subr.bf16.mxu0 0
        %925 = vmatpush1.bf16.msra.mxu0 0
        %926 = vmatprep.subr.bf16.mxu0 0
        %927 = vmatpush1.bf16.msra.mxu0 0
        %928 = vmatprep.subr.bf16.mxu0 0
        %929 = vmatpush1.bf16.msra.mxu0 0
        %930 = vmatprep.subr.bf16.mxu0 0
        %931 = vmatpush1.bf16.msra.mxu0 0
        %932 = vmatprep.subr.bf16.mxu0 0
        %933 = vmatpush1.bf16.msra.mxu0 0
        %934 = vmatprep.subr.bf16.mxu0 0
        %935 = vmatpush1.bf16.msra.mxu0 0
        %936 = vmatprep.subr.bf16.mxu0 0
        %937 = vmatpush1.bf16.msra.mxu0 0
        %938 = vmatprep.mubr.bf16.mxu0 0
        %939 = vmatmul.mubr.bf16.gmra.mrb[0].mxu0 %v904
        %v940 = vpop.f32.mrb[0].mxu0
        %v941 = vadd.f32 %v889, %v940
        %v942 = vpop.f32.mrb[0].mxu0
        %v943 = vpop.f32.mrb[0].mxu0
        %v944 = vpop.f32.mrb[0].mxu0
        %945 = vdwg.mxu0
        %v946 = vpack.c.bf16 %v941, %v941
        %948 = vrot.lane.b32.xlu0 %v946, 120
        %v949 = vpop.permute.xlu0 %948
        %950 = vrot.lane.b32.xlu0 %v946, 112
        %v951 = vpop.permute.xlu0 %950
        %952 = vrot.lane.b32.xlu0 %v946, 104
        %v953 = vpop.permute.xlu0 %952
        %v954 = vsel %vm855, %v814, 0.0
        %955 = vadd.xlane.f32.xlu0 %v954
        %v956 = vpop.xlane.xlu0 %955
        %v957 = vmul.f32 %v956, %v859
        %v958 = vsub.f32 %v814, %v957
        %v959 = vmul.f32 %v958, %v958
        %v960 = vsel %vm855, %v959, 0.0
        %961 = vadd.xlane.f32.xlu0 %v960
        %v962 = vpop.xlane.xlu0 %961
        %v963 = vmul.f32 %v962, %v859
        %v964 = vadd.f32 %v963, 1e-05
        %v965 = vrsqrt.pop %v964
        %v966 = vmul.f32 %v958, %v965
        %v967 = vmul.f32 %v966, %v874
        %v968 = vadd.f32 %v967, %v881
        %v969 = vpack.c.bf16 %v968, %v968
        %v971 = vlaneseq
        %v972 = vshrl.u32 %v971, 7
        %v973 = vsub.s32 0, %v972
        %v974 = vrot.slane %v751, %v973
        %v980 = vunpack.c.l.b16 %v747
        %v981 = vunpack.c.l.b16 %v748
        %v982 = vunpack.c.l.b16 %v749
        %v983 = vunpack.c.l.b16 %v750
        %v984 = vpack.c.b16 %v981, %v980
        %v985 = vpack.c.b16 %v983, %v982
        %v989 = vsel %vm855, %v969, 0
        %991 = vmatprep.subr.bf16.mxu0 0
        %992 = vmatpush1.bf16.msra.mxu0 %v984
        %993 = vmatprep.subr.bf16.mxu0 0
        %994 = vmatpush1.bf16.msra.mxu0 %v985
        %995 = vmatprep.subr.bf16.mxu0 0
        %996 = vmatpush1.bf16.msra.mxu0 0
        %997 = vmatprep.subr.bf16.mxu0 0
        %998 = vmatpush1.bf16.msra.mxu0 0
        %999 = vmatprep.subr.bf16.mxu0 0
        %1000 = vmatpush1.bf16.msra.mxu0 0
        %1001 = vmatprep.subr.bf16.mxu0 0
        %1002 = vmatpush1.bf16.msra.mxu0 0
        %1003 = vmatprep.subr.bf16.mxu0 0
        %1004 = vmatpush1.bf16.msra.mxu0 0
        %1005 = vmatprep.subr.bf16.mxu0 0
        %1006 = vmatpush1.bf16.msra.mxu0 0
        %1007 = vmatprep.subr.bf16.mxu0 0
        %1008 = vmatpush1.bf16.msra.mxu0 0
        %1009 = vmatprep.subr.bf16.mxu0 0
        %1010 = vmatpush1.bf16.msra.mxu0 0
        %1011 = vmatprep.subr.bf16.mxu0 0
        %1012 = vmatpush1.bf16.msra.mxu0 0
        %1013 = vmatprep.subr.bf16.mxu0 0
        %1014 = vmatpush1.bf16.msra.mxu0 0
        %1015 = vmatprep.subr.bf16.mxu0 0
        %1016 = vmatpush1.bf16.msra.mxu0 0
        %1017 = vmatprep.subr.bf16.mxu0 0
        %1018 = vmatpush1.bf16.msra.mxu0 0
        %1019 = vmatprep.subr.bf16.mxu0 0
        %1020 = vmatpush1.bf16.msra.mxu0 0
        %1021 = vmatprep.subr.bf16.mxu0 0
        %1022 = vmatpush1.bf16.msra.mxu0 0
        %1023 = vmatprep.mubr.bf16.mxu0 0
        %1024 = vmatmul.mubr.bf16.gmra.mrb[0].mxu0 %v989
        %v1025 = vpop.f32.mrb[0].mxu0
        %v1026 = vadd.f32 %v974, %v1025
        %v1027 = vpop.f32.mrb[0].mxu0
        %v1028 = vpop.f32.mrb[0].mxu0
        %v1029 = vpop.f32.mrb[0].mxu0
        %1030 = vdwg.mxu0
        %v1031 = vpack.c.bf16 %v1026, %v1026
        %1033 = vrot.lane.b32.xlu0 %v1031, 120
        %v1034 = vpop.permute.xlu0 %1033
        %1035 = vrot.lane.b32.xlu0 %v1031, 112
        %v1036 = vpop.permute.xlu0 %1035
        %1037 = vrot.lane.b32.xlu0 %v1031, 104
        %v1038 = vpop.permute.xlu0 %1037
        %vm1039 = vcmask 64512
        %v1041 = vsel %vm1039, %v1031, 0
        %v1044 = vsel %vm1039, %v946, 0
        %1046 = vmatprep.subr.bf16.mxu0 0
        %1047 = vmatpush1.bf16.xpose.msra.mxu0 %v1044
        %1048 = vmatprep.subr.bf16.mxu0 0
        %1049 = vmatpush1.bf16.xpose.msra.mxu0 0
        %1050 = vmatprep.subr.bf16.mxu0 0
        %1051 = vmatpush1.bf16.xpose.msra.mxu0 0
        %1052 = vmatprep.subr.bf16.mxu0 0
        %1053 = vmatpush1.bf16.xpose.msra.mxu0 0
        %1054 = vmatprep.subr.bf16.mxu0 0
        %1055 = vmatpush1.bf16.xpose.msra.mxu0 0
        %1056 = vmatprep.subr.bf16.mxu0 0
        %1057 = vmatpush1.bf16.xpose.msra.mxu0 0
        %1058 = vmatprep.subr.bf16.mxu0 0
        %1059 = vmatpush1.bf16.xpose.msra.mxu0 0
        %1060 = vmatprep.subr.bf16.mxu0 0
        %1061 = vmatpush1.bf16.xpose.msra.mxu0 0
        %1062 = vmatprep.subr.bf16.mxu0 0
        %1063 = vmatpush1.bf16.xpose.msra.mxu0 0
        %1064 = vmatprep.subr.bf16.mxu0 0
        %1065 = vmatpush1.bf16.xpose.msra.mxu0 0
        %1066 = vmatprep.subr.bf16.mxu0 0
        %1067 = vmatpush1.bf16.xpose.msra.mxu0 0
        %1068 = vmatprep.subr.bf16.mxu0 0
        %1069 = vmatpush1.bf16.xpose.msra.mxu0 0
        %1070 = vmatprep.subr.bf16.mxu0 0
        %1071 = vmatpush1.bf16.xpose.msra.mxu0 0
        %1072 = vmatprep.subr.bf16.mxu0 0
        %1073 = vmatpush1.bf16.xpose.msra.mxu0 0
        %1074 = vmatprep.subr.bf16.mxu0 0
        %1075 = vmatpush1.bf16.xpose.msra.mxu0 0
        %1076 = vmatprep.subr.bf16.mxu0 0
        %1077 = vmatpush1.bf16.xpose.msra.mxu0 0
        %1078 = vmatprep.mubr.bf16.mxu0 0
        %1079 = vmatmul.mubr.bf16.gmra.mrb[0].mxu0 %v1041
        %v1080 = vpop.f32.mrb[0].mxu0
        %v1081 = vadd.f32 %v829, %v1080
        %v1082 = vpop.f32.mrb[0].mxu0
        %v1083 = vpop.f32.mrb[0].mxu0
        %v1084 = vpop.f32.mrb[0].mxu0
        %1085 = vdwg.mxu0
        %v1087 = vsel %vm1039, %v1034, 0
        %v1090 = vsel %vm1039, %v949, 0
        %1092 = vmatprep.subr.bf16.mxu0 0
        %1093 = vmatpush1.bf16.xpose.msra.mxu0 %v1090
        %1094 = vmatprep.subr.bf16.mxu0 0
        %1095 = vmatpush1.bf16.xpose.msra.mxu0 0
        %1096 = vmatprep.subr.bf16.mxu0 0
        %1097 = vmatpush1.bf16.xpose.msra.mxu0 0
        %1098 = vmatprep.subr.bf16.mxu0 0
        %1099 = vmatpush1.bf16.xpose.msra.mxu0 0
        %1100 = vmatprep.subr.bf16.mxu0 0
        %1101 = vmatpush1.bf16.xpose.msra.mxu0 0
        %1102 = vmatprep.subr.bf16.mxu0 0
        %1103 = vmatpush1.bf16.xpose.msra.mxu0 0
        %1104 = vmatprep.subr.bf16.mxu0 0
        %1105 = vmatpush1.bf16.xpose.msra.mxu0 0
        %1106 = vmatprep.subr.bf16.mxu0 0
        %1107 = vmatpush1.bf16.xpose.msra.mxu0 0
        %1108 = vmatprep.subr.bf16.mxu0 0
        %1109 = vmatpush1.bf16.xpose.msra.mxu0 0
        %1110 = vmatprep.subr.bf16.mxu0 0
        %1111 = vmatpush1.bf16.xpose.msra.mxu0 0
        %1112 = vmatprep.subr.bf16.mxu0 0
        %1113 = vmatpush1.bf16.xpose.msra.mxu0 0
        %1114 = vmatprep.subr.bf16.mxu0 0
        %1115 = vmatpush1.bf16.xpose.msra.mxu0 0
        %1116 = vmatprep.subr.bf16.mxu0 0
        %1117 = vmatpush1.bf16.xpose.msra.mxu0 0
        %1118 = vmatprep.subr.bf16.mxu0 0
        %1119 = vmatpush1.bf16.xpose.msra.mxu0 0
        %1120 = vmatprep.subr.bf16.mxu0 0
        %1121 = vmatpush1.bf16.xpose.msra.mxu0 0
        %1122 = vmatprep.subr.bf16.mxu0 0
        %1123 = vmatpush1.bf16.xpose.msra.mxu0 0
        %1124 = vmatprep.mubr.bf16.mxu0 0
        %1125 = vmatmul.mubr.bf16.gmra.mrb[0].mxu0 %v1087
        %v1126 = vpop.f32.mrb[0].mxu0
        %v1127 = vadd.f32 %v829, %v1126
        %v1128 = vpop.f32.mrb[0].mxu0
        %v1129 = vpop.f32.mrb[0].mxu0
        %v1130 = vpop.f32.mrb[0].mxu0
        %1131 = vdwg.mxu0
        %v1133 = vsel %vm1039, %v1036, 0
        %v1136 = vsel %vm1039, %v951, 0
        %1138 = vmatprep.subr.bf16.mxu0 0
        %1139 = vmatpush1.bf16.xpose.msra.mxu0 %v1136
        %1140 = vmatprep.subr.bf16.mxu0 0
        %1141 = vmatpush1.bf16.xpose.msra.mxu0 0
        %1142 = vmatprep.subr.bf16.mxu0 0
        %1143 = vmatpush1.bf16.xpose.msra.mxu0 0
        %1144 = vmatprep.subr.bf16.mxu0 0
        %1145 = vmatpush1.bf16.xpose.msra.mxu0 0
        %1146 = vmatprep.subr.bf16.mxu0 0
        %1147 = vmatpush1.bf16.xpose.msra.mxu0 0
        %1148 = vmatprep.subr.bf16.mxu0 0
        %1149 = vmatpush1.bf16.xpose.msra.mxu0 0
        %1150 = vmatprep.subr.bf16.mxu0 0
        %1151 = vmatpush1.bf16.xpose.msra.mxu0 0
        %1152 = vmatprep.subr.bf16.mxu0 0
        %1153 = vmatpush1.bf16.xpose.msra.mxu0 0
        %1154 = vmatprep.subr.bf16.mxu0 0
        %1155 = vmatpush1.bf16.xpose.msra.mxu0 0
        %1156 = vmatprep.subr.bf16.mxu0 0
        %1157 = vmatpush1.bf16.xpose.msra.mxu0 0
        %1158 = vmatprep.subr.bf16.mxu0 0
        %1159 = vmatpush1.bf16.xpose.msra.mxu0 0
        %1160 = vmatprep.subr.bf16.mxu0 0
        %1161 = vmatpush1.bf16.xpose.msra.mxu0 0
        %1162 = vmatprep.subr.bf16.mxu0 0
        %1163 = vmatpush1.bf16.xpose.msra.mxu0 0
        %1164 = vmatprep.subr.bf16.mxu0 0
        %1165 = vmatpush1.bf16.xpose.msra.mxu0 0
        %1166 = vmatprep.subr.bf16.mxu0 0
        %1167 = vmatpush1.bf16.xpose.msra.mxu0 0
        %1168 = vmatprep.subr.bf16.mxu0 0
        %1169 = vmatpush1.bf16.xpose.msra.mxu0 0
        %1170 = vmatprep.mubr.bf16.mxu0 0
        %1171 = vmatmul.mubr.bf16.gmra.mrb[0].mxu0 %v1133
        %v1172 = vpop.f32.mrb[0].mxu0
        %v1173 = vadd.f32 %v829, %v1172
        %v1174 = vpop.f32.mrb[0].mxu0
        %v1175 = vpop.f32.mrb[0].mxu0
        %v1176 = vpop.f32.mrb[0].mxu0
        %1177 = vdwg.mxu0
        %v1179 = vsel %vm1039, %v1038, 0
        %v1182 = vsel %vm1039, %v953, 0
        %1184 = vmatprep.subr.bf16.mxu0 0
        %1185 = vmatpush1.bf16.xpose.msra.mxu0 %v1182
        %1186 = vmatprep.subr.bf16.mxu0 0
        %1187 = vmatpush1.bf16.xpose.msra.mxu0 0
        %1188 = vmatprep.subr.bf16.mxu0 0
        %1189 = vmatpush1.bf16.xpose.msra.mxu0 0
        %1190 = vmatprep.subr.bf16.mxu0 0
        %1191 = vmatpush1.bf16.xpose.msra.mxu0 0
        %1192 = vmatprep.subr.bf16.mxu0 0
        %1193 = vmatpush1.bf16.xpose.msra.mxu0 0
        %1194 = vmatprep.subr.bf16.mxu0 0
        %1195 = vmatpush1.bf16.xpose.msra.mxu0 0
        %1196 = vmatprep.subr.bf16.mxu0 0
        %1197 = vmatpush1.bf16.xpose.msra.mxu0 0
        %1198 = vmatprep.subr.bf16.mxu0 0
        %1199 = vmatpush1.bf16.xpose.msra.mxu0 0
        %1200 = vmatprep.subr.bf16.mxu0 0
        %1201 = vmatpush1.bf16.xpose.msra.mxu0 0
        %1202 = vmatprep.subr.bf16.mxu0 0
        %1203 = vmatpush1.bf16.xpose.msra.mxu0 0
        %1204 = vmatprep.subr.bf16.mxu0 0
        %1205 = vmatpush1.bf16.xpose.msra.mxu0 0
        %1206 = vmatprep.subr.bf16.mxu0 0
        %1207 = vmatpush1.bf16.xpose.msra.mxu0 0
        %1208 = vmatprep.subr.bf16.mxu0 0
        %1209 = vmatpush1.bf16.xpose.msra.mxu0 0
        %1210 = vmatprep.subr.bf16.mxu0 0
        %1211 = vmatpush1.bf16.xpose.msra.mxu0 0
        %1212 = vmatprep.subr.bf16.mxu0 0
        %1213 = vmatpush1.bf16.xpose.msra.mxu0 0
        %1214 = vmatprep.subr.bf16.mxu0 0
        %1215 = vmatpush1.bf16.xpose.msra.mxu0 0
        %1216 = vmatprep.mubr.bf16.mxu0 0
        %1217 = vmatmul.mubr.bf16.gmra.mrb[0].mxu0 %v1179
        %v1218 = vpop.f32.mrb[0].mxu0
        %v1219 = vadd.f32 %v829, %v1218
        %v1220 = vpop.f32.mrb[0].mxu0
        %v1221 = vpop.f32.mrb[0].mxu0
        %v1222 = vpop.f32.mrb[0].mxu0
        %1223 = vdwg.mxu0
        %v1224 = vsel %vm1039, %v1081, -inf
        %1225 = vmax.xlane.f32.xlu0 %v1224
        %v1226 = vpop.xlane.xlu0 %1225
        %v1227 = vsel %vm1039, %v1127, -inf
        %1228 = vmax.xlane.f32.xlu0 %v1227
        %v1229 = vpop.xlane.xlu0 %1228
        %v1230 = vsel %vm1039, %v1173, -inf
        %1231 = vmax.xlane.f32.xlu0 %v1230
        %v1232 = vpop.xlane.xlu0 %1231
        %v1233 = vsel %vm1039, %v1219, -inf
        %1234 = vmax.xlane.f32.xlu0 %v1233
        %v1235 = vpop.xlane.xlu0 %1234
        %v1236 = vsub.f32 %v1081, %v1226
        %v1237 = vsub.f32 %v1127, %v1229
        %v1238 = vsub.f32 %v1173, %v1232
        %v1239 = vsub.f32 %v1219, %v1235
        %v1240 = vmul.f32 %v1236, 1.442695
        %v1241 = vpow.pop %v1240
        %v1242 = vmul.f32 %v1237, 1.442695
        %v1243 = vpow.pop %v1242
        %v1244 = vmul.f32 %v1238, 1.442695
        %v1245 = vpow.pop %v1244
        %v1246 = vmul.f32 %v1239, 1.442695
        %v1247 = vpow.pop %v1246
        %v1248 = vsel %vm1039, %v1241, 0.0
        %1249 = vadd.xlane.f32.xlu0 %v1248
        %v1250 = vpop.xlane.xlu0 %1249
        %v1251 = vsel %vm1039, %v1243, 0.0
        %1252 = vadd.xlane.f32.xlu0 %v1251
        %v1253 = vpop.xlane.xlu0 %1252
        %v1254 = vsel %vm1039, %v1245, 0.0
        %1255 = vadd.xlane.f32.xlu0 %v1254
        %v1256 = vpop.xlane.xlu0 %1255
        %v1257 = vsel %vm1039, %v1247, 0.0
        %1258 = vadd.xlane.f32.xlu0 %v1257
        %v1259 = vpop.xlane.xlu0 %1258
        %v1260 = vrcp.pop %v1250
        %v1261 = vrcp.pop %v1253
        %v1262 = vrcp.pop %v1256
        %v1263 = vrcp.pop %v1259
        %v1264 = vmul.f32 %v1241, %v1260
        %v1265 = vmul.f32 %v1243, %v1261
        %v1266 = vmul.f32 %v1245, %v1262
        %v1267 = vmul.f32 %v1247, %v1263
        %v1268 = vpack.c.bf16 %v1264, %v1264
        %v1269 = vpack.c.bf16 %v1265, %v1265
        %v1270 = vpack.c.bf16 %v1266, %v1266
        %v1271 = vpack.c.bf16 %v1267, %v1267
        %1272 = vrot.lane.b32.xlu0 %v946, 96
        %v1273 = vpop.permute.xlu0 %1272
        %v1275 = vsel %vm1039, %v1268, 0
        %vm1277 = vcmask 1043456
        %v1279 = vsel %vm1277, %v1273, 0
        %1281 = vmatprep.subr.bf16.mxu0 0
        %1282 = vmatpush1.bf16.msra.mxu0 %v1279
        %1283 = vmatprep.subr.bf16.mxu0 0
        %1284 = vmatpush1.bf16.msra.mxu0 0
        %1285 = vmatprep.subr.bf16.mxu0 0
        %1286 = vmatpush1.bf16.msra.mxu0 0
        %1287 = vmatprep.subr.bf16.mxu0 0
        %1288 = vmatpush1.bf16.msra.mxu0 0
        %1289 = vmatprep.subr.bf16.mxu0 0
        %1290 = vmatpush1.bf16.msra.mxu0 0
        %1291 = vmatprep.subr.bf16.mxu0 0
        %1292 = vmatpush1.bf16.msra.mxu0 0
        %1293 = vmatprep.subr.bf16.mxu0 0
        %1294 = vmatpush1.bf16.msra.mxu0 0
        %1295 = vmatprep.subr.bf16.mxu0 0
        %1296 = vmatpush1.bf16.msra.mxu0 0
        %1297 = vmatprep.subr.bf16.mxu0 0
        %1298 = vmatpush1.bf16.msra.mxu0 0
        %1299 = vmatprep.subr.bf16.mxu0 0
        %1300 = vmatpush1.bf16.msra.mxu0 0
        %1301 = vmatprep.subr.bf16.mxu0 0
        %1302 = vmatpush1.bf16.msra.mxu0 0
        %1303 = vmatprep.subr.bf16.mxu0 0
        %1304 = vmatpush1.bf16.msra.mxu0 0
        %1305 = vmatprep.subr.bf16.mxu0 0
        %1306 = vmatpush1.bf16.msra.mxu0 0
        %1307 = vmatprep.subr.bf16.mxu0 0
        %1308 = vmatpush1.bf16.msra.mxu0 0
        %1309 = vmatprep.subr.bf16.mxu0 0
        %1310 = vmatpush1.bf16.msra.mxu0 0
        %1311 = vmatprep.subr.bf16.mxu0 0
        %1312 = vmatpush1.bf16.msra.mxu0 0
        %1313 = vmatprep.mubr.bf16.mxu0 0
        %1314 = vmatmul.mubr.bf16.gmra.mrb[0].mxu0 %v1275
        %v1315 = vpop.f32.mrb[0].mxu0
        %v1316 = vadd.f32 0.0, %v1315
        %v1317 = vpop.f32.mrb[0].mxu0
        %v1318 = vpop.f32.mrb[0].mxu0
        %v1319 = vpop.f32.mrb[0].mxu0
        %1320 = vdwg.mxu0
        %1321 = vrot.lane.b32.xlu0 %v949, 96
        %v1322 = vpop.permute.xlu0 %1321
        %v1324 = vsel %vm1039, %v1269, 0
        %v1327 = vsel %vm1277, %v1322, 0
        %1329 = vmatprep.subr.bf16.mxu0 0
        %1330 = vmatpush1.bf16.msra.mxu0 %v1327
        %1331 = vmatprep.subr.bf16.mxu0 0
        %1332 = vmatpush1.bf16.msra.mxu0 0
        %1333 = vmatprep.subr.bf16.mxu0 0
        %1334 = vmatpush1.bf16.msra.mxu0 0
        %1335 = vmatprep.subr.bf16.mxu0 0
        %1336 = vmatpush1.bf16.msra.mxu0 0
        %1337 = vmatprep.subr.bf16.mxu0 0
        %1338 = vmatpush1.bf16.msra.mxu0 0
        %1339 = vmatprep.subr.bf16.mxu0 0
        %1340 = vmatpush1.bf16.msra.mxu0 0
        %1341 = vmatprep.subr.bf16.mxu0 0
        %1342 = vmatpush1.bf16.msra.mxu0 0
        %1343 = vmatprep.subr.bf16.mxu0 0
        %1344 = vmatpush1.bf16.msra.mxu0 0
        %1345 = vmatprep.subr.bf16.mxu0 0
        %1346 = vmatpush1.bf16.msra.mxu0 0
        %1347 = vmatprep.subr.bf16.mxu0 0
        %1348 = vmatpush1.bf16.msra.mxu0 0
        %1349 = vmatprep.subr.bf16.mxu0 0
        %1350 = vmatpush1.bf16.msra.mxu0 0
        %1351 = vmatprep.subr.bf16.mxu0 0
        %1352 = vmatpush1.bf16.msra.mxu0 0
        %1353 = vmatprep.subr.bf16.mxu0 0
        %1354 = vmatpush1.bf16.msra.mxu0 0
        %1355 = vmatprep.subr.bf16.mxu0 0
        %1356 = vmatpush1.bf16.msra.mxu0 0
        %1357 = vmatprep.subr.bf16.mxu0 0
        %1358 = vmatpush1.bf16.msra.mxu0 0
        %1359 = vmatprep.subr.bf16.mxu0 0
        %1360 = vmatpush1.bf16.msra.mxu0 0
        %1361 = vmatprep.mubr.bf16.mxu0 0
        %1362 = vmatmul.mubr.bf16.gmra.mrb[0].mxu0 %v1324
        %v1363 = vpop.f32.mrb[0].mxu0
        %v1364 = vadd.f32 0.0, %v1363
        %v1365 = vpop.f32.mrb[0].mxu0
        %v1366 = vpop.f32.mrb[0].mxu0
        %v1367 = vpop.f32.mrb[0].mxu0
        %1368 = vdwg.mxu0
        %1369 = vrot.lane.b32.xlu0 %v951, 96
        %v1370 = vpop.permute.xlu0 %1369
        %v1372 = vsel %vm1039, %v1270, 0
        %v1375 = vsel %vm1277, %v1370, 0
        %1377 = vmatprep.subr.bf16.mxu0 0
        %1378 = vmatpush1.bf16.msra.mxu0 %v1375
        %1379 = vmatprep.subr.bf16.mxu0 0
        %1380 = vmatpush1.bf16.msra.mxu0 0
        %1381 = vmatprep.subr.bf16.mxu0 0
        %1382 = vmatpush1.bf16.msra.mxu0 0
        %1383 = vmatprep.subr.bf16.mxu0 0
        %1384 = vmatpush1.bf16.msra.mxu0 0
        %1385 = vmatprep.subr.bf16.mxu0 0
        %1386 = vmatpush1.bf16.msra.mxu0 0
        %1387 = vmatprep.subr.bf16.mxu0 0
        %1388 = vmatpush1.bf16.msra.mxu0 0
        %1389 = vmatprep.subr.bf16.mxu0 0
        %1390 = vmatpush1.bf16.msra.mxu0 0
        %1391 = vmatprep.subr.bf16.mxu0 0
        %1392 = vmatpush1.bf16.msra.mxu0 0
        %1393 = vmatprep.subr.bf16.mxu0 0
        %1394 = vmatpush1.bf16.msra.mxu0 0
        %1395 = vmatprep.subr.bf16.mxu0 0
        %1396 = vmatpush1.bf16.msra.mxu0 0
        %1397 = vmatprep.subr.bf16.mxu0 0
        %1398 = vmatpush1.bf16.msra.mxu0 0
        %1399 = vmatprep.subr.bf16.mxu0 0
        %1400 = vmatpush1.bf16.msra.mxu0 0
        %1401 = vmatprep.subr.bf16.mxu0 0
        %1402 = vmatpush1.bf16.msra.mxu0 0
        %1403 = vmatprep.subr.bf16.mxu0 0
        %1404 = vmatpush1.bf16.msra.mxu0 0
        %1405 = vmatprep.subr.bf16.mxu0 0
        %1406 = vmatpush1.bf16.msra.mxu0 0
        %1407 = vmatprep.subr.bf16.mxu0 0
        %1408 = vmatpush1.bf16.msra.mxu0 0
        %1409 = vmatprep.mubr.bf16.mxu0 0
        %1410 = vmatmul.mubr.bf16.gmra.mrb[0].mxu0 %v1372
        %v1411 = vpop.f32.mrb[0].mxu0
        %v1412 = vadd.f32 0.0, %v1411
        %v1413 = vpop.f32.mrb[0].mxu0
        %v1414 = vpop.f32.mrb[0].mxu0
        %v1415 = vpop.f32.mrb[0].mxu0
        %1416 = vdwg.mxu0
        %1417 = vrot.lane.b32.xlu0 %v953, 96
        %v1418 = vpop.permute.xlu0 %1417
        %v1420 = vsel %vm1039, %v1271, 0
        %v1423 = vsel %vm1277, %v1418, 0
        %1425 = vmatprep.subr.bf16.mxu0 0
        %1426 = vmatpush1.bf16.msra.mxu0 %v1423
        %1427 = vmatprep.subr.bf16.mxu0 0
        %1428 = vmatpush1.bf16.msra.mxu0 0
        %1429 = vmatprep.subr.bf16.mxu0 0
        %1430 = vmatpush1.bf16.msra.mxu0 0
        %1431 = vmatprep.subr.bf16.mxu0 0
        %1432 = vmatpush1.bf16.msra.mxu0 0
        %1433 = vmatprep.subr.bf16.mxu0 0
        %1434 = vmatpush1.bf16.msra.mxu0 0
        %1435 = vmatprep.subr.bf16.mxu0 0
        %1436 = vmatpush1.bf16.msra.mxu0 0
        %1437 = vmatprep.subr.bf16.mxu0 0
        %1438 = vmatpush1.bf16.msra.mxu0 0
        %1439 = vmatprep.subr.bf16.mxu0 0
        %1440 = vmatpush1.bf16.msra.mxu0 0
        %1441 = vmatprep.subr.bf16.mxu0 0
        %1442 = vmatpush1.bf16.msra.mxu0 0
        %1443 = vmatprep.subr.bf16.mxu0 0
        %1444 = vmatpush1.bf16.msra.mxu0 0
        %1445 = vmatprep.subr.bf16.mxu0 0
        %1446 = vmatpush1.bf16.msra.mxu0 0
        %1447 = vmatprep.subr.bf16.mxu0 0
        %1448 = vmatpush1.bf16.msra.mxu0 0
        %1449 = vmatprep.subr.bf16.mxu0 0
        %1450 = vmatpush1.bf16.msra.mxu0 0
        %1451 = vmatprep.subr.bf16.mxu0 0
        %1452 = vmatpush1.bf16.msra.mxu0 0
        %1453 = vmatprep.subr.bf16.mxu0 0
        %1454 = vmatpush1.bf16.msra.mxu0 0
        %1455 = vmatprep.subr.bf16.mxu0 0
        %1456 = vmatpush1.bf16.msra.mxu0 0
        %1457 = vmatprep.mubr.bf16.mxu0 0
        %1458 = vmatmul.mubr.bf16.gmra.mrb[0].mxu0 %v1420
        %v1459 = vpop.f32.mrb[0].mxu0
        %v1460 = vadd.f32 0.0, %v1459
        %v1461 = vpop.f32.mrb[0].mxu0
        %v1462 = vpop.f32.mrb[0].mxu0
        %v1463 = vpop.f32.mrb[0].mxu0
        %1464 = vdwg.mxu0
        %1466 = vrot.lane.b32.xlu0 %v1364, 8
        %v1467 = vpop.permute.xlu0 %1466
        %1470 = vrot.lane.b32.xlu0 %v1412, 16
        %v1471 = vpop.permute.xlu0 %1470
        %1474 = vrot.lane.b32.xlu0 %v1460, 24
        %v1475 = vpop.permute.xlu0 %1474
        %v1477 = vsel %vm1039, %v1316, %v1467
        %vm1478 = vcmask 130048
        %v1479 = vsel %vm1478, %v1477, %v1471
        %vm1480 = vcmask 195584
        %v1481 = vsel %vm1480, %v1479, %v1475
        %v1482 = vpack.c.bf16 %v1481, %v1481
        %v1484 = vlaneseq
        %v1485 = vshrl.u32 %v1484, 7
        %v1486 = vsub.s32 0, %v1485
        %v1487 = vrot.slane %v756, %v1486
        %v1493 = vunpack.c.l.b16 %v752
        %v1494 = vunpack.c.l.b16 %v753
        %v1495 = vunpack.c.l.b16 %v754
        %v1496 = vunpack.c.l.b16 %v755
        %v1497 = vpack.c.b16 %v1494, %v1493
        %v1498 = vpack.c.b16 %v1496, %v1495
        %v1502 = vsel %vm855, %v1482, 0
        %1504 = vmatprep.subr.bf16.mxu0 0
        %1505 = vmatpush1.bf16.msra.mxu0 %v1497
        %1506 = vmatprep.subr.bf16.mxu0 0
        %1507 = vmatpush1.bf16.msra.mxu0 %v1498
        %1508 = vmatprep.subr.bf16.mxu0 0
        %1509 = vmatpush1.bf16.msra.mxu0 0
        %1510 = vmatprep.subr.bf16.mxu0 0
        %1511 = vmatpush1.bf16.msra.mxu0 0
        %1512 = vmatprep.subr.bf16.mxu0 0
        %1513 = vmatpush1.bf16.msra.mxu0 0
        %1514 = vmatprep.subr.bf16.mxu0 0
        %1515 = vmatpush1.bf16.msra.mxu0 0
        %1516 = vmatprep.subr.bf16.mxu0 0
        %1517 = vmatpush1.bf16.msra.mxu0 0
        %1518 = vmatprep.subr.bf16.mxu0 0
        %1519 = vmatpush1.bf16.msra.mxu0 0
        %1520 = vmatprep.subr.bf16.mxu0 0
        %1521 = vmatpush1.bf16.msra.mxu0 0
        %1522 = vmatprep.subr.bf16.mxu0 0
        %1523 = vmatpush1.bf16.msra.mxu0 0
        %1524 = vmatprep.subr.bf16.mxu0 0
        %1525 = vmatpush1.bf16.msra.mxu0 0
        %1526 = vmatprep.subr.bf16.mxu0 0
        %1527 = vmatpush1.bf16.msra.mxu0 0
        %1528 = vmatprep.subr.bf16.mxu0 0
        %1529 = vmatpush1.bf16.msra.mxu0 0
        %1530 = vmatprep.subr.bf16.mxu0 0
        %1531 = vmatpush1.bf16.msra.mxu0 0
        %1532 = vmatprep.subr.bf16.mxu0 0
        %1533 = vmatpush1.bf16.msra.mxu0 0
        %1534 = vmatprep.subr.bf16.mxu0 0
        %1535 = vmatpush1.bf16.msra.mxu0 0
        %1536 = vmatprep.mubr.bf16.mxu0 0
        %1537 = vmatmul.mubr.bf16.gmra.mrb[0].mxu0 %v1502
        %v1538 = vpop.f32.mrb[0].mxu0
        %v1539 = vadd.f32 %v1487, %v1538
        %v1540 = vpop.f32.mrb[0].mxu0
        %v1541 = vpop.f32.mrb[0].mxu0
        %v1542 = vpop.f32.mrb[0].mxu0
        %1543 = vdwg.mxu0
        %v1544 = vadd.f32 %v968, %v1539
        %v1545 = vsel %vm855, %v1544, 0.0
        %1546 = vadd.xlane.f32.xlu0 %v1545
        %v1547 = vpop.xlane.xlu0 %1546
        %v1548 = vmul.f32 %v1547, %v859
        %v1549 = vsub.f32 %v1544, %v1548
        %v1550 = vmul.f32 %v1549, %v1549
        %v1551 = vsel %vm855, %v1550, 0.0
        %1552 = vadd.xlane.f32.xlu0 %v1551
        %v1553 = vpop.xlane.xlu0 %1552
        %v1554 = vmul.f32 %v1553, %v859
        %v1555 = vadd.f32 %v1554, 1e-05
        %v1556 = vrsqrt.pop %v1555
        %v1557 = vmul.f32 %v1549, %v1556
        %v1559 = vlaneseq
        %v1560 = vshrl.u32 %v1559, 7
        %v1561 = vsub.s32 0, %v1560
        %v1562 = vrot.slane %v745, %v1561
        %v1564 = vmul.f32 %v1557, %v1562
        %v1566 = vlaneseq
        %v1567 = vshrl.u32 %v1566, 7
        %v1568 = vsub.s32 0, %v1567
        %v1569 = vrot.slane %v746, %v1568
        %v1571 = vadd.f32 %v1564, %v1569
        %v1572 = vpack.c.bf16 %v1571, %v1571
        %v1574 = vlaneseq
        %v1575 = vshrl.u32 %v1574, 7
        %v1576 = vsub.s32 0, %v1575
        %v1577 = vrot.slane %v761, %v1576
        %v1583 = vunpack.c.l.b16 %v757
        %v1584 = vunpack.c.l.b16 %v758
        %v1585 = vunpack.c.l.b16 %v759
        %v1586 = vunpack.c.l.b16 %v760
        %v1587 = vpack.c.b16 %v1584, %v1583
        %v1588 = vpack.c.b16 %v1586, %v1585
        %v1592 = vsel %vm855, %v1572, 0
        %1594 = vmatprep.subr.bf16.mxu0 0
        %1595 = vmatpush1.bf16.msra.mxu0 %v1587
        %1596 = vmatprep.subr.bf16.mxu0 0
        %1597 = vmatpush1.bf16.msra.mxu0 %v1588
        %1598 = vmatprep.subr.bf16.mxu0 0
        %1599 = vmatpush1.bf16.msra.mxu0 0
        %1600 = vmatprep.subr.bf16.mxu0 0
        %1601 = vmatpush1.bf16.msra.mxu0 0
        %1602 = vmatprep.subr.bf16.mxu0 0
        %1603 = vmatpush1.bf16.msra.mxu0 0
        %1604 = vmatprep.subr.bf16.mxu0 0
        %1605 = vmatpush1.bf16.msra.mxu0 0
        %1606 = vmatprep.subr.bf16.mxu0 0
        %1607 = vmatpush1.bf16.msra.mxu0 0
        %1608 = vmatprep.subr.bf16.mxu0 0
        %1609 = vmatpush1.bf16.msra.mxu0 0
        %1610 = vmatprep.subr.bf16.mxu0 0
        %1611 = vmatpush1.bf16.msra.mxu0 0
        %1612 = vmatprep.subr.bf16.mxu0 0
        %1613 = vmatpush1.bf16.msra.mxu0 0
        %1614 = vmatprep.subr.bf16.mxu0 0
        %1615 = vmatpush1.bf16.msra.mxu0 0
        %1616 = vmatprep.subr.bf16.mxu0 0
        %1617 = vmatpush1.bf16.msra.mxu0 0
        %1618 = vmatprep.subr.bf16.mxu0 0
        %1619 = vmatpush1.bf16.msra.mxu0 0
        %1620 = vmatprep.subr.bf16.mxu0 0
        %1621 = vmatpush1.bf16.msra.mxu0 0
        %1622 = vmatprep.subr.bf16.mxu0 0
        %1623 = vmatpush1.bf16.msra.mxu0 0
        %1624 = vmatprep.subr.bf16.mxu0 0
        %1625 = vmatpush1.bf16.msra.mxu0 0
        %1626 = vmatprep.mubr.bf16.mxu0 0
        %1627 = vmatmul.mubr.bf16.gmra.mrb[0].mxu0 %v1592
        %v1628 = vpop.f32.mrb[0].mxu0
        %v1629 = vadd.f32 %v1577, %v1628
        %v1630 = vpop.f32.mrb[0].mxu0
        %v1631 = vpop.f32.mrb[0].mxu0
        %v1632 = vpop.f32.mrb[0].mxu0
        %1633 = vdwg.mxu0
        %v1634 = vmax.f32 %v1629, 0.0
        %v1635 = vpack.c.bf16 %v1634, %v1634
        %v1637 = vlaneseq
        %v1638 = vshrl.u32 %v1637, 7
        %v1639 = vsub.s32 0, %v1638
        %v1640 = vrot.slane %v778, %v1639
        %v1658 = vunpack.c.l.b16 %v762
        %v1659 = vunpack.c.l.b16 %v763
        %v1660 = vunpack.c.l.b16 %v764
        %v1661 = vunpack.c.l.b16 %v765
        %v1662 = vunpack.c.l.b16 %v766
        %v1663 = vunpack.c.l.b16 %v767
        %v1664 = vunpack.c.l.b16 %v768
        %v1665 = vunpack.c.l.b16 %v769
        %v1666 = vunpack.c.l.b16 %v770
        %v1667 = vunpack.c.l.b16 %v771
        %v1668 = vunpack.c.l.b16 %v772
        %v1669 = vunpack.c.l.b16 %v773
        %v1670 = vunpack.c.l.b16 %v774
        %v1671 = vunpack.c.l.b16 %v775
        %v1672 = vunpack.c.l.b16 %v776
        %v1673 = vunpack.c.l.b16 %v777
        %v1674 = vpack.c.b16 %v1659, %v1658
        %v1675 = vpack.c.b16 %v1661, %v1660
        %v1676 = vpack.c.b16 %v1663, %v1662
        %v1677 = vpack.c.b16 %v1665, %v1664
        %v1678 = vpack.c.b16 %v1667, %v1666
        %v1679 = vpack.c.b16 %v1669, %v1668
        %v1680 = vpack.c.b16 %v1671, %v1670
        %v1681 = vpack.c.b16 %v1673, %v1672
        %1690 = vmatprep.subr.bf16.mxu0 0
        %1691 = vmatpush1.bf16.msra.mxu0 %v1674
        %1692 = vmatprep.subr.bf16.mxu0 0
        %1693 = vmatpush1.bf16.msra.mxu0 %v1675
        %1694 = vmatprep.subr.bf16.mxu0 0
        %1695 = vmatpush1.bf16.msra.mxu0 %v1676
        %1696 = vmatprep.subr.bf16.mxu0 0
        %1697 = vmatpush1.bf16.msra.mxu0 %v1677
        %1698 = vmatprep.subr.bf16.mxu0 0
        %1699 = vmatpush1.bf16.msra.mxu0 %v1678
        %1700 = vmatprep.subr.bf16.mxu0 0
        %1701 = vmatpush1.bf16.msra.mxu0 %v1679
        %1702 = vmatprep.subr.bf16.mxu0 0
        %1703 = vmatpush1.bf16.msra.mxu0 %v1680
        %1704 = vmatprep.subr.bf16.mxu0 0
        %1705 = vmatpush1.bf16.msra.mxu0 %v1681
        %1706 = vmatprep.subr.bf16.mxu0 0
        %1707 = vmatpush1.bf16.msra.mxu0 0
        %1708 = vmatprep.subr.bf16.mxu0 0
        %1709 = vmatpush1.bf16.msra.mxu0 0
        %1710 = vmatprep.subr.bf16.mxu0 0
        %1711 = vmatpush1.bf16.msra.mxu0 0
        %1712 = vmatprep.subr.bf16.mxu0 0
        %1713 = vmatpush1.bf16.msra.mxu0 0
        %1714 = vmatprep.subr.bf16.mxu0 0
        %1715 = vmatpush1.bf16.msra.mxu0 0
        %1716 = vmatprep.subr.bf16.mxu0 0
        %1717 = vmatpush1.bf16.msra.mxu0 0
        %1718 = vmatprep.subr.bf16.mxu0 0
        %1719 = vmatpush1.bf16.msra.mxu0 0
        %1720 = vmatprep.subr.bf16.mxu0 0
        %1721 = vmatpush1.bf16.msra.mxu0 0
        %1722 = vmatprep.mubr.bf16.mxu0 0
        %1723 = vmatmul.mubr.bf16.gmra.mrb[0].mxu0 %v1635
        %v1724 = vpop.f32.mrb[0].mxu0
        %v1725 = vadd.f32 %v1640, %v1724
        %v1726 = vpop.f32.mrb[0].mxu0
        %v1727 = vpop.f32.mrb[0].mxu0
        %v1728 = vpop.f32.mrb[0].mxu0
        %1729 = vdwg.mxu0
        %v1730 = vadd.f32 %v1571, %v1725
        %v1731 = vsel %vm855, %v1730, 0.0
        %1732 = vadd.xlane.f32.xlu0 %v1731
        %v1733 = vpop.xlane.xlu0 %1732
        %v1734 = vmul.f32 %v1733, %v859
        %v1735 = vsub.f32 %v1730, %v1734
        %v1736 = vmul.f32 %v1735, %v1735
        %v1737 = vsel %vm855, %v1736, 0.0
        %1738 = vadd.xlane.f32.xlu0 %v1737
        %v1739 = vpop.xlane.xlu0 %1738
        %v1740 = vmul.f32 %v1739, %v859
        %v1741 = vadd.f32 %v1740, 1e-05
        %v1742 = vrsqrt.pop %v1741
        %v1743 = vmul.f32 %v1735, %v1742
        %v1744 = vmul.f32 %v1743, %v874
        %v1745 = vadd.f32 %v1744, %v881
        %v1746 = vpack.c.bf16 %v1745, %v1745
        %v1748 = vsel %vm855, %v1746, 0
        %1750 = vmatprep.subr.bf16.mxu0 0
        %1751 = vmatpush1.bf16.msra.mxu0 %v984
        %1752 = vmatprep.subr.bf16.mxu0 0
        %1753 = vmatpush1.bf16.msra.mxu0 %v985
        %1754 = vmatprep.subr.bf16.mxu0 0
        %1755 = vmatpush1.bf16.msra.mxu0 0
        %1756 = vmatprep.subr.bf16.mxu0 0
        %1757 = vmatpush1.bf16.msra.mxu0 0
        %1758 = vmatprep.subr.bf16.mxu0 0
        %1759 = vmatpush1.bf16.msra.mxu0 0
        %1760 = vmatprep.subr.bf16.mxu0 0
        %1761 = vmatpush1.bf16.msra.mxu0 0
        %1762 = vmatprep.subr.bf16.mxu0 0
        %1763 = vmatpush1.bf16.msra.mxu0 0
        %1764 = vmatprep.subr.bf16.mxu0 0
        %1765 = vmatpush1.bf16.msra.mxu0 0
        %1766 = vmatprep.subr.bf16.mxu0 0
        %1767 = vmatpush1.bf16.msra.mxu0 0
        %1768 = vmatprep.subr.bf16.mxu0 0
        %1769 = vmatpush1.bf16.msra.mxu0 0
        %1770 = vmatprep.subr.bf16.mxu0 0
        %1771 = vmatpush1.bf16.msra.mxu0 0
        %1772 = vmatprep.subr.bf16.mxu0 0
        %1773 = vmatpush1.bf16.msra.mxu0 0
        %1774 = vmatprep.subr.bf16.mxu0 0
        %1775 = vmatpush1.bf16.msra.mxu0 0
        %1776 = vmatprep.subr.bf16.mxu0 0
        %1777 = vmatpush1.bf16.msra.mxu0 0
        %1778 = vmatprep.subr.bf16.mxu0 0
        %1779 = vmatpush1.bf16.msra.mxu0 0
        %1780 = vmatprep.subr.bf16.mxu0 0
        %1781 = vmatpush1.bf16.msra.mxu0 0
        %1782 = vmatprep.mubr.bf16.mxu0 0
        %1783 = vmatmul.mubr.bf16.gmra.mrb[0].mxu0 %v1748
        %v1784 = vpop.f32.mrb[0].mxu0
        %v1785 = vadd.f32 %v974, %v1784
        %v1786 = vpop.f32.mrb[0].mxu0
        %v1787 = vpop.f32.mrb[0].mxu0
        %v1788 = vpop.f32.mrb[0].mxu0
        %1789 = vdwg.mxu0
        %v1790 = vpack.c.bf16 %v1785, %v1785
        %1792 = vrot.lane.b32.xlu0 %v1790, 120
        %v1793 = vpop.permute.xlu0 %1792
        %1794 = vrot.lane.b32.xlu0 %v1790, 112
        %v1795 = vpop.permute.xlu0 %1794
        %1796 = vrot.lane.b32.xlu0 %v1790, 104
        %v1797 = vpop.permute.xlu0 %1796
        %v1799 = vsel %vm1039, %v1790, 0
        %1801 = vmatprep.subr.bf16.mxu0 0
        %1802 = vmatpush1.bf16.xpose.msra.mxu0 %v1044
        %1803 = vmatprep.subr.bf16.mxu0 0
        %1804 = vmatpush1.bf16.xpose.msra.mxu0 0
        %1805 = vmatprep.subr.bf16.mxu0 0
        %1806 = vmatpush1.bf16.xpose.msra.mxu0 0
        %1807 = vmatprep.subr.bf16.mxu0 0
        %1808 = vmatpush1.bf16.xpose.msra.mxu0 0
        %1809 = vmatprep.subr.bf16.mxu0 0
        %1810 = vmatpush1.bf16.xpose.msra.mxu0 0
        %1811 = vmatprep.subr.bf16.mxu0 0
        %1812 = vmatpush1.bf16.xpose.msra.mxu0 0
        %1813 = vmatprep.subr.bf16.mxu0 0
        %1814 = vmatpush1.bf16.xpose.msra.mxu0 0
        %1815 = vmatprep.subr.bf16.mxu0 0
        %1816 = vmatpush1.bf16.xpose.msra.mxu0 0
        %1817 = vmatprep.subr.bf16.mxu0 0
        %1818 = vmatpush1.bf16.xpose.msra.mxu0 0
        %1819 = vmatprep.subr.bf16.mxu0 0
        %1820 = vmatpush1.bf16.xpose.msra.mxu0 0
        %1821 = vmatprep.subr.bf16.mxu0 0
        %1822 = vmatpush1.bf16.xpose.msra.mxu0 0
        %1823 = vmatprep.subr.bf16.mxu0 0
        %1824 = vmatpush1.bf16.xpose.msra.mxu0 0
        %1825 = vmatprep.subr.bf16.mxu0 0
        %1826 = vmatpush1.bf16.xpose.msra.mxu0 0
        %1827 = vmatprep.subr.bf16.mxu0 0
        %1828 = vmatpush1.bf16.xpose.msra.mxu0 0
        %1829 = vmatprep.subr.bf16.mxu0 0
        %1830 = vmatpush1.bf16.xpose.msra.mxu0 0
        %1831 = vmatprep.subr.bf16.mxu0 0
        %1832 = vmatpush1.bf16.xpose.msra.mxu0 0
        %1833 = vmatprep.mubr.bf16.mxu0 0
        %1834 = vmatmul.mubr.bf16.gmra.mrb[0].mxu0 %v1799
        %v1835 = vpop.f32.mrb[0].mxu0
        %v1836 = vadd.f32 %v829, %v1835
        %v1837 = vpop.f32.mrb[0].mxu0
        %v1838 = vpop.f32.mrb[0].mxu0
        %v1839 = vpop.f32.mrb[0].mxu0
        %1840 = vdwg.mxu0
        %v1842 = vsel %vm1039, %v1793, 0
        %1844 = vmatprep.subr.bf16.mxu0 0
        %1845 = vmatpush1.bf16.xpose.msra.mxu0 %v1090
        %1846 = vmatprep.subr.bf16.mxu0 0
        %1847 = vmatpush1.bf16.xpose.msra.mxu0 0
        %1848 = vmatprep.subr.bf16.mxu0 0
        %1849 = vmatpush1.bf16.xpose.msra.mxu0 0
        %1850 = vmatprep.subr.bf16.mxu0 0
        %1851 = vmatpush1.bf16.xpose.msra.mxu0 0
        %1852 = vmatprep.subr.bf16.mxu0 0
        %1853 = vmatpush1.bf16.xpose.msra.mxu0 0
        %1854 = vmatprep.subr.bf16.mxu0 0
        %1855 = vmatpush1.bf16.xpose.msra.mxu0 0
        %1856 = vmatprep.subr.bf16.mxu0 0
        %1857 = vmatpush1.bf16.xpose.msra.mxu0 0
        %1858 = vmatprep.subr.bf16.mxu0 0
        %1859 = vmatpush1.bf16.xpose.msra.mxu0 0
        %1860 = vmatprep.subr.bf16.mxu0 0
        %1861 = vmatpush1.bf16.xpose.msra.mxu0 0
        %1862 = vmatprep.subr.bf16.mxu0 0
        %1863 = vmatpush1.bf16.xpose.msra.mxu0 0
        %1864 = vmatprep.subr.bf16.mxu0 0
        %1865 = vmatpush1.bf16.xpose.msra.mxu0 0
        %1866 = vmatprep.subr.bf16.mxu0 0
        %1867 = vmatpush1.bf16.xpose.msra.mxu0 0
        %1868 = vmatprep.subr.bf16.mxu0 0
        %1869 = vmatpush1.bf16.xpose.msra.mxu0 0
        %1870 = vmatprep.subr.bf16.mxu0 0
        %1871 = vmatpush1.bf16.xpose.msra.mxu0 0
        %1872 = vmatprep.subr.bf16.mxu0 0
        %1873 = vmatpush1.bf16.xpose.msra.mxu0 0
        %1874 = vmatprep.subr.bf16.mxu0 0
        %1875 = vmatpush1.bf16.xpose.msra.mxu0 0
        %1876 = vmatprep.mubr.bf16.mxu0 0
        %1877 = vmatmul.mubr.bf16.gmra.mrb[0].mxu0 %v1842
        %v1878 = vpop.f32.mrb[0].mxu0
        %v1879 = vadd.f32 %v829, %v1878
        %v1880 = vpop.f32.mrb[0].mxu0
        %v1881 = vpop.f32.mrb[0].mxu0
        %v1882 = vpop.f32.mrb[0].mxu0
        %1883 = vdwg.mxu0
        %v1885 = vsel %vm1039, %v1795, 0
        %1887 = vmatprep.subr.bf16.mxu0 0
        %1888 = vmatpush1.bf16.xpose.msra.mxu0 %v1136
        %1889 = vmatprep.subr.bf16.mxu0 0
        %1890 = vmatpush1.bf16.xpose.msra.mxu0 0
        %1891 = vmatprep.subr.bf16.mxu0 0
        %1892 = vmatpush1.bf16.xpose.msra.mxu0 0
        %1893 = vmatprep.subr.bf16.mxu0 0
        %1894 = vmatpush1.bf16.xpose.msra.mxu0 0
        %1895 = vmatprep.subr.bf16.mxu0 0
        %1896 = vmatpush1.bf16.xpose.msra.mxu0 0
        %1897 = vmatprep.subr.bf16.mxu0 0
        %1898 = vmatpush1.bf16.xpose.msra.mxu0 0
        %1899 = vmatprep.subr.bf16.mxu0 0
        %1900 = vmatpush1.bf16.xpose.msra.mxu0 0
        %1901 = vmatprep.subr.bf16.mxu0 0
        %1902 = vmatpush1.bf16.xpose.msra.mxu0 0
        %1903 = vmatprep.subr.bf16.mxu0 0
        %1904 = vmatpush1.bf16.xpose.msra.mxu0 0
        %1905 = vmatprep.subr.bf16.mxu0 0
        %1906 = vmatpush1.bf16.xpose.msra.mxu0 0
        %1907 = vmatprep.subr.bf16.mxu0 0
        %1908 = vmatpush1.bf16.xpose.msra.mxu0 0
        %1909 = vmatprep.subr.bf16.mxu0 0
        %1910 = vmatpush1.bf16.xpose.msra.mxu0 0
        %1911 = vmatprep.subr.bf16.mxu0 0
        %1912 = vmatpush1.bf16.xpose.msra.mxu0 0
        %1913 = vmatprep.subr.bf16.mxu0 0
        %1914 = vmatpush1.bf16.xpose.msra.mxu0 0
        %1915 = vmatprep.subr.bf16.mxu0 0
        %1916 = vmatpush1.bf16.xpose.msra.mxu0 0
        %1917 = vmatprep.subr.bf16.mxu0 0
        %1918 = vmatpush1.bf16.xpose.msra.mxu0 0
        %1919 = vmatprep.mubr.bf16.mxu0 0
        %1920 = vmatmul.mubr.bf16.gmra.mrb[0].mxu0 %v1885
        %v1921 = vpop.f32.mrb[0].mxu0
        %v1922 = vadd.f32 %v829, %v1921
        %v1923 = vpop.f32.mrb[0].mxu0
        %v1924 = vpop.f32.mrb[0].mxu0
        %v1925 = vpop.f32.mrb[0].mxu0
        %1926 = vdwg.mxu0
        %v1928 = vsel %vm1039, %v1797, 0
        %1930 = vmatprep.subr.bf16.mxu0 0
        %1931 = vmatpush1.bf16.xpose.msra.mxu0 %v1182
        %1932 = vmatprep.subr.bf16.mxu0 0
        %1933 = vmatpush1.bf16.xpose.msra.mxu0 0
        %1934 = vmatprep.subr.bf16.mxu0 0
        %1935 = vmatpush1.bf16.xpose.msra.mxu0 0
        %1936 = vmatprep.subr.bf16.mxu0 0
        %1937 = vmatpush1.bf16.xpose.msra.mxu0 0
        %1938 = vmatprep.subr.bf16.mxu0 0
        %1939 = vmatpush1.bf16.xpose.msra.mxu0 0
        %1940 = vmatprep.subr.bf16.mxu0 0
        %1941 = vmatpush1.bf16.xpose.msra.mxu0 0
        %1942 = vmatprep.subr.bf16.mxu0 0
        %1943 = vmatpush1.bf16.xpose.msra.mxu0 0
        %1944 = vmatprep.subr.bf16.mxu0 0
        %1945 = vmatpush1.bf16.xpose.msra.mxu0 0
        %1946 = vmatprep.subr.bf16.mxu0 0
        %1947 = vmatpush1.bf16.xpose.msra.mxu0 0
        %1948 = vmatprep.subr.bf16.mxu0 0
        %1949 = vmatpush1.bf16.xpose.msra.mxu0 0
        %1950 = vmatprep.subr.bf16.mxu0 0
        %1951 = vmatpush1.bf16.xpose.msra.mxu0 0
        %1952 = vmatprep.subr.bf16.mxu0 0
        %1953 = vmatpush1.bf16.xpose.msra.mxu0 0
        %1954 = vmatprep.subr.bf16.mxu0 0
        %1955 = vmatpush1.bf16.xpose.msra.mxu0 0
        %1956 = vmatprep.subr.bf16.mxu0 0
        %1957 = vmatpush1.bf16.xpose.msra.mxu0 0
        %1958 = vmatprep.subr.bf16.mxu0 0
        %1959 = vmatpush1.bf16.xpose.msra.mxu0 0
        %1960 = vmatprep.subr.bf16.mxu0 0
        %1961 = vmatpush1.bf16.xpose.msra.mxu0 0
        %1962 = vmatprep.mubr.bf16.mxu0 0
        %1963 = vmatmul.mubr.bf16.gmra.mrb[0].mxu0 %v1928
        %v1964 = vpop.f32.mrb[0].mxu0
        %v1965 = vadd.f32 %v829, %v1964
        %v1966 = vpop.f32.mrb[0].mxu0
        %v1967 = vpop.f32.mrb[0].mxu0
        %v1968 = vpop.f32.mrb[0].mxu0
        %1969 = vdwg.mxu0
        %v1970 = vsel %vm1039, %v1836, -inf
        %1971 = vmax.xlane.f32.xlu0 %v1970
        %v1972 = vpop.xlane.xlu0 %1971
        %v1973 = vsel %vm1039, %v1879, -inf
        %1974 = vmax.xlane.f32.xlu0 %v1973
        %v1975 = vpop.xlane.xlu0 %1974
        %v1976 = vsel %vm1039, %v1922, -inf
        %1977 = vmax.xlane.f32.xlu0 %v1976
        %v1978 = vpop.xlane.xlu0 %1977
        %v1979 = vsel %vm1039, %v1965, -inf
        %1980 = vmax.xlane.f32.xlu0 %v1979
        %v1981 = vpop.xlane.xlu0 %1980
        %v1982 = vsub.f32 %v1836, %v1972
        %v1983 = vsub.f32 %v1879, %v1975
        %v1984 = vsub.f32 %v1922, %v1978
        %v1985 = vsub.f32 %v1965, %v1981
        %v1986 = vmul.f32 %v1982, 1.442695
        %v1987 = vpow.pop %v1986
        %v1988 = vmul.f32 %v1983, 1.442695
        %v1989 = vpow.pop %v1988
        %v1990 = vmul.f32 %v1984, 1.442695
        %v1991 = vpow.pop %v1990
        %v1992 = vmul.f32 %v1985, 1.442695
        %v1993 = vpow.pop %v1992
        %v1994 = vsel %vm1039, %v1987, 0.0
        %1995 = vadd.xlane.f32.xlu0 %v1994
        %v1996 = vpop.xlane.xlu0 %1995
        %v1997 = vsel %vm1039, %v1989, 0.0
        %1998 = vadd.xlane.f32.xlu0 %v1997
        %v1999 = vpop.xlane.xlu0 %1998
        %v2000 = vsel %vm1039, %v1991, 0.0
        %2001 = vadd.xlane.f32.xlu0 %v2000
        %v2002 = vpop.xlane.xlu0 %2001
        %v2003 = vsel %vm1039, %v1993, 0.0
        %2004 = vadd.xlane.f32.xlu0 %v2003
        %v2005 = vpop.xlane.xlu0 %2004
        %v2006 = vrcp.pop %v1996
        %v2007 = vrcp.pop %v1999
        %v2008 = vrcp.pop %v2002
        %v2009 = vrcp.pop %v2005
        %v2010 = vmul.f32 %v1987, %v2006
        %v2011 = vmul.f32 %v1989, %v2007
        %v2012 = vmul.f32 %v1991, %v2008
        %v2013 = vmul.f32 %v1993, %v2009
        %v2014 = vpack.c.bf16 %v2010, %v2010
        %v2015 = vpack.c.bf16 %v2011, %v2011
        %v2016 = vpack.c.bf16 %v2012, %v2012
        %v2017 = vpack.c.bf16 %v2013, %v2013
        %v2019 = vsel %vm1039, %v2014, 0
        %2021 = vmatprep.subr.bf16.mxu0 0
        %2022 = vmatpush1.bf16.msra.mxu0 %v1279
        %2023 = vmatprep.subr.bf16.mxu0 0
        %2024 = vmatpush1.bf16.msra.mxu0 0
        %2025 = vmatprep.subr.bf16.mxu0 0
        %2026 = vmatpush1.bf16.msra.mxu0 0
        %2027 = vmatprep.subr.bf16.mxu0 0
        %2028 = vmatpush1.bf16.msra.mxu0 0
        %2029 = vmatprep.subr.bf16.mxu0 0
        %2030 = vmatpush1.bf16.msra.mxu0 0
        %2031 = vmatprep.subr.bf16.mxu0 0
        %2032 = vmatpush1.bf16.msra.mxu0 0
        %2033 = vmatprep.subr.bf16.mxu0 0
        %2034 = vmatpush1.bf16.msra.mxu0 0
        %2035 = vmatprep.subr.bf16.mxu0 0
        %2036 = vmatpush1.bf16.msra.mxu0 0
        %2037 = vmatprep.subr.bf16.mxu0 0
        %2038 = vmatpush1.bf16.msra.mxu0 0
        %2039 = vmatprep.subr.bf16.mxu0 0
        %2040 = vmatpush1.bf16.msra.mxu0 0
        %2041 = vmatprep.subr.bf16.mxu0 0
        %2042 = vmatpush1.bf16.msra.mxu0 0
        %2043 = vmatprep.subr.bf16.mxu0 0
        %2044 = vmatpush1.bf16.msra.mxu0 0
        %2045 = vmatprep.subr.bf16.mxu0 0
        %2046 = vmatpush1.bf16.msra.mxu0 0
        %2047 = vmatprep.subr.bf16.mxu0 0
        %2048 = vmatpush1.bf16.msra.mxu0 0
        %2049 = vmatprep.subr.bf16.mxu0 0
        %2050 = vmatpush1.bf16.msra.mxu0 0
        %2051 = vmatprep.subr.bf16.mxu0 0
        %2052 = vmatpush1.bf16.msra.mxu0 0
        %2053 = vmatprep.mubr.bf16.mxu0 0
        %2054 = vmatmul.mubr.bf16.gmra.mrb[0].mxu0 %v2019
        %v2055 = vpop.f32.mrb[0].mxu0
        %v2056 = vadd.f32 0.0, %v2055
        %v2057 = vpop.f32.mrb[0].mxu0
        %v2058 = vpop.f32.mrb[0].mxu0
        %v2059 = vpop.f32.mrb[0].mxu0
        %2060 = vdwg.mxu0
        %v2062 = vsel %vm1039, %v2015, 0
        %2064 = vmatprep.subr.bf16.mxu0 0
        %2065 = vmatpush1.bf16.msra.mxu0 %v1327
        %2066 = vmatprep.subr.bf16.mxu0 0
        %2067 = vmatpush1.bf16.msra.mxu0 0
        %2068 = vmatprep.subr.bf16.mxu0 0
        %2069 = vmatpush1.bf16.msra.mxu0 0
        %2070 = vmatprep.subr.bf16.mxu0 0
        %2071 = vmatpush1.bf16.msra.mxu0 0
        %2072 = vmatprep.subr.bf16.mxu0 0
        %2073 = vmatpush1.bf16.msra.mxu0 0
        %2074 = vmatprep.subr.bf16.mxu0 0
        %2075 = vmatpush1.bf16.msra.mxu0 0
        %2076 = vmatprep.subr.bf16.mxu0 0
        %2077 = vmatpush1.bf16.msra.mxu0 0
        %2078 = vmatprep.subr.bf16.mxu0 0
        %2079 = vmatpush1.bf16.msra.mxu0 0
        %2080 = vmatprep.subr.bf16.mxu0 0
        %2081 = vmatpush1.bf16.msra.mxu0 0
        %2082 = vmatprep.subr.bf16.mxu0 0
        %2083 = vmatpush1.bf16.msra.mxu0 0
        %2084 = vmatprep.subr.bf16.mxu0 0
        %2085 = vmatpush1.bf16.msra.mxu0 0
        %2086 = vmatprep.subr.bf16.mxu0 0
        %2087 = vmatpush1.bf16.msra.mxu0 0
        %2088 = vmatprep.subr.bf16.mxu0 0
        %2089 = vmatpush1.bf16.msra.mxu0 0
        %2090 = vmatprep.subr.bf16.mxu0 0
        %2091 = vmatpush1.bf16.msra.mxu0 0
        %2092 = vmatprep.subr.bf16.mxu0 0
        %2093 = vmatpush1.bf16.msra.mxu0 0
        %2094 = vmatprep.subr.bf16.mxu0 0
        %2095 = vmatpush1.bf16.msra.mxu0 0
        %2096 = vmatprep.mubr.bf16.mxu0 0
        %2097 = vmatmul.mubr.bf16.gmra.mrb[0].mxu0 %v2062
        %v2098 = vpop.f32.mrb[0].mxu0
        %v2099 = vadd.f32 0.0, %v2098
        %v2100 = vpop.f32.mrb[0].mxu0
        %v2101 = vpop.f32.mrb[0].mxu0
        %v2102 = vpop.f32.mrb[0].mxu0
        %2103 = vdwg.mxu0
        %v2105 = vsel %vm1039, %v2016, 0
        %2107 = vmatprep.subr.bf16.mxu0 0
        %2108 = vmatpush1.bf16.msra.mxu0 %v1375
        %2109 = vmatprep.subr.bf16.mxu0 0
        %2110 = vmatpush1.bf16.msra.mxu0 0
        %2111 = vmatprep.subr.bf16.mxu0 0
        %2112 = vmatpush1.bf16.msra.mxu0 0
        %2113 = vmatprep.subr.bf16.mxu0 0
        %2114 = vmatpush1.bf16.msra.mxu0 0
        %2115 = vmatprep.subr.bf16.mxu0 0
        %2116 = vmatpush1.bf16.msra.mxu0 0
        %2117 = vmatprep.subr.bf16.mxu0 0
        %2118 = vmatpush1.bf16.msra.mxu0 0
        %2119 = vmatprep.subr.bf16.mxu0 0
        %2120 = vmatpush1.bf16.msra.mxu0 0
        %2121 = vmatprep.subr.bf16.mxu0 0
        %2122 = vmatpush1.bf16.msra.mxu0 0
        %2123 = vmatprep.subr.bf16.mxu0 0
        %2124 = vmatpush1.bf16.msra.mxu0 0
        %2125 = vmatprep.subr.bf16.mxu0 0
        %2126 = vmatpush1.bf16.msra.mxu0 0
        %2127 = vmatprep.subr.bf16.mxu0 0
        %2128 = vmatpush1.bf16.msra.mxu0 0
        %2129 = vmatprep.subr.bf16.mxu0 0
        %2130 = vmatpush1.bf16.msra.mxu0 0
        %2131 = vmatprep.subr.bf16.mxu0 0
        %2132 = vmatpush1.bf16.msra.mxu0 0
        %2133 = vmatprep.subr.bf16.mxu0 0
        %2134 = vmatpush1.bf16.msra.mxu0 0
        %2135 = vmatprep.subr.bf16.mxu0 0
        %2136 = vmatpush1.bf16.msra.mxu0 0
        %2137 = vmatprep.subr.bf16.mxu0 0
        %2138 = vmatpush1.bf16.msra.mxu0 0
        %2139 = vmatprep.mubr.bf16.mxu0 0
        %2140 = vmatmul.mubr.bf16.gmra.mrb[0].mxu0 %v2105
        %v2141 = vpop.f32.mrb[0].mxu0
        %v2142 = vadd.f32 0.0, %v2141
        %v2143 = vpop.f32.mrb[0].mxu0
        %v2144 = vpop.f32.mrb[0].mxu0
        %v2145 = vpop.f32.mrb[0].mxu0
        %2146 = vdwg.mxu0
        %v2148 = vsel %vm1039, %v2017, 0
        %2150 = vmatprep.subr.bf16.mxu0 0
        %2151 = vmatpush1.bf16.msra.mxu0 %v1423
        %2152 = vmatprep.subr.bf16.mxu0 0
        %2153 = vmatpush1.bf16.msra.mxu0 0
        %2154 = vmatprep.subr.bf16.mxu0 0
        %2155 = vmatpush1.bf16.msra.mxu0 0
        %2156 = vmatprep.subr.bf16.mxu0 0
        %2157 = vmatpush1.bf16.msra.mxu0 0
        %2158 = vmatprep.subr.bf16.mxu0 0
        %2159 = vmatpush1.bf16.msra.mxu0 0
        %2160 = vmatprep.subr.bf16.mxu0 0
        %2161 = vmatpush1.bf16.msra.mxu0 0
        %2162 = vmatprep.subr.bf16.mxu0 0
        %2163 = vmatpush1.bf16.msra.mxu0 0
        %2164 = vmatprep.subr.bf16.mxu0 0
        %2165 = vmatpush1.bf16.msra.mxu0 0
        %2166 = vmatprep.subr.bf16.mxu0 0
        %2167 = vmatpush1.bf16.msra.mxu0 0
        %2168 = vmatprep.subr.bf16.mxu0 0
        %2169 = vmatpush1.bf16.msra.mxu0 0
        %2170 = vmatprep.subr.bf16.mxu0 0
        %2171 = vmatpush1.bf16.msra.mxu0 0
        %2172 = vmatprep.subr.bf16.mxu0 0
        %2173 = vmatpush1.bf16.msra.mxu0 0
        %2174 = vmatprep.subr.bf16.mxu0 0
        %2175 = vmatpush1.bf16.msra.mxu0 0
        %2176 = vmatprep.subr.bf16.mxu0 0
        %2177 = vmatpush1.bf16.msra.mxu0 0
        %2178 = vmatprep.subr.bf16.mxu0 0
        %2179 = vmatpush1.bf16.msra.mxu0 0
        %2180 = vmatprep.subr.bf16.mxu0 0
        %2181 = vmatpush1.bf16.msra.mxu0 0
        %2182 = vmatprep.mubr.bf16.mxu0 0
        %2183 = vmatmul.mubr.bf16.gmra.mrb[0].mxu0 %v2148
        %v2184 = vpop.f32.mrb[0].mxu0
        %v2185 = vadd.f32 0.0, %v2184
        %v2186 = vpop.f32.mrb[0].mxu0
        %v2187 = vpop.f32.mrb[0].mxu0
        %v2188 = vpop.f32.mrb[0].mxu0
        %2189 = vdwg.mxu0
        %2191 = vrot.lane.b32.xlu0 %v2099, 8
        %v2192 = vpop.permute.xlu0 %2191
        %2195 = vrot.lane.b32.xlu0 %v2142, 16
        %v2196 = vpop.permute.xlu0 %2195
        %2199 = vrot.lane.b32.xlu0 %v2185, 24
        %v2200 = vpop.permute.xlu0 %2199
        %v2202 = vsel %vm1039, %v2056, %v2192
        %v2203 = vsel %vm1478, %v2202, %v2196
        %v2204 = vsel %vm1480, %v2203, %v2200
        %v2205 = vpack.c.bf16 %v2204, %v2204
        %v2207 = vsel %vm855, %v2205, 0
        %2209 = vmatprep.subr.bf16.mxu0 0
        %2210 = vmatpush1.bf16.msra.mxu0 %v1497
        %2211 = vmatprep.subr.bf16.mxu0 0
        %2212 = vmatpush1.bf16.msra.mxu0 %v1498
        %2213 = vmatprep.subr.bf16.mxu0 0
        %2214 = vmatpush1.bf16.msra.mxu0 0
        %2215 = vmatprep.subr.bf16.mxu0 0
        %2216 = vmatpush1.bf16.msra.mxu0 0
        %2217 = vmatprep.subr.bf16.mxu0 0
        %2218 = vmatpush1.bf16.msra.mxu0 0
        %2219 = vmatprep.subr.bf16.mxu0 0
        %2220 = vmatpush1.bf16.msra.mxu0 0
        %2221 = vmatprep.subr.bf16.mxu0 0
        %2222 = vmatpush1.bf16.msra.mxu0 0
        %2223 = vmatprep.subr.bf16.mxu0 0
        %2224 = vmatpush1.bf16.msra.mxu0 0
        %2225 = vmatprep.subr.bf16.mxu0 0
        %2226 = vmatpush1.bf16.msra.mxu0 0
        %2227 = vmatprep.subr.bf16.mxu0 0
        %2228 = vmatpush1.bf16.msra.mxu0 0
        %2229 = vmatprep.subr.bf16.mxu0 0
        %2230 = vmatpush1.bf16.msra.mxu0 0
        %2231 = vmatprep.subr.bf16.mxu0 0
        %2232 = vmatpush1.bf16.msra.mxu0 0
        %2233 = vmatprep.subr.bf16.mxu0 0
        %2234 = vmatpush1.bf16.msra.mxu0 0
        %2235 = vmatprep.subr.bf16.mxu0 0
        %2236 = vmatpush1.bf16.msra.mxu0 0
        %2237 = vmatprep.subr.bf16.mxu0 0
        %2238 = vmatpush1.bf16.msra.mxu0 0
        %2239 = vmatprep.subr.bf16.mxu0 0
        %2240 = vmatpush1.bf16.msra.mxu0 0
        %2241 = vmatprep.mubr.bf16.mxu0 0
        %2242 = vmatmul.mubr.bf16.gmra.mrb[0].mxu0 %v2207
        %v2243 = vpop.f32.mrb[0].mxu0
        %v2244 = vadd.f32 %v1487, %v2243
        %v2245 = vpop.f32.mrb[0].mxu0
        %v2246 = vpop.f32.mrb[0].mxu0
        %v2247 = vpop.f32.mrb[0].mxu0
        %2248 = vdwg.mxu0
        %v2249 = vadd.f32 %v1745, %v2244
        %v2250 = vsel %vm855, %v2249, 0.0
        %2251 = vadd.xlane.f32.xlu0 %v2250
        %v2252 = vpop.xlane.xlu0 %2251
        %v2253 = vmul.f32 %v2252, %v859
        %v2254 = vsub.f32 %v2249, %v2253
        %v2255 = vmul.f32 %v2254, %v2254
        %v2256 = vsel %vm855, %v2255, 0.0
        %2257 = vadd.xlane.f32.xlu0 %v2256
        %v2258 = vpop.xlane.xlu0 %2257
        %v2259 = vmul.f32 %v2258, %v859
        %v2260 = vadd.f32 %v2259, 1e-05
        %v2261 = vrsqrt.pop %v2260
        %v2262 = vmul.f32 %v2254, %v2261
        %v2263 = vmul.f32 %v2262, %v1562
        %v2264 = vadd.f32 %v2263, %v1569
        %v2265 = vpack.c.bf16 %v2264, %v2264
        %v2267 = vsel %vm855, %v2265, 0
        %2269 = vmatprep.subr.bf16.mxu0 0
        %2270 = vmatpush1.bf16.msra.mxu0 %v1587
        %2271 = vmatprep.subr.bf16.mxu0 0
        %2272 = vmatpush1.bf16.msra.mxu0 %v1588
        %2273 = vmatprep.subr.bf16.mxu0 0
        %2274 = vmatpush1.bf16.msra.mxu0 0
        %2275 = vmatprep.subr.bf16.mxu0 0
        %2276 = vmatpush1.bf16.msra.mxu0 0
        %2277 = vmatprep.subr.bf16.mxu0 0
        %2278 = vmatpush1.bf16.msra.mxu0 0
        %2279 = vmatprep.subr.bf16.mxu0 0
        %2280 = vmatpush1.bf16.msra.mxu0 0
        %2281 = vmatprep.subr.bf16.mxu0 0
        %2282 = vmatpush1.bf16.msra.mxu0 0
        %2283 = vmatprep.subr.bf16.mxu0 0
        %2284 = vmatpush1.bf16.msra.mxu0 0
        %2285 = vmatprep.subr.bf16.mxu0 0
        %2286 = vmatpush1.bf16.msra.mxu0 0
        %2287 = vmatprep.subr.bf16.mxu0 0
        %2288 = vmatpush1.bf16.msra.mxu0 0
        %2289 = vmatprep.subr.bf16.mxu0 0
        %2290 = vmatpush1.bf16.msra.mxu0 0
        %2291 = vmatprep.subr.bf16.mxu0 0
        %2292 = vmatpush1.bf16.msra.mxu0 0
        %2293 = vmatprep.subr.bf16.mxu0 0
        %2294 = vmatpush1.bf16.msra.mxu0 0
        %2295 = vmatprep.subr.bf16.mxu0 0
        %2296 = vmatpush1.bf16.msra.mxu0 0
        %2297 = vmatprep.subr.bf16.mxu0 0
        %2298 = vmatpush1.bf16.msra.mxu0 0
        %2299 = vmatprep.subr.bf16.mxu0 0
        %2300 = vmatpush1.bf16.msra.mxu0 0
        %2301 = vmatprep.mubr.bf16.mxu0 0
        %2302 = vmatmul.mubr.bf16.gmra.mrb[0].mxu0 %v2267
        %v2303 = vpop.f32.mrb[0].mxu0
        %v2304 = vadd.f32 %v1577, %v2303
        %v2305 = vpop.f32.mrb[0].mxu0
        %v2306 = vpop.f32.mrb[0].mxu0
        %v2307 = vpop.f32.mrb[0].mxu0
        %2308 = vdwg.mxu0
        %v2309 = vmax.f32 %v2304, 0.0
        %v2310 = vpack.c.bf16 %v2309, %v2309
        %2311 = vmatprep.subr.bf16.mxu0 0
        %2312 = vmatpush1.bf16.msra.mxu0 %v1674
        %2313 = vmatprep.subr.bf16.mxu0 0
        %2314 = vmatpush1.bf16.msra.mxu0 %v1675
        %2315 = vmatprep.subr.bf16.mxu0 0
        %2316 = vmatpush1.bf16.msra.mxu0 %v1676
        %2317 = vmatprep.subr.bf16.mxu0 0
        %2318 = vmatpush1.bf16.msra.mxu0 %v1677
        %2319 = vmatprep.subr.bf16.mxu0 0
        %2320 = vmatpush1.bf16.msra.mxu0 %v1678
        %2321 = vmatprep.subr.bf16.mxu0 0
        %2322 = vmatpush1.bf16.msra.mxu0 %v1679
        %2323 = vmatprep.subr.bf16.mxu0 0
        %2324 = vmatpush1.bf16.msra.mxu0 %v1680
        %2325 = vmatprep.subr.bf16.mxu0 0
        %2326 = vmatpush1.bf16.msra.mxu0 %v1681
        %2327 = vmatprep.subr.bf16.mxu0 0
        %2328 = vmatpush1.bf16.msra.mxu0 0
        %2329 = vmatprep.subr.bf16.mxu0 0
        %2330 = vmatpush1.bf16.msra.mxu0 0
        %2331 = vmatprep.subr.bf16.mxu0 0
        %2332 = vmatpush1.bf16.msra.mxu0 0
        %2333 = vmatprep.subr.bf16.mxu0 0
        %2334 = vmatpush1.bf16.msra.mxu0 0
        %2335 = vmatprep.subr.bf16.mxu0 0
        %2336 = vmatpush1.bf16.msra.mxu0 0
        %2337 = vmatprep.subr.bf16.mxu0 0
        %2338 = vmatpush1.bf16.msra.mxu0 0
        %2339 = vmatprep.subr.bf16.mxu0 0
        %2340 = vmatpush1.bf16.msra.mxu0 0
        %2341 = vmatprep.subr.bf16.mxu0 0
        %2342 = vmatpush1.bf16.msra.mxu0 0
        %2343 = vmatprep.mubr.bf16.mxu0 0
        %2344 = vmatmul.mubr.bf16.gmra.mrb[0].mxu0 %v2310
        %v2345 = vpop.f32.mrb[0].mxu0
        %v2346 = vadd.f32 %v1640, %v2345
        %v2347 = vpop.f32.mrb[0].mxu0
        %v2348 = vpop.f32.mrb[0].mxu0
        %v2349 = vpop.f32.mrb[0].mxu0
        %2350 = vdwg.mxu0
        %v2351 = vadd.f32 %v2264, %v2346
        %2352 = vst.msk [vmem:[%s719] sm:$0xff] %vm855, %v2351
        %s2353 = sand.u32 %s525, 1
        %s2354 = scalar_lea.sflag [#allocation3], %s2353
        %s2355 = sand.u32 %s525, 1
        %s2356 = smul.addr %s2355, 8
        %s2357 = scalar_lea.vmem [#allocation2], %s2356
        // Predicated region
        $region105: #{crossmodal_forward.1} parent=103 // pred_check
          %p2358 = pneg %p535
        $region106: #{crossmodal_forward.1} parent=103 // pred_check_branch
          %2360 = sbr.rel (%p2358) target = $region108
        $region107: #{crossmodal_forward.1} parent=103 // pred_region
          %s2362 = ssub.s32 128, 128
          %2363 = vsyncadd %s2354, %s2362
          %s2364 = sadd.s32 %s40, %s39
          %s2365 = smul.addr %s2364, 128
          %s2366 = scalar_lea.hbm %s21, %s2365
          %s2368 = sshll.u32 %s2357, 4
          %s2369 = int_to_ptr.vmem [resolvable:$true] %s2368
          %2371 = dma.vmem_to_hbm [thread:$0]  %s2369, 128, %s2366, %s2354
        $region108: #{crossmodal_forward.1} parent=103 // pred_fallthru
          _
      $region104: #{crossmodal_forward.1} parent=5 // pred_fallthru
        _
      %p2372 = scmp.le.s32.totalorder 2, %s30
      // Predicated region
      $region109: #{crossmodal_forward.1} parent=5 // pred_check
        %p2373 = pneg %p2372
      $region110: #{crossmodal_forward.1} parent=5 // pred_check_branch
        %2375 = sbr.rel (%p2373) target = $region112
      $region111: #{crossmodal_forward.1} parent=5 // pred_region
        %s2376 = ssub.s32 %s30, 2
        // Predicated region
        $region113: #{crossmodal_forward.1} parent=111 // pred_check
          %p2377 = pneg %p541
        $region114: #{crossmodal_forward.1} parent=111 // pred_check_branch
          %2379 = sbr.rel (%p2377) target = $region116
        $region115: #{crossmodal_forward.1} parent=111 // pred_region
          %s2380 = sand.u32 %s526, 1
          %s2381 = scalar_lea.sflag [#allocation3], %s2380
          %s2382 = sand.u32 %s526, 1
          %s2383 = smul.addr %s2382, 8
          %s2384 = scalar_lea.vmem [#allocation2], %s2383
          %2385 = dma.done %s2381, 128
        $region116: #{crossmodal_forward.1} parent=111 // pred_fallthru
          _
      $region112: #{crossmodal_forward.1} parent=5 // pred_fallthru
        _
    $region6: #{crossmodal_forward.1} parent=1 // loop_footer
      %s34 = sadd.s32 1, %s30
    $region7: #{crossmodal_forward.1} parent=1 // loop_footer_branch
      %29 = sbr.rel target = $region3
    $region8: #{crossmodal_forward.1} parent=1 // loop_exit
      _
    %2386 = vsyncpa [#allocation3], 1
    %s2387 = scalar_lea.sflag [#allocation3], 1
    %2388 = vsyncpa %s2387, 1

// kernel: tile.28
$region0: #{tile.28}
  #allocation0 [shape = 's32[1]{0}', space=sflag, size = 0x4, scoped, tag = 'scoped memory for tile.28']
  %s0 = inlined_call_operand.vmem [shape: f32[2], index: 0, kind: input, shape index: {}]
  %s1 = inlined_call_operand.vmem [shape: f32[4,2], index: 1, kind: output, shape index: {}]
  // Predicated region
  $region2: #{tile.28} parent=0 // pred_check
    _
  $region3: #{tile.28} parent=0 // pred_check_branch
    %3 = sbr.rel (0) target = $region5
  $region4: #{tile.28} parent=0 // pred_region
    _
  $region5: #{tile.28} parent=0 // pred_fallthru
    _
  %v4 = vld [vmem:[%s0] ss:$0 sm:$0xff]
  %5 = vst [vmem:[%s1] sm:$0xf] %v4

// kernel: crossmodal_forward.1
$region0: #{crossmodal_forward.1}
  #allocation0 [shape = 'u32[]', space=smem, size = 0x4, offset = 0x4, fixed_abs, tag = 'smem constant byte address 0x4 - core index']
  #allocation1 [shape = 'u32[144,128]{1,0:T(1,128)}', space=vmem, size = 0x12000, scoped, tag = 'internal scratch']
  %s0 = inlined_call_operand.vmem [shape: f32[2,8,32], index: 0, kind: input, shape index: {}]
  %s1 = inlined_call_operand.vmem [shape: f32[2,8,32], index: 1, kind: input, shape index: {}]
  %s2 = inlined_call_operand.vmem [shape: f32[2,1,8], index: 2, kind: input, shape index: {}]
  %s3 = inlined_call_operand.vmem [shape: f32[8,32], index: 3, kind: input, shape index: {}, may-alias: {3,5}]
  %s4 = inlined_call_operand.vmem [shape: f32[8,32], index: 4, kind: input, shape index: {}, may-alias: {4,6}]
  %s5 = inlined_call_operand.vmem [shape: f32[8,32], index: 5, kind: input, shape index: {}, may-alias: {3,5}]
  %s6 = inlined_call_operand.vmem [shape: f32[8,32], index: 6, kind: input, shape index: {}, may-alias: {4,6}]
  %s7 = inlined_call_operand.vmem [shape: f32[1,32], index: 7, kind: input, shape index: {}]
  %s8 = inlined_call_operand.vmem [shape: f32[1,32], index: 8, kind: input, shape index: {}]
  %s9 = inlined_call_operand.vmem [shape: bf16[32,32], index: 9, kind: input, shape index: {}]
  %s10 = inlined_call_operand.vmem [shape: f32[1,32], index: 10, kind: input, shape index: {}]
  %s11 = inlined_call_operand.vmem [shape: bf16[32,64], index: 11, kind: input, shape index: {}]
  %s12 = inlined_call_operand.vmem [shape: f32[1,64], index: 12, kind: input, shape index: {}]
  %s13 = inlined_call_operand.vmem [shape: bf16[32,32], index: 13, kind: input, shape index: {}]
  %s14 = inlined_call_operand.vmem [shape: f32[1,32], index: 14, kind: input, shape index: {}]
  %s15 = inlined_call_operand.vmem [shape: f32[1,32], index: 15, kind: input, shape index: {}]
  %s16 = inlined_call_operand.vmem [shape: f32[1,32], index: 16, kind: input, shape index: {}]
  %s17 = inlined_call_operand.vmem [shape: bf16[32,128], index: 17, kind: input, shape index: {}]
  %s18 = inlined_call_operand.vmem [shape: f32[1,128], index: 18, kind: input, shape index: {}]
  %s19 = inlined_call_operand.vmem [shape: bf16[128,32], index: 19, kind: input, shape index: {}]
  %s20 = inlined_call_operand.vmem [shape: f32[1,32], index: 20, kind: input, shape index: {}]
  %s21 = inlined_call_operand.hbm [shape: f32[2,8,32], index: 21, kind: output, shape index: {}]
  %s22 = sld [smem:[#allocation0]]
  $region117: #{crossmodal_forward.1} parent=0
    _
  %s24 = ssub.s32 1, %s22
  %s25 = scalar_select 0, %s24, %s22
  $region1: #{crossmodal_forward.1} parent=0
    #allocation2 [shape = 'u8[8192]{0}', space=vmem, size = 0x2000, scoped, tag = 'output window, operand 0']
    #allocation3 [shape = 's32[2]{0}', space=sflag, size = 0x8, scoped, tag = 'scoped memory for crossmodal_forward.1']
    %26 = vsyncpa [#allocation3], 0
    %s27 = scalar_lea.sflag [#allocation3], 1
    %28 = vsyncpa %s27, 0
    loop: start=0, step=1, limit=4
    $region2: #{crossmodal_forward.1} parent=1 // loop_pre_header
      _
    $region3: #{crossmodal_forward.1} parent=1 // loop_header
      %s30 = sphi 0, %s34
      %p31 = scmp.ge.s32.totalorder %s30, 4
      %s37 = sphi 0, %s49
      %s38 = sphi 0, %s45
      %s39 = sphi 0, %s37
      %s40 = sphi 0, %s38
      %s41 = sphi 0, %s39
      %s42 = sphi 0, %s40
      %s54 = sphi 0, %s56
      %s57 = sphi 0, %s54
      %s58 = sphi 0, %s57
      %s74 = sphi 0, %s58
      %s80 = sphi 0, %s82
      %s83 = sphi 0, %s80
      %s84 = sphi 0, %s83
      %s100 = sphi 0, %s84
      %s106 = sphi 0, %s108
      %s109 = sphi 0, %s106
      %s110 = sphi 0, %s109
      %s126 = sphi 0, %s110
      %s132 = sphi 0, %s134
      %s135 = sphi 0, %s132
      %s136 = sphi 0, %s135
      %s152 = sphi 0, %s136
      %s158 = sphi 0, %s160
      %s161 = sphi 0, %s158
      %s162 = sphi 0, %s161
      %s178 = sphi 0, %s162
      %s182 = sphi 0, %s182
      %s184 = sphi 0, %s182
      %s185 = sphi 0, %s184
      %s199 = sphi 0, %s185
      %s203 = sphi 0, %s203
      %s205 = sphi 0, %s203
      %s206 = sphi 0, %s205
      %s220 = sphi 0, %s206
      %s224 = sphi 0, %s224
      %s226 = sphi 0, %s224
      %s227 = sphi 0, %s226
      %s241 = sphi 0, %s227
      %s245 = sphi 0, %s245
      %s247 = sphi 0, %s245
      %s248 = sphi 0, %s247
      %s262 = sphi 0, %s248
      %s266 = sphi 0, %s266
      %s268 = sphi 0, %s266
      %s269 = sphi 0, %s268
      %s283 = sphi 0, %s269
      %s287 = sphi 0, %s287
      %s289 = sphi 0, %s287
      %s290 = sphi 0, %s289
      %s304 = sphi 0, %s290
      %s308 = sphi 0, %s308
      %s310 = sphi 0, %s308
      %s311 = sphi 0, %s310
      %s325 = sphi 0, %s311
      %s329 = sphi 0, %s329
      %s331 = sphi 0, %s329
      %s332 = sphi 0, %s331
      %s346 = sphi 0, %s332
      %s350 = sphi 0, %s350
      %s352 = sphi 0, %s350
      %s353 = sphi 0, %s352
      %s367 = sphi 0, %s353
      %s371 = sphi 0, %s371
      %s373 = sphi 0, %s371
      %s374 = sphi 0, %s373
      %s388 = sphi 0, %s374
      %s392 = sphi 0, %s392
      %s394 = sphi 0, %s392
      %s395 = sphi 0, %s394
      %s409 = sphi 0, %s395
      %s413 = sphi 0, %s413
      %s415 = sphi 0, %s413
      %s416 = sphi 0, %s415
      %s430 = sphi 0, %s416
      %s434 = sphi 0, %s434
      %s436 = sphi 0, %s434
      %s437 = sphi 0, %s436
      %s451 = sphi 0, %s437
      %s455 = sphi 0, %s455
      %s457 = sphi 0, %s455
      %s458 = sphi 0, %s457
      %s472 = sphi 0, %s458
      %s476 = sphi 0, %s476
      %s478 = sphi 0, %s476
      %s479 = sphi 0, %s478
      %s493 = sphi 0, %s479
      %s497 = sphi 0, %s497
      %s499 = sphi 0, %s497
      %s500 = sphi 0, %s499
      %s514 = sphi 0, %s500
      %s522 = sphi 0, %s524
      %s525 = sphi 0, %s522
      %s526 = sphi 0, %s525
      %s542 = sphi 0, %s526
    $region4: #{crossmodal_forward.1} parent=1 // loop_header_branch
      %33 = sbr.rel (%p31) target = $region8
    $region5: #{crossmodal_forward.1} parent=1 // loop_body
      %s35 = ssub.s32 %s30, 1
      %s36 = ssub.s32 %s30, 2
      %s43 = sadd.s32 1, %s38
      %p44 = scmp.ge.s32.totalorder %s43, 1
      %s45 = scalar_select %p44, 0, %s43
      %s46 = sadd.s32 1, %s37
      %s47 = scalar_select %p44, %s46, %s37
      %p48 = scmp.ge.s32.totalorder %s47, 2
      %s49 = scalar_select %p48, 0, %s47
      %s50 = ssub.s32 %s37, %s49
      %s51 = ssub.s32 %s38, %s45
      %s52 = sor.u32 %s50, %s51
      %p53 = scmp.eq.s32.totalorder %s52, 0
      %s55 = sadd.s32 %s54, 1
      %s56 = scalar_select %p53, %s54, %s55
      %p59 = pneg %p53
      %p60 = scmp.eq.s32.totalorder %s30, 1
      %p61 = por %p59, %p60
      %p62 = scmp.ne.s32.totalorder %s54, %s57
      %p63 = scmp.eq.s32.totalorder %s30, 0
      %p64 = por %p62, %p63
      %p65 = scmp.ne.s32.totalorder %s54, %s57
      %p66 = scmp.eq.s32.totalorder %s35, 1
      %p67 = por %p65, %p66
      %p68 = scmp.ne.s32.totalorder %s57, %s58
      %p69 = scmp.eq.s32.totalorder %s35, 0
      %p70 = por %p68, %p69
      %p71 = scmp.ne.s32.totalorder %s57, %s58
      %p72 = scmp.eq.s32.totalorder %s36, 1
      %p73 = por %p71, %p72
      %p75 = scmp.ne.s32.totalorder %s58, %s74
      %p76 = scmp.eq.s32.totalorder %s36, 0
      %p77 = por %p75, %p76
      %s78 = ssub.s32 %s37, %s49
      %p79 = scmp.eq.s32.totalorder %s78, 0
      %s81 = sadd.s32 %s80, 1
      %s82 = scalar_select %p79, %s80, %s81
      %p85 = pneg %p79
      %p86 = scmp.eq.s32.totalorder %s30, 1
      %p87 = por %p85, %p86
      %p88 = scmp.ne.s32.totalorder %s80, %s83
      %p89 = scmp.eq.s32.totalorder %s30, 0
      %p90 = por %p88, %p89
      %p91 = scmp.ne.s32.totalorder %s80, %s83
      %p92 = scmp.eq.s32.totalorder %s35, 1
      %p93 = por %p91, %p92
      %p94 = scmp.ne.s32.totalorder %s83, %s84
      %p95 = scmp.eq.s32.totalorder %s35, 0
      %p96 = por %p94, %p95
      %p97 = scmp.ne.s32.totalorder %s83, %s84
      %p98 = scmp.eq.s32.totalorder %s36, 1
      %p99 = por %p97, %p98
      %p101 = scmp.ne.s32.totalorder %s84, %s100
      %p102 = scmp.eq.s32.totalorder %s36, 0
      %p103 = por %p101, %p102
      %s104 = ssub.s32 %s37, %s49
      %p105 = scmp.eq.s32.totalorder %s104, 0
      %s107 = sadd.s32 %s106, 1
      %s108 = scalar_select %p105, %s106, %s107
      %p111 = pneg %p105
      %p112 = scmp.eq.s32.totalorder %s30, 1
      %p113 = por %p111, %p112
      %p114 = scmp.ne.s32.totalorder %s106, %s109
      %p115 = scmp.eq.s32.totalorder %s30, 0
      %p116 = por %p114, %p115
      %p117 = scmp.ne.s32.totalorder %s106, %s109
      %p118 = scmp.eq.s32.totalorder %s35, 1
      %p119 = por %p117, %p118
      %p120 = scmp.ne.s32.totalorder %s109, %s110
      %p121 = scmp.eq.s32.totalorder %s35, 0
      %p122 = por %p120, %p121
      %p123 = scmp.ne.s32.totalorder %s109, %s110
      %p124 = scmp.eq.s32.totalorder %s36, 1
      %p125 = por %p123, %p124
      %p127 = scmp.ne.s32.totalorder %s110, %s126
      %p128 = scmp.eq.s32.totalorder %s36, 0
      %p129 = por %p127, %p128
      %s130 = ssub.s32 %s38, %s45
      %p131 = scmp.eq.s32.totalorder %s130, 0
      %s133 = sadd.s32 %s132, 1
      %s134 = scalar_select %p131, %s132, %s133
      %p137 = pneg %p131
      %p138 = scmp.eq.s32.totalorder %s30, 1
      %p139 = por %p137, %p138
      %p140 = scmp.ne.s32.totalorder %s132, %s135
      %p141 = scmp.eq.s32.totalorder %s30, 0
      %p142 = por %p140, %p141
      %p143 = scmp.ne.s32.totalorder %s132, %s135
      %p144 = scmp.eq.s32.totalorder %s35, 1
      %p145 = por %p143, %p144
      %p146 = scmp.ne.s32.totalorder %s135, %s136
      %p147 = scmp.eq.s32.totalorder %s35, 0
      %p148 = por %p146, %p147
      %p149 = scmp.ne.s32.totalorder %s135, %s136
      %p150 = scmp.eq.s32.totalorder %s36, 1
      %p151 = por %p149, %p150
      %p153 = scmp.ne.s32.totalorder %s136, %s152
      %p154 = scmp.eq.s32.totalorder %s36, 0
      %p155 = por %p153, %p154
      %s156 = ssub.s32 %s38, %s45
      %p157 = scmp.eq.s32.totalorder %s156, 0
      %s159 = sadd.s32 %s158, 1
      %s160 = scalar_select %p157, %s158, %s159
      %p163 = pneg %p157
      %p164 = scmp.eq.s32.totalorder %s30, 1
      %p165 = por %p163, %p164
      %p166 = scmp.ne.s32.totalorder %s158, %s161
      %p167 = scmp.eq.s32.totalorder %s30, 0
      %p168 = por %p166, %p167
      %p169 = scmp.ne.s32.totalorder %s158, %s161
      %p170 = scmp.eq.s32.totalorder %s35, 1
      %p171 = por %p169, %p170
      %p172 = scmp.ne.s32.totalorder %s161, %s162
      %p173 = scmp.eq.s32.totalorder %s35, 0
      %p174 = por %p172, %p173
      %p175 = scmp.ne.s32.totalorder %s161, %s162
      %p176 = scmp.eq.s32.totalorder %s36, 1
      %p177 = por %p175, %p176
      %p179 = scmp.ne.s32.totalorder %s162, %s178
      %p180 = scmp.eq.s32.totalorder %s36, 0
      %p181 = por %p179, %p180
      %s183 = sadd.s32 %s182, 1
      %p186 = scmp.eq.s32.totalorder %s30, 1
      %p187 = scmp.ne.s32.totalorder %s182, %s184
      %p188 = scmp.eq.s32.totalorder %s30, 0
      %p189 = por %p187, %p188
      %p190 = scmp.ne.s32.totalorder %s182, %s184
      %p191 = scmp.eq.s32.totalorder %s35, 1
      %p192 = por %p190, %p191
      %p193 = scmp.ne.s32.totalorder %s184, %s185
      %p194 = scmp.eq.s32.totalorder %s35, 0
      %p195 = por %p193, %p194
      %p196 = scmp.ne.s32.totalorder %s184, %s185
      %p197 = scmp.eq.s32.totalorder %s36, 1
      %p198 = por %p196, %p197
      %p200 = scmp.ne.s32.totalorder %s185, %s199
      %p201 = scmp.eq.s32.totalorder %s36, 0
      %p202 = por %p200, %p201
      %s204 = sadd.s32 %s203, 1
      %p207 = scmp.eq.s32.totalorder %s30, 1
      %p208 = scmp.ne.s32.totalorder %s203, %s205
      %p209 = scmp.eq.s32.totalorder %s30, 0
      %p210 = por %p208, %p209
      %p211 = scmp.ne.s32.totalorder %s203, %s205
      %p212 = scmp.eq.s32.totalorder %s35, 1
      %p213 = por %p211, %p212
      %p214 = scmp.ne.s32.totalorder %s205, %s206
      %p215 = scmp.eq.s32.totalorder %s35, 0
      %p216 = por %p214, %p215
      %p217 = scmp.ne.s32.totalorder %s205, %s206
      %p218 = scmp.eq.s32.totalorder %s36, 1
      %p219 = por %p217, %p218
      %p221 = scmp.ne.s32.totalorder %s206, %s220
      %p222 = scmp.eq.s32.totalorder %s36, 0
      %p223 = por %p221, %p222
      %s225 = sadd.s32 %s224, 1
      %p228 = scmp.eq.s32.totalorder %s30, 1
      %p229 = scmp.ne.s32.totalorder %s224, %s226
      %p230 = scmp.eq.s32.totalorder %s30, 0
      %p231 = por %p229, %p230
      %p232 = scmp.ne.s32.totalorder %s224, %s226
      %p233 = scmp.eq.s32.totalorder %s35, 1
      %p234 = por %p232, %p233
      %p235 = scmp.ne.s32.totalorder %s226, %s227
      %p236 = scmp.eq.s32.totalorder %s35, 0
      %p237 = por %p235, %p236
      %p238 = scmp.ne.s32.totalorder %s226, %s227
      %p239 = scmp.eq.s32.totalorder %s36, 1
      %p240 = por %p238, %p239
      %p242 = scmp.ne.s32.totalorder %s227, %s241
      %p243 = scmp.eq.s32.totalorder %s36, 0
      %p244 = por %p242, %p243
      %s246 = sadd.s32 %s245, 1
      %p249 = scmp.eq.s32.totalorder %s30, 1
      %p250 = scmp.ne.s32.totalorder %s245, %s247
      %p251 = scmp.eq.s32.totalorder %s30, 0
      %p252 = por %p250, %p251
      %p253 = scmp.ne.s32.totalorder %s245, %s247
      %p254 = scmp.eq.s32.totalorder %s35, 1
      %p255 = por %p253, %p254
      %p256 = scmp.ne.s32.totalorder %s247, %s248
      %p257 = scmp.eq.s32.totalorder %s35, 0
      %p258 = por %p256, %p257
      %p259 = scmp.ne.s32.totalorder %s247, %s248
      %p260 = scmp.eq.s32.totalorder %s36, 1
      %p261 = por %p259, %p260
      %p263 = scmp.ne.s32.totalorder %s248, %s262
      %p264 = scmp.eq.s32.totalorder %s36, 0
      %p265 = por %p263, %p264
      %s267 = sadd.s32 %s266, 1
      %p270 = scmp.eq.s32.totalorder %s30, 1
      %p271 = scmp.ne.s32.totalorder %s266, %s268
      %p272 = scmp.eq.s32.totalorder %s30, 0
      %p273 = por %p271, %p272
      %p274 = scmp.ne.s32.totalorder %s266, %s268
      %p275 = scmp.eq.s32.totalorder %s35, 1
      %p276 = por %p274, %p275
      %p277 = scmp.ne.s32.totalorder %s268, %s269
      %p278 = scmp.eq.s32.totalorder %s35, 0
      %p279 = por %p277, %p278
      %p280 = scmp.ne.s32.totalorder %s268, %s269
      %p281 = scmp.eq.s32.totalorder %s36, 1
      %p282 = por %p280, %p281
      %p284 = scmp.ne.s32.totalorder %s269, %s283
      %p285 = scmp.eq.s32.totalorder %s36, 0
      %p286 = por %p284, %p285
      %s288 = sadd.s32 %s287, 1
      %p291 = scmp.eq.s32.totalorder %s30, 1
      %p292 = scmp.ne.s32.totalorder %s287, %s289
      %p293 = scmp.eq.s32.totalorder %s30, 0
      %p294 = por %p292, %p293
      %p295 = scmp.ne.s32.totalorder %s287, %s289
      %p296 = scmp.eq.s32.totalorder %s35, 1
      %p297 = por %p295, %p296
      %p298 = scmp.ne.s32.totalorder %s289, %s290
      %p299 = scmp.eq.s32.totalorder %s35, 0
      %p300 = por %p298, %p299
      %p301 = scmp.ne.s32.totalorder %s289, %s290
      %p302 = scmp.eq.s32.totalorder %s36, 1
      %p303 = por %p301, %p302
      %p305 = scmp.ne.s32.totalorder %s290, %s304
      %p306 = scmp.eq.s32.totalorder %s36, 0
      %p307 = por %p305, %p306
      %s309 = sadd.s32 %s308, 1
      %p312 = scmp.eq.s32.totalorder %s30, 1
      %p313 = scmp.ne.s32.totalorder %s308, %s310
      %p314 = scmp.eq.s32.totalorder %s30, 0
      %p315 = por %p313, %p314
      %p316 = scmp.ne.s32.totalorder %s308, %s310
      %p317 = scmp.eq.s32.totalorder %s35, 1
      %p318 = por %p316, %p317
      %p319 = scmp.ne.s32.totalorder %s310, %s311
      %p320 = scmp.eq.s32.totalorder %s35, 0
      %p321 = por %p319, %p320
      %p322 = scmp.ne.s32.totalorder %s310, %s311
      %p323 = scmp.eq.s32.totalorder %s36, 1
      %p324 = por %p322, %p323
      %p326 = scmp.ne.s32.totalorder %s311, %s325
      %p327 = scmp.eq.s32.totalorder %s36, 0
      %p328 = por %p326, %p327
      %s330 = sadd.s32 %s329, 1
      %p333 = scmp.eq.s32.totalorder %s30, 1
      %p334 = scmp.ne.s32.totalorder %s329, %s331
      %p335 = scmp.eq.s32.totalorder %s30, 0
      %p336 = por %p334, %p335
      %p337 = scmp.ne.s32.totalorder %s329, %s331
      %p338 = scmp.eq.s32.totalorder %s35, 1
      %p339 = por %p337, %p338
      %p340 = scmp.ne.s32.totalorder %s331, %s332
      %p341 = scmp.eq.s32.totalorder %s35, 0
      %p342 = por %p340, %p341
      %p343 = scmp.ne.s32.totalorder %s331, %s332
      %p344 = scmp.eq.s32.totalorder %s36, 1
      %p345 = por %p343, %p344
      %p347 = scmp.ne.s32.totalorder %s332, %s346
      %p348 = scmp.eq.s32.totalorder %s36, 0
      %p349 = por %p347, %p348
      %s351 = sadd.s32 %s350, 1
      %p354 = scmp.eq.s32.totalorder %s30, 1
      %p355 = scmp.ne.s32.totalorder %s350, %s352
      %p356 = scmp.eq.s32.totalorder %s30, 0
      %p357 = por %p355, %p356
      %p358 = scmp.ne.s32.totalorder %s350, %s352
      %p359 = scmp.eq.s32.totalorder %s35, 1
      %p360 = por %p358, %p359
      %p361 = scmp.ne.s32.totalorder %s352, %s353
      %p362 = scmp.eq.s32.totalorder %s35, 0
      %p363 = por %p361, %p362
      %p364 = scmp.ne.s32.totalorder %s352, %s353
      %p365 = scmp.eq.s32.totalorder %s36, 1
      %p366 = por %p364, %p365
      %p368 = scmp.ne.s32.totalorder %s353, %s367
      %p369 = scmp.eq.s32.totalorder %s36, 0
      %p370 = por %p368, %p369
      %s372 = sadd.s32 %s371, 1
      %p375 = scmp.eq.s32.totalorder %s30, 1
      %p376 = scmp.ne.s32.totalorder %s371, %s373
      %p377 = scmp.eq.s32.totalorder %s30, 0
      %p378 = por %p376, %p377
      %p379 = scmp.ne.s32.totalorder %s371, %s373
      %p380 = scmp.eq.s32.totalorder %s35, 1
      %p381 = por %p379, %p380
      %p382 = scmp.ne.s32.totalorder %s373, %s374
      %p383 = scmp.eq.s32.totalorder %s35, 0
      %p384 = por %p382, %p383
      %p385 = scmp.ne.s32.totalorder %s373, %s374
      %p386 = scmp.eq.s32.totalorder %s36, 1
      %p387 = por %p385, %p386
      %p389 = scmp.ne.s32.totalorder %s374, %s388
      %p390 = scmp.eq.s32.totalorder %s36, 0
      %p391 = por %p389, %p390
      %s393 = sadd.s32 %s392, 1
      %p396 = scmp.eq.s32.totalorder %s30, 1
      %p397 = scmp.ne.s32.totalorder %s392, %s394
      %p398 = scmp.eq.s32.totalorder %s30, 0
      %p399 = por %p397, %p398
      %p400 = scmp.ne.s32.totalorder %s392, %s394
      %p401 = scmp.eq.s32.totalorder %s35, 1
      %p402 = por %p400, %p401
      %p403 = scmp.ne.s32.totalorder %s394, %s395
      %p404 = scmp.eq.s32.totalorder %s35, 0
      %p405 = por %p403, %p404
      %p406 = scmp.ne.s32.totalorder %s394, %s395
      %p407 = scmp.eq.s32.totalorder %s36, 1
      %p408 = por %p406, %p407
      %p410 = scmp.ne.s32.totalorder %s395, %s409
      %p411 = scmp.eq.s32.totalorder %s36, 0
      %p412 = por %p410, %p411
      %s414 = sadd.s32 %s413, 1
      %p417 = scmp.eq.s32.totalorder %s30, 1
      %p418 = scmp.ne.s32.totalorder %s413, %s415
      %p419 = scmp.eq.s32.totalorder %s30, 0
      %p420 = por %p418, %p419
      %p421 = scmp.ne.s32.totalorder %s413, %s415
      %p422 = scmp.eq.s32.totalorder %s35, 1
      %p423 = por %p421, %p422
      %p424 = scmp.ne.s32.totalorder %s415, %s416
      %p425 = scmp.eq.s32.totalorder %s35, 0
      %p426 = por %p424, %p425
      %p427 = scmp.ne.s32.totalorder %s415, %s416
      %p428 = scmp.eq.s32.totalorder %s36, 1
      %p429 = por %p427, %p428
      %p431 = scmp.ne.s32.totalorder %s416, %s430
      %p432 = scmp.eq.s32.totalorder %s36, 0
      %p433 = por %p431, %p432
      %s435 = sadd.s32 %s434, 1
      %p438 = scmp.eq.s32.totalorder %s30, 1
      %p439 = scmp.ne.s32.totalorder %s434, %s436
      %p440 = scmp.eq.s32.totalorder %s30, 0
      %p441 = por %p439, %p440
      %p442 = scmp.ne.s32.totalorder %s434, %s436
      %p443 = scmp.eq.s32.totalorder %s35, 1
      %p444 = por %p442, %p443
      %p445 = scmp.ne.s32.totalorder %s436, %s437
      %p446 = scmp.eq.s32.totalorder %s35, 0
      %p447 = por %p445, %p446
      %p448 = scmp.ne.s32.totalorder %s436, %s437
      %p449 = scmp.eq.s32.totalorder %s36, 1
      %p450 = por %p448, %p449
      %p452 = scmp.ne.s32.totalorder %s437, %s451
      %p453 = scmp.eq.s32.totalorder %s36, 0
      %p454 = por %p452, %p453
      %s456 = sadd.s32 %s455, 1
      %p459 = scmp.eq.s32.totalorder %s30, 1
      %p460 = scmp.ne.s32.totalorder %s455, %s457
      %p461 = scmp.eq.s32.totalorder %s30, 0
      %p462 = por %p460, %p461
      %p463 = scmp.ne.s32.totalorder %s455, %s457
      %p464 = scmp.eq.s32.totalorder %s35, 1
      %p465 = por %p463, %p464
      %p466 = scmp.ne.s32.totalorder %s457, %s458
      %p467 = scmp.eq.s32.totalorder %s35, 0
      %p468 = por %p466, %p467
      %p469 = scmp.ne.s32.totalorder %s457, %s458
      %p470 = scmp.eq.s32.totalorder %s36, 1
      %p471 = por %p469, %p470
      %p473 = scmp.ne.s32.totalorder %s458, %s472
      %p474 = scmp.eq.s32.totalorder %s36, 0
      %p475 = por %p473, %p474
      %s477 = sadd.s32 %s476, 1
      %p480 = scmp.eq.s32.totalorder %s30, 1
      %p481 = scmp.ne.s32.totalorder %s476, %s478
      %p482 = scmp.eq.s32.totalorder %s30, 0
      %p483 = por %p481, %p482
      %p484 = scmp.ne.s32.totalorder %s476, %s478
      %p485 = scmp.eq.s32.totalorder %s35, 1
      %p486 = por %p484, %p485
      %p487 = scmp.ne.s32.totalorder %s478, %s479
      %p488 = scmp.eq.s32.totalorder %s35, 0
      %p489 = por %p487, %p488
      %p490 = scmp.ne.s32.totalorder %s478, %s479
      %p491 = scmp.eq.s32.totalorder %s36, 1
      %p492 = por %p490, %p491
      %p494 = scmp.ne.s32.totalorder %s479, %s493
      %p495 = scmp.eq.s32.totalorder %s36, 0
      %p496 = por %p494, %p495
      %s498 = sadd.s32 %s497, 1
      %p501 = scmp.eq.s32.totalorder %s30, 1
      %p502 = scmp.ne.s32.totalorder %s497, %s499
      %p503 = scmp.eq.s32.totalorder %s30, 0
      %p504 = por %p502, %p503
      %p505 = scmp.ne.s32.totalorder %s497, %s499
      %p506 = scmp.eq.s32.totalorder %s35, 1
      %p507 = por %p505, %p506
      %p508 = scmp.ne.s32.totalorder %s499, %s500
      %p509 = scmp.eq.s32.totalorder %s35, 0
      %p510 = por %p508, %p509
      %p511 = scmp.ne.s32.totalorder %s499, %s500
      %p512 = scmp.eq.s32.totalorder %s36, 1
      %p513 = por %p511, %p512
      %p515 = scmp.ne.s32.totalorder %s500, %s514
      %p516 = scmp.eq.s32.totalorder %s36, 0
      %p517 = por %p515, %p516
      %s518 = ssub.s32 %s37, %s49
      %s519 = ssub.s32 %s38, %s45
      %s520 = sor.u32 %s518, %s519
      %p521 = scmp.eq.s32.totalorder %s520, 0
      %s523 = sadd.s32 %s522, 1
      %s524 = scalar_select %p521, %s522, %s523
      %p527 = pneg %p521
      %p528 = scmp.eq.s32.totalorder %s30, 1
      %p529 = por %p527, %p528
      %p530 = scmp.ne.s32.totalorder %s522, %s525
      %p531 = scmp.eq.s32.totalorder %s30, 0
      %p532 = por %p530, %p531
      %p533 = scmp.ne.s32.totalorder %s522, %s525
      %p534 = scmp.eq.s32.totalorder %s35, 1
      %p535 = por %p533, %p534
      %p536 = scmp.ne.s32.totalorder %s525, %s526
      %p537 = scmp.eq.s32.totalorder %s35, 0
      %p538 = por %p536, %p537
      %p539 = scmp.ne.s32.totalorder %s525, %s526
      %p540 = scmp.eq.s32.totalorder %s36, 1
      %p541 = por %p539, %p540
      %p543 = scmp.ne.s32.totalorder %s526, %s542
      %p544 = scmp.eq.s32.totalorder %s36, 0
      %p545 = por %p543, %p544
      %p546 = scmp.le.s32.totalorder 1, %s30
      %p547 = scmp.lt.s32.totalorder %s30, 3
      %p548 = pnand %p546, %p547
      %p549 = pneg %p548
      // Predicated region
      $region9: #{crossmodal_forward.1} parent=5 // pred_check
        _
      $region10: #{crossmodal_forward.1} parent=5 // pred_check_branch
        %551 = sbr.rel (%p548) target = $region12
      $region11: #{crossmodal_forward.1} parent=5 // pred_region
        %s552 = ssub.s32 %s30, 1
        // Predicated region
        $region13: #{crossmodal_forward.1} parent=11 // pred_check
          %p553 = pneg %p148
        $region14: #{crossmodal_forward.1} parent=11 // pred_check_branch
          %555 = sbr.rel (%p553) target = $region16
        $region15: #{crossmodal_forward.1} parent=11 // pred_region
          %p556 = scmp.lt.s32.totalorder %s40, 0
          %s557 = scalar_select %p556, %s40, 0
          %s558 = smul.addr %s557, 8
          %s559 = scalar_lea.vmem %s3, %s558
        $region16: #{crossmodal_forward.1} parent=11 // pred_fallthru
          _
        // Predicated region
        $region17: #{crossmodal_forward.1} parent=11 // pred_check
          %p560 = pneg %p174
        $region18: #{crossmodal_forward.1} parent=11 // pred_check_branch
          %562 = sbr.rel (%p560) target = $region20
        $region19: #{crossmodal_forward.1} parent=11 // pred_region
          %p563 = scmp.lt.s32.totalorder %s40, 0
          %s564 = scalar_select %p563, %s40, 0
          %s565 = smul.addr %s564, 8
          %s566 = scalar_lea.vmem %s4, %s565
        $region20: #{crossmodal_forward.1} parent=11 // pred_fallthru
          _
        // Predicated region
        $region21: #{crossmodal_forward.1} parent=11 // pred_check
          %p567 = pneg %p195
        $region22: #{crossmodal_forward.1} parent=11 // pred_check_branch
          %569 = sbr.rel (%p567) target = $region24
        $region23: #{crossmodal_forward.1} parent=11 // pred_region
          _
        $region24: #{crossmodal_forward.1} parent=11 // pred_fallthru
          _
        // Predicated region
        $region25: #{crossmodal_forward.1} parent=11 // pred_check
          %p570 = pneg %p216
        $region26: #{crossmodal_forward.1} parent=11 // pred_check_branch
          %572 = sbr.rel (%p570) target = $region28
        $region27: #{crossmodal_forward.1} parent=11 // pred_region
          _
        $region28: #{crossmodal_forward.1} parent=11 // pred_fallthru
          _
        // Predicated region
        $region29: #{crossmodal_forward.1} parent=11 // pred_check
          %p573 = pneg %p237
        $region30: #{crossmodal_forward.1} parent=11 // pred_check_branch
          %575 = sbr.rel (%p573) target = $region32
        $region31: #{crossmodal_forward.1} parent=11 // pred_region
          _
        $region32: #{crossmodal_forward.1} parent=11 // pred_fallthru
          _
        // Predicated region
        $region33: #{crossmodal_forward.1} parent=11 // pred_check
          %p576 = pneg %p258
        $region34: #{crossmodal_forward.1} parent=11 // pred_check_branch
          %578 = sbr.rel (%p576) target = $region36
        $region35: #{crossmodal_forward.1} parent=11 // pred_region
          _
        $region36: #{crossmodal_forward.1} parent=11 // pred_fallthru
          _
        // Predicated region
        $region37: #{crossmodal_forward.1} parent=11 // pred_check
          %p579 = pneg %p279
        $region38: #{crossmodal_forward.1} parent=11 // pred_check_branch
          %581 = sbr.rel (%p579) target = $region40
        $region39: #{crossmodal_forward.1} parent=11 // pred_region
          _
        $region40: #{crossmodal_forward.1} parent=11 // pred_fallthru
          _
        // Predicated region
        $region41: #{crossmodal_forward.1} parent=11 // pred_check
          %p582 = pneg %p300
        $region42: #{crossmodal_forward.1} parent=11 // pred_check_branch
          %584 = sbr.rel (%p582) target = $region44
        $region43: #{crossmodal_forward.1} parent=11 // pred_region
          _
        $region44: #{crossmodal_forward.1} parent=11 // pred_fallthru
          _
        // Predicated region
        $region45: #{crossmodal_forward.1} parent=11 // pred_check
          %p585 = pneg %p321
        $region46: #{crossmodal_forward.1} parent=11 // pred_check_branch
          %587 = sbr.rel (%p585) target = $region48
        $region47: #{crossmodal_forward.1} parent=11 // pred_region
          _
        $region48: #{crossmodal_forward.1} parent=11 // pred_fallthru
          _
        // Predicated region
        $region49: #{crossmodal_forward.1} parent=11 // pred_check
          %p588 = pneg %p342
        $region50: #{crossmodal_forward.1} parent=11 // pred_check_branch
          %590 = sbr.rel (%p588) target = $region52
        $region51: #{crossmodal_forward.1} parent=11 // pred_region
          _
        $region52: #{crossmodal_forward.1} parent=11 // pred_fallthru
          _
        // Predicated region
        $region53: #{crossmodal_forward.1} parent=11 // pred_check
          %p591 = pneg %p363
        $region54: #{crossmodal_forward.1} parent=11 // pred_check_branch
          %593 = sbr.rel (%p591) target = $region56
        $region55: #{crossmodal_forward.1} parent=11 // pred_region
          _
        $region56: #{crossmodal_forward.1} parent=11 // pred_fallthru
          _
        // Predicated region
        $region57: #{crossmodal_forward.1} parent=11 // pred_check
          %p594 = pneg %p384
        $region58: #{crossmodal_forward.1} parent=11 // pred_check_branch
          %596 = sbr.rel (%p594) target = $region60
        $region59: #{crossmodal_forward.1} parent=11 // pred_region
          _
        $region60: #{crossmodal_forward.1} parent=11 // pred_fallthru
          _
        // Predicated region
        $region61: #{crossmodal_forward.1} parent=11 // pred_check
          %p597 = pneg %p405
        $region62: #{crossmodal_forward.1} parent=11 // pred_check_branch
          %599 = sbr.rel (%p597) target = $region64
        $region63: #{crossmodal_forward.1} parent=11 // pred_region
          _
        $region64: #{crossmodal_forward.1} parent=11 // pred_fallthru
          _
        // Predicated region
        $region65: #{crossmodal_forward.1} parent=11 // pred_check
          %p600 = pneg %p426
        $region66: #{crossmodal_forward.1} parent=11 // pred_check_branch
          %602 = sbr.rel (%p600) target = $region68
        $region67: #{crossmodal_forward.1} parent=11 // pred_region
          _
        $region68: #{crossmodal_forward.1} parent=11 // pred_fallthru
          _
        // Predicated region
        $region69: #{crossmodal_forward.1} parent=11 // pred_check
          %p603 = pneg %p447
        $region70: #{crossmodal_forward.1} parent=11 // pred_check_branch
          %605 = sbr.rel (%p603) target = $region72
        $region71: #{crossmodal_forward.1} parent=11 // pred_region
          _
        $region72: #{crossmodal_forward.1} parent=11 // pred_fallthru
          _
        // Predicated region
        $region73: #{crossmodal_forward.1} parent=11 // pred_check
          %p606 = pneg %p468
        $region74: #{crossmodal_forward.1} parent=11 // pred_check_branch
          %608 = sbr.rel (%p606) target = $region76
        $region75: #{crossmodal_forward.1} parent=11 // pred_region
          _
        $region76: #{crossmodal_forward.1} parent=11 // pred_fallthru
          _
        // Predicated region
        $region77: #{crossmodal_forward.1} parent=11 // pred_check
          %p609 = pneg %p489
        $region78: #{crossmodal_forward.1} parent=11 // pred_check_branch
          %611 = sbr.rel (%p609) target = $region80
        $region79: #{crossmodal_forward.1} parent=11 // pred_region
          _
        $region80: #{crossmodal_forward.1} parent=11 // pred_fallthru
          _
        // Predicated region
        $region81: #{crossmodal_forward.1} parent=11 // pred_check
          %p612 = pneg %p510
        $region82: #{crossmodal_forward.1} parent=11 // pred_check_branch
          %614 = sbr.rel (%p612) target = $region84
        $region83: #{crossmodal_forward.1} parent=11 // pred_region
          _
        $region84: #{crossmodal_forward.1} parent=11 // pred_fallthru
          _
      $region12: #{crossmodal_forward.1} parent=5 // pred_fallthru
        _
      %p615 = scmp.lt.s32.totalorder %s30, 2
      // Predicated region
      $region85: #{crossmodal_forward.1} parent=5 // pred_check
        %p616 = pneg %p615
      $region86: #{crossmodal_forward.1} parent=5 // pred_check_branch
        %618 = sbr.rel (%p616) target = $region88
      $region87: #{crossmodal_forward.1} parent=5 // pred_region
        // Predicated region
        $region89: #{crossmodal_forward.1} parent=87 // pred_check
          %p619 = pneg %p64
        $region90: #{crossmodal_forward.1} parent=87 // pred_check_branch
          %621 = sbr.rel (%p619) target = $region92
        $region91: #{crossmodal_forward.1} parent=87 // pred_region
          %p622 = scmp.lt.s32.totalorder %s37, 1
          %s623 = scalar_select %p622, %s37, 1
          %p624 = scmp.lt.s32.totalorder %s38, 0
          %s625 = scalar_select %p624, %s38, 0
          %s626 = sadd.s32 %s625, %s623
          %s627 = smul.addr %s626, 8
          %s628 = scalar_lea.vmem %s0, %s627
        $region92: #{crossmodal_forward.1} parent=87 // pred_fallthru
          _
        // Predicated region
        $region93: #{crossmodal_forward.1} parent=87 // pred_check
          %p629 = pneg %p90
        $region94: #{crossmodal_forward.1} parent=87 // pred_check_branch
          %631 = sbr.rel (%p629) target = $region96
        $region95: #{crossmodal_forward.1} parent=87 // pred_region
          %p632 = scmp.lt.s32.totalorder %s37, 1
          %s633 = scalar_select %p632, %s37, 1
          %s634 = smul.addr %s633, 8
          %s635 = scalar_lea.vmem %s1, %s634
        $region96: #{crossmodal_forward.1} parent=87 // pred_fallthru
          _
        // Predicated region
        $region97: #{crossmodal_forward.1} parent=87 // pred_check
          %p636 = pneg %p116
        $region98: #{crossmodal_forward.1} parent=87 // pred_check_branch
          %638 = sbr.rel (%p636) target = $region100
        $region99: #{crossmodal_forward.1} parent=87 // pred_region
          %p639 = scmp.lt.s32.totalorder %s37, 1
          %s640 = scalar_select %p639, %s37, 1
          %s641 = scalar_lea.vmem %s2, %s640
        $region100: #{crossmodal_forward.1} parent=87 // pred_fallthru
          _
      $region88: #{crossmodal_forward.1} parent=5 // pred_fallthru
        _
      %p642 = scmp.le.s32.totalorder 1, %s30
      %p643 = scmp.lt.s32.totalorder %s30, 3
      %p644 = pnand %p642, %p643
      %p645 = pneg %p644
      // Predicated region
      $region101: #{crossmodal_forward.1} parent=5 // pred_check
        _
      $region102: #{crossmodal_forward.1} parent=5 // pred_check_branch
        %647 = sbr.rel (%p644) target = $region104
      $region103: #{crossmodal_forward.1} parent=5 // pred_region
        %s648 = ssub.s32 %s30, 1
        %p649 = scmp.lt.s32.totalorder %s39, 1
        %s650 = scalar_select %p649, %s39, 1
        %p651 = scmp.lt.s32.totalorder %s40, 0
        %s652 = scalar_select %p651, %s40, 0
        %s653 = sadd.s32 %s652, %s650
        %s654 = smul.addr %s653, 8
        %s655 = scalar_lea.vmem %s0, %s654
        %p656 = pneg %p70
        %p657 = pneg %p67
        %p658 = scmp.lt.s32.totalorder %s39, 1
        %s659 = scalar_select %p658, %s39, 1
        %s660 = smul.addr %s659, 8
        %s661 = scalar_lea.vmem %s1, %s660
        %p662 = pneg %p96
        %p663 = pneg %p93
        %p664 = scmp.lt.s32.totalorder %s39, 1
        %s665 = scalar_select %p664, %s39, 1
        %s666 = scalar_lea.vmem %s2, %s665
        %p667 = pneg %p122
        %p668 = pneg %p119
        %p669 = scmp.lt.s32.totalorder %s40, 0
        %s670 = scalar_select %p669, %s40, 0
        %s671 = smul.addr %s670, 8
        %s672 = scalar_lea.vmem %s3, %s671
        %p673 = pneg %p148
        %p674 = pneg %p145
        %p675 = scmp.lt.s32.totalorder %s40, 0
        %s676 = scalar_select %p675, %s40, 0
        %s677 = smul.addr %s676, 8
        %s678 = scalar_lea.vmem %s4, %s677
        %p679 = pneg %p174
        %p680 = pneg %p171
        %p681 = pneg %p195
        %p682 = pneg %p192
        %p683 = pneg %p216
        %p684 = pneg %p213
        %p685 = pneg %p237
        %p686 = pneg %p234
        %p687 = pneg %p258
        %p688 = pneg %p255
        %p689 = pneg %p279
        %p690 = pneg %p276
        %p691 = pneg %p300
        %p692 = pneg %p297
        %p693 = pneg %p321
        %p694 = pneg %p318
        %p695 = pneg %p342
        %p696 = pneg %p339
        %p697 = pneg %p363
        %p698 = pneg %p360
        %p699 = pneg %p384
        %p700 = pneg %p381
        %p701 = pneg %p405
        %p702 = pneg %p402
        %p703 = pneg %p426
        %p704 = pneg %p423
        %p705 = pneg %p447
        %p706 = pneg %p444
        %p707 = pneg %p468
        %p708 = pneg %p465
        %p709 = pneg %p489
        %p710 = pneg %p486
        %p711 = pneg %p510
        %p712 = pneg %p507
        %p713 = pneg %p538
        %p714 = pneg %p535
        %s715 = sand.u32 %s525, 1
        %s716 = scalar_lea.sflag [#allocation3], %s715
        %s717 = sand.u32 %s525, 1
        %s718 = smul.addr %s717, 8
        %s719 = scalar_lea.vmem [#allocation2], %s718
        %p720 = scmp.lt.s32.totalorder %s39, 1
        %s721 = scalar_select %p720, %s39, 1
        %p722 = scmp.lt.s32.totalorder %s40, 0
        %s723 = scalar_select %p722, %s40, 0
        %s724 = sadd.s32 %s723, %s721
        %s725 = smul.addr %s724, 8
        %s726 = scalar_lea.vmem %s0, %s725
        %p727 = scmp.lt.s32.totalorder %s39, 1
        %s728 = scalar_select %p727, %s39, 1
        %s729 = smul.addr %s728, 8
        %s730 = scalar_lea.vmem %s1, %s729
        %p731 = scmp.lt.s32.totalorder %s39, 1
        %s732 = scalar_select %p731, %s39, 1
        %s733 = scalar_lea.vmem %s2, %s732
        %p734 = scmp.lt.s32.totalorder %s40, 0
        %s735 = scalar_select %p734, %s40, 0
        %s736 = smul.addr %s735, 8
        %s737 = scalar_lea.vmem %s3, %s736
        %p738 = scmp.lt.s32.totalorder %s40, 0
        %s739 = scalar_select %p738, %s40, 0
        %s740 = smul.addr %s739, 8
        %s741 = scalar_lea.vmem %s4, %s740
        %v743 = vld [vmem:[%s7] sm:$0x1]
        %v744 = vld [vmem:[%s8] sm:$0x1]
        %v745 = vld [vmem:[%s15] sm:$0x1]
        %v746 = vld [vmem:[%s16] sm:$0x1]
        %v747 = vld [vmem:[%s9] sm:$0xf]
        %v748 = vld [vmem:[%s9 + $0x4] sm:$0xf]
        %v749 = vld [vmem:[%s9 + $0x8] sm:$0xf]
        %v750 = vld [vmem:[%s9 + $0xc] sm:$0xf]
        %v751 = vld [vmem:[%s10] sm:$0x1]
        %v752 = vld [vmem:[%s13] sm:$0xf]
        %v753 = vld [vmem:[%s13 + $0x4] sm:$0xf]
        %v754 = vld [vmem:[%s13 + $0x8] sm:$0xf]
        %v755 = vld [vmem:[%s13 + $0xc] sm:$0xf]
        %v756 = vld [vmem:[%s14] sm:$0x1]
        %v757 = vld [vmem:[%s17] sm:$0xf]
        %v758 = vld [vmem:[%s17 + $0x4] sm:$0xf]
        %v759 = vld [vmem:[%s17 + $0x8] sm:$0xf]
        %v760 = vld [vmem:[%s17 + $0xc] sm:$0xf]
        %v761 = vld [vmem:[%s18] sm:$0x1]
        %v762 = vld [vmem:[%s19] sm:$0xf]
        %v763 = vld [vmem:[%s19 + $0x4] sm:$0xf]
        %v764 = vld [vmem:[%s19 + $0x8] sm:$0xf]
        %v765 = vld [vmem:[%s19 + $0xc] sm:$0xf]
        %v766 = vld [vmem:[%s19 + $0x10] sm:$0xf]
        %v767 = vld [vmem:[%s19 + $0x14] sm:$0xf]
        %v768 = vld [vmem:[%s19 + $0x18] sm:$0xf]
        %v769 = vld [vmem:[%s19 + $0x1c] sm:$0xf]
        %v770 = vld [vmem:[%s19 + $0x20] sm:$0xf]
        %v771 = vld [vmem:[%s19 + $0x24] sm:$0xf]
        %v772 = vld [vmem:[%s19 + $0x28] sm:$0xf]
        %v773 = vld [vmem:[%s19 + $0x2c] sm:$0xf]
        %v774 = vld [vmem:[%s19 + $0x30] sm:$0xf]
        %v775 = vld [vmem:[%s19 + $0x34] sm:$0xf]
        %v776 = vld [vmem:[%s19 + $0x38] sm:$0xf]
        %v777 = vld [vmem:[%s19 + $0x3c] sm:$0xf]
        %v778 = vld [vmem:[%s20] sm:$0x1]
        %v779 = vld [vmem:[%s726] sm:$0xff]
        %v780 = vld [vmem:[%s737] sm:$0xff]
        %v781 = vld [vmem:[%s741] sm:$0xff]
        %v782 = vlaneseq
        %v783 = vand.u32 %v782, 127
        %vm784 = vcmask 1047808
        %785 = vrot.lane.b32.xlu0 %v779, 32
        %v786 = vpop.permute.xlu0 %785
        %v787 = vsel %vm784, %v786, %v779
        %788 = vrot.lane.b32.xlu0 %v787, 32
        %v789 = vpop.permute.xlu0 %788
        %v790 = vsel %vm784, %v789, %v779
        %vm791 = vcmp.lt.s32.totalorder %v783, 0
        %v792 = vsub.s32 0, %v783
        %v793 = vsel %vm791, %v792, %v783
        %v794 = vshrl.u32 %v793, 1
        %v795 = vand.u32 %v793, 1
        %v796 = vsub.s32 0, %v795
        %v797 = vsel %vm791, %v796, %v795
        %vm798 = vcmp.ne.s32.totalorder %v797, 0
        %vm799 = vcmp.lt.s32.totalorder %v797, 0
        %vm800 = vmand %vm799, %vm798
        %v801 = vadd.s32 %v797, 2
        %v802 = vsel %vm800, %v801, %v797
        %vm803 = vcmp.eq.s32.totalorder %v802, 0
        %805 = vrot.lane.b32.xlu0 %v790, 127
        %v806 = vpop.permute.xlu0 %805
        %808 = vrot.lane.b32.xlu0 %v790, 97
        %v809 = vpop.permute.xlu0 %808
        %v811 = vsel %vm803, %v806, %v809
        %v812 = vmul.f32 %v779, %v780
        %v813 = vmul.f32 %v811, %v781
        %v814 = vadd.f32 %v812, %v813
        %v815 = vld [vmem:[%s733] sm:$0x1]
        %s816 = smul.u32 %s40, 8
        %v817 = vlaneseq
        %v818 = vshrl.u32 %v817, 7
        %v819 = vstv %s816
        %v820 = vadd.s32 %v819, %v818
        %vm821 = vcmp.gt.s32.totalorder %v783, %v820
        %v822 = vsel %vm821, -1e+30, 0.0
        %v824 = vlaneseq
        %v825 = vshrl.u32 %v824, 7
        %v826 = vsub.s32 0, %v825
        %v827 = vrot.slane %v815, %v826
        %v829 = vadd.f32 %v827, %v822
        %v830 = vld [vmem:[%s11] sm:$0xf]
        %v831 = vld [vmem:[%s11 + $0x4] sm:$0xf]
        %v832 = vld [vmem:[%s11 + $0x8] sm:$0xf]
        %v833 = vld [vmem:[%s11 + $0xc] sm:$0xf]
        %v834 = vld [vmem:[%s12] sm:$0x1]
        %v835 = vld [vmem:[%s730] sm:$0xff]
        %v836 = vld [vmem:[%s5] sm:$0xff]
        %v837 = vld [vmem:[%s6] sm:$0xff]
        %838 = vrot.lane.b32.xlu0 %v835, 32
        %v839 = vpop.permute.xlu0 %838
        %v840 = vsel %vm784, %v839, %v835
        %841 = vrot.lane.b32.xlu0 %v840, 32
        %v842 = vpop.permute.xlu0 %841
        %v843 = vsel %vm784, %v842, %v835
        %845 = vrot.lane.b32.xlu0 %v843, 127
        %v846 = vpop.permute.xlu0 %845
        %848 = vrot.lane.b32.xlu0 %v843, 97
        %v849 = vpop.permute.xlu0 %848
        %v851 = vsel %vm803, %v846, %v849
        %v852 = vmul.f32 %v835, %v836
        %v853 = vmul.f32 %v851, %v837
        %v854 = vadd.f32 %v852, %v853
        %vm855 = vcmask 261120
        %v856 = vsel %vm855, %v854, 0.0
        %857 = vadd.xlane.f32.xlu0 %v856
        %v858 = vpop.xlane.xlu0 %857
        %v859 = vrcp.pop 32.0
        %v860 = vmul.f32 %v858, %v859
        %v861 = vsub.f32 %v854, %v860
        %v862 = vmul.f32 %v861, %v861
        %v863 = vsel %vm855, %v862, 0.0
        %864 = vadd.xlane.f32.xlu0 %v863
        %v865 = vpop.xlane.xlu0 %864
        %v866 = vmul.f32 %v865, %v859
        %v867 = vadd.f32 %v866, 1e-05
        %v868 = vrsqrt.pop %v867
        %v869 = vmul.f32 %v861, %v868
        %v871 = vlaneseq
        %v872 = vshrl.u32 %v871, 7
        %v873 = vsub.s32 0, %v872
        %v874 = vrot.slane %v743, %v873
        %v876 = vmul.f32 %v869, %v874
        %v878 = vlaneseq
        %v879 = vshrl.u32 %v878, 7
        %v880 = vsub.s32 0, %v879
        %v881 = vrot.slane %v744, %v880
        %v883 = vadd.f32 %v876, %v881
        %v884 = vpack.c.bf16 %v883, %v883
        %v886 = vlaneseq
        %v887 = vshrl.u32 %v886, 7
        %v888 = vsub.s32 0, %v887
        %v889 = vrot.slane %v834, %v888
        %v895 = vunpack.c.l.b16 %v830
        %v896 = vunpack.c.l.b16 %v831
        %v897 = vunpack.c.l.b16 %v832
        %v898 = vunpack.c.l.b16 %v833
        %v899 = vpack.c.b16 %v896, %v895
        %v900 = vpack.c.b16 %v898, %v897
        %v904 = vsel %vm855, %v884, 0
        %906 = vmatprep.subr.bf16.mxu0 0
        %907 = vmatpush1.bf16.msra.mxu0 %v899
        %908 = vmatprep.subr.bf16.mxu0 0
        %909 = vmatpush1.bf16.msra.mxu0 %v900
        %910 = vmatprep.subr.bf16.mxu0 0
        %911 = vmatpush1.bf16.msra.mxu0 0
        %912 = vmatprep.subr.bf16.mxu0 0
        %913 = vmatpush1.bf16.msra.mxu0 0
        %914 = vmatprep.subr.bf16.mxu0 0
        %915 = vmatpush1.bf16.msra.mxu0 0
        %916 = vmatprep.subr.bf16.mxu0 0
        %917 = vmatpush1.bf16.msra.mxu0 0
        %918 = vmatprep.subr.bf16.mxu0 0
        %919 = vmatpush1.bf16.msra.mxu0 0
        %920 = vmatprep.subr.bf16.mxu0 0
        %921 = vmatpush1.bf16.msra.mxu0 0
        %922 = vmatprep.subr.bf16.mxu0 0
        %923 = vmatpush1.bf16.msra.mxu0 0
        %924 = vmatprep.subr.bf16.mxu0 0
        %925 = vmatpush1.bf16.msra.mxu0 0
        %926 = vmatprep.subr.bf16.mxu0 0
        %927 = vmatpush1.bf16.msra.mxu0 0
        %928 = vmatprep.subr.bf16.mxu0 0
        %929 = vmatpush1.bf16.msra.mxu0 0
        %930 = vmatprep.subr.bf16.mxu0 0
        %931 = vmatpush1.bf16.msra.mxu0 0
        %932 = vmatprep.subr.bf16.mxu0 0
        %933 = vmatpush1.bf16.msra.mxu0 0
        %934 = vmatprep.subr.bf16.mxu0 0
        %935 = vmatpush1.bf16.msra.mxu0 0
        %936 = vmatprep.subr.bf16.mxu0 0
        %937 = vmatpush1.bf16.msra.mxu0 0
        %938 = vmatprep.mubr.bf16.mxu0 0
        %939 = vmatmul.mubr.bf16.gmra.mrb[0].mxu0 %v904
        %v940 = vpop.f32.mrb[0].mxu0
        %v941 = vadd.f32 %v889, %v940
        %v942 = vpop.f32.mrb[0].mxu0
        %v943 = vpop.f32.mrb[0].mxu0
        %v944 = vpop.f32.mrb[0].mxu0
        %945 = vdwg.mxu0
        %v946 = vpack.c.bf16 %v941, %v941
        %948 = vrot.lane.b32.xlu0 %v946, 120
        %v949 = vpop.permute.xlu0 %948
        %950 = vrot.lane.b32.xlu0 %v946, 112
        %v951 = vpop.permute.xlu0 %950
        %952 = vrot.lane.b32.xlu0 %v946, 104
        %v953 = vpop.permute.xlu0 %952
        %v954 = vsel %vm855, %v814, 0.0
        %955 = vadd.xlane.f32.xlu0 %v954
        %v956 = vpop.xlane.xlu0 %955
        %v957 = vmul.f32 %v956, %v859
        %v958 = vsub.f32 %v814, %v957
        %v959 = vmul.f32 %v958, %v958
        %v960 = vsel %vm855, %v959, 0.0
        %961 = vadd.xlane.f32.xlu0 %v960
        %v962 = vpop.xlane.xlu0 %961
        %v963 = vmul.f32 %v962, %v859
        %v964 = vadd.f32 %v963, 1e-05
        %v965 = vrsqrt.pop %v964
        %v966 = vmul.f32 %v958, %v965
        %v967 = vmul.f32 %v966, %v874
        %v968 = vadd.f32 %v967, %v881
        %v969 = vpack.c.bf16 %v968, %v968
        %v971 = vlaneseq
        %v972 = vshrl.u32 %v971, 7
        %v973 = vsub.s32 0, %v972
        %v974 = vrot.slane %v751, %v973
        %v980 = vunpack.c.l.b16 %v747
        %v981 = vunpack.c.l.b16 %v748
        %v982 = vunpack.c.l.b16 %v749
        %v983 = vunpack.c.l.b16 %v750
        %v984 = vpack.c.b16 %v981, %v980
        %v985 = vpack.c.b16 %v983, %v982
        %v989 = vsel %vm855, %v969, 0
        %991 = vmatprep.subr.bf16.mxu0 0
        %992 = vmatpush1.bf16.msra.mxu0 %v984
        %993 = vmatprep.subr.bf16.mxu0 0
        %994 = vmatpush1.bf16.msra.mxu0 %v985
        %995 = vmatprep.subr.bf16.mxu0 0
        %996 = vmatpush1.bf16.msra.mxu0 0
        %997 = vmatprep.subr.bf16.mxu0 0
        %998 = vmatpush1.bf16.msra.mxu0 0
        %999 = vmatprep.subr.bf16.mxu0 0
        %1000 = vmatpush1.bf16.msra.mxu0 0
        %1001 = vmatprep.subr.bf16.mxu0 0
        %1002 = vmatpush1.bf16.msra.mxu0 0
        %1003 = vmatprep.subr.bf16.mxu0 0
        %1004 = vmatpush1.bf16.msra.mxu0 0
        %1005 = vmatprep.subr.bf16.mxu0 0
        %1006 = vmatpush1.bf16.msra.mxu0 0
        %1007 = vmatprep.subr.bf16.mxu0 0
        %1008 = vmatpush1.bf16.msra.mxu0 0
        %1009 = vmatprep.subr.bf16.mxu0 0
        %1010 = vmatpush1.bf16.msra.mxu0 0
        %1011 = vmatprep.subr.bf16.mxu0 0
        %1012 = vmatpush1.bf16.msra.mxu0 0
        %1013 = vmatprep.subr.bf16.mxu0 0
        %1014 = vmatpush1.bf16.msra.mxu0 0
        %1015 = vmatprep.subr.bf16.mxu0 0
        %1016 = vmatpush1.bf16.msra.mxu0 0
        %1017 = vmatprep.subr.bf16.mxu0 0
        %1018 = vmatpush1.bf16.msra.mxu0 0
        %1019 = vmatprep.subr.bf16.mxu0 0
        %1020 = vmatpush1.bf16.msra.mxu0 0
        %1021 = vmatprep.subr.bf16.mxu0 0
        %1022 = vmatpush1.bf16.msra.mxu0 0
        %1023 = vmatprep.mubr.bf16.mxu0 0
        %1024 = vmatmul.mubr.bf16.gmra.mrb[0].mxu0 %v989
        %v1025 = vpop.f32.mrb[0].mxu0
        %v1026 = vadd.f32 %v974, %v1025
        %v1027 = vpop.f32.mrb[0].mxu0
        %v1028 = vpop.f32.mrb[0].mxu0
        %v1029 = vpop.f32.mrb[0].mxu0
        %1030 = vdwg.mxu0
        %v1031 = vpack.c.bf16 %v1026, %v1026
        %1033 = vrot.lane.b32.xlu0 %v1031, 120
        %v1034 = vpop.permute.xlu0 %1033
        %1035 = vrot.lane.b32.xlu0 %v1031, 112
        %v1036 = vpop.permute.xlu0 %1035
        %1037 = vrot.lane.b32.xlu0 %v1031, 104
        %v1038 = vpop.permute.xlu0 %1037
        %vm1039 = vcmask 64512
        %v1041 = vsel %vm1039, %v1031, 0
        %v1044 = vsel %vm1039, %v946, 0
        %1046 = vmatprep.subr.bf16.mxu0 0
        %1047 = vmatpush1.bf16.xpose.msra.mxu0 %v1044
        %1048 = vmatprep.subr.bf16.mxu0 0
        %1049 = vmatpush1.bf16.xpose.msra.mxu0 0
        %1050 = vmatprep.subr.bf16.mxu0 0
        %1051 = vmatpush1.bf16.xpose.msra.mxu0 0
        %1052 = vmatprep.subr.bf16.mxu0 0
        %1053 = vmatpush1.bf16.xpose.msra.mxu0 0
        %1054 = vmatprep.subr.bf16.mxu0 0
        %1055 = vmatpush1.bf16.xpose.msra.mxu0 0
        %1056 = vmatprep.subr.bf16.mxu0 0
        %1057 = vmatpush1.bf16.xpose.msra.mxu0 0
        %1058 = vmatprep.subr.bf16.mxu0 0
        %1059 = vmatpush1.bf16.xpose.msra.mxu0 0
        %1060 = vmatprep.subr.bf16.mxu0 0
        %1061 = vmatpush1.bf16.xpose.msra.mxu0 0
        %1062 = vmatprep.subr.bf16.mxu0 0
        %1063 = vmatpush1.bf16.xpose.msra.mxu0 0
        %1064 = vmatprep.subr.bf16.mxu0 0
        %1065 = vmatpush1.bf16.xpose.msra.mxu0 0
        %1066 = vmatprep.subr.bf16.mxu0 0
        %1067 = vmatpush1.bf16.xpose.msra.mxu0 0
        %1068 = vmatprep.subr.bf16.mxu0 0
        %1069 = vmatpush1.bf16.xpose.msra.mxu0 0
        %1070 = vmatprep.subr.bf16.mxu0 0
        %1071 = vmatpush1.bf16.xpose.msra.mxu0 0
        %1072 = vmatprep.subr.bf16.mxu0 0
        %1073 = vmatpush1.bf16.xpose.msra.mxu0 0
        %1074 = vmatprep.subr.bf16.mxu0 0
        %1075 = vmatpush1.bf16.xpose.msra.mxu0 0
        %1076 = vmatprep.subr.bf16.mxu0 0
        %1077 = vmatpush1.bf16.xpose.msra.mxu0 0
        %1078 = vmatprep.mubr.bf16.mxu0 0
        %1079 = vmatmul.mubr.bf16.gmra.mrb[0].mxu0 %v1041
        %v1080 = vpop.f32.mrb[0].mxu0
        %v1081 = vadd.f32 %v829, %v1080
        %v1082 = vpop.f32.mrb[0].mxu0
        %v1083 = vpop.f32.mrb[0].mxu0
        %v1084 = vpop.f32.mrb[0].mxu0
        %1085 = vdwg.mxu0
        %v1087 = vsel %vm1039, %v1034, 0
        %v1090 = vsel %vm1039, %v949, 0
        %1092 = vmatprep.subr.bf16.mxu0 0
        %1093 = vmatpush1.bf16.xpose.msra.mxu0 %v1090
        %1094 = vmatprep.subr.bf16.mxu0 0
        %1095 = vmatpush1.bf16.xpose.msra.mxu0 0
        %1096 = vmatprep.subr.bf16.mxu0 0
        %1097 = vmatpush1.bf16.xpose.msra.mxu0 0
        %1098 = vmatprep.subr.bf16.mxu0 0
        %1099 = vmatpush1.bf16.xpose.msra.mxu0 0
        %1100 = vmatprep.subr.bf16.mxu0 0
        %1101 = vmatpush1.bf16.xpose.msra.mxu0 0
        %1102 = vmatprep.subr.bf16.mxu0 0
        %1103 = vmatpush1.bf16.xpose.msra.mxu0 0
        %1104 = vmatprep.subr.bf16.mxu0 0
        %1105 = vmatpush1.bf16.xpose.msra.mxu0 0
        %1106 = vmatprep.subr.bf16.mxu0 0
        %1107 = vmatpush1.bf16.xpose.msra.mxu0 0
        %1108 = vmatprep.subr.bf16.mxu0 0
        %1109 = vmatpush1.bf16.xpose.msra.mxu0 0
        %1110 = vmatprep.subr.bf16.mxu0 0
        %1111 = vmatpush1.bf16.xpose.msra.mxu0 0
        %1112 = vmatprep.subr.bf16.mxu0 0
        %1113 = vmatpush1.bf16.xpose.msra.mxu0 0
        %1114 = vmatprep.subr.bf16.mxu0 0
        %1115 = vmatpush1.bf16.xpose.msra.mxu0 0
        %1116 = vmatprep.subr.bf16.mxu0 0
        %1117 = vmatpush1.bf16.xpose.msra.mxu0 0
        %1118 = vmatprep.subr.bf16.mxu0 0
        %1119 = vmatpush1.bf16.xpose.msra.mxu0 0
        %1120 = vmatprep.subr.bf16.mxu0 0
        %1121 = vmatpush1.bf16.xpose.msra.mxu0 0
        %1122 = vmatprep.subr.bf16.mxu0 0
        %1123 = vmatpush1.bf16.xpose.msra.mxu0 0
        %1124 = vmatprep.mubr.bf16.mxu0 0
        %1125 = vmatmul.mubr.bf16.gmra.mrb[0].mxu0 %v1087
        %v1126 = vpop.f32.mrb[0].mxu0
        %v1127 = vadd.f32 %v829, %v1126
        %v1128 = vpop.f32.mrb[0].mxu0
        %v1129 = vpop.f32.mrb[0].mxu0
        %v1130 = vpop.f32.mrb[0].mxu0
        %1131 = vdwg.mxu0
        %v1133 = vsel %vm1039, %v1036, 0
        %v1136 = vsel %vm1039, %v951, 0
        %1138 = vmatprep.subr.bf16.mxu0 0
        %1139 = vmatpush1.bf16.xpose.msra.mxu0 %v1136
        %1140 = vmatprep.subr.bf16.mxu0 0
        %1141 = vmatpush1.bf16.xpose.msra.mxu0 0
        %1142 = vmatprep.subr.bf16.mxu0 0
        %1143 = vmatpush1.bf16.xpose.msra.mxu0 0
        %1144 = vmatprep.subr.bf16.mxu0 0
        %1145 = vmatpush1.bf16.xpose.msra.mxu0 0
        %1146 = vmatprep.subr.bf16.mxu0 0
        %1147 = vmatpush1.bf16.xpose.msra.mxu0 0
        %1148 = vmatprep.subr.bf16.mxu0 0
        %1149 = vmatpush1.bf16.xpose.msra.mxu0 0
        %1150 = vmatprep.subr.bf16.mxu0 0
        %1151 = vmatpush1.bf16.xpose.msra.mxu0 0
        %1152 = vmatprep.subr.bf16.mxu0 0
        %1153 = vmatpush1.bf16.xpose.msra.mxu0 0
        %1154 = vmatprep.subr.bf16.mxu0 0
        %1155 = vmatpush1.bf16.xpose.msra.mxu0 0
        %1156 = vmatprep.subr.bf16.mxu0 0
        %1157 = vmatpush1.bf16.xpose.msra.mxu0 0
        %1158 = vmatprep.subr.bf16.mxu0 0
        %1159 = vmatpush1.bf16.xpose.msra.mxu0 0
        %1160 = vmatprep.subr.bf16.mxu0 0
        %1161 = vmatpush1.bf16.xpose.msra.mxu0 0
        %1162 = vmatprep.subr.bf16.mxu0 0
        %1163 = vmatpush1.bf16.xpose.msra.mxu0 0
        %1164 = vmatprep.subr.bf16.mxu0 0
        %1165 = vmatpush1.bf16.xpose.msra.mxu0 0
        %1166 = vmatprep.subr.bf16.mxu0 0
        %1167 = vmatpush1.bf16.xpose.msra.mxu0 0
        %1168 = vmatprep.subr.bf16.mxu0 0
        %1169 = vmatpush1.bf16.xpose.msra.mxu0 0
        %1170 = vmatprep.mubr.bf16.mxu0 0
        %1171 = vmatmul.mubr.bf16.gmra.mrb[0].mxu0 %v1133
        %v1172 = vpop.f32.mrb[0].mxu0
        %v1173 = vadd.f32 %v829, %v1172
        %v1174 = vpop.f32.mrb[0].mxu0
        %v1175 = vpop.f32.mrb[0].mxu0
        %v1176 = vpop.f32.mrb[0].mxu0
        %1177 = vdwg.mxu0
        %v1179 = vsel %vm1039, %v1038, 0
        %v1182 = vsel %vm1039, %v953, 0
        %1184 = vmatprep.subr.bf16.mxu0 0
        %1185 = vmatpush1.bf16.xpose.msra.mxu0 %v1182
        %1186 = vmatprep.subr.bf16.mxu0 0
        %1187 = vmatpush1.bf16.xpose.msra.mxu0 0
        %1188 = vmatprep.subr.bf16.mxu0 0
        %1189 = vmatpush1.bf16.xpose.msra.mxu0 0
        %1190 = vmatprep.subr.bf16.mxu0 0
        %1191 = vmatpush1.bf16.xpose.msra.mxu0 0
        %1192 = vmatprep.subr.bf16.mxu0 0
        %1193 = vmatpush1.bf16.xpose.msra.mxu0 0
        %1194 = vmatprep.subr.bf16.mxu0 0
        %1195 = vmatpush1.bf16.xpose.msra.mxu0 0
        %1196 = vmatprep.subr.bf16.mxu0 0
        %1197 = vmatpush1.bf16.xpose.msra.mxu0 0
        %1198 = vmatprep.subr.bf16.mxu0 0
        %1199 = vmatpush1.bf16.xpose.msra.mxu0 0
        %1200 = vmatprep.subr.bf16.mxu0 0
        %1201 = vmatpush1.bf16.xpose.msra.mxu0 0
        %1202 = vmatprep.subr.bf16.mxu0 0
        %1203 = vmatpush1.bf16.xpose.msra.mxu0 0
        %1204 = vmatprep.subr.bf16.mxu0 0
        %1205 = vmatpush1.bf16.xpose.msra.mxu0 0
        %1206 = vmatprep.subr.bf16.mxu0 0
        %1207 = vmatpush1.bf16.xpose.msra.mxu0 0
        %1208 = vmatprep.subr.bf16.mxu0 0
        %1209 = vmatpush1.bf16.xpose.msra.mxu0 0
        %1210 = vmatprep.subr.bf16.mxu0 0
        %1211 = vmatpush1.bf16.xpose.msra.mxu0 0
        %1212 = vmatprep.subr.bf16.mxu0 0
        %1213 = vmatpush1.bf16.xpose.msra.mxu0 0
        %1214 = vmatprep.subr.bf16.mxu0 0
        %1215 = vmatpush1.bf16.xpose.msra.mxu0 0
        %1216 = vmatprep.mubr.bf16.mxu0 0
        %1217 = vmatmul.mubr.bf16.gmra.mrb[0].mxu0 %v1179
        %v1218 = vpop.f32.mrb[0].mxu0
        %v1219 = vadd.f32 %v829, %v1218
        %v1220 = vpop.f32.mrb[0].mxu0
        %v1221 = vpop.f32.mrb[0].mxu0
        %v1222 = vpop.f32.mrb[0].mxu0
        %1223 = vdwg.mxu0
        %v1224 = vsel %vm1039, %v1081, -inf
        %1225 = vmax.xlane.f32.xlu0 %v1224
        %v1226 = vpop.xlane.xlu0 %1225
        %v1227 = vsel %vm1039, %v1127, -inf
        %1228 = vmax.xlane.f32.xlu0 %v1227
        %v1229 = vpop.xlane.xlu0 %1228
        %v1230 = vsel %vm1039, %v1173, -inf
        %1231 = vmax.xlane.f32.xlu0 %v1230
        %v1232 = vpop.xlane.xlu0 %1231
        %v1233 = vsel %vm1039, %v1219, -inf
        %1234 = vmax.xlane.f32.xlu0 %v1233
        %v1235 = vpop.xlane.xlu0 %1234
        %v1236 = vsub.f32 %v1081, %v1226
        %v1237 = vsub.f32 %v1127, %v1229
        %v1238 = vsub.f32 %v1173, %v1232
        %v1239 = vsub.f32 %v1219, %v1235
        %v1240 = vmul.f32 %v1236, 1.442695
        %v1241 = vpow.pop %v1240
        %v1242 = vmul.f32 %v1237, 1.442695
        %v1243 = vpow.pop %v1242
        %v1244 = vmul.f32 %v1238, 1.442695
        %v1245 = vpow.pop %v1244
        %v1246 = vmul.f32 %v1239, 1.442695
        %v1247 = vpow.pop %v1246
        %v1248 = vsel %vm1039, %v1241, 0.0
        %1249 = vadd.xlane.f32.xlu0 %v1248
        %v1250 = vpop.xlane.xlu0 %1249
        %v1251 = vsel %vm1039, %v1243, 0.0
        %1252 = vadd.xlane.f32.xlu0 %v1251
        %v1253 = vpop.xlane.xlu0 %1252
        %v1254 = vsel %vm1039, %v1245, 0.0
        %1255 = vadd.xlane.f32.xlu0 %v1254
        %v1256 = vpop.xlane.xlu0 %1255
        %v1257 = vsel %vm1039, %v1247, 0.0
        %1258 = vadd.xlane.f32.xlu0 %v1257
        %v1259 = vpop.xlane.xlu0 %1258
        %v1260 = vrcp.pop %v1250
        %v1261 = vrcp.pop %v1253
        %v1262 = vrcp.pop %v1256
        %v1263 = vrcp.pop %v1259
        %v1264 = vmul.f32 %v1241, %v1260
        %v1265 = vmul.f32 %v1243, %v1261
        %v1266 = vmul.f32 %v1245, %v1262
        %v1267 = vmul.f32 %v1247, %v1263
        %v1268 = vpack.c.bf16 %v1264, %v1264
        %v1269 = vpack.c.bf16 %v1265, %v1265
        %v1270 = vpack.c.bf16 %v1266, %v1266
        %v1271 = vpack.c.bf16 %v1267, %v1267
        %1272 = vrot.lane.b32.xlu0 %v946, 96
        %v1273 = vpop.permute.xlu0 %1272
        %v1275 = vsel %vm1039, %v1268, 0
        %vm1277 = vcmask 1043456
        %v1279 = vsel %vm1277, %v1273, 0
        %1281 = vmatprep.subr.bf16.mxu0 0
        %1282 = vmatpush1.bf16.msra.mxu0 %v1279
        %1283 = vmatprep.subr.bf16.mxu0 0
        %1284 = vmatpush1.bf16.msra.mxu0 0
        %1285 = vmatprep.subr.bf16.mxu0 0
        %1286 = vmatpush1.bf16.msra.mxu0 0
        %1287 = vmatprep.subr.bf16.mxu0 0
        %1288 = vmatpush1.bf16.msra.mxu0 0
        %1289 = vmatprep.subr.bf16.mxu0 0
        %1290 = vmatpush1.bf16.msra.mxu0 0
        %1291 = vmatprep.subr.bf16.mxu0 0
        %1292 = vmatpush1.bf16.msra.mxu0 0
        %1293 = vmatprep.subr.bf16.mxu0 0
        %1294 = vmatpush1.bf16.msra.mxu0 0
        %1295 = vmatprep.subr.bf16.mxu0 0
        %1296 = vmatpush1.bf16.msra.mxu0 0
        %1297 = vmatprep.subr.bf16.mxu0 0
        %1298 = vmatpush1.bf16.msra.mxu0 0
        %1299 = vmatprep.subr.bf16.mxu0 0
        %1300 = vmatpush1.bf16.msra.mxu0 0
        %1301 = vmatprep.subr.bf16.mxu0 0
        %1302 = vmatpush1.bf16.msra.mxu0 0
        %1303 = vmatprep.subr.bf16.mxu0 0
        %1304 = vmatpush1.bf16.msra.mxu0 0
        %1305 = vmatprep.subr.bf16.mxu0 0
        %1306 = vmatpush1.bf16.msra.mxu0 0
        %1307 = vmatprep.subr.bf16.mxu0 0
        %1308 = vmatpush1.bf16.msra.mxu0 0
        %1309 = vmatprep.subr.bf16.mxu0 0
        %1310 = vmatpush1.bf16.msra.mxu0 0
        %1311 = vmatprep.subr.bf16.mxu0 0
        %1312 = vmatpush1.bf16.msra.mxu0 0
        %1313 = vmatprep.mubr.bf16.mxu0 0
        %1314 = vmatmul.mubr.bf16.gmra.mrb[0].mxu0 %v1275
        %v1315 = vpop.f32.mrb[0].mxu0
        %v1316 = vadd.f32 0.0, %v1315
        %v1317 = vpop.f32.mrb[0].mxu0
        %v1318 = vpop.f32.mrb[0].mxu0
        %v1319 = vpop.f32.mrb[0].mxu0
        %1320 = vdwg.mxu0
        %1321 = vrot.lane.b32.xlu0 %v949, 96
        %v1322 = vpop.permute.xlu0 %1321
        %v1324 = vsel %vm1039, %v1269, 0
        %v1327 = vsel %vm1277, %v1322, 0
        %1329 = vmatprep.subr.bf16.mxu0 0
        %1330 = vmatpush1.bf16.msra.mxu0 %v1327
        %1331 = vmatprep.subr.bf16.mxu0 0
        %1332 = vmatpush1.bf16.msra.mxu0 0
        %1333 = vmatprep.subr.bf16.mxu0 0
        %1334 = vmatpush1.bf16.msra.mxu0 0
        %1335 = vmatprep.subr.bf16.mxu0 0
        %1336 = vmatpush1.bf16.msra.mxu0 0
        %1337 = vmatprep.subr.bf16.mxu0 0
        %1338 = vmatpush1.bf16.msra.mxu0 0
        %1339 = vmatprep.subr.bf16.mxu0 0
        %1340 = vmatpush1.bf16.msra.mxu0 0
        %1341 = vmatprep.subr.bf16.mxu0 0
        %1342 = vmatpush1.bf16.msra.mxu0 0
        %1343 = vmatprep.subr.bf16.mxu0 0
        %1344 = vmatpush1.bf16.msra.mxu0 0
        %1345 = vmatprep.subr.bf16.mxu0 0
        %1346 = vmatpush1.bf16.msra.mxu0 0
        %1347 = vmatprep.subr.bf16.mxu0 0
        %1348 = vmatpush1.bf16.msra.mxu0 0
        %1349 = vmatprep.subr.bf16.mxu0 0
        %1350 = vmatpush1.bf16.msra.mxu0 0
        %1351 = vmatprep.subr.bf16.mxu0 0
        %1352 = vmatpush1.bf16.msra.mxu0 0
        %1353 = vmatprep.subr.bf16.mxu0 0
        %1354 = vmatpush1.bf16.msra.mxu0 0
        %1355 = vmatprep.subr.bf16.mxu0 0
        %1356 = vmatpush1.bf16.msra.mxu0 0
        %1357 = vmatprep.subr.bf16.mxu0 0
        %1358 = vmatpush1.bf16.msra.mxu0 0
        %1359 = vmatprep.subr.bf16.mxu0 0
        %1360 = vmatpush1.bf16.msra.mxu0 0
        %1361 = vmatprep.mubr.bf16.mxu0 0
        %1362 = vmatmul.mubr.bf16.gmra.mrb[0].mxu0 %v1324
        %v1363 = vpop.f32.mrb[0].mxu0
        %v1364 = vadd.f32 0.0, %v1363
        %v1365 = vpop.f32.mrb[0].mxu0
        %v1366 = vpop.f32.mrb[0].mxu0
        %v1367 = vpop.f32.mrb[0].mxu0
        %1368 = vdwg.mxu0
        %1369 = vrot.lane.b32.xlu0 %v951, 96
        %v1370 = vpop.permute.xlu0 %1369
        %v1372 = vsel %vm1039, %v1270, 0
        %v1375 = vsel %vm1277, %v1370, 0
        %1377 = vmatprep.subr.bf16.mxu0 0
        %1378 = vmatpush1.bf16.msra.mxu0 %v1375
        %1379 = vmatprep.subr.bf16.mxu0 0
        %1380 = vmatpush1.bf16.msra.mxu0 0
        %1381 = vmatprep.subr.bf16.mxu0 0
        %1382 = vmatpush1.bf16.msra.mxu0 0
        %1383 = vmatprep.subr.bf16.mxu0 0
        %1384 = vmatpush1.bf16.msra.mxu0 0
        %1385 = vmatprep.subr.bf16.mxu0 0
        %1386 = vmatpush1.bf16.msra.mxu0 0
        %1387 = vmatprep.subr.bf16.mxu0 0
        %1388 = vmatpush1.bf16.msra.mxu0 0
        %1389 = vmatprep.subr.bf16.mxu0 0
        %1390 = vmatpush1.bf16.msra.mxu0 0
        %1391 = vmatprep.subr.bf16.mxu0 0
        %1392 = vmatpush1.bf16.msra.mxu0 0
        %1393 = vmatprep.subr.bf16.mxu0 0
        %1394 = vmatpush1.bf16.msra.mxu0 0
        %1395 = vmatprep.subr.bf16.mxu0 0
        %1396 = vmatpush1.bf16.msra.mxu0 0
        %1397 = vmatprep.subr.bf16.mxu0 0
        %1398 = vmatpush1.bf16.msra.mxu0 0
        %1399 = vmatprep.subr.bf16.mxu0 0
        %1400 = vmatpush1.bf16.msra.mxu0 0
        %1401 = vmatprep.subr.bf16.mxu0 0
        %1402 = vmatpush1.bf16.msra.mxu0 0
        %1403 = vmatprep.subr.bf16.mxu0 0
        %1404 = vmatpush1.bf16.msra.mxu0 0
        %1405 = vmatprep.subr.bf16.mxu0 0
        %1406 = vmatpush1.bf16.msra.mxu0 0
        %1407 = vmatprep.subr.bf16.mxu0 0
        %1408 = vmatpush1.bf16.msra.mxu0 0
        %1409 = vmatprep.mubr.bf16.mxu0 0
        %1410 = vmatmul.mubr.bf16.gmra.mrb[0].mxu0 %v1372
        %v1411 = vpop.f32.mrb[0].mxu0
        %v1412 = vadd.f32 0.0, %v1411
        %v1413 = vpop.f32.mrb[0].mxu0
        %v1414 = vpop.f32.mrb[0].mxu0
        %v1415 = vpop.f32.mrb[0].mxu0
        %1416 = vdwg.mxu0
        %1417 = vrot.lane.b32.xlu0 %v953, 96
        %v1418 = vpop.permute.xlu0 %1417
        %v1420 = vsel %vm1039, %v1271, 0
        %v1423 = vsel %vm1277, %v1418, 0
        %1425 = vmatprep.subr.bf16.mxu0 0
        %1426 = vmatpush1.bf16.msra.mxu0 %v1423
        %1427 = vmatprep.subr.bf16.mxu0 0
        %1428 = vmatpush1.bf16.msra.mxu0 0
        %1429 = vmatprep.subr.bf16.mxu0 0
        %1430 = vmatpush1.bf16.msra.mxu0 0
        %1431 = vmatprep.subr.bf16.mxu0 0
        %1432 = vmatpush1.bf16.msra.mxu0 0
        %1433 = vmatprep.subr.bf16.mxu0 0
        %1434 = vmatpush1.bf16.msra.mxu0 0
        %1435 = vmatprep.subr.bf16.mxu0 0
        %1436 = vmatpush1.bf16.msra.mxu0 0
        %1437 = vmatprep.subr.bf16.mxu0 0
        %1438 = vmatpush1.bf16.msra.mxu0 0
        %1439 = vmatprep.subr.bf16.mxu0 0
        %1440 = vmatpush1.bf16.msra.mxu0 0
        %1441 = vmatprep.subr.bf16.mxu0 0
        %1442 = vmatpush1.bf16.msra.mxu0 0
        %1443 = vmatprep.subr.bf16.mxu0 0
        %1444 = vmatpush1.bf16.msra.mxu0 0
        %1445 = vmatprep.subr.bf16.mxu0 0
        %1446 = vmatpush1.bf16.msra.mxu0 0
        %1447 = vmatprep.subr.bf16.mxu0 0
        %1448 = vmatpush1.bf16.msra.mxu0 0
        %1449 = vmatprep.subr.bf16.mxu0 0
        %1450 = vmatpush1.bf16.msra.mxu0 0
        %1451 = vmatprep.subr.bf16.mxu0 0
        %1452 = vmatpush1.bf16.msra.mxu0 0
        %1453 = vmatprep.subr.bf16.mxu0 0
        %1454 = vmatpush1.bf16.msra.mxu0 0
        %1455 = vmatprep.subr.bf16.mxu0 0
        %1456 = vmatpush1.bf16.msra.mxu0 0
        %1457 = vmatprep.mubr.bf16.mxu0 0
        %1458 = vmatmul.mubr.bf16.gmra.mrb[0].mxu0 %v1420
        %v1459 = vpop.f32.mrb[0].mxu0
        %v1460 = vadd.f32 0.0, %v1459
        %v1461 = vpop.f32.mrb[0].mxu0
        %v1462 = vpop.f32.mrb[0].mxu0
        %v1463 = vpop.f32.mrb[0].mxu0
        %1464 = vdwg.mxu0
        %1466 = vrot.lane.b32.xlu0 %v1364, 8
        %v1467 = vpop.permute.xlu0 %1466
        %1470 = vrot.lane.b32.xlu0 %v1412, 16
        %v1471 = vpop.permute.xlu0 %1470
        %1474 = vrot.lane.b32.xlu0 %v1460, 24
        %v1475 = vpop.permute.xlu0 %1474
        %v1477 = vsel %vm1039, %v1316, %v1467
        %vm1478 = vcmask 130048
        %v1479 = vsel %vm1478, %v1477, %v1471
        %vm1480 = vcmask 195584
        %v1481 = vsel %vm1480, %v1479, %v1475
        %v1482 = vpack.c.bf16 %v1481, %v1481
        %v1484 = vlaneseq
        %v1485 = vshrl.u32 %v1484, 7
        %v1486 = vsub.s32 0, %v1485
        %v1487 = vrot.slane %v756, %v1486
        %v1493 = vunpack.c.l.b16 %v752
        %v1494 = vunpack.c.l.b16 %v753
        %v1495 = vunpack.c.l.b16 %v754
        %v1496 = vunpack.c.l.b16 %v755
        %v1497 = vpack.c.b16 %v1494, %v1493
        %v1498 = vpack.c.b16 %v1496, %v1495
        %v1502 = vsel %vm855, %v1482, 0
        %1504 = vmatprep.subr.bf16.mxu0 0
        %1505 = vmatpush1.bf16.msra.mxu0 %v1497
        %1506 = vmatprep.subr.bf16.mxu0 0
        %1507 = vmatpush1.bf16.msra.mxu0 %v1498
        %1508 = vmatprep.subr.bf16.mxu0 0
        %1509 = vmatpush1.bf16.msra.mxu0 0
        %1510 = vmatprep.subr.bf16.mxu0 0
        %1511 = vmatpush1.bf16.msra.mxu0 0
        %1512 = vmatprep.subr.bf16.mxu0 0
        %1513 = vmatpush1.bf16.msra.mxu0 0
        %1514 = vmatprep.subr.bf16.mxu0 0
        %1515 = vmatpush1.bf16.msra.mxu0 0
        %1516 = vmatprep.subr.bf16.mxu0 0
        %1517 = vmatpush1.bf16.msra.mxu0 0
        %1518 = vmatprep.subr.bf16.mxu0 0
        %1519 = vmatpush1.bf16.msra.mxu0 0
        %1520 = vmatprep.subr.bf16.mxu0 0
        %1521 = vmatpush1.bf16.msra.mxu0 0
        %1522 = vmatprep.subr.bf16.mxu0 0
        %1523 = vmatpush1.bf16.msra.mxu0 0
        %1524 = vmatprep.subr.bf16.mxu0 0
        %1525 = vmatpush1.bf16.msra.mxu0 0
        %1526 = vmatprep.subr.bf16.mxu0 0
        %1527 = vmatpush1.bf16.msra.mxu0 0
        %1528 = vmatprep.subr.bf16.mxu0 0
        %1529 = vmatpush1.bf16.msra.mxu0 0
        %1530 = vmatprep.subr.bf16.mxu0 0
        %1531 = vmatpush1.bf16.msra.mxu0 0
        %1532 = vmatprep.subr.bf16.mxu0 0
        %1533 = vmatpush1.bf16.msra.mxu0 0
        %1534 = vmatprep.subr.bf16.mxu0 0
        %1535 = vmatpush1.bf16.msra.mxu0 0
        %1536 = vmatprep.mubr.bf16.mxu0 0
        %1537 = vmatmul.mubr.bf16.gmra.mrb[0].mxu0 %v1502
        %v1538 = vpop.f32.mrb[0].mxu0
        %v1539 = vadd.f32 %v1487, %v1538
        %v1540 = vpop.f32.mrb[0].mxu0
        %v1541 = vpop.f32.mrb[0].mxu0
        %v1542 = vpop.f32.mrb[0].mxu0
        %1543 = vdwg.mxu0
        %v1544 = vadd.f32 %v968, %v1539
        %v1545 = vsel %vm855, %v1544, 0.0
        %1546 = vadd.xlane.f32.xlu0 %v1545
        %v1547 = vpop.xlane.xlu0 %1546
        %v1548 = vmul.f32 %v1547, %v859
        %v1549 = vsub.f32 %v1544, %v1548
        %v1550 = vmul.f32 %v1549, %v1549
        %v1551 = vsel %vm855, %v1550, 0.0
        %1552 = vadd.xlane.f32.xlu0 %v1551
        %v1553 = vpop.xlane.xlu0 %1552
        %v1554 = vmul.f32 %v1553, %v859
        %v1555 = vadd.f32 %v1554, 1e-05
        %v1556 = vrsqrt.pop %v1555
        %v1557 = vmul.f32 %v1549, %v1556
        %v1559 = vlaneseq
        %v1560 = vshrl.u32 %v1559, 7
        %v1561 = vsub.s32 0, %v1560
        %v1562 = vrot.slane %v745, %v1561
        %v1564 = vmul.f32 %v1557, %v1562
        %v1566 = vlaneseq
        %v1567 = vshrl.u32 %v1566, 7
        %v1568 = vsub.s32 0, %v1567
        %v1569 = vrot.slane %v746, %v1568
        %v1571 = vadd.f32 %v1564, %v1569
        %v1572 = vpack.c.bf16 %v1571, %v1571
        %v1574 = vlaneseq
        %v1575 = vshrl.u32 %v1574, 7
        %v1576 = vsub.s32 0, %v1575
        %v1577 = vrot.slane %v761, %v1576
        %v1583 = vunpack.c.l.b16 %v757
        %v1584 = vunpack.c.l.b16 %v758
        %v1585 = vunpack.c.l.b16 %v759
        %v1586 = vunpack.c.l.b16 %v760
        %v1587 = vpack.c.b16 %v1584, %v1583
        %v1588 = vpack.c.b16 %v1586, %v1585
        %v1592 = vsel %vm855, %v1572, 0
        %1594 = vmatprep.subr.bf16.mxu0 0
        %1595 = vmatpush1.bf16.msra.mxu0 %v1587
        %1596 = vmatprep.subr.bf16.mxu0 0
        %1597 = vmatpush1.bf16.msra.mxu0 %v1588
        %1598 = vmatprep.subr.bf16.mxu0 0
        %1599 = vmatpush1.bf16.msra.mxu0 0
        %1600 = vmatprep.subr.bf16.mxu0 0
        %1601 = vmatpush1.bf16.msra.mxu0 0
        %1602 = vmatprep.subr.bf16.mxu0 0
        %1603 = vmatpush1.bf16.msra.mxu0 0
        %1604 = vmatprep.subr.bf16.mxu0 0
        %1605 = vmatpush1.bf16.msra.mxu0 0
        %1606 = vmatprep.subr.bf16.mxu0 0
        %1607 = vmatpush1.bf16.msra.mxu0 0
        %1608 = vmatprep.subr.bf16.mxu0 0
        %1609 = vmatpush1.bf16.msra.mxu0 0
        %1610 = vmatprep.subr.bf16.mxu0 0
        %1611 = vmatpush1.bf16.msra.mxu0 0
        %1612 = vmatprep.subr.bf16.mxu0 0
        %1613 = vmatpush1.bf16.msra.mxu0 0
        %1614 = vmatprep.subr.bf16.mxu0 0
        %1615 = vmatpush1.bf16.msra.mxu0 0
        %1616 = vmatprep.subr.bf16.mxu0 0
        %1617 = vmatpush1.bf16.msra.mxu0 0
        %1618 = vmatprep.subr.bf16.mxu0 0
        %1619 = vmatpush1.bf16.msra.mxu0 0
        %1620 = vmatprep.subr.bf16.mxu0 0
        %1621 = vmatpush1.bf16.msra.mxu0 0
        %1622 = vmatprep.subr.bf16.mxu0 0
        %1623 = vmatpush1.bf16.msra.mxu0 0
        %1624 = vmatprep.subr.bf16.mxu0 0
        %1625 = vmatpush1.bf16.msra.mxu0 0
        %1626 = vmatprep.mubr.bf16.mxu0 0
        %1627 = vmatmul.mubr.bf16.gmra.mrb[0].mxu0 %v1592
        %v1628 = vpop.f32.mrb[0].mxu0
        %v1629 = vadd.f32 %v1577, %v1628
        %v1630 = vpop.f32.mrb[0].mxu0
        %v1631 = vpop.f32.mrb[0].mxu0
        %v1632 = vpop.f32.mrb[0].mxu0
        %1633 = vdwg.mxu0
        %v1634 = vmax.f32 %v1629, 0.0
        %v1635 = vpack.c.bf16 %v1634, %v1634
        %v1637 = vlaneseq
        %v1638 = vshrl.u32 %v1637, 7
        %v1639 = vsub.s32 0, %v1638
        %v1640 = vrot.slane %v778, %v1639
        %v1658 = vunpack.c.l.b16 %v762
        %v1659 = vunpack.c.l.b16 %v763
        %v1660 = vunpack.c.l.b16 %v764
        %v1661 = vunpack.c.l.b16 %v765
        %v1662 = vunpack.c.l.b16 %v766
        %v1663 = vunpack.c.l.b16 %v767
        %v1664 = vunpack.c.l.b16 %v768
        %v1665 = vunpack.c.l.b16 %v769
        %v1666 = vunpack.c.l.b16 %v770
        %v1667 = vunpack.c.l.b16 %v771
        %v1668 = vunpack.c.l.b16 %v772
        %v1669 = vunpack.c.l.b16 %v773
        %v1670 = vunpack.c.l.b16 %v774
        %v1671 = vunpack.c.l.b16 %v775
        %v1672 = vunpack.c.l.b16 %v776
        %v1673 = vunpack.c.l.b16 %v777
        %v1674 = vpack.c.b16 %v1659, %v1658
        %v1675 = vpack.c.b16 %v1661, %v1660
        %v1676 = vpack.c.b16 %v1663, %v1662
        %v1677 = vpack.c.b16 %v1665, %v1664
        %v1678 = vpack.c.b16 %v1667, %v1666
        %v1679 = vpack.c.b16 %v1669, %v1668
        %v1680 = vpack.c.b16 %v1671, %v1670
        %v1681 = vpack.c.b16 %v1673, %v1672
        %1690 = vmatprep.subr.bf16.mxu0 0
        %1691 = vmatpush1.bf16.msra.mxu0 %v1674
        %1692 = vmatprep.subr.bf16.mxu0 0
        %1693 = vmatpush1.bf16.msra.mxu0 %v1675
        %1694 = vmatprep.subr.bf16.mxu0 0
        %1695 = vmatpush1.bf16.msra.mxu0 %v1676
        %1696 = vmatprep.subr.bf16.mxu0 0
        %1697 = vmatpush1.bf16.msra.mxu0 %v1677
        %1698 = vmatprep.subr.bf16.mxu0 0
        %1699 = vmatpush1.bf16.msra.mxu0 %v1678
        %1700 = vmatprep.subr.bf16.mxu0 0
        %1701 = vmatpush1.bf16.msra.mxu0 %v1679
        %1702 = vmatprep.subr.bf16.mxu0 0
        %1703 = vmatpush1.bf16.msra.mxu0 %v1680
        %1704 = vmatprep.subr.bf16.mxu0 0
        %1705 = vmatpush1.bf16.msra.mxu0 %v1681
        %1706 = vmatprep.subr.bf16.mxu0 0
        %1707 = vmatpush1.bf16.msra.mxu0 0
        %1708 = vmatprep.subr.bf16.mxu0 0
        %1709 = vmatpush1.bf16.msra.mxu0 0
        %1710 = vmatprep.subr.bf16.mxu0 0
        %1711 = vmatpush1.bf16.msra.mxu0 0
        %1712 = vmatprep.subr.bf16.mxu0 0
        %1713 = vmatpush1.bf16.msra.mxu0 0
        %1714 = vmatprep.subr.bf16.mxu0 0
        %1715 = vmatpush1.bf16.msra.mxu0 0
        %1716 = vmatprep.subr.bf16.mxu0 0
        %1717 = vmatpush1.bf16.msra.mxu0 0
        %1718 = vmatprep.subr.bf16.mxu0 0
        %1719 = vmatpush1.bf16.msra.mxu0 0
        %1720 = vmatprep.subr.bf16.mxu0 0
        %1721 = vmatpush1.bf16.msra.mxu0 0
        %1722 = vmatprep.mubr.bf16.mxu0 0
        %1723 = vmatmul.mubr.bf16.gmra.mrb[0].mxu0 %v1635
        %v1724 = vpop.f32.mrb[0].mxu0
        %v1725 = vadd.f32 %v1640, %v1724
        %v1726 = vpop.f32.mrb[0].mxu0
        %v1727 = vpop.f32.mrb[0].mxu0
        %v1728 = vpop.f32.mrb[0].mxu0
        %1729 = vdwg.mxu0
        %v1730 = vadd.f32 %v1571, %v1725
        %v1731 = vsel %vm855, %v1730, 0.0
        %1732 = vadd.xlane.f32.xlu0 %v1731
        %v1733 = vpop.xlane.xlu0 %1732
        %v1734 = vmul.f32 %v1733, %v859
        %v1735 = vsub.f32 %v1730, %v1734
        %v1736 = vmul.f32 %v1735, %v1735
        %v1737 = vsel %vm855, %v1736, 0.0
        %1738 = vadd.xlane.f32.xlu0 %v1737
        %v1739 = vpop.xlane.xlu0 %1738
        %v1740 = vmul.f32 %v1739, %v859
        %v1741 = vadd.f32 %v1740, 1e-05
        %v1742 = vrsqrt.pop %v1741
        %v1743 = vmul.f32 %v1735, %v1742
        %v1744 = vmul.f32 %v1743, %v874
        %v1745 = vadd.f32 %v1744, %v881
        %v1746 = vpack.c.bf16 %v1745, %v1745
        %v1748 = vsel %vm855, %v1746, 0
        %1750 = vmatprep.subr.bf16.mxu0 0
        %1751 = vmatpush1.bf16.msra.mxu0 %v984
        %1752 = vmatprep.subr.bf16.mxu0 0
        %1753 = vmatpush1.bf16.msra.mxu0 %v985
        %1754 = vmatprep.subr.bf16.mxu0 0
        %1755 = vmatpush1.bf16.msra.mxu0 0
        %1756 = vmatprep.subr.bf16.mxu0 0
        %1757 = vmatpush1.bf16.msra.mxu0 0
        %1758 = vmatprep.subr.bf16.mxu0 0
        %1759 = vmatpush1.bf16.msra.mxu0 0
        %1760 = vmatprep.subr.bf16.mxu0 0
        %1761 = vmatpush1.bf16.msra.mxu0 0
        %1762 = vmatprep.subr.bf16.mxu0 0
        %1763 = vmatpush1.bf16.msra.mxu0 0
        %1764 = vmatprep.subr.bf16.mxu0 0
        %1765 = vmatpush1.bf16.msra.mxu0 0
        %1766 = vmatprep.subr.bf16.mxu0 0
        %1767 = vmatpush1.bf16.msra.mxu0 0
        %1768 = vmatprep.subr.bf16.mxu0 0
        %1769 = vmatpush1.bf16.msra.mxu0 0
        %1770 = vmatprep.subr.bf16.mxu0 0
        %1771 = vmatpush1.bf16.msra.mxu0 0
        %1772 = vmatprep.subr.bf16.mxu0 0
        %1773 = vmatpush1.bf16.msra.mxu0 0
        %1774 = vmatprep.subr.bf16.mxu0 0
        %1775 = vmatpush1.bf16.msra.mxu0 0
        %1776 = vmatprep.subr.bf16.mxu0 0
        %1777 = vmatpush1.bf16.msra.mxu0 0
        %1778 = vmatprep.subr.bf16.mxu0 0
        %1779 = vmatpush1.bf16.msra.mxu0 0
        %1780 = vmatprep.subr.bf16.mxu0 0
        %1781 = vmatpush1.bf16.msra.mxu0 0
        %1782 = vmatprep.mubr.bf16.mxu0 0
        %1783 = vmatmul.mubr.bf16.gmra.mrb[0].mxu0 %v1748
        %v1784 = vpop.f32.mrb[0].mxu0
        %v1785 = vadd.f32 %v974, %v1784
        %v1786 = vpop.f32.mrb[0].mxu0
        %v1787 = vpop.f32.mrb[0].mxu0
        %v1788 = vpop.f32.mrb[0].mxu0
        %1789 = vdwg.mxu0
        %v1790 = vpack.c.bf16 %v1785, %v1785
        %1792 = vrot.lane.b32.xlu0 %v1790, 120
        %v1793 = vpop.permute.xlu0 %1792
        %1794 = vrot.lane.b32.xlu0 %v1790, 112
        %v1795 = vpop.permute.xlu0 %1794
        %1796 = vrot.lane.b32.xlu0 %v1790, 104
        %v1797 = vpop.permute.xlu0 %1796
        %v1799 = vsel %vm1039, %v1790, 0
        %1801 = vmatprep.subr.bf16.mxu0 0
        %1802 = vmatpush1.bf16.xpose.msra.mxu0 %v1044
        %1803 = vmatprep.subr.bf16.mxu0 0
        %1804 = vmatpush1.bf16.xpose.msra.mxu0 0
        %1805 = vmatprep.subr.bf16.mxu0 0
        %1806 = vmatpush1.bf16.xpose.msra.mxu0 0
        %1807 = vmatprep.subr.bf16.mxu0 0
        %1808 = vmatpush1.bf16.xpose.msra.mxu0 0
        %1809 = vmatprep.subr.bf16.mxu0 0
        %1810 = vmatpush1.bf16.xpose.msra.mxu0 0
        %1811 = vmatprep.subr.bf16.mxu0 0
        %1812 = vmatpush1.bf16.xpose.msra.mxu0 0
        %1813 = vmatprep.subr.bf16.mxu0 0
        %1814 = vmatpush1.bf16.xpose.msra.mxu0 0
        %1815 = vmatprep.subr.bf16.mxu0 0
        %1816 = vmatpush1.bf16.xpose.msra.mxu0 0
        %1817 = vmatprep.subr.bf16.mxu0 0
        %1818 = vmatpush1.bf16.xpose.msra.mxu0 0
        %1819 = vmatprep.subr.bf16.mxu0 0
        %1820 = vmatpush1.bf16.xpose.msra.mxu0 0
        %1821 = vmatprep.subr.bf16.mxu0 0
        %1822 = vmatpush1.bf16.xpose.msra.mxu0 0
        %1823 = vmatprep.subr.bf16.mxu0 0
        %1824 = vmatpush1.bf16.xpose.msra.mxu0 0
        %1825 = vmatprep.subr.bf16.mxu0 0
        %1826 = vmatpush1.bf16.xpose.msra.mxu0 0
        %1827 = vmatprep.subr.bf16.mxu0 0
        %1828 = vmatpush1.bf16.xpose.msra.mxu0 0
        %1829 = vmatprep.subr.bf16.mxu0 0
        %1830 = vmatpush1.bf16.xpose.msra.mxu0 0
        %1831 = vmatprep.subr.bf16.mxu0 0
        %1832 = vmatpush1.bf16.xpose.msra.mxu0 0
        %1833 = vmatprep.mubr.bf16.mxu0 0
        %1834 = vmatmul.mubr.bf16.gmra.mrb[0].mxu0 %v1799
        %v1835 = vpop.f32.mrb[0].mxu0
        %v1836 = vadd.f32 %v829, %v1835
        %v1837 = vpop.f32.mrb[0].mxu0
        %v1838 = vpop.f32.mrb[0].mxu0
        %v1839 = vpop.f32.mrb[0].mxu0
        %1840 = vdwg.mxu0
        %v1842 = vsel %vm1039, %v1793, 0
        %1844 = vmatprep.subr.bf16.mxu0 0
        %1845 = vmatpush1.bf16.xpose.msra.mxu0 %v1090
        %1846 = vmatprep.subr.bf16.mxu0 0
        %1847 = vmatpush1.bf16.xpose.msra.mxu0 0
        %1848 = vmatprep.subr.bf16.mxu0 0
        %1849 = vmatpush1.bf16.xpose.msra.mxu0 0
        %1850 = vmatprep.subr.bf16.mxu0 0
        %1851 = vmatpush1.bf16.xpose.msra.mxu0 0
        %1852 = vmatprep.subr.bf16.mxu0 0
        %1853 = vmatpush1.bf16.xpose.msra.mxu0 0
        %1854 = vmatprep.subr.bf16.mxu0 0
        %1855 = vmatpush1.bf16.xpose.msra.mxu0 0
        %1856 = vmatprep.subr.bf16.mxu0 0
        %1857 = vmatpush1.bf16.xpose.msra.mxu0 0
        %1858 = vmatprep.subr.bf16.mxu0 0
        %1859 = vmatpush1.bf16.xpose.msra.mxu0 0
        %1860 = vmatprep.subr.bf16.mxu0 0
        %1861 = vmatpush1.bf16.xpose.msra.mxu0 0
        %1862 = vmatprep.subr.bf16.mxu0 0
        %1863 = vmatpush1.bf16.xpose.msra.mxu0 0
        %1864 = vmatprep.subr.bf16.mxu0 0
        %1865 = vmatpush1.bf16.xpose.msra.mxu0 0
        %1866 = vmatprep.subr.bf16.mxu0 0
        %1867 = vmatpush1.bf16.xpose.msra.mxu0 0
        %1868 = vmatprep.subr.bf16.mxu0 0
        %1869 = vmatpush1.bf16.xpose.msra.mxu0 0
        %1870 = vmatprep.subr.bf16.mxu0 0
        %1871 = vmatpush1.bf16.xpose.msra.mxu0 0
        %1872 = vmatprep.subr.bf16.mxu0 0
        %1873 = vmatpush1.bf16.xpose.msra.mxu0 0
        %1874 = vmatprep.subr.bf16.mxu0 0
        %1875 = vmatpush1.bf16.xpose.msra.mxu0 0
        %1876 = vmatprep.mubr.bf16.mxu0 0
        %1877 = vmatmul.mubr.bf16.gmra.mrb[0].mxu0 %v1842
        %v1878 = vpop.f32.mrb[0].mxu0
        %v1879 = vadd.f32 %v829, %v1878
        %v1880 = vpop.f32.mrb[0].mxu0
        %v1881 = vpop.f32.mrb[0].mxu0
        %v1882 = vpop.f32.mrb[0].mxu0
        %1883 = vdwg.mxu0
        %v1885 = vsel %vm1039, %v1795, 0
        %1887 = vmatprep.subr.bf16.mxu0 0
        %1888 = vmatpush1.bf16.xpose.msra.mxu0 %v1136
        %1889 = vmatprep.subr.bf16.mxu0 0
        %1890 = vmatpush1.bf16.xpose.msra.mxu0 0
        %1891 = vmatprep.subr.bf16.mxu0 0
        %1892 = vmatpush1.bf16.xpose.msra.mxu0 0
        %1893 = vmatprep.subr.bf16.mxu0 0
        %1894 = vmatpush1.bf16.xpose.msra.mxu0 0
        %1895 = vmatprep.subr.bf16.mxu0 0
        %1896 = vmatpush1.bf16.xpose.msra.mxu0 0
        %1897 = vmatprep.subr.bf16.mxu0 0
        %1898 = vmatpush1.bf16.xpose.msra.mxu0 0
        %1899 = vmatprep.subr.bf16.mxu0 0
        %1900 = vmatpush1.bf16.xpose.msra.mxu0 0
        %1901 = vmatprep.subr.bf16.mxu0 0
        %1902 = vmatpush1.bf16.xpose.msra.mxu0 0
        %1903 = vmatprep.subr.bf16.mxu0 0
        %1904 = vmatpush1.bf16.xpose.msra.mxu0 0
        %1905 = vmatprep.subr.bf16.mxu0 0
        %1906 = vmatpush1.bf16.xpose.msra.mxu0 0
        %1907 = vmatprep.subr.bf16.mxu0 0
        %1908 = vmatpush1.bf16.xpose.msra.mxu0 0
        %1909 = vmatprep.subr.bf16.mxu0 0
        %1910 = vmatpush1.bf16.xpose.msra.mxu0 0
        %1911 = vmatprep.subr.bf16.mxu0 0
        %1912 = vmatpush1.bf16.xpose.msra.mxu0 0
        %1913 = vmatprep.subr.bf16.mxu0 0
        %1914 = vmatpush1.bf16.xpose.msra.mxu0 0
        %1915 = vmatprep.subr.bf16.mxu0 0
        %1916 = vmatpush1.bf16.xpose.msra.mxu0 0
        %1917 = vmatprep.subr.bf16.mxu0 0
        %1918 = vmatpush1.bf16.xpose.msra.mxu0 0
        %1919 = vmatprep.mubr.bf16.mxu0 0
        %1920 = vmatmul.mubr.bf16.gmra.mrb[0].mxu0 %v1885
        %v1921 = vpop.f32.mrb[0].mxu0
        %v1922 = vadd.f32 %v829, %v1921
        %v1923 = vpop.f32.mrb[0].mxu0
        %v1924 = vpop.f32.mrb[0].mxu0
        %v1925 = vpop.f32.mrb[0].mxu0
        %1926 = vdwg.mxu0
        %v1928 = vsel %vm1039, %v1797, 0
        %1930 = vmatprep.subr.bf16.mxu0 0
        %1931 = vmatpush1.bf16.xpose.msra.mxu0 %v1182
        %1932 = vmatprep.subr.bf16.mxu0 0
        %1933 = vmatpush1.bf16.xpose.msra.mxu0 0
        %1934 = vmatprep.subr.bf16.mxu0 0
        %1935 = vmatpush1.bf16.xpose.msra.mxu0 0
        %1936 = vmatprep.subr.bf16.mxu0 0
        %1937 = vmatpush1.bf16.xpose.msra.mxu0 0
        %1938 = vmatprep.subr.bf16.mxu0 0
        %1939 = vmatpush1.bf16.xpose.msra.mxu0 0
        %1940 = vmatprep.subr.bf16.mxu0 0
        %1941 = vmatpush1.bf16.xpose.msra.mxu0 0
        %1942 = vmatprep.subr.bf16.mxu0 0
        %1943 = vmatpush1.bf16.xpose.msra.mxu0 0
        %1944 = vmatprep.subr.bf16.mxu0 0
        %1945 = vmatpush1.bf16.xpose.msra.mxu0 0
        %1946 = vmatprep.subr.bf16.mxu0 0
        %1947 = vmatpush1.bf16.xpose.msra.mxu0 0
        %1948 = vmatprep.subr.bf16.mxu0 0
        %1949 = vmatpush1.bf16.xpose.msra.mxu0 0
        %1950 = vmatprep.subr.bf16.mxu0 0
        %1951 = vmatpush1.bf16.xpose.msra.mxu0 0
        %1952 = vmatprep.subr.bf16.mxu0 0
        %1953 = vmatpush1.bf16.xpose.msra.mxu0 0
        %1954 = vmatprep.subr.bf16.mxu0 0
        %1955 = vmatpush1.bf16.xpose.msra.mxu0 0
        %1956 = vmatprep.subr.bf16.mxu0 0
        %1957 = vmatpush1.bf16.xpose.msra.mxu0 0
        %1958 = vmatprep.subr.bf16.mxu0 0
        %1959 = vmatpush1.bf16.xpose.msra.mxu0 0
        %1960 = vmatprep.subr.bf16.mxu0 0
        %1961 = vmatpush1.bf16.xpose.msra.mxu0 0
        %1962 = vmatprep.mubr.bf16.mxu0 0
        %1963 = vmatmul.mubr.bf16.gmra.mrb[0].mxu0 %v1928
        %v1964 = vpop.f32.mrb[0].mxu0
        %v1965 = vadd.f32 %v829, %v1964
        %v1966 = vpop.f32.mrb[0].mxu0
        %v1967 = vpop.f32.mrb[0].mxu0
        %v1968 = vpop.f32.mrb[0].mxu0
        %1969 = vdwg.mxu0
        %v1970 = vsel %vm1039, %v1836, -inf
        %1971 = vmax.xlane.f32.xlu0 %v1970
        %v1972 = vpop.xlane.xlu0 %1971
        %v1973 = vsel %vm1039, %v1879, -inf
        %1974 = vmax.xlane.f32.xlu0 %v1973
        %v1975 = vpop.xlane.xlu0 %1974
        %v1976 = vsel %vm1039, %v1922, -inf
        %1977 = vmax.xlane.f32.xlu0 %v1976
        %v1978 = vpop.xlane.xlu0 %1977
        %v1979 = vsel %vm1039, %v1965, -inf
        %1980 = vmax.xlane.f32.xlu0 %v1979
        %v1981 = vpop.xlane.xlu0 %1980
        %v1982 = vsub.f32 %v1836, %v1972
        %v1983 = vsub.f32 %v1879, %v1975
        %v1984 = vsub.f32 %v1922, %v1978
        %v1985 = vsub.f32 %v1965, %v1981
        %v1986 = vmul.f32 %v1982, 1.442695
        %v1987 = vpow.pop %v1986
        %v1988 = vmul.f32 %v1983, 1.442695
        %v1989 = vpow.pop %v1988
        %v1990 = vmul.f32 %v1984, 1.442695
        %v1991 = vpow.pop %v1990
        %v1992 = vmul.f32 %v1985, 1.442695
        %v1993 = vpow.pop %v1992
        %v1994 = vsel %vm1039, %v1987, 0.0
        %1995 = vadd.xlane.f32.xlu0 %v1994
        %v1996 = vpop.xlane.xlu0 %1995
        %v1997 = vsel %vm1039, %v1989, 0.0
        %1998 = vadd.xlane.f32.xlu0 %v1997
        %v1999 = vpop.xlane.xlu0 %1998
        %v2000 = vsel %vm1039, %v1991, 0.0
        %2001 = vadd.xlane.f32.xlu0 %v2000
        %v2002 = vpop.xlane.xlu0 %2001
        %v2003 = vsel %vm1039, %v1993, 0.0
        %2004 = vadd.xlane.f32.xlu0 %v2003
        %v2005 = vpop.xlane.xlu0 %2004
        %v2006 = vrcp.pop %v1996
        %v2007 = vrcp.pop %v1999
        %v2008 = vrcp.pop %v2002
        %v2009 = vrcp.pop %v2005
        %v2010 = vmul.f32 %v1987, %v2006
        %v2011 = vmul.f32 %v1989, %v2007
        %v2012 = vmul.f32 %v1991, %v2008
        %v2013 = vmul.f32 %v1993, %v2009
        %v2014 = vpack.c.bf16 %v2010, %v2010
        %v2015 = vpack.c.bf16 %v2011, %v2011
        %v2016 = vpack.c.bf16 %v2012, %v2012
        %v2017 = vpack.c.bf16 %v2013, %v2013
        %v2019 = vsel %vm1039, %v2014, 0
        %2021 = vmatprep.subr.bf16.mxu0 0
        %2022 = vmatpush1.bf16.msra.mxu0 %v1279
        %2023 = vmatprep.subr.bf16.mxu0 0
        %2024 = vmatpush1.bf16.msra.mxu0 0
        %2025 = vmatprep.subr.bf16.mxu0 0
        %2026 = vmatpush1.bf16.msra.mxu0 0
        %2027 = vmatprep.subr.bf16.mxu0 0
        %2028 = vmatpush1.bf16.msra.mxu0 0
        %2029 = vmatprep.subr.bf16.mxu0 0
        %2030 = vmatpush1.bf16.msra.mxu0 0
        %2031 = vmatprep.subr.bf16.mxu0 0
        %2032 = vmatpush1.bf16.msra.mxu0 0
        %2033 = vmatprep.subr.bf16.mxu0 0
        %2034 = vmatpush1.bf16.msra.mxu0 0
        %2035 = vmatprep.subr.bf16.mxu0 0
        %2036 = vmatpush1.bf16.msra.mxu0 0
        %2037 = vmatprep.subr.bf16.mxu0 0
        %2038 = vmatpush1.bf16.msra.mxu0 0
        %2039 = vmatprep.subr.bf16.mxu0 0
        %2040 = vmatpush1.bf16.msra.mxu0 0
        %2041 = vmatprep.subr.bf16.mxu0 0
        %2042 = vmatpush1.bf16.msra.mxu0 0
        %2043 = vmatprep.subr.bf16.mxu0 0
        %2044 = vmatpush1.bf16.msra.mxu0 0
        %2045 = vmatprep.subr.bf16.mxu0 0
        %2046 = vmatpush1.bf16.msra.mxu0 0
        %2047 = vmatprep.subr.bf16.mxu0 0
        %2048 = vmatpush1.bf16.msra.mxu0 0
        %2049 = vmatprep.subr.bf16.mxu0 0
        %2050 = vmatpush1.bf16.msra.mxu0 0
        %2051 = vmatprep.subr.bf16.mxu0 0
        %2052 = vmatpush1.bf16.msra.mxu0 0
        %2053 = vmatprep.mubr.bf16.mxu0 0
        %2054 = vmatmul.mubr.bf16.gmra.mrb[0].mxu0 %v2019
        %v2055 = vpop.f32.mrb[0].mxu0
        %v2056 = vadd.f32 0.0, %v2055
        %v2057 = vpop.f32.mrb[0].mxu0
        %v2058 = vpop.f32.mrb[0].mxu0
        %v2059 = vpop.f32.mrb[0].mxu0
        %2060 = vdwg.mxu0
        %v2062 = vsel %vm1039, %v2015, 0
        %2064 = vmatprep.subr.bf16.mxu0 0
        %2065 = vmatpush1.bf16.msra.mxu0 %v1327
        %2066 = vmatprep.subr.bf16.mxu0 0
        %2067 = vmatpush1.bf16.msra.mxu0 0
        %2068 = vmatprep.subr.bf16.mxu0 0
        %2069 = vmatpush1.bf16.msra.mxu0 0
        %2070 = vmatprep.subr.bf16.mxu0 0
        %2071 = vmatpush1.bf16.msra.mxu0 0
        %2072 = vmatprep.subr.bf16.mxu0 0
        %2073 = vmatpush1.bf16.msra.mxu0 0
        %2074 = vmatprep.subr.bf16.mxu0 0
        %2075 = vmatpush1.bf16.msra.mxu0 0
        %2076 = vmatprep.subr.bf16.mxu0 0
        %2077 = vmatpush1.bf16.msra.mxu0 0
        %2078 = vmatprep.subr.bf16.mxu0 0
        %2079 = vmatpush1.bf16.msra.mxu0 0
        %2080 = vmatprep.subr.bf16.mxu0 0
        %2081 = vmatpush1.bf16.msra.mxu0 0
        %2082 = vmatprep.subr.bf16.mxu0 0
        %2083 = vmatpush1.bf16.msra.mxu0 0
        %2084 = vmatprep.subr.bf16.mxu0 0
        %2085 = vmatpush1.bf16.msra.mxu0 0
        %2086 = vmatprep.subr.bf16.mxu0 0
        %2087 = vmatpush1.bf16.msra.mxu0 0
        %2088 = vmatprep.subr.bf16.mxu0 0
        %2089 = vmatpush1.bf16.msra.mxu0 0
        %2090 = vmatprep.subr.bf16.mxu0 0
        %2091 = vmatpush1.bf16.msra.mxu0 0
        %2092 = vmatprep.subr.bf16.mxu0 0
        %2093 = vmatpush1.bf16.msra.mxu0 0
        %2094 = vmatprep.subr.bf16.mxu0 0
        %2095 = vmatpush1.bf16.msra.mxu0 0
        %2096 = vmatprep.mubr.bf16.mxu0 0
        %2097 = vmatmul.mubr.bf16.gmra.mrb[0].mxu0 %v2062
        %v2098 = vpop.f32.mrb[0].mxu0
        %v2099 = vadd.f32 0.0, %v2098
        %v2100 = vpop.f32.mrb[0].mxu0
        %v2101 = vpop.f32.mrb[0].mxu0
        %v2102 = vpop.f32.mrb[0].mxu0
        %2103 = vdwg.mxu0
        %v2105 = vsel %vm1039, %v2016, 0
        %2107 = vmatprep.subr.bf16.mxu0 0
        %2108 = vmatpush1.bf16.msra.mxu0 %v1375
        %2109 = vmatprep.subr.bf16.mxu0 0
        %2110 = vmatpush1.bf16.msra.mxu0 0
        %2111 = vmatprep.subr.bf16.mxu0 0
        %2112 = vmatpush1.bf16.msra.mxu0 0
        %2113 = vmatprep.subr.bf16.mxu0 0
        %2114 = vmatpush1.bf16.msra.mxu0 0
        %2115 = vmatprep.subr.bf16.mxu0 0
        %2116 = vmatpush1.bf16.msra.mxu0 0
        %2117 = vmatprep.subr.bf16.mxu0 0
        %2118 = vmatpush1.bf16.msra.mxu0 0
        %2119 = vmatprep.subr.bf16.mxu0 0
        %2120 = vmatpush1.bf16.msra.mxu0 0
        %2121 = vmatprep.subr.bf16.mxu0 0
        %2122 = vmatpush1.bf16.msra.mxu0 0
        %2123 = vmatprep.subr.bf16.mxu0 0
        %2124 = vmatpush1.bf16.msra.mxu0 0
        %2125 = vmatprep.subr.bf16.mxu0 0
        %2126 = vmatpush1.bf16.msra.mxu0 0
        %2127 = vmatprep.subr.bf16.mxu0 0
        %2128 = vmatpush1.bf16.msra.mxu0 0
        %2129 = vmatprep.subr.bf16.mxu0 0
        %2130 = vmatpush1.bf16.msra.mxu0 0
        %2131 = vmatprep.subr.bf16.mxu0 0
        %2132 = vmatpush1.bf16.msra.mxu0 0
        %2133 = vmatprep.subr.bf16.mxu0 0
        %2134 = vmatpush1.bf16.msra.mxu0 0
        %2135 = vmatprep.subr.bf16.mxu0 0
        %2136 = vmatpush1.bf16.msra.mxu0 0
        %2137 = vmatprep.subr.bf16.mxu0 0
        %2138 = vmatpush1.bf16.msra.mxu0 0
        %2139 = vmatprep.mubr.bf16.mxu0 0
        %2140 = vmatmul.mubr.bf16.gmra.mrb[0].mxu0 %v2105
        %v2141 = vpop.f32.mrb[0].mxu0
        %v2142 = vadd.f32 0.0, %v2141
        %v2143 = vpop.f32.mrb[0].mxu0
        %v2144 = vpop.f32.mrb[0].mxu0
        %v2145 = vpop.f32.mrb[0].mxu0
        %2146 = vdwg.mxu0
        %v2148 = vsel %vm1039, %v2017, 0
        %2150 = vmatprep.subr.bf16.mxu0 0
        %2151 = vmatpush1.bf16.msra.mxu0 %v1423
        %2152 = vmatprep.subr.bf16.mxu0 0
        %2153 = vmatpush1.bf16.msra.mxu0 0
        %2154 = vmatprep.subr.bf16.mxu0 0
        %2155 = vmatpush1.bf16.msra.mxu0 0
        %2156 = vmatprep.subr.bf16.mxu0 0
        %2157 = vmatpush1.bf16.msra.mxu0 0
        %2158 = vmatprep.subr.bf16.mxu0 0
        %2159 = vmatpush1.bf16.msra.mxu0 0
        %2160 = vmatprep.subr.bf16.mxu0 0
        %2161 = vmatpush1.bf16.msra.mxu0 0
        %2162 = vmatprep.subr.bf16.mxu0 0
        %2163 = vmatpush1.bf16.msra.mxu0 0
        %2164 = vmatprep.subr.bf16.mxu0 0
        %2165 = vmatpush1.bf16.msra.mxu0 0
        %2166 = vmatprep.subr.bf16.mxu0 0
        %2167 = vmatpush1.bf16.msra.mxu0 0
        %2168 = vmatprep.subr.bf16.mxu0 0
        %2169 = vmatpush1.bf16.msra.mxu0 0
        %2170 = vmatprep.subr.bf16.mxu0 0
        %2171 = vmatpush1.bf16.msra.mxu0 0
        %2172 = vmatprep.subr.bf16.mxu0 0
        %2173 = vmatpush1.bf16.msra.mxu0 0
        %2174 = vmatprep.subr.bf16.mxu0 0
        %2175 = vmatpush1.bf16.msra.mxu0 0
        %2176 = vmatprep.subr.bf16.mxu0 0
        %2177 = vmatpush1.bf16.msra.mxu0 0
        %2178 = vmatprep.subr.bf16.mxu0 0
        %2179 = vmatpush1.bf16.msra.mxu0 0
        %2180 = vmatprep.subr.bf16.mxu0 0
        %2181 = vmatpush1.bf16.msra.mxu0 0
        %2182 = vmatprep.mubr.bf16.mxu0 0
        %2183 = vmatmul.mubr.bf16.gmra.mrb[0].mxu0 %v2148
        %v2184 = vpop.f32.mrb[0].mxu0
        %v2185 = vadd.f32 0.0, %v2184
        %v2186 = vpop.f32.mrb[0].mxu0
        %v2187 = vpop.f32.mrb[0].mxu0
        %v2188 = vpop.f32.mrb[0].mxu0
        %2189 = vdwg.mxu0
        %2191 = vrot.lane.b32.xlu0 %v2099, 8
        %v2192 = vpop.permute.xlu0 %2191
        %2195 = vrot.lane.b32.xlu0 %v2142, 16
        %v2196 = vpop.permute.xlu0 %2195
        %2199 = vrot.lane.b32.xlu0 %v2185, 24
        %v2200 = vpop.permute.xlu0 %2199
        %v2202 = vsel %vm1039, %v2056, %v2192
        %v2203 = vsel %vm1478, %v2202, %v2196
        %v2204 = vsel %vm1480, %v2203, %v2200
        %v2205 = vpack.c.bf16 %v2204, %v2204
        %v2207 = vsel %vm855, %v2205, 0
        %2209 = vmatprep.subr.bf16.mxu0 0
        %2210 = vmatpush1.bf16.msra.mxu0 %v1497
        %2211 = vmatprep.subr.bf16.mxu0 0
        %2212 = vmatpush1.bf16.msra.mxu0 %v1498
        %2213 = vmatprep.subr.bf16.mxu0 0
        %2214 = vmatpush1.bf16.msra.mxu0 0
        %2215 = vmatprep.subr.bf16.mxu0 0
        %2216 = vmatpush1.bf16.msra.mxu0 0
        %2217 = vmatprep.subr.bf16.mxu0 0
        %2218 = vmatpush1.bf16.msra.mxu0 0
        %2219 = vmatprep.subr.bf16.mxu0 0
        %2220 = vmatpush1.bf16.msra.mxu0 0
        %2221 = vmatprep.subr.bf16.mxu0 0
        %2222 = vmatpush1.bf16.msra.mxu0 0
        %2223 = vmatprep.subr.bf16.mxu0 0
        %2224 = vmatpush1.bf16.msra.mxu0 0
        %2225 = vmatprep.subr.bf16.mxu0 0
        %2226 = vmatpush1.bf16.msra.mxu0 0
        %2227 = vmatprep.subr.bf16.mxu0 0
        %2228 = vmatpush1.bf16.msra.mxu0 0
        %2229 = vmatprep.subr.bf16.mxu0 0
        %2230 = vmatpush1.bf16.msra.mxu0 0
        %2231 = vmatprep.subr.bf16.mxu0 0
        %2232 = vmatpush1.bf16.msra.mxu0 0
        %2233 = vmatprep.subr.bf16.mxu0 0
        %2234 = vmatpush1.bf16.msra.mxu0 0
        %2235 = vmatprep.subr.bf16.mxu0 0
        %2236 = vmatpush1.bf16.msra.mxu0 0
        %2237 = vmatprep.subr.bf16.mxu0 0
        %2238 = vmatpush1.bf16.msra.mxu0 0
        %2239 = vmatprep.subr.bf16.mxu0 0
        %2240 = vmatpush1.bf16.msra.mxu0 0
        %2241 = vmatprep.mubr.bf16.mxu0 0
        %2242 = vmatmul.mubr.bf16.gmra.mrb[0].mxu0 %v2207
        %v2243 = vpop.f32.mrb[0].mxu0
        %v2244 = vadd.f32 %v1487, %v2243
        %v2245 = vpop.f32.mrb[0].mxu0
        %v2246 = vpop.f32.mrb[0].mxu0
        %v2247 = vpop.f32.mrb[0].mxu0
        %2248 = vdwg.mxu0
        %v2249 = vadd.f32 %v1745, %v2244
        %v2250 = vsel %vm855, %v2249, 0.0
        %2251 = vadd.xlane.f32.xlu0 %v2250
        %v2252 = vpop.xlane.xlu0 %2251
        %v2253 = vmul.f32 %v2252, %v859
        %v2254 = vsub.f32 %v2249, %v2253
        %v2255 = vmul.f32 %v2254, %v2254
        %v2256 = vsel %vm855, %v2255, 0.0
        %2257 = vadd.xlane.f32.xlu0 %v2256
        %v2258 = vpop.xlane.xlu0 %2257
        %v2259 = vmul.f32 %v2258, %v859
        %v2260 = vadd.f32 %v2259, 1e-05
        %v2261 = vrsqrt.pop %v2260
        %v2262 = vmul.f32 %v2254, %v2261
        %v2263 = vmul.f32 %v2262, %v1562
        %v2264 = vadd.f32 %v2263, %v1569
        %v2265 = vpack.c.bf16 %v2264, %v2264
        %v2267 = vsel %vm855, %v2265, 0
        %2269 = vmatprep.subr.bf16.mxu0 0
        %2270 = vmatpush1.bf16.msra.mxu0 %v1587
        %2271 = vmatprep.subr.bf16.mxu0 0
        %2272 = vmatpush1.bf16.msra.mxu0 %v1588
        %2273 = vmatprep.subr.bf16.mxu0 0
        %2274 = vmatpush1.bf16.msra.mxu0 0
        %2275 = vmatprep.subr.bf16.mxu0 0
        %2276 = vmatpush1.bf16.msra.mxu0 0
        %2277 = vmatprep.subr.bf16.mxu0 0
        %2278 = vmatpush1.bf16.msra.mxu0 0
        %2279 = vmatprep.subr.bf16.mxu0 0
        %2280 = vmatpush1.bf16.msra.mxu0 0
        %2281 = vmatprep.subr.bf16.mxu0 0
        %2282 = vmatpush1.bf16.msra.mxu0 0
        %2283 = vmatprep.subr.bf16.mxu0 0
        %2284 = vmatpush1.bf16.msra.mxu0 0
        %2285 = vmatprep.subr.bf16.mxu0 0
        %2286 = vmatpush1.bf16.msra.mxu0 0
        %2287 = vmatprep.subr.bf16.mxu0 0
        %2288 = vmatpush1.bf16.msra.mxu0 0
        %2289 = vmatprep.subr.bf16.mxu0 0
        %2290 = vmatpush1.bf16.msra.mxu0 0
        %2291 = vmatprep.subr.bf16.mxu0 0
        %2292 = vmatpush1.bf16.msra.mxu0 0
        %2293 = vmatprep.subr.bf16.mxu0 0
        %2294 = vmatpush1.bf16.msra.mxu0 0
        %2295 = vmatprep.subr.bf16.mxu0 0
        %2296 = vmatpush1.bf16.msra.mxu0 0
        %2297 = vmatprep.subr.bf16.mxu0 0
        %2298 = vmatpush1.bf16.msra.mxu0 0
        %2299 = vmatprep.subr.bf16.mxu0 0
        %2300 = vmatpush1.bf16.msra.mxu0 0
        %2301 = vmatprep.mubr.bf16.mxu0 0
        %2302 = vmatmul.mubr.bf16.gmra.mrb[0].mxu0 %v2267
        %v2303 = vpop.f32.mrb[0].mxu0
        %v2304 = vadd.f32 %v1577, %v2303
        %v2305 = vpop.f32.mrb[0].mxu0
        %v2306 = vpop.f32.mrb[0].mxu0
        %v2307 = vpop.f32.mrb[0].mxu0
        %2308 = vdwg.mxu0
        %v2309 = vmax.f32 %v2304, 0.0
        %v2310 = vpack.c.bf16 %v2309, %v2309
        %2311 = vmatprep.subr.bf16.mxu0 0
        %2312 = vmatpush1.bf16.msra.mxu0 %v1674
        %2313 = vmatprep.subr.bf16.mxu0 0
        %2314 = vmatpush1.bf16.msra.mxu0 %v1675
        %2315 = vmatprep.subr.bf16.mxu0 0
        %2316 = vmatpush1.bf16.msra.mxu0 %v1676
        %2317 = vmatprep.subr.bf16.mxu0 0
        %2318 = vmatpush1.bf16.msra.mxu0 %v1677
        %2319 = vmatprep.subr.bf16.mxu0 0
        %2320 = vmatpush1.bf16.msra.mxu0 %v1678
        %2321 = vmatprep.subr.bf16.mxu0 0
        %2322 = vmatpush1.bf16.msra.mxu0 %v1679
        %2323 = vmatprep.subr.bf16.mxu0 0
        %2324 = vmatpush1.bf16.msra.mxu0 %v1680
        %2325 = vmatprep.subr.bf16.mxu0 0
        %2326 = vmatpush1.bf16.msra.mxu0 %v1681
        %2327 = vmatprep.subr.bf16.mxu0 0
        %2328 = vmatpush1.bf16.msra.mxu0 0
        %2329 = vmatprep.subr.bf16.mxu0 0
        %2330 = vmatpush1.bf16.msra.mxu0 0
        %2331 = vmatprep.subr.bf16.mxu0 0
        %2332 = vmatpush1.bf16.msra.mxu0 0
        %2333 = vmatprep.subr.bf16.mxu0 0
        %2334 = vmatpush1.bf16.msra.mxu0 0
        %2335 = vmatprep.subr.bf16.mxu0 0
        %2336 = vmatpush1.bf16.msra.mxu0 0
        %2337 = vmatprep.subr.bf16.mxu0 0
        %2338 = vmatpush1.bf16.msra.mxu0 0
        %2339 = vmatprep.subr.bf16.mxu0 0
        %2340 = vmatpush1.bf16.msra.mxu0 0
        %2341 = vmatprep.subr.bf16.mxu0 0
        %2342 = vmatpush1.bf16.msra.mxu0 0
        %2343 = vmatprep.mubr.bf16.mxu0 0
        %2344 = vmatmul.mubr.bf16.gmra.mrb[0].mxu0 %v2310
        %v2345 = vpop.f32.mrb[0].mxu0
        %v2346 = vadd.f32 %v1640, %v2345
        %v2347 = vpop.f32.mrb[0].mxu0
        %v2348 = vpop.f32.mrb[0].mxu0
        %v2349 = vpop.f32.mrb[0].mxu0
        %2350 = vdwg.mxu0
        %v2351 = vadd.f32 %v2264, %v2346
        %2352 = vst.msk [vmem:[%s719] sm:$0xff] %vm855, %v2351
        %s2353 = sand.u32 %s525, 1
        %s2354 = scalar_lea.sflag [#allocation3], %s2353
        %s2355 = sand.u32 %s525, 1
        %s2356 = smul.addr %s2355, 8
        %s2357 = scalar_lea.vmem [#allocation2], %s2356
        // Predicated region
        $region105: #{crossmodal_forward.1} parent=103 // pred_check
          %p2358 = pneg %p535
        $region106: #{crossmodal_forward.1} parent=103 // pred_check_branch
          %2360 = sbr.rel (%p2358) target = $region108
        $region107: #{crossmodal_forward.1} parent=103 // pred_region
          %s2362 = ssub.s32 128, 128
          %2363 = vsyncadd %s2354, %s2362
          %s2364 = sadd.s32 %s40, %s39
          %s2365 = smul.addr %s2364, 128
          %s2366 = scalar_lea.hbm %s21, %s2365
          %s2368 = sshll.u32 %s2357, 4
          %s2369 = int_to_ptr.vmem [resolvable:$true] %s2368
          %2371 = dma.vmem_to_hbm [thread:$0]  %s2369, 128, %s2366, %s2354
        $region108: #{crossmodal_forward.1} parent=103 // pred_fallthru
          _
      $region104: #{crossmodal_forward.1} parent=5 // pred_fallthru
        _
      %p2372 = scmp.le.s32.totalorder 2, %s30
      // Predicated region
      $region109: #{crossmodal_forward.1} parent=5 // pred_check
        %p2373 = pneg %p2372
      $region110: #{crossmodal_forward.1} parent=5 // pred_check_branch
        %2375 = sbr.rel (%p2373) target = $region112
      $region111: #{crossmodal_forward.1} parent=5 // pred_region
        %s2376 = ssub.s32 %s30, 2
        // Predicated region
        $region113: #{crossmodal_forward.1} parent=111 // pred_check
          %p2377 = pneg %p541
        $region114: #{crossmodal_forward.1} parent=111 // pred_check_branch
          %2379 = sbr.rel (%p2377) target = $region116
        $region115: #{crossmodal_forward.1} parent=111 // pred_region
          %s2380 = sand.u32 %s526, 1
          %s2381 = scalar_lea.sflag [#allocation3], %s2380
          %s2382 = sand.u32 %s526, 1
          %s2383 = smul.addr %s2382, 8
          %s2384 = scalar_lea.vmem [#allocation2], %s2383
          %2385 = dma.done %s2381, 128
        $region116: #{crossmodal_forward.1} parent=111 // pred_fallthru
          _
      $region112: #{crossmodal_forward.1} parent=5 // pred_fallthru
        _
    $region6: #{crossmodal_forward.1} parent=1 // loop_footer
      %s34 = sadd.s32 1, %s30
    $region7: #{crossmodal_forward.1} parent=1 // loop_footer_branch
      %29 = sbr.rel target = $region3
    $region8: #{crossmodal_forward.1} parent=1 // loop_exit
      _
    %2386 = vsyncpa [#allocation3], 1
    %s2387 = scalar_lea.sflag [#allocation3], 1
    %2388 = vsyncpa %s2387, 1

</llo_original>
